<compile_context>
chip_gen: v6e
topology: v6e:2x2x1
jax: 0.10.0
libtpu: 0.0.40
codegen_flags: <defaults>
</compile_context>

<pallas_src>
import math
from functools import partial

import jax
import jax.numpy as jnp
from jax.experimental import pallas as pl
from jax.experimental.pallas import tpu as pltpu


_VMEM_LIMIT = 64 * 1024 * 1024
_BN_EPS = 1e-5


# --------------------------------- helpers -----------------------------------

def _gelu(x):
    """Exact (erf-based) GELU.  erf via Abramowitz&Stegun 7.1.26 (|err| < 1.5e-7),
    avoiding reliance on an erf primitive inside Mosaic.  (Optionally the divide could
    use pl.reciprocal(approx=True); kept exact since the kernels are not VALU-bound.)"""
    a1, a2, a3, a4, a5 = 0.254829592, -0.284496736, 1.421413741, -1.453152027, 1.061405429
    p = 0.3275911
    z = x * 0.7071067811865476
    az = jnp.abs(z)
    t = 1.0 / (1.0 + p * az)
    poly = ((((a5 * t + a4) * t + a3) * t + a2) * t + a1) * t
    erf = 1.0 - poly * jnp.exp(-az * az)
    erf = jnp.where(z >= 0, erf, -erf)
    return 0.5 * x * (1.0 + erf)


def bn_scale_shift(stats, count, gamma, beta):
    """Finish BatchNorm2d (training-mode batch statistics) from the per-image partial
    sums emitted by the conv kernels; returns per-channel (scale, shift) so that
    normalize(x) == scale * x + shift."""
    s = jnp.sum(stats.astype(jnp.float32), axis=0)          # (2, C)
    mean = s[0] / count
    var = jnp.maximum(s[1] / count - mean * mean, 0.0)       # biased var (torch training mode)
    inv = jax.lax.rsqrt(var + _BN_EPS)
    scale = gamma * inv
    shift = beta - mean * scale
    return scale, shift


# ------------------- fused cylindrical 3x3 conv (stride 1) -------------------

def _conv3x3_kernel(x_ref, w_ref, b_ref, sc_ref, sh_ref, y_ref, st_ref,
                    *, H, W, Cin, Cout, apply_act):
    # x_ref : (1, H+2, W+2, Cin) bf16 — zero-padded H, circularly padded W.
    # w_ref : (9, Cin, Cout) bf16 ; b_ref: (1, Cout) f32 ; sc/sh: (1, Cin) f32.
    # y_ref : (1, H, W, Cout) bf16 ; st_ref: (1, 2, Cout) f32 partial BN stats.
    Hp = H + 2
    if apply_act:
        # Fused prologue: previous layer's BatchNorm (scale/shift) + GELU, applied to the
        # raw (pre-activation) padded input.  The zero H-pad rows must stay zero AFTER the
        # activation, so mask them out (this also covers the corner cells).
        xf = x_ref[0].astype(jnp.float32)
        xf = xf * sc_ref[...] + sh_ref[...]
        xf = _gelu(xf)
        rows = jax.lax.broadcasted_iota(jnp.int32, xf.shape, 0)
        keep = jnp.logical_and(rows > 0, rows < Hp - 1)
        xf = jnp.where(keep, xf, 0.0)
        xb = xf.astype(jnp.bfloat16)
    else:
        xb = x_ref[0]

    # In-kernel im2col: 9 taps as value slices, 9 MXU dots, f32 accumulation.
    acc = None
    for kh in range(3):
        for kw in range(3):
            tap = xb[kh:kh + H, kw:kw + W, :].reshape(H * W, Cin)
            part = jnp.dot(tap, w_ref[kh * 3 + kw], preferred_element_type=jnp.float32)
            acc = part if acc is None else acc + part
    acc = acc + b_ref[...]

    # Partial BatchNorm statistics of this image's conv output (from the f32 accumulator).
    st_ref[0, 0:1, :] = jnp.sum(acc, axis=0, keepdims=True)
    st_ref[0, 1:2, :] = jnp.sum(acc * acc, axis=0, keepdims=True)

    y_ref[0] = acc.reshape(H, W, Cout).astype(y_ref.dtype)


def conv3x3_fused(x, w, b, scale=None, shift=None, *, apply_act):
    """CylindricalConv2D(k=3, s=1) with in-kernel im2col, fused bias, optional fused
    BN+GELU prologue on the raw input, and per-image partial BN stats as a 2nd output."""
    N, H, W, Cin = x.shape
    Cout = w.shape[-1]
    xb = x.astype(jnp.bfloat16)
    # torch order: zero-pad H first, then circular-pad W (corners end up zero).
    xp = jnp.pad(xb, ((0, 0), (1, 1), (0, 0), (0, 0)))
    xp = jnp.concatenate([xp[:, :, -1:, :], xp, xp[:, :, :1, :]], axis=2)
    if scale is None:
        scale = jnp.ones((1, Cin), jnp.float32)
        shift = jnp.zeros((1, Cin), jnp.float32)
    kern = partial(_conv3x3_kernel, H=H, W=W, Cin=Cin, Cout=Cout, apply_act=apply_act)
    y, st = pl.pallas_call(
        kern,
        out_shape=(jax.ShapeDtypeStruct((N, H, W, Cout), jnp.bfloat16),
                   jax.ShapeDtypeStruct((N, 2, Cout), jnp.float32)),
        grid=(N,),
        in_specs=[
            pl.BlockSpec((1, H + 2, W + 2, Cin), lambda n: (n, 0, 0, 0)),
            pl.BlockSpec((9, Cin, Cout), lambda n: (0, 0, 0)),
            pl.BlockSpec((1, Cout), lambda n: (0, 0)),
            pl.BlockSpec((1, Cin), lambda n: (0, 0)),
            pl.BlockSpec((1, Cin), lambda n: (0, 0)),
        ],
        out_specs=(pl.BlockSpec((1, H, W, Cout), lambda n: (n, 0, 0, 0)),
                   pl.BlockSpec((1, 2, Cout), lambda n: (n, 0, 0))),
        compiler_params=pltpu.CompilerParams(
            dimension_semantics=("parallel",),
            vmem_limit_bytes=_VMEM_LIMIT),
    )(xp,
      w.reshape(9, Cin, Cout).astype(jnp.bfloat16),
      b.reshape(1, Cout).astype(jnp.float32),
      scale.reshape(1, Cin).astype(jnp.float32),
      shift.reshape(1, Cin).astype(jnp.float32))
    return y, st


# ------------- cylindrical transposed conv (k=3, s=2), 4-phase ---------------

def _convt_kernel(x_ref, w_ref, b_ref, p00_ref, p01_ref, p10_ref, p11_ref, *, h, w, Cin):
    # x_ref : (1, h+1, w+1, Cin) f32 — one zero row on top, one circular column on the left,
    #         so [1:,1:] = x[i,j], [1:,:-1] = x[i,j-1] (wrap), [:-1,1:] = x[i-1,j] (zero).
    # Output phase (pr, pc) lands at interleaved position (2i+pr, 2j+pc):
    #   p00 = a*w00 + b*w02 + c*w20 + d*w22 ; p01 = a*w01 + c*w21
    #   p10 = a*w10 + b*w12                 ; p11 = a*w11          (+ bias each)
    xf = x_ref[0]
    a = xf[1:, 1:, :].reshape(h * w, Cin).astype(jnp.bfloat16)
    bl = xf[1:, :w, :].reshape(h * w, Cin).astype(jnp.bfloat16)
    cu = xf[:h, 1:, :].reshape(h * w, Cin).astype(jnp.bfloat16)
    du = xf[:h, :w, :].reshape(h * w, Cin).astype(jnp.bfloat16)

    def mm(t, k):
        return jnp.dot(t, w_ref[k], preferred_element_type=jnp.float32)

    bias = b_ref[...]
    p00 = mm(a, 0) + mm(bl, 2) + mm(cu, 6) + mm(du, 8) + bias
    p01 = mm(a, 1) + mm(cu, 7) + bias
    p10 = mm(a, 3) + mm(bl, 5) + bias
    p11 = mm(a, 4) + bias

    Cout = p00_ref.shape[-1]
    p00_ref[0] = p00.reshape(h, w, Cout).astype(p00_ref.dtype)
    p01_ref[0] = p01.reshape(h, w, Cout).astype(p01_ref.dtype)
    p10_ref[0] = p10.reshape(h, w, Cout).astype(p10_ref.dtype)
    p11_ref[0] = p11.reshape(h, w, Cout).astype(p11_ref.dtype)


def cyl_conv_transpose_2x(x, wt, bt):
    """CylindricalConvTranspose2D(k=3, stride=2) via sub-pixel (4-phase) decomposition:
    9 small matmuls on the un-dilated input, one image per output parity phase, then a
    cheap XLA interleave (stack + free reshape).  No dilated zero tensor, no 9x im2col."""
    N, h, w, Cin = x.shape
    Cout = wt.shape[-1]
    xf = x.astype(jnp.float32)
    xw = jnp.concatenate([xf[:, :, -1:, :], xf], axis=2)        # circular column on the left
    xp = jnp.pad(xw, ((0, 0), (1, 0), (0, 0), (0, 0)))          # zero row on top
    kern = partial(_convt_kernel, h=h, w=w, Cin=Cin)
    outs = pl.pallas_call(
        kern,
        out_shape=tuple(jax.ShapeDtypeStruct((N, h, w, Cout), jnp.bfloat16) for _ in range(4)),
        grid=(N,),
        in_specs=[
            pl.BlockSpec((1, h + 1, w + 1, Cin), lambda n: (n, 0, 0, 0)),
            pl.BlockSpec((9, Cin, Cout), lambda n: (0, 0, 0)),
            pl.BlockSpec((1, Cout), lambda n: (0, 0)),
        ],
        out_specs=tuple(pl.BlockSpec((1, h, w, Cout), lambda n: (n, 0, 0, 0)) for _ in range(4)),
        compiler_params=pltpu.CompilerParams(
            dimension_semantics=("parallel",),
            vmem_limit_bytes=_VMEM_LIMIT),
    )(xp, wt.reshape(9, Cin, Cout).astype(jnp.bfloat16), bt.reshape(1, Cout).astype(jnp.float32))
    p00, p01, p10, p11 = outs
    top = jnp.stack([p00, p01], axis=-2)          # (N, h, w, 2, Cout): even output rows
    bot = jnp.stack([p10, p11], axis=-2)          # odd output rows
    y = jnp.stack([top, bot], axis=2)             # (N, h, 2, w, 2, Cout)
    return y.reshape(N, 2 * h, 2 * w, Cout)


# ----------------- fused BN2 + GELU + torch.cat([x2, x1], 1) ------------------

def _concat_bn_gelu_kernel(x2_ref, y_ref, sc_ref, sh_ref, o_ref, *, C2):
    o_ref[0, :, 0:C2] = x2_ref[0]
    yf = y_ref[0].astype(jnp.float32) * sc_ref[...] + sh_ref[...]
    o_ref[0, :, C2:] = _gelu(yf)


def concat_bn_gelu(x2, y, scale, shift):
    """out[..., :C2] = x2 ; out[..., C2:] = GELU(scale*y + shift): the final BatchNorm+GELU
    of the Down block fused with the channel concat, one HBM write of the final tensor."""
    N, H, W, C2 = x2.shape
    Co = y.shape[-1]
    M = H * W
    kern = partial(_concat_bn_gelu_kernel, C2=C2)
    out = pl.pallas_call(
        kern,
        out_shape=jax.ShapeDtypeStruct((N, M, C2 + Co), jnp.float32),
        grid=(N,),
        in_specs=[
            pl.BlockSpec((1, M, C2), lambda n: (n, 0, 0)),
            pl.BlockSpec((1, M, Co), lambda n: (n, 0, 0)),
            pl.BlockSpec((1, Co), lambda n: (0, 0)),
            pl.BlockSpec((1, Co), lambda n: (0, 0)),
        ],
        out_specs=pl.BlockSpec((1, M, C2 + Co), lambda n: (n, 0, 0)),
        compiler_params=pltpu.CompilerParams(
            dimension_semantics=("parallel",),
            vmem_limit_bytes=_VMEM_LIMIT),
    )(x2.reshape(N, M, C2).astype(jnp.float32),
      y.reshape(N, M, Co),
      scale.reshape(1, Co).astype(jnp.float32),
      shift.reshape(1, Co).astype(jnp.float32))
    return out.reshape(N, H, W, C2 + Co)


# --------------------------------- Up.forward --------------------------------

def up_forward(params, x1_nchw, x2_nchw, film_index):
    # film=False (default): film_index is indexed (torch parity) but unused.
    _ = film_index[:, 0].astype(jnp.int32)

    x1 = jnp.transpose(x1_nchw, (0, 2, 3, 1))                     # NCHW -> NHWC
    x2 = jnp.transpose(x2_nchw, (0, 2, 3, 1))

    # self.up : CylindricalConvTranspose2D(k=3, s=2)
    y0 = cyl_conv_transpose_2x(x1, params["wt"], params["bt"])    # (N, 2h, 2w, Co) bf16

    # self.conv : Down(Co, Co, down=False)
    y1, st1 = conv3x3_fused(y0, params["w1"], params["b1"], apply_act=False)
    n, hh, ww, _ = y1.shape
    sc1, sh1 = bn_scale_shift(st1, n * hh * ww, params["g1"], params["be1"])
    # BN1 + GELU fused into conv_2's input load; conv_2 emits partial BN2 stats.
    y2, st2 = conv3x3_fused(y1, params["w2"], params["b2"], sc1, sh1, apply_act=True)
    sc2, sh2 = bn_scale_shift(st2, n * hh * ww, params["g2"], params["be2"])

    # crop (torch drops the last column / row when the skip connection is smaller)
    if y2.shape[2] != x2.shape[2]:
        y2 = y2[:, :, : x2.shape[2], :]
    if y2.shape[1] != x2.shape[1]:
        y2 = y2[:, : x2.shape[1], :, :]

    out = concat_bn_gelu(x2, y2, sc2, sh2)                        # (N, H2, W2, C2+Co) f32
    return jnp.transpose(out, (0, 3, 1, 2))                       # back to NCHW like torch


# --------------------------------- parameters ---------------------------------

def init_up_params(key, in_channels, out_channels):
    ks = jax.random.split(key, 3)

    def conv_init(k, cin, cout):
        kw_, kb_ = jax.random.split(k)
        bound = 1.0 / math.sqrt(cin * 9)
        w = jax.random.uniform(kw_, (3, 3, cin, cout), jnp.float32, -bound, bound)
        b = jax.random.uniform(kb_, (cout,), jnp.float32, -bound, bound)
        return w, b

    wt, bt = conv_init(ks[0], in_channels, out_channels)   # ConvTranspose weight, (kh, kw, Cin, Cout)
    w1, b1 = conv_init(ks[1], out_channels, out_channels)
    w2, b2 = conv_init(ks[2], out_channels, out_channels)
    ones = jnp.ones((out_channels,), jnp.float32)
    zeros = jnp.zeros((out_channels,), jnp.float32)
    # NOTE: the module's unused CylindricalConvTranspose2D._bias parameter and the
    # film/attn branches (off by default) do not participate in the forward pass.
    return dict(wt=wt, bt=bt, w1=w1, b1=b1, w2=w2, b2=b2,
                g1=ones, be1=zeros, g2=ones, be2=zeros)


# ------------------------------------ main ------------------------------------

if __name__ == "__main__":
    key = jax.random.PRNGKey(0)
    k1, k2, kp = jax.random.split(key, 3)

    batch, in_ch, out_ch = 2, 32, 16
    h, w = 8, 8                                   # x1 spatial; x2 / output spatial = (16, 16)

    x1 = jax.random.normal(k1, (batch, in_ch, h, w), jnp.float32)            # NCHW like torch
    x2 = jax.random.normal(k2, (batch, out_ch, 2 * h, 2 * w), jnp.float32)   # skip connection
    film_index = jnp.zeros((batch, 1), jnp.int32)
    params = init_up_params(kp, in_ch, out_ch)

    fwd = jax.jit(partial(up_forward, params))
    y = fwd(x1, x2, film_index)
    jax.block_until_ready(y)
    assert y.shape == (batch, out_ch + out_ch, 2 * h, 2 * w), y.shape
    assert bool(jnp.all(jnp.isfinite(y)))
    print("KERNEL_OK")
</pallas_src>

<mosaic_0001>
module attributes {stable_mosaic.version = 11 : i64} {
  func.func @_convt_kernel(%arg0: i32, %arg1: memref<1x9x9x32xf32, #tpu.memory_space<vmem>>, %arg2: memref<9x32x16xbf16, #tpu.memory_space<vmem>>, %arg3: memref<1x16xf32, #tpu.memory_space<vmem>>, %arg4: memref<1x8x8x16xbf16, #tpu.memory_space<vmem>>, %arg5: memref<1x8x8x16xbf16, #tpu.memory_space<vmem>>, %arg6: memref<1x8x8x16xbf16, #tpu.memory_space<vmem>>, %arg7: memref<1x8x8x16xbf16, #tpu.memory_space<vmem>>) attributes {dimension_semantics = [#tpu.dimension_semantics<parallel>], iteration_bounds = array<i64: 2>, scalar_prefetch = 0 : i64, scratch_operands = 0 : i64, tpu.core_type = #tpu.core_type<tc>, window_params = [{transform_indices = @transform_0, window_bounds = array<i64: 1, 9, 9, 32>}, {pipeline_mode = #tpu.pipeline_mode<synchronous>, transform_indices = @transform_1, window_bounds = array<i64: 9, 32, 16>}, {pipeline_mode = #tpu.pipeline_mode<synchronous>, transform_indices = @transform_2, window_bounds = array<i64: 1, 16>}, {transform_indices = @transform_3, window_bounds = array<i64: 1, 8, 8, 16>}, {transform_indices = @transform_4, window_bounds = array<i64: 1, 8, 8, 16>}, {transform_indices = @transform_5, window_bounds = array<i64: 1, 8, 8, 16>}, {transform_indices = @transform_6, window_bounds = array<i64: 1, 8, 8, 16>}]} {
    %c0 = arith.constant 0 : index
    %c0_0 = arith.constant 0 : index
    %c0_1 = arith.constant 0 : index
    %c0_2 = arith.constant 0 : index
    %0 = vector.load %arg1[%c0, %c0_0, %c0_1, %c0_2] : memref<1x9x9x32xf32, #tpu.memory_space<vmem>>, vector<1x9x9x32xf32>
    %1 = vector.shape_cast %0 : vector<1x9x9x32xf32> to vector<9x9x32xf32>
    %2 = vector.extract_strided_slice %1 {offsets = [1, 1, 0], sizes = [8, 8, 32], strides = [1, 1, 1]} : vector<9x9x32xf32> to vector<8x8x32xf32>
    %3 = vector.shape_cast %2 : vector<8x8x32xf32> to vector<64x32xf32>
    %4 = arith.truncf %3 : vector<64x32xf32> to vector<64x32xbf16>
    %5 = vector.extract_strided_slice %1 {offsets = [1, 0, 0], sizes = [8, 8, 32], strides = [1, 1, 1]} : vector<9x9x32xf32> to vector<8x8x32xf32>
    %6 = vector.shape_cast %5 : vector<8x8x32xf32> to vector<64x32xf32>
    %7 = arith.truncf %6 : vector<64x32xf32> to vector<64x32xbf16>
    %8 = vector.extract_strided_slice %1 {offsets = [0, 1, 0], sizes = [8, 8, 32], strides = [1, 1, 1]} : vector<9x9x32xf32> to vector<8x8x32xf32>
    %9 = vector.shape_cast %8 : vector<8x8x32xf32> to vector<64x32xf32>
    %10 = arith.truncf %9 : vector<64x32xf32> to vector<64x32xbf16>
    %11 = vector.extract_strided_slice %1 {offsets = [0, 0, 0], sizes = [8, 8, 32], strides = [1, 1, 1]} : vector<9x9x32xf32> to vector<8x8x32xf32>
    %12 = vector.shape_cast %11 : vector<8x8x32xf32> to vector<64x32xf32>
    %13 = arith.truncf %12 : vector<64x32xf32> to vector<64x32xbf16>
    %c0_3 = arith.constant 0 : index
    %c0_4 = arith.constant 0 : index
    %14 = vector.load %arg3[%c0_3, %c0_4] : memref<1x16xf32, #tpu.memory_space<vmem>>, vector<1x16xf32>
    %c0_5 = arith.constant 0 : index
    %c0_6 = arith.constant 0 : index
    %c0_7 = arith.constant 0 : index
    %15 = vector.load %arg2[%c0_5, %c0_6, %c0_7] : memref<9x32x16xbf16, #tpu.memory_space<vmem>>, vector<1x32x16xbf16>
    %16 = vector.shape_cast %15 : vector<1x32x16xbf16> to vector<32x16xbf16>
    %cst = arith.constant dense<0.000000e+00> : vector<64x16xf32>
    %17 = tpu.matmul %4, %16, %cst {dimension_numbers = #tpu.dot_dimension_numbers<[1], [0], [0], [1], [0, 0, 1, 1], [], []>} : vector<64x32xbf16>, vector<32x16xbf16>, vector<64x16xf32> -> vector<64x16xf32>
    %c2 = arith.constant 2 : index
    %c0_8 = arith.constant 0 : index
    %c0_9 = arith.constant 0 : index
    %18 = vector.load %arg2[%c2, %c0_8, %c0_9] : memref<9x32x16xbf16, #tpu.memory_space<vmem>>, vector<1x32x16xbf16>
    %19 = vector.shape_cast %18 : vector<1x32x16xbf16> to vector<32x16xbf16>
    %cst_10 = arith.constant dense<0.000000e+00> : vector<64x16xf32>
    %20 = tpu.matmul %7, %19, %cst_10 {dimension_numbers = #tpu.dot_dimension_numbers<[1], [0], [0], [1], [0, 0, 1, 1], [], []>} : vector<64x32xbf16>, vector<32x16xbf16>, vector<64x16xf32> -> vector<64x16xf32>
    %21 = arith.addf %17, %20 : vector<64x16xf32>
    %c6 = arith.constant 6 : index
    %c0_11 = arith.constant 0 : index
    %c0_12 = arith.constant 0 : index
    %22 = vector.load %arg2[%c6, %c0_11, %c0_12] : memref<9x32x16xbf16, #tpu.memory_space<vmem>>, vector<1x32x16xbf16>
    %23 = vector.shape_cast %22 : vector<1x32x16xbf16> to vector<32x16xbf16>
    %cst_13 = arith.constant dense<0.000000e+00> : vector<64x16xf32>
    %24 = tpu.matmul %10, %23, %cst_13 {dimension_numbers = #tpu.dot_dimension_numbers<[1], [0], [0], [1], [0, 0, 1, 1], [], []>} : vector<64x32xbf16>, vector<32x16xbf16>, vector<64x16xf32> -> vector<64x16xf32>
    %25 = arith.addf %21, %24 : vector<64x16xf32>
    %c8 = arith.constant 8 : index
    %c0_14 = arith.constant 0 : index
    %c0_15 = arith.constant 0 : index
    %26 = vector.load %arg2[%c8, %c0_14, %c0_15] : memref<9x32x16xbf16, #tpu.memory_space<vmem>>, vector<1x32x16xbf16>
    %27 = vector.shape_cast %26 : vector<1x32x16xbf16> to vector<32x16xbf16>
    %cst_16 = arith.constant dense<0.000000e+00> : vector<64x16xf32>
    %28 = tpu.matmul %13, %27, %cst_16 {dimension_numbers = #tpu.dot_dimension_numbers<[1], [0], [0], [1], [0, 0, 1, 1], [], []>} : vector<64x32xbf16>, vector<32x16xbf16>, vector<64x16xf32> -> vector<64x16xf32>
    %29 = arith.addf %25, %28 : vector<64x16xf32>
    %30 = vector.broadcast %14 : vector<1x16xf32> to vector<64x16xf32>
    %31 = arith.addf %29, %30 : vector<64x16xf32>
    %c1 = arith.constant 1 : index
    %c0_17 = arith.constant 0 : index
    %c0_18 = arith.constant 0 : index
    %32 = vector.load %arg2[%c1, %c0_17, %c0_18] : memref<9x32x16xbf16, #tpu.memory_space<vmem>>, vector<1x32x16xbf16>
    %33 = vector.shape_cast %32 : vector<1x32x16xbf16> to vector<32x16xbf16>
    %cst_19 = arith.constant dense<0.000000e+00> : vector<64x16xf32>
    %34 = tpu.matmul %4, %33, %cst_19 {dimension_numbers = #tpu.dot_dimension_numbers<[1], [0], [0], [1], [0, 0, 1, 1], [], []>} : vector<64x32xbf16>, vector<32x16xbf16>, vector<64x16xf32> -> vector<64x16xf32>
    %c7 = arith.constant 7 : index
    %c0_20 = arith.constant 0 : index
    %c0_21 = arith.constant 0 : index
    %35 = vector.load %arg2[%c7, %c0_20, %c0_21] : memref<9x32x16xbf16, #tpu.memory_space<vmem>>, vector<1x32x16xbf16>
    %36 = vector.shape_cast %35 : vector<1x32x16xbf16> to vector<32x16xbf16>
    %cst_22 = arith.constant dense<0.000000e+00> : vector<64x16xf32>
    %37 = tpu.matmul %10, %36, %cst_22 {dimension_numbers = #tpu.dot_dimension_numbers<[1], [0], [0], [1], [0, 0, 1, 1], [], []>} : vector<64x32xbf16>, vector<32x16xbf16>, vector<64x16xf32> -> vector<64x16xf32>
    %38 = arith.addf %34, %37 : vector<64x16xf32>
    %39 = vector.broadcast %14 : vector<1x16xf32> to vector<64x16xf32>
    %40 = arith.addf %38, %39 : vector<64x16xf32>
    %c3 = arith.constant 3 : index
    %c0_23 = arith.constant 0 : index
    %c0_24 = arith.constant 0 : index
    %41 = vector.load %arg2[%c3, %c0_23, %c0_24] : memref<9x32x16xbf16, #tpu.memory_space<vmem>>, vector<1x32x16xbf16>
    %42 = vector.shape_cast %41 : vector<1x32x16xbf16> to vector<32x16xbf16>
    %cst_25 = arith.constant dense<0.000000e+00> : vector<64x16xf32>
    %43 = tpu.matmul %4, %42, %cst_25 {dimension_numbers = #tpu.dot_dimension_numbers<[1], [0], [0], [1], [0, 0, 1, 1], [], []>} : vector<64x32xbf16>, vector<32x16xbf16>, vector<64x16xf32> -> vector<64x16xf32>
    %c5 = arith.constant 5 : index
    %c0_26 = arith.constant 0 : index
    %c0_27 = arith.constant 0 : index
    %44 = vector.load %arg2[%c5, %c0_26, %c0_27] : memref<9x32x16xbf16, #tpu.memory_space<vmem>>, vector<1x32x16xbf16>
    %45 = vector.shape_cast %44 : vector<1x32x16xbf16> to vector<32x16xbf16>
    %cst_28 = arith.constant dense<0.000000e+00> : vector<64x16xf32>
    %46 = tpu.matmul %7, %45, %cst_28 {dimension_numbers = #tpu.dot_dimension_numbers<[1], [0], [0], [1], [0, 0, 1, 1], [], []>} : vector<64x32xbf16>, vector<32x16xbf16>, vector<64x16xf32> -> vector<64x16xf32>
    %47 = arith.addf %43, %46 : vector<64x16xf32>
    %48 = vector.broadcast %14 : vector<1x16xf32> to vector<64x16xf32>
    %49 = arith.addf %47, %48 : vector<64x16xf32>
    %c4 = arith.constant 4 : index
    %c0_29 = arith.constant 0 : index
    %c0_30 = arith.constant 0 : index
    %50 = vector.load %arg2[%c4, %c0_29, %c0_30] : memref<9x32x16xbf16, #tpu.memory_space<vmem>>, vector<1x32x16xbf16>
    %51 = vector.shape_cast %50 : vector<1x32x16xbf16> to vector<32x16xbf16>
    %cst_31 = arith.constant dense<0.000000e+00> : vector<64x16xf32>
    %52 = tpu.matmul %4, %51, %cst_31 {dimension_numbers = #tpu.dot_dimension_numbers<[1], [0], [0], [1], [0, 0, 1, 1], [], []>} : vector<64x32xbf16>, vector<32x16xbf16>, vector<64x16xf32> -> vector<64x16xf32>
    %53 = vector.broadcast %14 : vector<1x16xf32> to vector<64x16xf32>
    %54 = arith.addf %52, %53 : vector<64x16xf32>
    %55 = vector.shape_cast %31 : vector<64x16xf32> to vector<8x8x16xf32>
    %56 = arith.truncf %55 : vector<8x8x16xf32> to vector<8x8x16xbf16>
    %c0_32 = arith.constant 0 : index
    %c0_33 = arith.constant 0 : index
    %c0_34 = arith.constant 0 : index
    %c0_35 = arith.constant 0 : index
    %57 = vector.load %arg4[%c0_32, %c0_33, %c0_34, %c0_35] : memref<1x8x8x16xbf16, #tpu.memory_space<vmem>>, vector<1x8x8x16xbf16>
    %58 = vector.shape_cast %57 : vector<1x8x8x16xbf16> to vector<8x8x16xbf16>
    %59 = vector.shape_cast %56 : vector<8x8x16xbf16> to vector<1x8x8x16xbf16>
    tpu.vector_store %arg4[%c0_32, %c0_33, %c0_34, %c0_35], %59 {strides = array<i32>} : memref<1x8x8x16xbf16, #tpu.memory_space<vmem>>, vector<1x8x8x16xbf16>,
    %60 = vector.shape_cast %40 : vector<64x16xf32> to vector<8x8x16xf32>
    %61 = arith.truncf %60 : vector<8x8x16xf32> to vector<8x8x16xbf16>
    %c0_36 = arith.constant 0 : index
    %c0_37 = arith.constant 0 : index
    %c0_38 = arith.constant 0 : index
    %c0_39 = arith.constant 0 : index
    %62 = vector.load %arg5[%c0_36, %c0_37, %c0_38, %c0_39] : memref<1x8x8x16xbf16, #tpu.memory_space<vmem>>, vector<1x8x8x16xbf16>
    %63 = vector.shape_cast %62 : vector<1x8x8x16xbf16> to vector<8x8x16xbf16>
    %64 = vector.shape_cast %61 : vector<8x8x16xbf16> to vector<1x8x8x16xbf16>
    tpu.vector_store %arg5[%c0_36, %c0_37, %c0_38, %c0_39], %64 {strides = array<i32>} : memref<1x8x8x16xbf16, #tpu.memory_space<vmem>>, vector<1x8x8x16xbf16>,
    %65 = vector.shape_cast %49 : vector<64x16xf32> to vector<8x8x16xf32>
    %66 = arith.truncf %65 : vector<8x8x16xf32> to vector<8x8x16xbf16>
    %c0_40 = arith.constant 0 : index
    %c0_41 = arith.constant 0 : index
    %c0_42 = arith.constant 0 : index
    %c0_43 = arith.constant 0 : index
    %67 = vector.load %arg6[%c0_40, %c0_41, %c0_42, %c0_43] : memref<1x8x8x16xbf16, #tpu.memory_space<vmem>>, vector<1x8x8x16xbf16>
    %68 = vector.shape_cast %67 : vector<1x8x8x16xbf16> to vector<8x8x16xbf16>
    %69 = vector.shape_cast %66 : vector<8x8x16xbf16> to vector<1x8x8x16xbf16>
    tpu.vector_store %arg6[%c0_40, %c0_41, %c0_42, %c0_43], %69 {strides = array<i32>} : memref<1x8x8x16xbf16, #tpu.memory_space<vmem>>, vector<1x8x8x16xbf16>,
    %70 = vector.shape_cast %54 : vector<64x16xf32> to vector<8x8x16xf32>
    %71 = arith.truncf %70 : vector<8x8x16xf32> to vector<8x8x16xbf16>
    %c0_44 = arith.constant 0 : index
    %c0_45 = arith.constant 0 : index
    %c0_46 = arith.constant 0 : index
    %c0_47 = arith.constant 0 : index
    %72 = vector.load %arg7[%c0_44, %c0_45, %c0_46, %c0_47] : memref<1x8x8x16xbf16, #tpu.memory_space<vmem>>, vector<1x8x8x16xbf16>
    %73 = vector.shape_cast %72 : vector<1x8x8x16xbf16> to vector<8x8x16xbf16>
    %74 = vector.shape_cast %71 : vector<8x8x16xbf16> to vector<1x8x8x16xbf16>
    tpu.vector_store %arg7[%c0_44, %c0_45, %c0_46, %c0_47], %74 {strides = array<i32>} : memref<1x8x8x16xbf16, #tpu.memory_space<vmem>>, vector<1x8x8x16xbf16>,
    return
  }
  func.func @transform_0(%arg0: i32) -> (i32, i32, i32, i32) {
    %c0_i32 = arith.constant 0 : i32
    %c0_i32_0 = arith.constant 0 : i32
    %c0_i32_1 = arith.constant 0 : i32
    %c0_i32_2 = arith.constant 0 : i32
    return %arg0, %c0_i32, %c0_i32_0, %c0_i32_1 : i32, i32, i32, i32
  }
  func.func @transform_1(%arg0: i32) -> (i32, i32, i32) {
    %c0_i32 = arith.constant 0 : i32
    %c0_i32_0 = arith.constant 0 : i32
    %c0_i32_1 = arith.constant 0 : i32
    %c0_i32_2 = arith.constant 0 : i32
    return %c0_i32, %c0_i32_0, %c0_i32_1 : i32, i32, i32
  }
  func.func @transform_2(%arg0: i32) -> (i32, i32) {
    %c0_i32 = arith.constant 0 : i32
    %c0_i32_0 = arith.constant 0 : i32
    %c0_i32_1 = arith.constant 0 : i32
    return %c0_i32, %c0_i32_0 : i32, i32
  }
  func.func @transform_3(%arg0: i32) -> (i32, i32, i32, i32) {
    %c0_i32 = arith.constant 0 : i32
    %c0_i32_0 = arith.constant 0 : i32
    %c0_i32_1 = arith.constant 0 : i32
    %c0_i32_2 = arith.constant 0 : i32
    return %arg0, %c0_i32, %c0_i32_0, %c0_i32_1 : i32, i32, i32, i32
  }
  func.func @transform_4(%arg0: i32) -> (i32, i32, i32, i32) {
    %c0_i32 = arith.constant 0 : i32
    %c0_i32_0 = arith.constant 0 : i32
    %c0_i32_1 = arith.constant 0 : i32
    %c0_i32_2 = arith.constant 0 : i32
    return %arg0, %c0_i32, %c0_i32_0, %c0_i32_1 : i32, i32, i32, i32
  }
  func.func @transform_5(%arg0: i32) -> (i32, i32, i32, i32) {
    %c0_i32 = arith.constant 0 : i32
    %c0_i32_0 = arith.constant 0 : i32
    %c0_i32_1 = arith.constant 0 : i32
    %c0_i32_2 = arith.constant 0 : i32
    return %arg0, %c0_i32, %c0_i32_0, %c0_i32_1 : i32, i32, i32, i32
  }
  func.func @transform_6(%arg0: i32) -> (i32, i32, i32, i32) {
    %c0_i32 = arith.constant 0 : i32
    %c0_i32_0 = arith.constant 0 : i32
    %c0_i32_1 = arith.constant 0 : i32
    %c0_i32_2 = arith.constant 0 : i32
    return %arg0, %c0_i32, %c0_i32_0, %c0_i32_1 : i32, i32, i32, i32
  }
}

module attributes {stable_mosaic.version = 11 : i64} {
  func.func @_conv3x3_kernel(%arg0: i32, %arg1: memref<1x18x18x16xbf16, #tpu.memory_space<vmem>>, %arg2: memref<9x16x16xbf16, #tpu.memory_space<vmem>>, %arg3: memref<1x16xf32, #tpu.memory_space<vmem>>, %arg4: memref<1x16xf32, #tpu.memory_space<vmem>>, %arg5: memref<1x16xf32, #tpu.memory_space<vmem>>, %arg6: memref<1x16x16x16xbf16, #tpu.memory_space<vmem>>, %arg7: memref<1x2x16xf32, #tpu.memory_space<vmem>>) attributes {dimension_semantics = [#tpu.dimension_semantics<parallel>], iteration_bounds = array<i64: 2>, scalar_prefetch = 0 : i64, scratch_operands = 0 : i64, tpu.core_type = #tpu.core_type<tc>, window_params = [{transform_indices = @transform_0, window_bounds = array<i64: 1, 18, 18, 16>}, {pipeline_mode = #tpu.pipeline_mode<synchronous>, transform_indices = @transform_1, window_bounds = array<i64: 9, 16, 16>}, {pipeline_mode = #tpu.pipeline_mode<synchronous>, transform_indices = @transform_2, window_bounds = array<i64: 1, 16>}, {pipeline_mode = #tpu.pipeline_mode<synchronous>, transform_indices = @transform_3, window_bounds = array<i64: 1, 16>}, {pipeline_mode = #tpu.pipeline_mode<synchronous>, transform_indices = @transform_4, window_bounds = array<i64: 1, 16>}, {transform_indices = @transform_5, window_bounds = array<i64: 1, 16, 16, 16>}, {transform_indices = @transform_6, window_bounds = array<i64: 1, 2, 16>}]} {
    %c0 = arith.constant 0 : index
    %c0_0 = arith.constant 0 : index
    %c0_1 = arith.constant 0 : index
    %c0_2 = arith.constant 0 : index
    %0 = vector.load %arg1[%c0, %c0_0, %c0_1, %c0_2] : memref<1x18x18x16xbf16, #tpu.memory_space<vmem>>, vector<1x18x18x16xbf16>
    %1 = vector.shape_cast %0 : vector<1x18x18x16xbf16> to vector<18x18x16xbf16>
    %2 = vector.extract_strided_slice %1 {offsets = [0, 0, 0], sizes = [16, 16, 16], strides = [1, 1, 1]} : vector<18x18x16xbf16> to vector<16x16x16xbf16>
    %3 = vector.shape_cast %2 : vector<16x16x16xbf16> to vector<256x16xbf16>
    %c0_3 = arith.constant 0 : index
    %c0_4 = arith.constant 0 : index
    %c0_5 = arith.constant 0 : index
    %4 = vector.load %arg2[%c0_3, %c0_4, %c0_5] : memref<9x16x16xbf16, #tpu.memory_space<vmem>>, vector<1x16x16xbf16>
    %5 = vector.shape_cast %4 : vector<1x16x16xbf16> to vector<16x16xbf16>
    %cst = arith.constant dense<0.000000e+00> : vector<256x16xf32>
    %6 = tpu.matmul %3, %5, %cst {dimension_numbers = #tpu.dot_dimension_numbers<[1], [0], [0], [1], [0, 0, 1, 1], [], []>} : vector<256x16xbf16>, vector<16x16xbf16>, vector<256x16xf32> -> vector<256x16xf32>
    %7 = vector.extract_strided_slice %1 {offsets = [0, 1, 0], sizes = [16, 16, 16], strides = [1, 1, 1]} : vector<18x18x16xbf16> to vector<16x16x16xbf16>
    %8 = vector.shape_cast %7 : vector<16x16x16xbf16> to vector<256x16xbf16>
    %c1 = arith.constant 1 : index
    %c0_6 = arith.constant 0 : index
    %c0_7 = arith.constant 0 : index
    %9 = vector.load %arg2[%c1, %c0_6, %c0_7] : memref<9x16x16xbf16, #tpu.memory_space<vmem>>, vector<1x16x16xbf16>
    %10 = vector.shape_cast %9 : vector<1x16x16xbf16> to vector<16x16xbf16>
    %cst_8 = arith.constant dense<0.000000e+00> : vector<256x16xf32>
    %11 = tpu.matmul %8, %10, %cst_8 {dimension_numbers = #tpu.dot_dimension_numbers<[1], [0], [0], [1], [0, 0, 1, 1], [], []>} : vector<256x16xbf16>, vector<16x16xbf16>, vector<256x16xf32> -> vector<256x16xf32>
    %12 = arith.addf %6, %11 : vector<256x16xf32>
    %13 = vector.extract_strided_slice %1 {offsets = [0, 2, 0], sizes = [16, 16, 16], strides = [1, 1, 1]} : vector<18x18x16xbf16> to vector<16x16x16xbf16>
    %14 = vector.shape_cast %13 : vector<16x16x16xbf16> to vector<256x16xbf16>
    %c2 = arith.constant 2 : index
    %c0_9 = arith.constant 0 : index
    %c0_10 = arith.constant 0 : index
    %15 = vector.load %arg2[%c2, %c0_9, %c0_10] : memref<9x16x16xbf16, #tpu.memory_space<vmem>>, vector<1x16x16xbf16>
    %16 = vector.shape_cast %15 : vector<1x16x16xbf16> to vector<16x16xbf16>
    %cst_11 = arith.constant dense<0.000000e+00> : vector<256x16xf32>
    %17 = tpu.matmul %14, %16, %cst_11 {dimension_numbers = #tpu.dot_dimension_numbers<[1], [0], [0], [1], [0, 0, 1, 1], [], []>} : vector<256x16xbf16>, vector<16x16xbf16>, vector<256x16xf32> -> vector<256x16xf32>
    %18 = arith.addf %12, %17 : vector<256x16xf32>
    %19 = vector.extract_strided_slice %1 {offsets = [1, 0, 0], sizes = [16, 16, 16], strides = [1, 1, 1]} : vector<18x18x16xbf16> to vector<16x16x16xbf16>
    %20 = vector.shape_cast %19 : vector<16x16x16xbf16> to vector<256x16xbf16>
    %c3 = arith.constant 3 : index
    %c0_12 = arith.constant 0 : index
    %c0_13 = arith.constant 0 : index
    %21 = vector.load %arg2[%c3, %c0_12, %c0_13] : memref<9x16x16xbf16, #tpu.memory_space<vmem>>, vector<1x16x16xbf16>
    %22 = vector.shape_cast %21 : vector<1x16x16xbf16> to vector<16x16xbf16>
    %cst_14 = arith.constant dense<0.000000e+00> : vector<256x16xf32>
    %23 = tpu.matmul %20, %22, %cst_14 {dimension_numbers = #tpu.dot_dimension_numbers<[1], [0], [0], [1], [0, 0, 1, 1], [], []>} : vector<256x16xbf16>, vector<16x16xbf16>, vector<256x16xf32> -> vector<256x16xf32>
    %24 = arith.addf %18, %23 : vector<256x16xf32>
    %25 = vector.extract_strided_slice %1 {offsets = [1, 1, 0], sizes = [16, 16, 16], strides = [1, 1, 1]} : vector<18x18x16xbf16> to vector<16x16x16xbf16>
    %26 = vector.shape_cast %25 : vector<16x16x16xbf16> to vector<256x16xbf16>
    %c4 = arith.constant 4 : index
    %c0_15 = arith.constant 0 : index
    %c0_16 = arith.constant 0 : index
    %27 = vector.load %arg2[%c4, %c0_15, %c0_16] : memref<9x16x16xbf16, #tpu.memory_space<vmem>>, vector<1x16x16xbf16>
    %28 = vector.shape_cast %27 : vector<1x16x16xbf16> to vector<16x16xbf16>
    %cst_17 = arith.constant dense<0.000000e+00> : vector<256x16xf32>
    %29 = tpu.matmul %26, %28, %cst_17 {dimension_numbers = #tpu.dot_dimension_numbers<[1], [0], [0], [1], [0, 0, 1, 1], [], []>} : vector<256x16xbf16>, vector<16x16xbf16>, vector<256x16xf32> -> vector<256x16xf32>
    %30 = arith.addf %24, %29 : vector<256x16xf32>
    %31 = vector.extract_strided_slice %1 {offsets = [1, 2, 0], sizes = [16, 16, 16], strides = [1, 1, 1]} : vector<18x18x16xbf16> to vector<16x16x16xbf16>
    %32 = vector.shape_cast %31 : vector<16x16x16xbf16> to vector<256x16xbf16>
    %c5 = arith.constant 5 : index
    %c0_18 = arith.constant 0 : index
    %c0_19 = arith.constant 0 : index
    %33 = vector.load %arg2[%c5, %c0_18, %c0_19] : memref<9x16x16xbf16, #tpu.memory_space<vmem>>, vector<1x16x16xbf16>
    %34 = vector.shape_cast %33 : vector<1x16x16xbf16> to vector<16x16xbf16>
    %cst_20 = arith.constant dense<0.000000e+00> : vector<256x16xf32>
    %35 = tpu.matmul %32, %34, %cst_20 {dimension_numbers = #tpu.dot_dimension_numbers<[1], [0], [0], [1], [0, 0, 1, 1], [], []>} : vector<256x16xbf16>, vector<16x16xbf16>, vector<256x16xf32> -> vector<256x16xf32>
    %36 = arith.addf %30, %35 : vector<256x16xf32>
    %37 = vector.extract_strided_slice %1 {offsets = [2, 0, 0], sizes = [16, 16, 16], strides = [1, 1, 1]} : vector<18x18x16xbf16> to vector<16x16x16xbf16>
    %38 = vector.shape_cast %37 : vector<16x16x16xbf16> to vector<256x16xbf16>
    %c6 = arith.constant 6 : index
    %c0_21 = arith.constant 0 : index
    %c0_22 = arith.constant 0 : index
    %39 = vector.load %arg2[%c6, %c0_21, %c0_22] : memref<9x16x16xbf16, #tpu.memory_space<vmem>>, vector<1x16x16xbf16>
    %40 = vector.shape_cast %39 : vector<1x16x16xbf16> to vector<16x16xbf16>
    %cst_23 = arith.constant dense<0.000000e+00> : vector<256x16xf32>
    %41 = tpu.matmul %38, %40, %cst_23 {dimension_numbers = #tpu.dot_dimension_numbers<[1], [0], [0], [1], [0, 0, 1, 1], [], []>} : vector<256x16xbf16>, vector<16x16xbf16>, vector<256x16xf32> -> vector<256x16xf32>
    %42 = arith.addf %36, %41 : vector<256x16xf32>
    %43 = vector.extract_strided_slice %1 {offsets = [2, 1, 0], sizes = [16, 16, 16], strides = [1, 1, 1]} : vector<18x18x16xbf16> to vector<16x16x16xbf16>
    %44 = vector.shape_cast %43 : vector<16x16x16xbf16> to vector<256x16xbf16>
    %c7 = arith.constant 7 : index
    %c0_24 = arith.constant 0 : index
    %c0_25 = arith.constant 0 : index
    %45 = vector.load %arg2[%c7, %c0_24, %c0_25] : memref<9x16x16xbf16, #tpu.memory_space<vmem>>, vector<1x16x16xbf16>
    %46 = vector.shape_cast %45 : vector<1x16x16xbf16> to vector<16x16xbf16>
    %cst_26 = arith.constant dense<0.000000e+00> : vector<256x16xf32>
    %47 = tpu.matmul %44, %46, %cst_26 {dimension_numbers = #tpu.dot_dimension_numbers<[1], [0], [0], [1], [0, 0, 1, 1], [], []>} : vector<256x16xbf16>, vector<16x16xbf16>, vector<256x16xf32> -> vector<256x16xf32>
    %48 = arith.addf %42, %47 : vector<256x16xf32>
    %49 = vector.extract_strided_slice %1 {offsets = [2, 2, 0], sizes = [16, 16, 16], strides = [1, 1, 1]} : vector<18x18x16xbf16> to vector<16x16x16xbf16>
    %50 = vector.shape_cast %49 : vector<16x16x16xbf16> to vector<256x16xbf16>
    %c8 = arith.constant 8 : index
    %c0_27 = arith.constant 0 : index
    %c0_28 = arith.constant 0 : index
    %51 = vector.load %arg2[%c8, %c0_27, %c0_28] : memref<9x16x16xbf16, #tpu.memory_space<vmem>>, vector<1x16x16xbf16>
    %52 = vector.shape_cast %51 : vector<1x16x16xbf16> to vector<16x16xbf16>
    %cst_29 = arith.constant dense<0.000000e+00> : vector<256x16xf32>
    %53 = tpu.matmul %50, %52, %cst_29 {dimension_numbers = #tpu.dot_dimension_numbers<[1], [0], [0], [1], [0, 0, 1, 1], [], []>} : vector<256x16xbf16>, vector<16x16xbf16>, vector<256x16xf32> -> vector<256x16xf32>
    %54 = arith.addf %48, %53 : vector<256x16xf32>
    %c0_30 = arith.constant 0 : index
    %c0_31 = arith.constant 0 : index
    %55 = vector.load %arg3[%c0_30, %c0_31] : memref<1x16xf32, #tpu.memory_space<vmem>>, vector<1x16xf32>
    %56 = vector.broadcast %55 : vector<1x16xf32> to vector<256x16xf32>
    %57 = arith.addf %54, %56 : vector<256x16xf32>
    %cst_32 = arith.constant dense<0.000000e+00> : vector<16xf32>
    %58 = vector.multi_reduction <add>, %57, %cst_32 [0] : vector<256x16xf32> to vector<16xf32>
    %59 = vector.shape_cast %58 : vector<16xf32> to vector<1x16xf32>
    %c0_33 = arith.constant 0 : index
    %c0_34 = arith.constant 0 : index
    %c0_35 = arith.constant 0 : index
    %60 = vector.load %arg7[%c0_33, %c0_34, %c0_35] : memref<1x2x16xf32, #tpu.memory_space<vmem>>, vector<1x1x16xf32>
    %61 = vector.shape_cast %60 : vector<1x1x16xf32> to vector<1x16xf32>
    %62 = vector.shape_cast %59 : vector<1x16xf32> to vector<1x1x16xf32>
    tpu.vector_store %arg7[%c0_33, %c0_34, %c0_35], %62 {strides = array<i32>} : memref<1x2x16xf32, #tpu.memory_space<vmem>>, vector<1x1x16xf32>,
    %63 = arith.mulf %57, %57 : vector<256x16xf32>
    %cst_36 = arith.constant dense<0.000000e+00> : vector<16xf32>
    %64 = vector.multi_reduction <add>, %63, %cst_36 [0] : vector<256x16xf32> to vector<16xf32>
    %65 = vector.shape_cast %64 : vector<16xf32> to vector<1x16xf32>
    %c0_37 = arith.constant 0 : index
    %c1_38 = arith.constant 1 : index
    %c0_39 = arith.constant 0 : index
    %66 = vector.load %arg7[%c0_37, %c1_38, %c0_39] : memref<1x2x16xf32, #tpu.memory_space<vmem>>, vector<1x1x16xf32>
    %67 = vector.shape_cast %66 : vector<1x1x16xf32> to vector<1x16xf32>
    %68 = vector.shape_cast %65 : vector<1x16xf32> to vector<1x1x16xf32>
    tpu.vector_store %arg7[%c0_37, %c1_38, %c0_39], %68 {strides = array<i32>} : memref<1x2x16xf32, #tpu.memory_space<vmem>>, vector<1x1x16xf32>,
    %69 = vector.shape_cast %57 : vector<256x16xf32> to vector<16x16x16xf32>
    %70 = arith.truncf %69 : vector<16x16x16xf32> to vector<16x16x16xbf16>
    %c0_40 = arith.constant 0 : index
    %c0_41 = arith.constant 0 : index
    %c0_42 = arith.constant 0 : index
    %c0_43 = arith.constant 0 : index
    %71 = vector.load %arg6[%c0_40, %c0_41, %c0_42, %c0_43] : memref<1x16x16x16xbf16, #tpu.memory_space<vmem>>, vector<1x16x16x16xbf16>
    %72 = vector.shape_cast %71 : vector<1x16x16x16xbf16> to vector<16x16x16xbf16>
    %73 = vector.shape_cast %70 : vector<16x16x16xbf16> to vector<1x16x16x16xbf16>
    tpu.vector_store %arg6[%c0_40, %c0_41, %c0_42, %c0_43], %73 {strides = array<i32>} : memref<1x16x16x16xbf16, #tpu.memory_space<vmem>>, vector<1x16x16x16xbf16>,
    return
  }
  func.func @transform_0(%arg0: i32) -> (i32, i32, i32, i32) {
    %c0_i32 = arith.constant 0 : i32
    %c0_i32_0 = arith.constant 0 : i32
    %c0_i32_1 = arith.constant 0 : i32
    %c0_i32_2 = arith.constant 0 : i32
    return %arg0, %c0_i32, %c0_i32_0, %c0_i32_1 : i32, i32, i32, i32
  }
  func.func @transform_1(%arg0: i32) -> (i32, i32, i32) {
    %c0_i32 = arith.constant 0 : i32
    %c0_i32_0 = arith.constant 0 : i32
    %c0_i32_1 = arith.constant 0 : i32
    %c0_i32_2 = arith.constant 0 : i32
    return %c0_i32, %c0_i32_0, %c0_i32_1 : i32, i32, i32
  }
  func.func @transform_2(%arg0: i32) -> (i32, i32) {
    %c0_i32 = arith.constant 0 : i32
    %c0_i32_0 = arith.constant 0 : i32
    %c0_i32_1 = arith.constant 0 : i32
    return %c0_i32, %c0_i32_0 : i32, i32
  }
  func.func @transform_3(%arg0: i32) -> (i32, i32) {
    %c0_i32 = arith.constant 0 : i32
    %c0_i32_0 = arith.constant 0 : i32
    %c0_i32_1 = arith.constant 0 : i32
    return %c0_i32, %c0_i32_0 : i32, i32
  }
  func.func @transform_4(%arg0: i32) -> (i32, i32) {
    %c0_i32 = arith.constant 0 : i32
    %c0_i32_0 = arith.constant 0 : i32
    %c0_i32_1 = arith.constant 0 : i32
    return %c0_i32, %c0_i32_0 : i32, i32
  }
  func.func @transform_5(%arg0: i32) -> (i32, i32, i32, i32) {
    %c0_i32 = arith.constant 0 : i32
    %c0_i32_0 = arith.constant 0 : i32
    %c0_i32_1 = arith.constant 0 : i32
    %c0_i32_2 = arith.constant 0 : i32
    return %arg0, %c0_i32, %c0_i32_0, %c0_i32_1 : i32, i32, i32, i32
  }
  func.func @transform_6(%arg0: i32) -> (i32, i32, i32) {
    %c0_i32 = arith.constant 0 : i32
    %c0_i32_0 = arith.constant 0 : i32
    %c0_i32_1 = arith.constant 0 : i32
    return %arg0, %c0_i32, %c0_i32_0 : i32, i32, i32
  }
}

module attributes {stable_mosaic.version = 11 : i64} {
  func.func @_conv3x3_kernel(%arg0: i32, %arg1: memref<1x18x18x16xbf16, #tpu.memory_space<vmem>>, %arg2: memref<9x16x16xbf16, #tpu.memory_space<vmem>>, %arg3: memref<1x16xf32, #tpu.memory_space<vmem>>, %arg4: memref<1x16xf32, #tpu.memory_space<vmem>>, %arg5: memref<1x16xf32, #tpu.memory_space<vmem>>, %arg6: memref<1x16x16x16xbf16, #tpu.memory_space<vmem>>, %arg7: memref<1x2x16xf32, #tpu.memory_space<vmem>>) attributes {dimension_semantics = [#tpu.dimension_semantics<parallel>], iteration_bounds = array<i64: 2>, scalar_prefetch = 0 : i64, scratch_operands = 0 : i64, tpu.core_type = #tpu.core_type<tc>, window_params = [{transform_indices = @transform_0, window_bounds = array<i64: 1, 18, 18, 16>}, {pipeline_mode = #tpu.pipeline_mode<synchronous>, transform_indices = @transform_1, window_bounds = array<i64: 9, 16, 16>}, {pipeline_mode = #tpu.pipeline_mode<synchronous>, transform_indices = @transform_2, window_bounds = array<i64: 1, 16>}, {pipeline_mode = #tpu.pipeline_mode<synchronous>, transform_indices = @transform_3, window_bounds = array<i64: 1, 16>}, {pipeline_mode = #tpu.pipeline_mode<synchronous>, transform_indices = @transform_4, window_bounds = array<i64: 1, 16>}, {transform_indices = @transform_5, window_bounds = array<i64: 1, 16, 16, 16>}, {transform_indices = @transform_6, window_bounds = array<i64: 1, 2, 16>}]} {
    %c0 = arith.constant 0 : index
    %c0_0 = arith.constant 0 : index
    %c0_1 = arith.constant 0 : index
    %c0_2 = arith.constant 0 : index
    %0 = vector.load %arg1[%c0, %c0_0, %c0_1, %c0_2] : memref<1x18x18x16xbf16, #tpu.memory_space<vmem>>, vector<1x18x18x16xbf16>
    %1 = vector.shape_cast %0 : vector<1x18x18x16xbf16> to vector<18x18x16xbf16>
    %2 = arith.extf %1 : vector<18x18x16xbf16> to vector<18x18x16xf32>
    %c0_3 = arith.constant 0 : index
    %c0_4 = arith.constant 0 : index
    %3 = vector.load %arg4[%c0_3, %c0_4] : memref<1x16xf32, #tpu.memory_space<vmem>>, vector<1x16xf32>
    %4 = vector.shape_cast %3 : vector<1x16xf32> to vector<1x1x16xf32>
    %5 = vector.broadcast %4 : vector<1x1x16xf32> to vector<18x18x16xf32>
    %6 = arith.mulf %2, %5 : vector<18x18x16xf32>
    %c0_5 = arith.constant 0 : index
    %c0_6 = arith.constant 0 : index
    %7 = vector.load %arg5[%c0_5, %c0_6] : memref<1x16xf32, #tpu.memory_space<vmem>>, vector<1x16xf32>
    %8 = vector.shape_cast %7 : vector<1x16xf32> to vector<1x1x16xf32>
    %9 = vector.broadcast %8 : vector<1x1x16xf32> to vector<18x18x16xf32>
    %10 = arith.addf %6, %9 : vector<18x18x16xf32>
    %cst = arith.constant 0.707106769 : f32
    %11 = vector.broadcast %cst : f32 to vector<18x18x16xf32>
    %12 = arith.mulf %10, %11 : vector<18x18x16xf32>
    %13 = math.absf %12 : vector<18x18x16xf32>
    %cst_7 = arith.constant 0.327591091 : f32
    %14 = vector.broadcast %cst_7 : f32 to vector<18x18x16xf32>
    %15 = arith.mulf %14, %13 : vector<18x18x16xf32>
    %cst_8 = arith.constant 1.000000e+00 : f32
    %16 = vector.broadcast %cst_8 : f32 to vector<18x18x16xf32>
    %17 = arith.addf %16, %15 : vector<18x18x16xf32>
    %cst_9 = arith.constant 1.000000e+00 : f32
    %18 = vector.broadcast %cst_9 : f32 to vector<18x18x16xf32>
    %19 = arith.divf %18, %17 : vector<18x18x16xf32>
    %cst_10 = arith.constant 1.06140542 : f32
    %20 = vector.broadcast %cst_10 : f32 to vector<18x18x16xf32>
    %21 = arith.mulf %20, %19 : vector<18x18x16xf32>
    %cst_11 = arith.constant -1.45315206 : f32
    %22 = vector.broadcast %cst_11 : f32 to vector<18x18x16xf32>
    %23 = arith.addf %21, %22 : vector<18x18x16xf32>
    %24 = arith.mulf %23, %19 : vector<18x18x16xf32>
    %cst_12 = arith.constant 1.42141378 : f32
    %25 = vector.broadcast %cst_12 : f32 to vector<18x18x16xf32>
    %26 = arith.addf %24, %25 : vector<18x18x16xf32>
    %27 = arith.mulf %26, %19 : vector<18x18x16xf32>
    %cst_13 = arith.constant -0.284496725 : f32
    %28 = vector.broadcast %cst_13 : f32 to vector<18x18x16xf32>
    %29 = arith.addf %27, %28 : vector<18x18x16xf32>
    %30 = arith.mulf %29, %19 : vector<18x18x16xf32>
    %cst_14 = arith.constant 0.254829586 : f32
    %31 = vector.broadcast %cst_14 : f32 to vector<18x18x16xf32>
    %32 = arith.addf %30, %31 : vector<18x18x16xf32>
    %33 = arith.mulf %32, %19 : vector<18x18x16xf32>
    %cst_15 = arith.constant 0.000000e+00 : f32
    %34 = vector.broadcast %cst_15 : f32 to vector<18x18x16xf32>
    %35 = arith.subf %34, %13 : vector<18x18x16xf32>
    %36 = arith.mulf %35, %13 : vector<18x18x16xf32>
    %37 = math.exp %36 : vector<18x18x16xf32>
    %38 = arith.mulf %33, %37 : vector<18x18x16xf32>
    %cst_16 = arith.constant 1.000000e+00 : f32
    %39 = vector.broadcast %cst_16 : f32 to vector<18x18x16xf32>
    %40 = arith.subf %39, %38 : vector<18x18x16xf32>
    %cst_17 = arith.constant 0.000000e+00 : f32
    %41 = vector.broadcast %cst_17 : f32 to vector<18x18x16xf32>
    %42 = arith.cmpf oge, %12, %41 : vector<18x18x16xf32>
    %cst_18 = arith.constant 0.000000e+00 : f32
    %43 = vector.broadcast %cst_18 : f32 to vector<18x18x16xf32>
    %44 = arith.subf %43, %40 : vector<18x18x16xf32>
    %45 = arith.select %42, %40, %44 : vector<18x18x16xi1>, vector<18x18x16xf32>
    %cst_19 = arith.constant 5.000000e-01 : f32
    %46 = vector.broadcast %cst_19 : f32 to vector<18x18x16xf32>
    %47 = arith.mulf %46, %10 : vector<18x18x16xf32>
    %cst_20 = arith.constant 1.000000e+00 : f32
    %48 = vector.broadcast %cst_20 : f32 to vector<18x18x16xf32>
    %49 = arith.addf %48, %45 : vector<18x18x16xf32>
    %50 = arith.mulf %47, %49 : vector<18x18x16xf32>
    %51 = tpu.iota {dimensions = array<i32: 0>} : vector<18x18x16xi32>
    %c0_i32 = arith.constant 0 : i32
    %52 = vector.broadcast %c0_i32 : i32 to vector<18x18x16xi32>
    %53 = arith.cmpi sgt, %51, %52 : vector<18x18x16xi32>
    %c17_i32 = arith.constant 17 : i32
    %54 = vector.broadcast %c17_i32 : i32 to vector<18x18x16xi32>
    %55 = arith.cmpi slt, %51, %54 : vector<18x18x16xi32>
    %56 = arith.andi %53, %55 : vector<18x18x16xi1>
    %cst_21 = arith.constant 0.000000e+00 : f32
    %57 = vector.broadcast %cst_21 : f32 to vector<18x18x16xf32>
    %58 = arith.select %56, %50, %57 : vector<18x18x16xi1>, vector<18x18x16xf32>
    %59 = arith.truncf %58 : vector<18x18x16xf32> to vector<18x18x16xbf16>
    %60 = vector.extract_strided_slice %59 {offsets = [0, 0, 0], sizes = [16, 16, 16], strides = [1, 1, 1]} : vector<18x18x16xbf16> to vector<16x16x16xbf16>
    %61 = vector.shape_cast %60 : vector<16x16x16xbf16> to vector<256x16xbf16>
    %c0_22 = arith.constant 0 : index
    %c0_23 = arith.constant 0 : index
    %c0_24 = arith.constant 0 : index
    %62 = vector.load %arg2[%c0_22, %c0_23, %c0_24] : memref<9x16x16xbf16, #tpu.memory_space<vmem>>, vector<1x16x16xbf16>
    %63 = vector.shape_cast %62 : vector<1x16x16xbf16> to vector<16x16xbf16>
    %cst_25 = arith.constant dense<0.000000e+00> : vector<256x16xf32>
    %64 = tpu.matmul %61, %63, %cst_25 {dimension_numbers = #tpu.dot_dimension_numbers<[1], [0], [0], [1], [0, 0, 1, 1], [], []>} : vector<256x16xbf16>, vector<16x16xbf16>, vector<256x16xf32> -> vector<256x16xf32>
    %65 = vector.extract_strided_slice %59 {offsets = [0, 1, 0], sizes = [16, 16, 16], strides = [1, 1, 1]} : vector<18x18x16xbf16> to vector<16x16x16xbf16>
    %66 = vector.shape_cast %65 : vector<16x16x16xbf16> to vector<256x16xbf16>
    %c1 = arith.constant 1 : index
    %c0_26 = arith.constant 0 : index
    %c0_27 = arith.constant 0 : index
    %67 = vector.load %arg2[%c1, %c0_26, %c0_27] : memref<9x16x16xbf16, #tpu.memory_space<vmem>>, vector<1x16x16xbf16>
    %68 = vector.shape_cast %67 : vector<1x16x16xbf16> to vector<16x16xbf16>
    %cst_28 = arith.constant dense<0.000000e+00> : vector<256x16xf32>
    %69 = tpu.matmul %66, %68, %cst_28 {dimension_numbers = #tpu.dot_dimension_numbers<[1], [0], [0], [1], [0, 0, 1, 1], [], []>} : vector<256x16xbf16>, vector<16x16xbf16>, vector<256x16xf32> -> vector<256x16xf32>
    %70 = arith.addf %64, %69 : vector<256x16xf32>
    %71 = vector.extract_strided_slice %59 {offsets = [0, 2, 0], sizes = [16, 16, 16], strides = [1, 1, 1]} : vector<18x18x16xbf16> to vector<16x16x16xbf16>
    %72 = vector.shape_cast %71 : vector<16x16x16xbf16> to vector<256x16xbf16>
    %c2 = arith.constant 2 : index
    %c0_29 = arith.constant 0 : index
    %c0_30 = arith.constant 0 : index
    %73 = vector.load %arg2[%c2, %c0_29, %c0_30] : memref<9x16x16xbf16, #tpu.memory_space<vmem>>, vector<1x16x16xbf16>
    %74 = vector.shape_cast %73 : vector<1x16x16xbf16> to vector<16x16xbf16>
    %cst_31 = arith.constant dense<0.000000e+00> : vector<256x16xf32>
    %75 = tpu.matmul %72, %74, %cst_31 {dimension_numbers = #tpu.dot_dimension_numbers<[1], [0], [0], [1], [0, 0, 1, 1], [], []>} : vector<256x16xbf16>, vector<16x16xbf16>, vector<256x16xf32> -> vector<256x16xf32>
    %76 = arith.addf %70, %75 : vector<256x16xf32>
    %77 = vector.extract_strided_slice %59 {offsets = [1, 0, 0], sizes = [16, 16, 16], strides = [1, 1, 1]} : vector<18x18x16xbf16> to vector<16x16x16xbf16>
    %78 = vector.shape_cast %77 : vector<16x16x16xbf16> to vector<256x16xbf16>
    %c3 = arith.constant 3 : index
    %c0_32 = arith.constant 0 : index
    %c0_33 = arith.constant 0 : index
    %79 = vector.load %arg2[%c3, %c0_32, %c0_33] : memref<9x16x16xbf16, #tpu.memory_space<vmem>>, vector<1x16x16xbf16>
    %80 = vector.shape_cast %79 : vector<1x16x16xbf16> to vector<16x16xbf16>
    %cst_34 = arith.constant dense<0.000000e+00> : vector<256x16xf32>
    %81 = tpu.matmul %78, %80, %cst_34 {dimension_numbers = #tpu.dot_dimension_numbers<[1], [0], [0], [1], [0, 0, 1, 1], [], []>} : vector<256x16xbf16>, vector<16x16xbf16>, vector<256x16xf32> -> vector<256x16xf32>
    %82 = arith.addf %76, %81 : vector<256x16xf32>
    %83 = vector.extract_strided_slice %59 {offsets = [1, 1, 0], sizes = [16, 16, 16], strides = [1, 1, 1]} : vector<18x18x16xbf16> to vector<16x16x16xbf16>
    %84 = vector.shape_cast %83 : vector<16x16x16xbf16> to vector<256x16xbf16>
    %c4 = arith.constant 4 : index
    %c0_35 = arith.constant 0 : index
    %c0_36 = arith.constant 0 : index
    %85 = vector.load %arg2[%c4, %c0_35, %c0_36] : memref<9x16x16xbf16, #tpu.memory_space<vmem>>, vector<1x16x16xbf16>
    %86 = vector.shape_cast %85 : vector<1x16x16xbf16> to vector<16x16xbf16>
    %cst_37 = arith.constant dense<0.000000e+00> : vector<256x16xf32>
    %87 = tpu.matmul %84, %86, %cst_37 {dimension_numbers = #tpu.dot_dimension_numbers<[1], [0], [0], [1], [0, 0, 1, 1], [], []>} : vector<256x16xbf16>, vector<16x16xbf16>, vector<256x16xf32> -> vector<256x16xf32>
    %88 = arith.addf %82, %87 : vector<256x16xf32>
    %89 = vector.extract_strided_slice %59 {offsets = [1, 2, 0], sizes = [16, 16, 16], strides = [1, 1, 1]} : vector<18x18x16xbf16> to vector<16x16x16xbf16>
    %90 = vector.shape_cast %89 : vector<16x16x16xbf16> to vector<256x16xbf16>
    %c5 = arith.constant 5 : index
    %c0_38 = arith.constant 0 : index
    %c0_39 = arith.constant 0 : index
    %91 = vector.load %arg2[%c5, %c0_38, %c0_39] : memref<9x16x16xbf16, #tpu.memory_space<vmem>>, vector<1x16x16xbf16>
    %92 = vector.shape_cast %91 : vector<1x16x16xbf16> to vector<16x16xbf16>
    %cst_40 = arith.constant dense<0.000000e+00> : vector<256x16xf32>
    %93 = tpu.matmul %90, %92, %cst_40 {dimension_numbers = #tpu.dot_dimension_numbers<[1], [0], [0], [1], [0, 0, 1, 1], [], []>} : vector<256x16xbf16>, vector<16x16xbf16>, vector<256x16xf32> -> vector<256x16xf32>
    %94 = arith.addf %88, %93 : vector<256x16xf32>
    %95 = vector.extract_strided_slice %59 {offsets = [2, 0, 0], sizes = [16, 16, 16], strides = [1, 1, 1]} : vector<18x18x16xbf16> to vector<16x16x16xbf16>
    %96 = vector.shape_cast %95 : vector<16x16x16xbf16> to vector<256x16xbf16>
    %c6 = arith.constant 6 : index
    %c0_41 = arith.constant 0 : index
    %c0_42 = arith.constant 0 : index
    %97 = vector.load %arg2[%c6, %c0_41, %c0_42] : memref<9x16x16xbf16, #tpu.memory_space<vmem>>, vector<1x16x16xbf16>
    %98 = vector.shape_cast %97 : vector<1x16x16xbf16> to vector<16x16xbf16>
    %cst_43 = arith.constant dense<0.000000e+00> : vector<256x16xf32>
    %99 = tpu.matmul %96, %98, %cst_43 {dimension_numbers = #tpu.dot_dimension_numbers<[1], [0], [0], [1], [0, 0, 1, 1], [], []>} : vector<256x16xbf16>, vector<16x16xbf16>, vector<256x16xf32> -> vector<256x16xf32>
    %100 = arith.addf %94, %99 : vector<256x16xf32>
    %101 = vector.extract_strided_slice %59 {offsets = [2, 1, 0], sizes = [16, 16, 16], strides = [1, 1, 1]} : vector<18x18x16xbf16> to vector<16x16x16xbf16>
    %102 = vector.shape_cast %101 : vector<16x16x16xbf16> to vector<256x16xbf16>
    %c7 = arith.constant 7 : index
    %c0_44 = arith.constant 0 : index
    %c0_45 = arith.constant 0 : index
    %103 = vector.load %arg2[%c7, %c0_44, %c0_45] : memref<9x16x16xbf16, #tpu.memory_space<vmem>>, vector<1x16x16xbf16>
    %104 = vector.shape_cast %103 : vector<1x16x16xbf16> to vector<16x16xbf16>
    %cst_46 = arith.constant dense<0.000000e+00> : vector<256x16xf32>
    %105 = tpu.matmul %102, %104, %cst_46 {dimension_numbers = #tpu.dot_dimension_numbers<[1], [0], [0], [1], [0, 0, 1, 1], [], []>} : vector<256x16xbf16>, vector<16x16xbf16>, vector<256x16xf32> -> vector<256x16xf32>
    %106 = arith.addf %100, %105 : vector<256x16xf32>
    %107 = vector.extract_strided_slice %59 {offsets = [2, 2, 0], sizes = [16, 16, 16], strides = [1, 1, 1]} : vector<18x18x16xbf16> to vector<16x16x16xbf16>
    %108 = vector.shape_cast %107 : vector<16x16x16xbf16> to vector<256x16xbf16>
    %c8 = arith.constant 8 : index
    %c0_47 = arith.constant 0 : index
    %c0_48 = arith.constant 0 : index
    %109 = vector.load %arg2[%c8, %c0_47, %c0_48] : memref<9x16x16xbf16, #tpu.memory_space<vmem>>, vector<1x16x16xbf16>
    %110 = vector.shape_cast %109 : vector<1x16x16xbf16> to vector<16x16xbf16>
    %cst_49 = arith.constant dense<0.000000e+00> : vector<256x16xf32>
    %111 = tpu.matmul %108, %110, %cst_49 {dimension_numbers = #tpu.dot_dimension_numbers<[1], [0], [0], [1], [0, 0, 1, 1], [], []>} : vector<256x16xbf16>, vector<16x16xbf16>, vector<256x16xf32> -> vector<256x16xf32>
    %112 = arith.addf %106, %111 : vector<256x16xf32>
    %c0_50 = arith.constant 0 : index
    %c0_51 = arith.constant 0 : index
    %113 = vector.load %arg3[%c0_50, %c0_51] : memref<1x16xf32, #tpu.memory_space<vmem>>, vector<1x16xf32>
    %114 = vector.broadcast %113 : vector<1x16xf32> to vector<256x16xf32>
    %115 = arith.addf %112, %114 : vector<256x16xf32>
    %cst_52 = arith.constant dense<0.000000e+00> : vector<16xf32>
    %116 = vector.multi_reduction <add>, %115, %cst_52 [0] : vector<256x16xf32> to vector<16xf32>
    %117 = vector.shape_cast %116 : vector<16xf32> to vector<1x16xf32>
    %c0_53 = arith.constant 0 : index
    %c0_54 = arith.constant 0 : index
    %c0_55 = arith.constant 0 : index
    %118 = vector.load %arg7[%c0_53, %c0_54, %c0_55] : memref<1x2x16xf32, #tpu.memory_space<vmem>>, vector<1x1x16xf32>
    %119 = vector.shape_cast %118 : vector<1x1x16xf32> to vector<1x16xf32>
    %120 = vector.shape_cast %117 : vector<1x16xf32> to vector<1x1x16xf32>
    tpu.vector_store %arg7[%c0_53, %c0_54, %c0_55], %120 {strides = array<i32>} : memref<1x2x16xf32, #tpu.memory_space<vmem>>, vector<1x1x16xf32>,
    %121 = arith.mulf %115, %115 : vector<256x16xf32>
    %cst_56 = arith.constant dense<0.000000e+00> : vector<16xf32>
    %122 = vector.multi_reduction <add>, %121, %cst_56 [0] : vector<256x16xf32> to vector<16xf32>
    %123 = vector.shape_cast %122 : vector<16xf32> to vector<1x16xf32>
    %c0_57 = arith.constant 0 : index
    %c1_58 = arith.constant 1 : index
    %c0_59 = arith.constant 0 : index
    %124 = vector.load %arg7[%c0_57, %c1_58, %c0_59] : memref<1x2x16xf32, #tpu.memory_space<vmem>>, vector<1x1x16xf32>
    %125 = vector.shape_cast %124 : vector<1x1x16xf32> to vector<1x16xf32>
    %126 = vector.shape_cast %123 : vector<1x16xf32> to vector<1x1x16xf32>
    tpu.vector_store %arg7[%c0_57, %c1_58, %c0_59], %126 {strides = array<i32>} : memref<1x2x16xf32, #tpu.memory_space<vmem>>, vector<1x1x16xf32>,
    %127 = vector.shape_cast %115 : vector<256x16xf32> to vector<16x16x16xf32>
    %128 = arith.truncf %127 : vector<16x16x16xf32> to vector<16x16x16xbf16>
    %c0_60 = arith.constant 0 : index
    %c0_61 = arith.constant 0 : index
    %c0_62 = arith.constant 0 : index
    %c0_63 = arith.constant 0 : index
    %129 = vector.load %arg6[%c0_60, %c0_61, %c0_62, %c0_63] : memref<1x16x16x16xbf16, #tpu.memory_space<vmem>>, vector<1x16x16x16xbf16>
    %130 = vector.shape_cast %129 : vector<1x16x16x16xbf16> to vector<16x16x16xbf16>
    %131 = vector.shape_cast %128 : vector<16x16x16xbf16> to vector<1x16x16x16xbf16>
    tpu.vector_store %arg6[%c0_60, %c0_61, %c0_62, %c0_63], %131 {strides = array<i32>} : memref<1x16x16x16xbf16, #tpu.memory_space<vmem>>, vector<1x16x16x16xbf16>,
    return
  }
  func.func @transform_0(%arg0: i32) -> (i32, i32, i32, i32) {
    %c0_i32 = arith.constant 0 : i32
    %c0_i32_0 = arith.constant 0 : i32
    %c0_i32_1 = arith.constant 0 : i32
    %c0_i32_2 = arith.constant 0 : i32
    return %arg0, %c0_i32, %c0_i32_0, %c0_i32_1 : i32, i32, i32, i32
  }
  func.func @transform_1(%arg0: i32) -> (i32, i32, i32) {
    %c0_i32 = arith.constant 0 : i32
    %c0_i32_0 = arith.constant 0 : i32
    %c0_i32_1 = arith.constant 0 : i32
    %c0_i32_2 = arith.constant 0 : i32
    return %c0_i32, %c0_i32_0, %c0_i32_1 : i32, i32, i32
  }
  func.func @transform_2(%arg0: i32) -> (i32, i32) {
    %c0_i32 = arith.constant 0 : i32
    %c0_i32_0 = arith.constant 0 : i32
    %c0_i32_1 = arith.constant 0 : i32
    return %c0_i32, %c0_i32_0 : i32, i32
  }
  func.func @transform_3(%arg0: i32) -> (i32, i32) {
    %c0_i32 = arith.constant 0 : i32
    %c0_i32_0 = arith.constant 0 : i32
    %c0_i32_1 = arith.constant 0 : i32
    return %c0_i32, %c0_i32_0 : i32, i32
  }
  func.func @transform_4(%arg0: i32) -> (i32, i32) {
    %c0_i32 = arith.constant 0 : i32
    %c0_i32_0 = arith.constant 0 : i32
    %c0_i32_1 = arith.constant 0 : i32
    return %c0_i32, %c0_i32_0 : i32, i32
  }
  func.func @transform_5(%arg0: i32) -> (i32, i32, i32, i32) {
    %c0_i32 = arith.constant 0 : i32
    %c0_i32_0 = arith.constant 0 : i32
    %c0_i32_1 = arith.constant 0 : i32
    %c0_i32_2 = arith.constant 0 : i32
    return %arg0, %c0_i32, %c0_i32_0, %c0_i32_1 : i32, i32, i32, i32
  }
  func.func @transform_6(%arg0: i32) -> (i32, i32, i32) {
    %c0_i32 = arith.constant 0 : i32
    %c0_i32_0 = arith.constant 0 : i32
    %c0_i32_1 = arith.constant 0 : i32
    return %arg0, %c0_i32, %c0_i32_0 : i32, i32, i32
  }
}

module attributes {stable_mosaic.version = 11 : i64} {
  func.func @_concat_bn_gelu_kernel(%arg0: i32, %arg1: memref<1x256x16xf32, #tpu.memory_space<vmem>>, %arg2: memref<1x256x16xbf16, #tpu.memory_space<vmem>>, %arg3: memref<1x16xf32, #tpu.memory_space<vmem>>, %arg4: memref<1x16xf32, #tpu.memory_space<vmem>>, %arg5: memref<1x256x32xf32, #tpu.memory_space<vmem>>) attributes {dimension_semantics = [#tpu.dimension_semantics<parallel>], iteration_bounds = array<i64: 2>, scalar_prefetch = 0 : i64, scratch_operands = 0 : i64, tpu.core_type = #tpu.core_type<tc>, window_params = [{transform_indices = @transform_0, window_bounds = array<i64: 1, 256, 16>}, {transform_indices = @transform_1, window_bounds = array<i64: 1, 256, 16>}, {pipeline_mode = #tpu.pipeline_mode<synchronous>, transform_indices = @transform_2, window_bounds = array<i64: 1, 16>}, {pipeline_mode = #tpu.pipeline_mode<synchronous>, transform_indices = @transform_3, window_bounds = array<i64: 1, 16>}, {transform_indices = @transform_4, window_bounds = array<i64: 1, 256, 32>}]} {
    %c0 = arith.constant 0 : index
    %c0_0 = arith.constant 0 : index
    %c0_1 = arith.constant 0 : index
    %0 = vector.load %arg1[%c0, %c0_0, %c0_1] : memref<1x256x16xf32, #tpu.memory_space<vmem>>, vector<1x256x16xf32>
    %1 = vector.shape_cast %0 : vector<1x256x16xf32> to vector<256x16xf32>
    %c0_2 = arith.constant 0 : index
    %c0_3 = arith.constant 0 : index
    %c0_4 = arith.constant 0 : index
    %2 = vector.load %arg5[%c0_2, %c0_3, %c0_4] : memref<1x256x32xf32, #tpu.memory_space<vmem>>, vector<1x256x16xf32>
    %3 = vector.shape_cast %2 : vector<1x256x16xf32> to vector<256x16xf32>
    %4 = vector.shape_cast %1 : vector<256x16xf32> to vector<1x256x16xf32>
    tpu.vector_store %arg5[%c0_2, %c0_3, %c0_4], %4 {strides = array<i32>} : memref<1x256x32xf32, #tpu.memory_space<vmem>>, vector<1x256x16xf32>,
    %c0_5 = arith.constant 0 : index
    %c0_6 = arith.constant 0 : index
    %c0_7 = arith.constant 0 : index
    %5 = vector.load %arg2[%c0_5, %c0_6, %c0_7] : memref<1x256x16xbf16, #tpu.memory_space<vmem>>, vector<1x256x16xbf16>
    %6 = vector.shape_cast %5 : vector<1x256x16xbf16> to vector<256x16xbf16>
    %7 = arith.extf %6 : vector<256x16xbf16> to vector<256x16xf32>
    %c0_8 = arith.constant 0 : index
    %c0_9 = arith.constant 0 : index
    %8 = vector.load %arg3[%c0_8, %c0_9] : memref<1x16xf32, #tpu.memory_space<vmem>>, vector<1x16xf32>
    %9 = vector.broadcast %8 : vector<1x16xf32> to vector<256x16xf32>
    %10 = arith.mulf %7, %9 : vector<256x16xf32>
    %c0_10 = arith.constant 0 : index
    %c0_11 = arith.constant 0 : index
    %11 = vector.load %arg4[%c0_10, %c0_11] : memref<1x16xf32, #tpu.memory_space<vmem>>, vector<1x16xf32>
    %12 = vector.broadcast %11 : vector<1x16xf32> to vector<256x16xf32>
    %13 = arith.addf %10, %12 : vector<256x16xf32>
    %cst = arith.constant 0.707106769 : f32
    %14 = vector.broadcast %cst : f32 to vector<256x16xf32>
    %15 = arith.mulf %13, %14 : vector<256x16xf32>
    %16 = math.absf %15 : vector<256x16xf32>
    %cst_12 = arith.constant 0.327591091 : f32
    %17 = vector.broadcast %cst_12 : f32 to vector<256x16xf32>
    %18 = arith.mulf %17, %16 : vector<256x16xf32>
    %cst_13 = arith.constant 1.000000e+00 : f32
    %19 = vector.broadcast %cst_13 : f32 to vector<256x16xf32>
    %20 = arith.addf %19, %18 : vector<256x16xf32>
    %cst_14 = arith.constant 1.000000e+00 : f32
    %21 = vector.broadcast %cst_14 : f32 to vector<256x16xf32>
    %22 = arith.divf %21, %20 : vector<256x16xf32>
    %cst_15 = arith.constant 1.06140542 : f32
    %23 = vector.broadcast %cst_15 : f32 to vector<256x16xf32>
    %24 = arith.mulf %23, %22 : vector<256x16xf32>
    %cst_16 = arith.constant -1.45315206 : f32
    %25 = vector.broadcast %cst_16 : f32 to vector<256x16xf32>
    %26 = arith.addf %24, %25 : vector<256x16xf32>
    %27 = arith.mulf %26, %22 : vector<256x16xf32>
    %cst_17 = arith.constant 1.42141378 : f32
    %28 = vector.broadcast %cst_17 : f32 to vector<256x16xf32>
    %29 = arith.addf %27, %28 : vector<256x16xf32>
    %30 = arith.mulf %29, %22 : vector<256x16xf32>
    %cst_18 = arith.constant -0.284496725 : f32
    %31 = vector.broadcast %cst_18 : f32 to vector<256x16xf32>
    %32 = arith.addf %30, %31 : vector<256x16xf32>
    %33 = arith.mulf %32, %22 : vector<256x16xf32>
    %cst_19 = arith.constant 0.254829586 : f32
    %34 = vector.broadcast %cst_19 : f32 to vector<256x16xf32>
    %35 = arith.addf %33, %34 : vector<256x16xf32>
    %36 = arith.mulf %35, %22 : vector<256x16xf32>
    %cst_20 = arith.constant 0.000000e+00 : f32
    %37 = vector.broadcast %cst_20 : f32 to vector<256x16xf32>
    %38 = arith.subf %37, %16 : vector<256x16xf32>
    %39 = arith.mulf %38, %16 : vector<256x16xf32>
    %40 = math.exp %39 : vector<256x16xf32>
    %41 = arith.mulf %36, %40 : vector<256x16xf32>
    %cst_21 = arith.constant 1.000000e+00 : f32
    %42 = vector.broadcast %cst_21 : f32 to vector<256x16xf32>
    %43 = arith.subf %42, %41 : vector<256x16xf32>
    %cst_22 = arith.constant 0.000000e+00 : f32
    %44 = vector.broadcast %cst_22 : f32 to vector<256x16xf32>
    %45 = arith.cmpf oge, %15, %44 : vector<256x16xf32>
    %cst_23 = arith.constant 0.000000e+00 : f32
    %46 = vector.broadcast %cst_23 : f32 to vector<256x16xf32>
    %47 = arith.subf %46, %43 : vector<256x16xf32>
    %48 = arith.select %45, %43, %47 : vector<256x16xi1>, vector<256x16xf32>
    %cst_24 = arith.constant 5.000000e-01 : f32
    %49 = vector.broadcast %cst_24 : f32 to vector<256x16xf32>
    %50 = arith.mulf %49, %13 : vector<256x16xf32>
    %cst_25 = arith.constant 1.000000e+00 : f32
    %51 = vector.broadcast %cst_25 : f32 to vector<256x16xf32>
    %52 = arith.addf %51, %48 : vector<256x16xf32>
    %53 = arith.mulf %50, %52 : vector<256x16xf32>
    %c0_26 = arith.constant 0 : index
    %c0_27 = arith.constant 0 : index
    %c16 = arith.constant 16 : index
    %54 = vector.load %arg5[%c0_26, %c0_27, %c16] : memref<1x256x32xf32, #tpu.memory_space<vmem>>, vector<1x256x16xf32>
    %55 = vector.shape_cast %54 : vector<1x256x16xf32> to vector<256x16xf32>
    %56 = vector.shape_cast %53 : vector<256x16xf32> to vector<1x256x16xf32>
    tpu.vector_store %arg5[%c0_26, %c0_27, %c16], %56 {strides = array<i32>} : memref<1x256x32xf32, #tpu.memory_space<vmem>>, vector<1x256x16xf32>,
    return
  }
  func.func @transform_0(%arg0: i32) -> (i32, i32, i32) {
    %c0_i32 = arith.constant 0 : i32
    %c0_i32_0 = arith.constant 0 : i32
    %c0_i32_1 = arith.constant 0 : i32
    return %arg0, %c0_i32, %c0_i32_0 : i32, i32, i32
  }
  func.func @transform_1(%arg0: i32) -> (i32, i32, i32) {
    %c0_i32 = arith.constant 0 : i32
    %c0_i32_0 = arith.constant 0 : i32
    %c0_i32_1 = arith.constant 0 : i32
    return %arg0, %c0_i32, %c0_i32_0 : i32, i32, i32
  }
  func.func @transform_2(%arg0: i32) -> (i32, i32) {
    %c0_i32 = arith.constant 0 : i32
    %c0_i32_0 = arith.constant 0 : i32
    %c0_i32_1 = arith.constant 0 : i32
    return %c0_i32, %c0_i32_0 : i32, i32
  }
  func.func @transform_3(%arg0: i32) -> (i32, i32) {
    %c0_i32 = arith.constant 0 : i32
    %c0_i32_0 = arith.constant 0 : i32
    %c0_i32_1 = arith.constant 0 : i32
    return %c0_i32, %c0_i32_0 : i32, i32
  }
  func.func @transform_4(%arg0: i32) -> (i32, i32, i32) {
    %c0_i32 = arith.constant 0 : i32
    %c0_i32_0 = arith.constant 0 : i32
    %c0_i32_1 = arith.constant 0 : i32
    return %arg0, %c0_i32, %c0_i32_0 : i32, i32, i32
  }
}

</mosaic_0001>

<llo_original>
// kernel: up_forward.4
$region0: #{up_forward.4}
  #allocation0 [shape = 'u32[]', space=smem, size = 0x4, offset = 0x4, fixed_abs, tag = 'smem constant byte address 0x4 - core index']
  #allocation1 [shape = 'u32[144,128]{1,0:T(1,128)}', space=vmem, size = 0x12000, scoped, tag = 'internal scratch']
  %s0 = inlined_call_operand.vmem [shape: f32[2,9,9,32], index: 0, kind: input, shape index: {}]
  %s1 = inlined_call_operand.vmem [shape: bf16[9,32,16], index: 1, kind: input, shape index: {}]
  %s2 = inlined_call_operand.vmem [shape: f32[1,16], index: 2, kind: input, shape index: {}]
  %s3 = inlined_call_operand.vmem [shape: bf16[2,8,8,16], index: 3, kind: output, shape index: {0}]
  %s4 = inlined_call_operand.vmem [shape: bf16[2,8,8,16], index: 4, kind: output, shape index: {1}]
  %s5 = inlined_call_operand.vmem [shape: bf16[2,8,8,16], index: 5, kind: output, shape index: {2}]
  %s6 = inlined_call_operand.vmem [shape: bf16[2,8,8,16], index: 6, kind: output, shape index: {3}]
  %7 = xla_tuple %s3, %s4, %s5, %s6
  %s8 = sld [smem:[#allocation0]]
  $region69: #{up_forward.4} parent=0
    _
  %s10 = ssub.s32 1, %s8
  %s11 = scalar_select 0, %s10, %s8
  loop: start=0, step=1, limit=4
  $region2: #{up_forward.4} parent=0 // loop_pre_header
    _
  $region3: #{up_forward.4} parent=0 // loop_header
    %s13 = sphi 0, %s17
    %p14 = scmp.ge.s32.totalorder %s13, 4
    %s23 = sphi 0, %s25
    %s26 = sphi 0, %s23
    %s27 = sphi 0, %s26
    %s43 = sphi 0, %s27
    %s47 = sphi 0, %s47
    %s49 = sphi 0, %s47
    %s50 = sphi 0, %s49
    %s64 = sphi 0, %s50
    %s68 = sphi 0, %s68
    %s70 = sphi 0, %s68
    %s71 = sphi 0, %s70
    %s85 = sphi 0, %s71
    %s91 = sphi 0, %s93
    %s94 = sphi 0, %s91
    %s95 = sphi 0, %s94
    %s111 = sphi 0, %s95
    %s117 = sphi 0, %s119
    %s120 = sphi 0, %s117
    %s121 = sphi 0, %s120
    %s137 = sphi 0, %s121
    %s143 = sphi 0, %s145
    %s146 = sphi 0, %s143
    %s147 = sphi 0, %s146
    %s163 = sphi 0, %s147
    %s169 = sphi 0, %s171
    %s172 = sphi 0, %s169
    %s173 = sphi 0, %s172
    %s189 = sphi 0, %s173
  $region4: #{up_forward.4} parent=0 // loop_header_branch
    %16 = sbr.rel (%p14) target = $region8
  $region5: #{up_forward.4} parent=0 // loop_body
    %s18 = ssub.s32 %s13, 1
    %s19 = ssub.s32 %s13, 2
    %s20 = sadd.s32 %s13, 1
    %s21 = ssub.s32 %s13, %s20
    %p22 = scmp.eq.s32.totalorder %s21, 0
    %s24 = sadd.s32 %s23, 1
    %s25 = scalar_select %p22, %s23, %s24
    %p28 = pneg %p22
    %p29 = scmp.eq.s32.totalorder %s13, 1
    %p30 = por %p28, %p29
    %p31 = scmp.ne.s32.totalorder %s23, %s26
    %p32 = scmp.eq.s32.totalorder %s13, 0
    %p33 = por %p31, %p32
    %p34 = scmp.ne.s32.totalorder %s23, %s26
    %p35 = scmp.eq.s32.totalorder %s18, 1
    %p36 = por %p34, %p35
    %p37 = scmp.ne.s32.totalorder %s26, %s27
    %p38 = scmp.eq.s32.totalorder %s18, 0
    %p39 = por %p37, %p38
    %p40 = scmp.ne.s32.totalorder %s26, %s27
    %p41 = scmp.eq.s32.totalorder %s19, 1
    %p42 = por %p40, %p41
    %p44 = scmp.ne.s32.totalorder %s27, %s43
    %p45 = scmp.eq.s32.totalorder %s19, 0
    %p46 = por %p44, %p45
    %s48 = sadd.s32 %s47, 1
    %p51 = scmp.eq.s32.totalorder %s13, 1
    %p52 = scmp.ne.s32.totalorder %s47, %s49
    %p53 = scmp.eq.s32.totalorder %s13, 0
    %p54 = por %p52, %p53
    %p55 = scmp.ne.s32.totalorder %s47, %s49
    %p56 = scmp.eq.s32.totalorder %s18, 1
    %p57 = por %p55, %p56
    %p58 = scmp.ne.s32.totalorder %s49, %s50
    %p59 = scmp.eq.s32.totalorder %s18, 0
    %p60 = por %p58, %p59
    %p61 = scmp.ne.s32.totalorder %s49, %s50
    %p62 = scmp.eq.s32.totalorder %s19, 1
    %p63 = por %p61, %p62
    %p65 = scmp.ne.s32.totalorder %s50, %s64
    %p66 = scmp.eq.s32.totalorder %s19, 0
    %p67 = por %p65, %p66
    %s69 = sadd.s32 %s68, 1
    %p72 = scmp.eq.s32.totalorder %s13, 1
    %p73 = scmp.ne.s32.totalorder %s68, %s70
    %p74 = scmp.eq.s32.totalorder %s13, 0
    %p75 = por %p73, %p74
    %p76 = scmp.ne.s32.totalorder %s68, %s70
    %p77 = scmp.eq.s32.totalorder %s18, 1
    %p78 = por %p76, %p77
    %p79 = scmp.ne.s32.totalorder %s70, %s71
    %p80 = scmp.eq.s32.totalorder %s18, 0
    %p81 = por %p79, %p80
    %p82 = scmp.ne.s32.totalorder %s70, %s71
    %p83 = scmp.eq.s32.totalorder %s19, 1
    %p84 = por %p82, %p83
    %p86 = scmp.ne.s32.totalorder %s71, %s85
    %p87 = scmp.eq.s32.totalorder %s19, 0
    %p88 = por %p86, %p87
    %s89 = ssub.s32 %s13, %s20
    %p90 = scmp.eq.s32.totalorder %s89, 0
    %s92 = sadd.s32 %s91, 1
    %s93 = scalar_select %p90, %s91, %s92
    %p96 = pneg %p90
    %p97 = scmp.eq.s32.totalorder %s13, 1
    %p98 = por %p96, %p97
    %p99 = scmp.ne.s32.totalorder %s91, %s94
    %p100 = scmp.eq.s32.totalorder %s13, 0
    %p101 = por %p99, %p100
    %p102 = scmp.ne.s32.totalorder %s91, %s94
    %p103 = scmp.eq.s32.totalorder %s18, 1
    %p104 = por %p102, %p103
    %p105 = scmp.ne.s32.totalorder %s94, %s95
    %p106 = scmp.eq.s32.totalorder %s18, 0
    %p107 = por %p105, %p106
    %p108 = scmp.ne.s32.totalorder %s94, %s95
    %p109 = scmp.eq.s32.totalorder %s19, 1
    %p110 = por %p108, %p109
    %p112 = scmp.ne.s32.totalorder %s95, %s111
    %p113 = scmp.eq.s32.totalorder %s19, 0
    %p114 = por %p112, %p113
    %s115 = ssub.s32 %s13, %s20
    %p116 = scmp.eq.s32.totalorder %s115, 0
    %s118 = sadd.s32 %s117, 1
    %s119 = scalar_select %p116, %s117, %s118
    %p122 = pneg %p116
    %p123 = scmp.eq.s32.totalorder %s13, 1
    %p124 = por %p122, %p123
    %p125 = scmp.ne.s32.totalorder %s117, %s120
    %p126 = scmp.eq.s32.totalorder %s13, 0
    %p127 = por %p125, %p126
    %p128 = scmp.ne.s32.totalorder %s117, %s120
    %p129 = scmp.eq.s32.totalorder %s18, 1
    %p130 = por %p128, %p129
    %p131 = scmp.ne.s32.totalorder %s120, %s121
    %p132 = scmp.eq.s32.totalorder %s18, 0
    %p133 = por %p131, %p132
    %p134 = scmp.ne.s32.totalorder %s120, %s121
    %p135 = scmp.eq.s32.totalorder %s19, 1
    %p136 = por %p134, %p135
    %p138 = scmp.ne.s32.totalorder %s121, %s137
    %p139 = scmp.eq.s32.totalorder %s19, 0
    %p140 = por %p138, %p139
    %s141 = ssub.s32 %s13, %s20
    %p142 = scmp.eq.s32.totalorder %s141, 0
    %s144 = sadd.s32 %s143, 1
    %s145 = scalar_select %p142, %s143, %s144
    %p148 = pneg %p142
    %p149 = scmp.eq.s32.totalorder %s13, 1
    %p150 = por %p148, %p149
    %p151 = scmp.ne.s32.totalorder %s143, %s146
    %p152 = scmp.eq.s32.totalorder %s13, 0
    %p153 = por %p151, %p152
    %p154 = scmp.ne.s32.totalorder %s143, %s146
    %p155 = scmp.eq.s32.totalorder %s18, 1
    %p156 = por %p154, %p155
    %p157 = scmp.ne.s32.totalorder %s146, %s147
    %p158 = scmp.eq.s32.totalorder %s18, 0
    %p159 = por %p157, %p158
    %p160 = scmp.ne.s32.totalorder %s146, %s147
    %p161 = scmp.eq.s32.totalorder %s19, 1
    %p162 = por %p160, %p161
    %p164 = scmp.ne.s32.totalorder %s147, %s163
    %p165 = scmp.eq.s32.totalorder %s19, 0
    %p166 = por %p164, %p165
    %s167 = ssub.s32 %s13, %s20
    %p168 = scmp.eq.s32.totalorder %s167, 0
    %s170 = sadd.s32 %s169, 1
    %s171 = scalar_select %p168, %s169, %s170
    %p174 = pneg %p168
    %p175 = scmp.eq.s32.totalorder %s13, 1
    %p176 = por %p174, %p175
    %p177 = scmp.ne.s32.totalorder %s169, %s172
    %p178 = scmp.eq.s32.totalorder %s13, 0
    %p179 = por %p177, %p178
    %p180 = scmp.ne.s32.totalorder %s169, %s172
    %p181 = scmp.eq.s32.totalorder %s18, 1
    %p182 = por %p180, %p181
    %p183 = scmp.ne.s32.totalorder %s172, %s173
    %p184 = scmp.eq.s32.totalorder %s18, 0
    %p185 = por %p183, %p184
    %p186 = scmp.ne.s32.totalorder %s172, %s173
    %p187 = scmp.eq.s32.totalorder %s19, 1
    %p188 = por %p186, %p187
    %p190 = scmp.ne.s32.totalorder %s173, %s189
    %p191 = scmp.eq.s32.totalorder %s19, 0
    %p192 = por %p190, %p191
    %p193 = scmp.le.s32.totalorder 1, %s13
    %p194 = scmp.lt.s32.totalorder %s13, 3
    %p195 = pnand %p193, %p194
    %p196 = pneg %p195
    // Predicated region
    $region9: #{up_forward.4} parent=5 // pred_check
      _
    $region10: #{up_forward.4} parent=5 // pred_check_branch
      %198 = sbr.rel (%p195) target = $region12
    $region11: #{up_forward.4} parent=5 // pred_region
      %s199 = ssub.s32 %s13, 1
      // Predicated region
      $region13: #{up_forward.4} parent=11 // pred_check
        %p200 = pneg %p60
      $region14: #{up_forward.4} parent=11 // pred_check_branch
        %202 = sbr.rel (%p200) target = $region16
      $region15: #{up_forward.4} parent=11 // pred_region
        _
      $region16: #{up_forward.4} parent=11 // pred_fallthru
        _
      // Predicated region
      $region17: #{up_forward.4} parent=11 // pred_check
        %p203 = pneg %p81
      $region18: #{up_forward.4} parent=11 // pred_check_branch
        %205 = sbr.rel (%p203) target = $region20
      $region19: #{up_forward.4} parent=11 // pred_region
        _
      $region20: #{up_forward.4} parent=11 // pred_fallthru
        _
    $region12: #{up_forward.4} parent=5 // pred_fallthru
      _
    %p206 = scmp.lt.s32.totalorder %s13, 2
    // Predicated region
    $region21: #{up_forward.4} parent=5 // pred_check
      %p207 = pneg %p206
    $region22: #{up_forward.4} parent=5 // pred_check_branch
      %209 = sbr.rel (%p207) target = $region24
    $region23: #{up_forward.4} parent=5 // pred_region
      // Predicated region
      $region25: #{up_forward.4} parent=23 // pred_check
        %p210 = pneg %p33
      $region26: #{up_forward.4} parent=23 // pred_check_branch
        %212 = sbr.rel (%p210) target = $region28
      $region27: #{up_forward.4} parent=23 // pred_region
        %p213 = scmp.lt.s32.totalorder %s13, 1
        %s214 = scalar_select %p213, %s13, 1
        %s215 = smul.addr %s214, 18
        %s216 = smul.addr %s215, 8
        %s217 = scalar_lea.vmem %s0, %s216
      $region28: #{up_forward.4} parent=23 // pred_fallthru
        _
    $region24: #{up_forward.4} parent=5 // pred_fallthru
      _
    %p218 = scmp.le.s32.totalorder 1, %s13
    %p219 = scmp.lt.s32.totalorder %s13, 3
    %p220 = pnand %p218, %p219
    %p221 = pneg %p220
    // Predicated region
    $region29: #{up_forward.4} parent=5 // pred_check
      _
    $region30: #{up_forward.4} parent=5 // pred_check_branch
      %223 = sbr.rel (%p220) target = $region32
    $region31: #{up_forward.4} parent=5 // pred_region
      %s224 = ssub.s32 %s13, 1
      %p225 = scmp.lt.s32.totalorder %s18, 1
      %s226 = scalar_select %p225, %s18, 1
      %s227 = smul.addr %s226, 18
      %s228 = smul.addr %s227, 8
      %s229 = scalar_lea.vmem %s0, %s228
      %p230 = pneg %p39
      %p231 = pneg %p36
      %p232 = pneg %p60
      %p233 = pneg %p57
      %p234 = pneg %p81
      %p235 = pneg %p78
      %p236 = pneg %p107
      %p237 = pneg %p104
      %p238 = scmp.lt.s32.totalorder %s18, 1
      %s239 = scalar_select %p238, %s18, 1
      %s240 = smul.addr %s239, 8
      %s241 = smul.addr %s240, 4
      %s242 = scalar_lea.vmem %s3, %s241
      %p243 = pneg %p133
      %p244 = pneg %p130
      %p245 = scmp.lt.s32.totalorder %s18, 1
      %s246 = scalar_select %p245, %s18, 1
      %s247 = smul.addr %s246, 8
      %s248 = smul.addr %s247, 4
      %s249 = scalar_lea.vmem %s4, %s248
      %p250 = pneg %p159
      %p251 = pneg %p156
      %p252 = scmp.lt.s32.totalorder %s18, 1
      %s253 = scalar_select %p252, %s18, 1
      %s254 = smul.addr %s253, 8
      %s255 = smul.addr %s254, 4
      %s256 = scalar_lea.vmem %s5, %s255
      %p257 = pneg %p185
      %p258 = pneg %p182
      %p259 = scmp.lt.s32.totalorder %s18, 1
      %s260 = scalar_select %p259, %s18, 1
      %s261 = smul.addr %s260, 8
      %s262 = smul.addr %s261, 4
      %s263 = scalar_lea.vmem %s6, %s262
      %p264 = scmp.lt.s32.totalorder %s18, 1
      %s265 = scalar_select %p264, %s18, 1
      %s266 = smul.addr %s265, 18
      %s267 = smul.addr %s266, 8
      %s268 = scalar_lea.vmem %s0, %s267
      %p269 = scmp.lt.s32.totalorder %s18, 1
      %s270 = scalar_select %p269, %s18, 1
      %s271 = smul.addr %s270, 8
      %s272 = smul.addr %s271, 4
      %s273 = scalar_lea.vmem %s3, %s272
      %p274 = scmp.lt.s32.totalorder %s18, 1
      %s275 = scalar_select %p274, %s18, 1
      %s276 = smul.addr %s275, 8
      %s277 = smul.addr %s276, 4
      %s278 = scalar_lea.vmem %s4, %s277
      %p279 = scmp.lt.s32.totalorder %s18, 1
      %s280 = scalar_select %p279, %s18, 1
      %s281 = smul.addr %s280, 8
      %s282 = smul.addr %s281, 4
      %s283 = scalar_lea.vmem %s5, %s282
      %p284 = scmp.lt.s32.totalorder %s18, 1
      %s285 = scalar_select %p284, %s18, 1
      %s286 = smul.addr %s285, 8
      %s287 = smul.addr %s286, 4
      %s288 = scalar_lea.vmem %s6, %s287
      %v290 = vld [vmem:[%s268] sm:$0xff]
      %v291 = vld [vmem:[%s268 + $0x8] sm:$0x1]
      %v292 = vld [vmem:[%s268 + $0x10] sm:$0xff]
      %v293 = vld [vmem:[%s268 + $0x18] sm:$0x1]
      %v294 = vld [vmem:[%s268 + $0x20] sm:$0xff]
      %v295 = vld [vmem:[%s268 + $0x28] sm:$0x1]
      %v296 = vld [vmem:[%s268 + $0x30] sm:$0xff]
      %v297 = vld [vmem:[%s268 + $0x38] sm:$0x1]
      %v298 = vld [vmem:[%s268 + $0x40] sm:$0xff]
      %v299 = vld [vmem:[%s268 + $0x48] sm:$0x1]
      %v300 = vld [vmem:[%s268 + $0x50] sm:$0xff]
      %v301 = vld [vmem:[%s268 + $0x58] sm:$0x1]
      %v302 = vld [vmem:[%s268 + $0x60] sm:$0xff]
      %v303 = vld [vmem:[%s268 + $0x68] sm:$0x1]
      %v304 = vld [vmem:[%s268 + $0x70] sm:$0xff]
      %v305 = vld [vmem:[%s268 + $0x78] sm:$0x1]
      %v306 = vld [vmem:[%s268 + $0x80] sm:$0xff]
      %v307 = vld [vmem:[%s268 + $0x88] sm:$0x1]
      %vm324 = vcmask 1046528
      %v325 = vrot.slane %v292, 1
      %v326 = vrot.slane %v293, 1
      %v327 = vsel %vm324, %v325, %v326
      %v328 = vrot.slane %v294, 1
      %v329 = vrot.slane %v295, 1
      %v330 = vsel %vm324, %v328, %v329
      %v331 = vrot.slane %v296, 1
      %v332 = vrot.slane %v297, 1
      %v333 = vsel %vm324, %v331, %v332
      %v334 = vrot.slane %v298, 1
      %v335 = vrot.slane %v299, 1
      %v336 = vsel %vm324, %v334, %v335
      %v337 = vrot.slane %v300, 1
      %v338 = vrot.slane %v301, 1
      %v339 = vsel %vm324, %v337, %v338
      %v340 = vrot.slane %v302, 1
      %v341 = vrot.slane %v303, 1
      %v342 = vsel %vm324, %v340, %v341
      %v343 = vrot.slane %v304, 1
      %v344 = vrot.slane %v305, 1
      %v345 = vsel %vm324, %v343, %v344
      %v346 = vrot.slane %v306, 1
      %v347 = vrot.slane %v307, 1
      %v348 = vsel %vm324, %v346, %v347
      %v357 = vpack.c.bf16 %v330, %v327
      %v358 = vpack.c.bf16 %v336, %v333
      %v359 = vpack.c.bf16 %v342, %v339
      %v360 = vpack.c.bf16 %v348, %v345
      %v361 = vpack.c.bf16 %v294, %v292
      %v362 = vpack.c.bf16 %v298, %v296
      %v363 = vpack.c.bf16 %v302, %v300
      %v364 = vpack.c.bf16 %v306, %v304
      %v367 = vrot.slane %v290, 1
      %v368 = vrot.slane %v291, 1
      %v369 = vsel %vm324, %v367, %v368
      %v371 = vpack.c.bf16 %v327, %v369
      %v372 = vpack.c.bf16 %v333, %v330
      %v373 = vpack.c.bf16 %v339, %v336
      %v374 = vpack.c.bf16 %v345, %v342
      %v375 = vpack.c.bf16 %v292, %v290
      %v376 = vpack.c.bf16 %v296, %v294
      %v377 = vpack.c.bf16 %v300, %v298
      %v378 = vpack.c.bf16 %v304, %v302
      %v379 = vld [vmem:[%s2] sm:$0x1]
      %v380 = vld [vmem:[%s1] sm:$0xf]
      %v381 = vld [vmem:[%s1 + $0x4] sm:$0xf]
      %v382 = vld [vmem:[%s1 + $0x8] sm:$0xf]
      %v383 = vld [vmem:[%s1 + $0xc] sm:$0xf]
      %s384 = scalar_lea.vmem %s1, 32
      %v385 = vld [vmem:[%s384] sm:$0xf]
      %v386 = vld [vmem:[%s384 + $0x4] sm:$0xf]
      %v387 = vld [vmem:[%s384 + $0x8] sm:$0xf]
      %v388 = vld [vmem:[%s384 + $0xc] sm:$0xf]
      %v393 = vunpack.c.l.b16 %v385
      %v394 = vunpack.c.l.b16 %v386
      %v395 = vunpack.c.l.b16 %v387
      %v396 = vunpack.c.l.b16 %v388
      %v397 = vpack.c.b16 %v394, %v393
      %v398 = vpack.c.b16 %v396, %v395
      %vm401 = vcmask 261120
      %v403 = vsel %vm401, %v361, 0
      %v406 = vsel %vm401, %v362, 0
      %v409 = vsel %vm401, %v363, 0
      %v412 = vsel %vm401, %v364, 0
      %414 = vmatprep.subr.bf16.mxu0 0
      %415 = vmatpush1.bf16.msra.mxu0 0
      %416 = vmatprep.subr.bf16.mxu0 0
      %417 = vmatpush1.bf16.msra.mxu0 0
      %418 = vmatprep.subr.bf16.mxu0 0
      %419 = vmatpush1.bf16.msra.mxu0 0
      %420 = vmatprep.subr.bf16.mxu0 0
      %421 = vmatpush1.bf16.msra.mxu0 0
      %422 = vmatprep.subr.bf16.mxu0 0
      %423 = vmatpush1.bf16.msra.mxu0 0
      %424 = vmatprep.subr.bf16.mxu0 0
      %425 = vmatpush1.bf16.msra.mxu0 0
      %426 = vmatprep.subr.bf16.mxu0 0
      %427 = vmatpush1.bf16.msra.mxu0 %v398
      %428 = vmatprep.subr.bf16.mxu0 0
      %429 = vmatpush1.bf16.msra.mxu0 %v397
      %430 = vmatprep.subr.bf16.mxu0 0
      %431 = vmatpush2.bf16.msra.mxu0 0
      %432 = vmatprep.subr.bf16.mxu0 0
      %433 = vmatpush2.bf16.msra.mxu0 0
      %434 = vmatprep.subr.bf16.mxu0 0
      %435 = vmatpush2.bf16.msra.mxu0 0
      %436 = vmatprep.subr.bf16.mxu0 0
      %437 = vmatpush2.bf16.msra.mxu0 0
      %438 = vmatprep.subr.bf16.mxu0 0
      %439 = vmatpush2.bf16.msra.mxu0 0
      %440 = vmatprep.subr.bf16.mxu0 0
      %441 = vmatpush2.bf16.msra.mxu0 0
      %442 = vmatprep.subr.bf16.mxu0 0
      %443 = vmatpush2.bf16.msra.mxu0 0
      %444 = vmatprep.subr.bf16.mxu0 0
      %445 = vmatpush2.bf16.msra.mxu0 0
      %446 = vmatprep.mubr.bf16.mxu0 0
      %447 = vmatmul.mubr.bf16.gmra.mxu0 %v403
      %v448 = vpop.f32.mrf.mxu0
      %v449 = vadd.f32 0.0, %v448
      %v450 = vpop.f32.mrf.mxu0
      %v451 = vpop.f32.mrf.mxu0
      %v452 = vadd.f32 0.0, %v451
      %v453 = vpop.f32.mrf.mxu0
      %454 = vmatprep.mubr.bf16.mxu0 0
      %455 = vmatmul.mubr.bf16.gmra.mxu0 %v406
      %v456 = vpop.f32.mrf.mxu0
      %v457 = vadd.f32 0.0, %v456
      %v458 = vpop.f32.mrf.mxu0
      %v459 = vpop.f32.mrf.mxu0
      %v460 = vadd.f32 0.0, %v459
      %v461 = vpop.f32.mrf.mxu0
      %462 = vmatprep.mubr.bf16.mxu0 0
      %463 = vmatmul.mubr.bf16.gmra.mxu0 %v409
      %v464 = vpop.f32.mrf.mxu0
      %v465 = vadd.f32 0.0, %v464
      %v466 = vpop.f32.mrf.mxu0
      %v467 = vpop.f32.mrf.mxu0
      %v468 = vadd.f32 0.0, %v467
      %v469 = vpop.f32.mrf.mxu0
      %470 = vmatprep.mubr.bf16.mxu0 0
      %471 = vmatmul.mubr.bf16.gmra.mxu0 %v412
      %v472 = vpop.f32.mrf.mxu0
      %v473 = vadd.f32 0.0, %v472
      %v474 = vpop.f32.mrf.mxu0
      %v475 = vpop.f32.mrf.mxu0
      %v476 = vadd.f32 0.0, %v475
      %v477 = vpop.f32.mrf.mxu0
      %478 = vdwg.mxu0
      %v483 = vunpack.c.l.b16 %v380
      %v484 = vunpack.c.l.b16 %v381
      %v485 = vunpack.c.l.b16 %v382
      %v486 = vunpack.c.l.b16 %v383
      %v487 = vpack.c.b16 %v484, %v483
      %v488 = vpack.c.b16 %v486, %v485
      %v492 = vsel %vm401, %v357, 0
      %v495 = vsel %vm401, %v358, 0
      %v498 = vsel %vm401, %v359, 0
      %v501 = vsel %vm401, %v360, 0
      %503 = vmatprep.subr.bf16.mxu0 0
      %504 = vmatpush1.bf16.msra.mxu0 0
      %505 = vmatprep.subr.bf16.mxu0 0
      %506 = vmatpush1.bf16.msra.mxu0 0
      %507 = vmatprep.subr.bf16.mxu0 0
      %508 = vmatpush1.bf16.msra.mxu0 0
      %509 = vmatprep.subr.bf16.mxu0 0
      %510 = vmatpush1.bf16.msra.mxu0 0
      %511 = vmatprep.subr.bf16.mxu0 0
      %512 = vmatpush1.bf16.msra.mxu0 0
      %513 = vmatprep.subr.bf16.mxu0 0
      %514 = vmatpush1.bf16.msra.mxu0 0
      %515 = vmatprep.subr.bf16.mxu0 0
      %516 = vmatpush1.bf16.msra.mxu0 %v488
      %517 = vmatprep.subr.bf16.mxu0 0
      %518 = vmatpush1.bf16.msra.mxu0 %v487
      %519 = vmatprep.subr.bf16.mxu0 0
      %520 = vmatpush2.bf16.msra.mxu0 0
      %521 = vmatprep.subr.bf16.mxu0 0
      %522 = vmatpush2.bf16.msra.mxu0 0
      %523 = vmatprep.subr.bf16.mxu0 0
      %524 = vmatpush2.bf16.msra.mxu0 0
      %525 = vmatprep.subr.bf16.mxu0 0
      %526 = vmatpush2.bf16.msra.mxu0 0
      %527 = vmatprep.subr.bf16.mxu0 0
      %528 = vmatpush2.bf16.msra.mxu0 0
      %529 = vmatprep.subr.bf16.mxu0 0
      %530 = vmatpush2.bf16.msra.mxu0 0
      %531 = vmatprep.subr.bf16.mxu0 0
      %532 = vmatpush2.bf16.msra.mxu0 0
      %533 = vmatprep.subr.bf16.mxu0 0
      %534 = vmatpush2.bf16.msra.mxu0 0
      %535 = vmatprep.mubr.bf16.mxu0 0
      %536 = vmatmul.mubr.bf16.gmra.mxu0 %v492
      %v537 = vpop.f32.mrf.mxu0
      %v538 = vadd.f32 %v449, %v537
      %v539 = vpop.f32.mrf.mxu0
      %v540 = vpop.f32.mrf.mxu0
      %v541 = vadd.f32 %v452, %v540
      %v542 = vpop.f32.mrf.mxu0
      %543 = vmatprep.mubr.bf16.mxu0 0
      %544 = vmatmul.mubr.bf16.gmra.mxu0 %v495
      %v545 = vpop.f32.mrf.mxu0
      %v546 = vadd.f32 %v457, %v545
      %v547 = vpop.f32.mrf.mxu0
      %v548 = vpop.f32.mrf.mxu0
      %v549 = vadd.f32 %v460, %v548
      %v550 = vpop.f32.mrf.mxu0
      %551 = vmatprep.mubr.bf16.mxu0 0
      %552 = vmatmul.mubr.bf16.gmra.mxu0 %v498
      %v553 = vpop.f32.mrf.mxu0
      %v554 = vadd.f32 %v465, %v553
      %v555 = vpop.f32.mrf.mxu0
      %v556 = vpop.f32.mrf.mxu0
      %v557 = vadd.f32 %v468, %v556
      %v558 = vpop.f32.mrf.mxu0
      %559 = vmatprep.mubr.bf16.mxu0 0
      %560 = vmatmul.mubr.bf16.gmra.mxu0 %v501
      %v561 = vpop.f32.mrf.mxu0
      %v562 = vadd.f32 %v473, %v561
      %v563 = vpop.f32.mrf.mxu0
      %v564 = vpop.f32.mrf.mxu0
      %v565 = vadd.f32 %v476, %v564
      %v566 = vpop.f32.mrf.mxu0
      %567 = vdwg.mxu0
      %s568 = scalar_lea.vmem %s1, 96
      %v569 = vld [vmem:[%s568] sm:$0xf]
      %v570 = vld [vmem:[%s568 + $0x4] sm:$0xf]
      %v571 = vld [vmem:[%s568 + $0x8] sm:$0xf]
      %v572 = vld [vmem:[%s568 + $0xc] sm:$0xf]
      %v577 = vunpack.c.l.b16 %v569
      %v578 = vunpack.c.l.b16 %v570
      %v579 = vunpack.c.l.b16 %v571
      %v580 = vunpack.c.l.b16 %v572
      %v581 = vpack.c.b16 %v578, %v577
      %v582 = vpack.c.b16 %v580, %v579
      %v586 = vsel %vm401, %v371, 0
      %v589 = vsel %vm401, %v372, 0
      %v592 = vsel %vm401, %v373, 0
      %v595 = vsel %vm401, %v374, 0
      %597 = vmatprep.subr.bf16.mxu0 0
      %598 = vmatpush1.bf16.msra.mxu0 0
      %599 = vmatprep.subr.bf16.mxu0 0
      %600 = vmatpush1.bf16.msra.mxu0 0
      %601 = vmatprep.subr.bf16.mxu0 0
      %602 = vmatpush1.bf16.msra.mxu0 0
      %603 = vmatprep.subr.bf16.mxu0 0
      %604 = vmatpush1.bf16.msra.mxu0 0
      %605 = vmatprep.subr.bf16.mxu0 0
      %606 = vmatpush1.bf16.msra.mxu0 0
      %607 = vmatprep.subr.bf16.mxu0 0
      %608 = vmatpush1.bf16.msra.mxu0 0
      %609 = vmatprep.subr.bf16.mxu0 0
      %610 = vmatpush1.bf16.msra.mxu0 %v582
      %611 = vmatprep.subr.bf16.mxu0 0
      %612 = vmatpush1.bf16.msra.mxu0 %v581
      %613 = vmatprep.subr.bf16.mxu0 0
      %614 = vmatpush2.bf16.msra.mxu0 0
      %615 = vmatprep.subr.bf16.mxu0 0
      %616 = vmatpush2.bf16.msra.mxu0 0
      %617 = vmatprep.subr.bf16.mxu0 0
      %618 = vmatpush2.bf16.msra.mxu0 0
      %619 = vmatprep.subr.bf16.mxu0 0
      %620 = vmatpush2.bf16.msra.mxu0 0
      %621 = vmatprep.subr.bf16.mxu0 0
      %622 = vmatpush2.bf16.msra.mxu0 0
      %623 = vmatprep.subr.bf16.mxu0 0
      %624 = vmatpush2.bf16.msra.mxu0 0
      %625 = vmatprep.subr.bf16.mxu0 0
      %626 = vmatpush2.bf16.msra.mxu0 0
      %627 = vmatprep.subr.bf16.mxu0 0
      %628 = vmatpush2.bf16.msra.mxu0 0
      %629 = vmatprep.mubr.bf16.mxu0 0
      %630 = vmatmul.mubr.bf16.gmra.mxu0 %v586
      %v631 = vpop.f32.mrf.mxu0
      %v632 = vadd.f32 0.0, %v631
      %v633 = vpop.f32.mrf.mxu0
      %v634 = vpop.f32.mrf.mxu0
      %v635 = vadd.f32 0.0, %v634
      %v636 = vpop.f32.mrf.mxu0
      %637 = vmatprep.mubr.bf16.mxu0 0
      %638 = vmatmul.mubr.bf16.gmra.mxu0 %v589
      %v639 = vpop.f32.mrf.mxu0
      %v640 = vadd.f32 0.0, %v639
      %v641 = vpop.f32.mrf.mxu0
      %v642 = vpop.f32.mrf.mxu0
      %v643 = vadd.f32 0.0, %v642
      %v644 = vpop.f32.mrf.mxu0
      %645 = vmatprep.mubr.bf16.mxu0 0
      %646 = vmatmul.mubr.bf16.gmra.mxu0 %v592
      %v647 = vpop.f32.mrf.mxu0
      %v648 = vadd.f32 0.0, %v647
      %v649 = vpop.f32.mrf.mxu0
      %v650 = vpop.f32.mrf.mxu0
      %v651 = vadd.f32 0.0, %v650
      %v652 = vpop.f32.mrf.mxu0
      %653 = vmatprep.mubr.bf16.mxu0 0
      %654 = vmatmul.mubr.bf16.gmra.mxu0 %v595
      %v655 = vpop.f32.mrf.mxu0
      %v656 = vadd.f32 0.0, %v655
      %v657 = vpop.f32.mrf.mxu0
      %v658 = vpop.f32.mrf.mxu0
      %v659 = vadd.f32 0.0, %v658
      %v660 = vpop.f32.mrf.mxu0
      %661 = vdwg.mxu0
      %v662 = vadd.f32 %v538, %v632
      %v663 = vadd.f32 %v541, %v635
      %v664 = vadd.f32 %v546, %v640
      %v665 = vadd.f32 %v549, %v643
      %v666 = vadd.f32 %v554, %v648
      %v667 = vadd.f32 %v557, %v651
      %v668 = vadd.f32 %v562, %v656
      %v669 = vadd.f32 %v565, %v659
      %s670 = scalar_lea.vmem %s1, 128
      %v671 = vld [vmem:[%s670] sm:$0xf]
      %v672 = vld [vmem:[%s670 + $0x4] sm:$0xf]
      %v673 = vld [vmem:[%s670 + $0x8] sm:$0xf]
      %v674 = vld [vmem:[%s670 + $0xc] sm:$0xf]
      %v679 = vunpack.c.l.b16 %v671
      %v680 = vunpack.c.l.b16 %v672
      %v681 = vunpack.c.l.b16 %v673
      %v682 = vunpack.c.l.b16 %v674
      %v683 = vpack.c.b16 %v680, %v679
      %v684 = vpack.c.b16 %v682, %v681
      %v688 = vsel %vm401, %v375, 0
      %v691 = vsel %vm401, %v376, 0
      %v694 = vsel %vm401, %v377, 0
      %v697 = vsel %vm401, %v378, 0
      %699 = vmatprep.subr.bf16.mxu0 0
      %700 = vmatpush1.bf16.msra.mxu0 0
      %701 = vmatprep.subr.bf16.mxu0 0
      %702 = vmatpush1.bf16.msra.mxu0 0
      %703 = vmatprep.subr.bf16.mxu0 0
      %704 = vmatpush1.bf16.msra.mxu0 0
      %705 = vmatprep.subr.bf16.mxu0 0
      %706 = vmatpush1.bf16.msra.mxu0 0
      %707 = vmatprep.subr.bf16.mxu0 0
      %708 = vmatpush1.bf16.msra.mxu0 0
      %709 = vmatprep.subr.bf16.mxu0 0
      %710 = vmatpush1.bf16.msra.mxu0 0
      %711 = vmatprep.subr.bf16.mxu0 0
      %712 = vmatpush1.bf16.msra.mxu0 %v684
      %713 = vmatprep.subr.bf16.mxu0 0
      %714 = vmatpush1.bf16.msra.mxu0 %v683
      %715 = vmatprep.subr.bf16.mxu0 0
      %716 = vmatpush2.bf16.msra.mxu0 0
      %717 = vmatprep.subr.bf16.mxu0 0
      %718 = vmatpush2.bf16.msra.mxu0 0
      %719 = vmatprep.subr.bf16.mxu0 0
      %720 = vmatpush2.bf16.msra.mxu0 0
      %721 = vmatprep.subr.bf16.mxu0 0
      %722 = vmatpush2.bf16.msra.mxu0 0
      %723 = vmatprep.subr.bf16.mxu0 0
      %724 = vmatpush2.bf16.msra.mxu0 0
      %725 = vmatprep.subr.bf16.mxu0 0
      %726 = vmatpush2.bf16.msra.mxu0 0
      %727 = vmatprep.subr.bf16.mxu0 0
      %728 = vmatpush2.bf16.msra.mxu0 0
      %729 = vmatprep.subr.bf16.mxu0 0
      %730 = vmatpush2.bf16.msra.mxu0 0
      %731 = vmatprep.mubr.bf16.mxu0 0
      %732 = vmatmul.mubr.bf16.gmra.mxu0 %v688
      %v733 = vpop.f32.mrf.mxu0
      %v734 = vadd.f32 0.0, %v733
      %v735 = vpop.f32.mrf.mxu0
      %v736 = vpop.f32.mrf.mxu0
      %v737 = vadd.f32 0.0, %v736
      %v738 = vpop.f32.mrf.mxu0
      %739 = vmatprep.mubr.bf16.mxu0 0
      %740 = vmatmul.mubr.bf16.gmra.mxu0 %v691
      %v741 = vpop.f32.mrf.mxu0
      %v742 = vadd.f32 0.0, %v741
      %v743 = vpop.f32.mrf.mxu0
      %v744 = vpop.f32.mrf.mxu0
      %v745 = vadd.f32 0.0, %v744
      %v746 = vpop.f32.mrf.mxu0
      %747 = vmatprep.mubr.bf16.mxu0 0
      %748 = vmatmul.mubr.bf16.gmra.mxu0 %v694
      %v749 = vpop.f32.mrf.mxu0
      %v750 = vadd.f32 0.0, %v749
      %v751 = vpop.f32.mrf.mxu0
      %v752 = vpop.f32.mrf.mxu0
      %v753 = vadd.f32 0.0, %v752
      %v754 = vpop.f32.mrf.mxu0
      %755 = vmatprep.mubr.bf16.mxu0 0
      %756 = vmatmul.mubr.bf16.gmra.mxu0 %v697
      %v757 = vpop.f32.mrf.mxu0
      %v758 = vadd.f32 0.0, %v757
      %v759 = vpop.f32.mrf.mxu0
      %v760 = vpop.f32.mrf.mxu0
      %v761 = vadd.f32 0.0, %v760
      %v762 = vpop.f32.mrf.mxu0
      %763 = vdwg.mxu0
      %v764 = vadd.f32 %v662, %v734
      %v765 = vadd.f32 %v663, %v737
      %v766 = vadd.f32 %v664, %v742
      %v767 = vadd.f32 %v665, %v745
      %v768 = vadd.f32 %v666, %v750
      %v769 = vadd.f32 %v667, %v753
      %v770 = vadd.f32 %v668, %v758
      %v771 = vadd.f32 %v669, %v761
      %v773 = vlaneseq
      %v774 = vshrl.u32 %v773, 7
      %v775 = vsub.s32 0, %v774
      %v776 = vrot.slane %v379, %v775
      %v778 = vadd.f32 %v764, %v776
      %v779 = vadd.f32 %v765, %v776
      %v780 = vadd.f32 %v766, %v776
      %v781 = vadd.f32 %v767, %v776
      %v782 = vadd.f32 %v768, %v776
      %v783 = vadd.f32 %v769, %v776
      %v784 = vadd.f32 %v770, %v776
      %v785 = vadd.f32 %v771, %v776
      %s786 = scalar_lea.vmem %s1, 16
      %v787 = vld [vmem:[%s786] sm:$0xf]
      %v788 = vld [vmem:[%s786 + $0x4] sm:$0xf]
      %v789 = vld [vmem:[%s786 + $0x8] sm:$0xf]
      %v790 = vld [vmem:[%s786 + $0xc] sm:$0xf]
      %s791 = scalar_lea.vmem %s1, 112
      %v792 = vld [vmem:[%s791] sm:$0xf]
      %v793 = vld [vmem:[%s791 + $0x4] sm:$0xf]
      %v794 = vld [vmem:[%s791 + $0x8] sm:$0xf]
      %v795 = vld [vmem:[%s791 + $0xc] sm:$0xf]
      %v800 = vunpack.c.l.b16 %v792
      %v801 = vunpack.c.l.b16 %v793
      %v802 = vunpack.c.l.b16 %v794
      %v803 = vunpack.c.l.b16 %v795
      %v804 = vpack.c.b16 %v801, %v800
      %v805 = vpack.c.b16 %v803, %v802
      %808 = vmatprep.subr.bf16.mxu0 0
      %809 = vmatpush1.bf16.msra.mxu0 0
      %810 = vmatprep.subr.bf16.mxu0 0
      %811 = vmatpush1.bf16.msra.mxu0 0
      %812 = vmatprep.subr.bf16.mxu0 0
      %813 = vmatpush1.bf16.msra.mxu0 0
      %814 = vmatprep.subr.bf16.mxu0 0
      %815 = vmatpush1.bf16.msra.mxu0 0
      %816 = vmatprep.subr.bf16.mxu0 0
      %817 = vmatpush1.bf16.msra.mxu0 0
      %818 = vmatprep.subr.bf16.mxu0 0
      %819 = vmatpush1.bf16.msra.mxu0 0
      %820 = vmatprep.subr.bf16.mxu0 0
      %821 = vmatpush1.bf16.msra.mxu0 %v805
      %822 = vmatprep.subr.bf16.mxu0 0
      %823 = vmatpush1.bf16.msra.mxu0 %v804
      %824 = vmatprep.subr.bf16.mxu0 0
      %825 = vmatpush2.bf16.msra.mxu0 0
      %826 = vmatprep.subr.bf16.mxu0 0
      %827 = vmatpush2.bf16.msra.mxu0 0
      %828 = vmatprep.subr.bf16.mxu0 0
      %829 = vmatpush2.bf16.msra.mxu0 0
      %830 = vmatprep.subr.bf16.mxu0 0
      %831 = vmatpush2.bf16.msra.mxu0 0
      %832 = vmatprep.subr.bf16.mxu0 0
      %833 = vmatpush2.bf16.msra.mxu0 0
      %834 = vmatprep.subr.bf16.mxu0 0
      %835 = vmatpush2.bf16.msra.mxu0 0
      %836 = vmatprep.subr.bf16.mxu0 0
      %837 = vmatpush2.bf16.msra.mxu0 0
      %838 = vmatprep.subr.bf16.mxu0 0
      %839 = vmatpush2.bf16.msra.mxu0 0
      %840 = vmatprep.mubr.bf16.mxu0 0
      %841 = vmatmul.mubr.bf16.gmra.mxu0 %v586
      %v842 = vpop.f32.mrf.mxu0
      %v843 = vadd.f32 0.0, %v842
      %v844 = vpop.f32.mrf.mxu0
      %v845 = vpop.f32.mrf.mxu0
      %v846 = vadd.f32 0.0, %v845
      %v847 = vpop.f32.mrf.mxu0
      %848 = vmatprep.mubr.bf16.mxu0 0
      %849 = vmatmul.mubr.bf16.gmra.mxu0 %v589
      %v850 = vpop.f32.mrf.mxu0
      %v851 = vadd.f32 0.0, %v850
      %v852 = vpop.f32.mrf.mxu0
      %v853 = vpop.f32.mrf.mxu0
      %v854 = vadd.f32 0.0, %v853
      %v855 = vpop.f32.mrf.mxu0
      %856 = vmatprep.mubr.bf16.mxu0 0
      %857 = vmatmul.mubr.bf16.gmra.mxu0 %v592
      %v858 = vpop.f32.mrf.mxu0
      %v859 = vadd.f32 0.0, %v858
      %v860 = vpop.f32.mrf.mxu0
      %v861 = vpop.f32.mrf.mxu0
      %v862 = vadd.f32 0.0, %v861
      %v863 = vpop.f32.mrf.mxu0
      %864 = vmatprep.mubr.bf16.mxu0 0
      %865 = vmatmul.mubr.bf16.gmra.mxu0 %v595
      %v866 = vpop.f32.mrf.mxu0
      %v867 = vadd.f32 0.0, %v866
      %v868 = vpop.f32.mrf.mxu0
      %v869 = vpop.f32.mrf.mxu0
      %v870 = vadd.f32 0.0, %v869
      %v871 = vpop.f32.mrf.mxu0
      %872 = vdwg.mxu0
      %v877 = vunpack.c.l.b16 %v787
      %v878 = vunpack.c.l.b16 %v788
      %v879 = vunpack.c.l.b16 %v789
      %v880 = vunpack.c.l.b16 %v790
      %v881 = vpack.c.b16 %v878, %v877
      %v882 = vpack.c.b16 %v880, %v879
      %885 = vmatprep.subr.bf16.mxu0 0
      %886 = vmatpush1.bf16.msra.mxu0 0
      %887 = vmatprep.subr.bf16.mxu0 0
      %888 = vmatpush1.bf16.msra.mxu0 0
      %889 = vmatprep.subr.bf16.mxu0 0
      %890 = vmatpush1.bf16.msra.mxu0 0
      %891 = vmatprep.subr.bf16.mxu0 0
      %892 = vmatpush1.bf16.msra.mxu0 0
      %893 = vmatprep.subr.bf16.mxu0 0
      %894 = vmatpush1.bf16.msra.mxu0 0
      %895 = vmatprep.subr.bf16.mxu0 0
      %896 = vmatpush1.bf16.msra.mxu0 0
      %897 = vmatprep.subr.bf16.mxu0 0
      %898 = vmatpush1.bf16.msra.mxu0 %v882
      %899 = vmatprep.subr.bf16.mxu0 0
      %900 = vmatpush1.bf16.msra.mxu0 %v881
      %901 = vmatprep.subr.bf16.mxu0 0
      %902 = vmatpush2.bf16.msra.mxu0 0
      %903 = vmatprep.subr.bf16.mxu0 0
      %904 = vmatpush2.bf16.msra.mxu0 0
      %905 = vmatprep.subr.bf16.mxu0 0
      %906 = vmatpush2.bf16.msra.mxu0 0
      %907 = vmatprep.subr.bf16.mxu0 0
      %908 = vmatpush2.bf16.msra.mxu0 0
      %909 = vmatprep.subr.bf16.mxu0 0
      %910 = vmatpush2.bf16.msra.mxu0 0
      %911 = vmatprep.subr.bf16.mxu0 0
      %912 = vmatpush2.bf16.msra.mxu0 0
      %913 = vmatprep.subr.bf16.mxu0 0
      %914 = vmatpush2.bf16.msra.mxu0 0
      %915 = vmatprep.subr.bf16.mxu0 0
      %916 = vmatpush2.bf16.msra.mxu0 0
      %917 = vmatprep.mubr.bf16.mxu0 0
      %918 = vmatmul.mubr.bf16.gmra.mxu0 %v492
      %v919 = vpop.f32.mrf.mxu0
      %v920 = vadd.f32 %v843, %v919
      %v921 = vpop.f32.mrf.mxu0
      %v922 = vpop.f32.mrf.mxu0
      %v923 = vadd.f32 %v846, %v922
      %v924 = vpop.f32.mrf.mxu0
      %925 = vmatprep.mubr.bf16.mxu0 0
      %926 = vmatmul.mubr.bf16.gmra.mxu0 %v495
      %v927 = vpop.f32.mrf.mxu0
      %v928 = vadd.f32 %v851, %v927
      %v929 = vpop.f32.mrf.mxu0
      %v930 = vpop.f32.mrf.mxu0
      %v931 = vadd.f32 %v854, %v930
      %v932 = vpop.f32.mrf.mxu0
      %933 = vmatprep.mubr.bf16.mxu0 0
      %934 = vmatmul.mubr.bf16.gmra.mxu0 %v498
      %v935 = vpop.f32.mrf.mxu0
      %v936 = vadd.f32 %v859, %v935
      %v937 = vpop.f32.mrf.mxu0
      %v938 = vpop.f32.mrf.mxu0
      %v939 = vadd.f32 %v862, %v938
      %v940 = vpop.f32.mrf.mxu0
      %941 = vmatprep.mubr.bf16.mxu0 0
      %942 = vmatmul.mubr.bf16.gmra.mxu0 %v501
      %v943 = vpop.f32.mrf.mxu0
      %v944 = vadd.f32 %v867, %v943
      %v945 = vpop.f32.mrf.mxu0
      %v946 = vpop.f32.mrf.mxu0
      %v947 = vadd.f32 %v870, %v946
      %v948 = vpop.f32.mrf.mxu0
      %949 = vdwg.mxu0
      %v950 = vadd.f32 %v920, %v776
      %v951 = vadd.f32 %v923, %v776
      %v952 = vadd.f32 %v928, %v776
      %v953 = vadd.f32 %v931, %v776
      %v954 = vadd.f32 %v936, %v776
      %v955 = vadd.f32 %v939, %v776
      %v956 = vadd.f32 %v944, %v776
      %v957 = vadd.f32 %v947, %v776
      %s958 = scalar_lea.vmem %s1, 48
      %v959 = vld [vmem:[%s958] sm:$0xf]
      %v960 = vld [vmem:[%s958 + $0x4] sm:$0xf]
      %v961 = vld [vmem:[%s958 + $0x8] sm:$0xf]
      %v962 = vld [vmem:[%s958 + $0xc] sm:$0xf]
      %s963 = scalar_lea.vmem %s1, 80
      %v964 = vld [vmem:[%s963] sm:$0xf]
      %v965 = vld [vmem:[%s963 + $0x4] sm:$0xf]
      %v966 = vld [vmem:[%s963 + $0x8] sm:$0xf]
      %v967 = vld [vmem:[%s963 + $0xc] sm:$0xf]
      %v972 = vunpack.c.l.b16 %v964
      %v973 = vunpack.c.l.b16 %v965
      %v974 = vunpack.c.l.b16 %v966
      %v975 = vunpack.c.l.b16 %v967
      %v976 = vpack.c.b16 %v973, %v972
      %v977 = vpack.c.b16 %v975, %v974
      %980 = vmatprep.subr.bf16.mxu0 0
      %981 = vmatpush1.bf16.msra.mxu0 0
      %982 = vmatprep.subr.bf16.mxu0 0
      %983 = vmatpush1.bf16.msra.mxu0 0
      %984 = vmatprep.subr.bf16.mxu0 0
      %985 = vmatpush1.bf16.msra.mxu0 0
      %986 = vmatprep.subr.bf16.mxu0 0
      %987 = vmatpush1.bf16.msra.mxu0 0
      %988 = vmatprep.subr.bf16.mxu0 0
      %989 = vmatpush1.bf16.msra.mxu0 0
      %990 = vmatprep.subr.bf16.mxu0 0
      %991 = vmatpush1.bf16.msra.mxu0 0
      %992 = vmatprep.subr.bf16.mxu0 0
      %993 = vmatpush1.bf16.msra.mxu0 %v977
      %994 = vmatprep.subr.bf16.mxu0 0
      %995 = vmatpush1.bf16.msra.mxu0 %v976
      %996 = vmatprep.subr.bf16.mxu0 0
      %997 = vmatpush2.bf16.msra.mxu0 0
      %998 = vmatprep.subr.bf16.mxu0 0
      %999 = vmatpush2.bf16.msra.mxu0 0
      %1000 = vmatprep.subr.bf16.mxu0 0
      %1001 = vmatpush2.bf16.msra.mxu0 0
      %1002 = vmatprep.subr.bf16.mxu0 0
      %1003 = vmatpush2.bf16.msra.mxu0 0
      %1004 = vmatprep.subr.bf16.mxu0 0
      %1005 = vmatpush2.bf16.msra.mxu0 0
      %1006 = vmatprep.subr.bf16.mxu0 0
      %1007 = vmatpush2.bf16.msra.mxu0 0
      %1008 = vmatprep.subr.bf16.mxu0 0
      %1009 = vmatpush2.bf16.msra.mxu0 0
      %1010 = vmatprep.subr.bf16.mxu0 0
      %1011 = vmatpush2.bf16.msra.mxu0 0
      %1012 = vmatprep.mubr.bf16.mxu0 0
      %1013 = vmatmul.mubr.bf16.gmra.mxu0 %v403
      %v1014 = vpop.f32.mrf.mxu0
      %v1015 = vadd.f32 0.0, %v1014
      %v1016 = vpop.f32.mrf.mxu0
      %v1017 = vpop.f32.mrf.mxu0
      %v1018 = vadd.f32 0.0, %v1017
      %v1019 = vpop.f32.mrf.mxu0
      %1020 = vmatprep.mubr.bf16.mxu0 0
      %1021 = vmatmul.mubr.bf16.gmra.mxu0 %v406
      %v1022 = vpop.f32.mrf.mxu0
      %v1023 = vadd.f32 0.0, %v1022
      %v1024 = vpop.f32.mrf.mxu0
      %v1025 = vpop.f32.mrf.mxu0
      %v1026 = vadd.f32 0.0, %v1025
      %v1027 = vpop.f32.mrf.mxu0
      %1028 = vmatprep.mubr.bf16.mxu0 0
      %1029 = vmatmul.mubr.bf16.gmra.mxu0 %v409
      %v1030 = vpop.f32.mrf.mxu0
      %v1031 = vadd.f32 0.0, %v1030
      %v1032 = vpop.f32.mrf.mxu0
      %v1033 = vpop.f32.mrf.mxu0
      %v1034 = vadd.f32 0.0, %v1033
      %v1035 = vpop.f32.mrf.mxu0
      %1036 = vmatprep.mubr.bf16.mxu0 0
      %1037 = vmatmul.mubr.bf16.gmra.mxu0 %v412
      %v1038 = vpop.f32.mrf.mxu0
      %v1039 = vadd.f32 0.0, %v1038
      %v1040 = vpop.f32.mrf.mxu0
      %v1041 = vpop.f32.mrf.mxu0
      %v1042 = vadd.f32 0.0, %v1041
      %v1043 = vpop.f32.mrf.mxu0
      %1044 = vdwg.mxu0
      %v1049 = vunpack.c.l.b16 %v959
      %v1050 = vunpack.c.l.b16 %v960
      %v1051 = vunpack.c.l.b16 %v961
      %v1052 = vunpack.c.l.b16 %v962
      %v1053 = vpack.c.b16 %v1050, %v1049
      %v1054 = vpack.c.b16 %v1052, %v1051
      %1057 = vmatprep.subr.bf16.mxu0 0
      %1058 = vmatpush1.bf16.msra.mxu0 0
      %1059 = vmatprep.subr.bf16.mxu0 0
      %1060 = vmatpush1.bf16.msra.mxu0 0
      %1061 = vmatprep.subr.bf16.mxu0 0
      %1062 = vmatpush1.bf16.msra.mxu0 0
      %1063 = vmatprep.subr.bf16.mxu0 0
      %1064 = vmatpush1.bf16.msra.mxu0 0
      %1065 = vmatprep.subr.bf16.mxu0 0
      %1066 = vmatpush1.bf16.msra.mxu0 0
      %1067 = vmatprep.subr.bf16.mxu0 0
      %1068 = vmatpush1.bf16.msra.mxu0 0
      %1069 = vmatprep.subr.bf16.mxu0 0
      %1070 = vmatpush1.bf16.msra.mxu0 %v1054
      %1071 = vmatprep.subr.bf16.mxu0 0
      %1072 = vmatpush1.bf16.msra.mxu0 %v1053
      %1073 = vmatprep.subr.bf16.mxu0 0
      %1074 = vmatpush2.bf16.msra.mxu0 0
      %1075 = vmatprep.subr.bf16.mxu0 0
      %1076 = vmatpush2.bf16.msra.mxu0 0
      %1077 = vmatprep.subr.bf16.mxu0 0
      %1078 = vmatpush2.bf16.msra.mxu0 0
      %1079 = vmatprep.subr.bf16.mxu0 0
      %1080 = vmatpush2.bf16.msra.mxu0 0
      %1081 = vmatprep.subr.bf16.mxu0 0
      %1082 = vmatpush2.bf16.msra.mxu0 0
      %1083 = vmatprep.subr.bf16.mxu0 0
      %1084 = vmatpush2.bf16.msra.mxu0 0
      %1085 = vmatprep.subr.bf16.mxu0 0
      %1086 = vmatpush2.bf16.msra.mxu0 0
      %1087 = vmatprep.subr.bf16.mxu0 0
      %1088 = vmatpush2.bf16.msra.mxu0 0
      %1089 = vmatprep.mubr.bf16.mxu0 0
      %1090 = vmatmul.mubr.bf16.gmra.mxu0 %v492
      %v1091 = vpop.f32.mrf.mxu0
      %v1092 = vadd.f32 %v1015, %v1091
      %v1093 = vpop.f32.mrf.mxu0
      %v1094 = vpop.f32.mrf.mxu0
      %v1095 = vadd.f32 %v1018, %v1094
      %v1096 = vpop.f32.mrf.mxu0
      %1097 = vmatprep.mubr.bf16.mxu0 0
      %1098 = vmatmul.mubr.bf16.gmra.mxu0 %v495
      %v1099 = vpop.f32.mrf.mxu0
      %v1100 = vadd.f32 %v1023, %v1099
      %v1101 = vpop.f32.mrf.mxu0
      %v1102 = vpop.f32.mrf.mxu0
      %v1103 = vadd.f32 %v1026, %v1102
      %v1104 = vpop.f32.mrf.mxu0
      %1105 = vmatprep.mubr.bf16.mxu0 0
      %1106 = vmatmul.mubr.bf16.gmra.mxu0 %v498
      %v1107 = vpop.f32.mrf.mxu0
      %v1108 = vadd.f32 %v1031, %v1107
      %v1109 = vpop.f32.mrf.mxu0
      %v1110 = vpop.f32.mrf.mxu0
      %v1111 = vadd.f32 %v1034, %v1110
      %v1112 = vpop.f32.mrf.mxu0
      %1113 = vmatprep.mubr.bf16.mxu0 0
      %1114 = vmatmul.mubr.bf16.gmra.mxu0 %v501
      %v1115 = vpop.f32.mrf.mxu0
      %v1116 = vadd.f32 %v1039, %v1115
      %v1117 = vpop.f32.mrf.mxu0
      %v1118 = vpop.f32.mrf.mxu0
      %v1119 = vadd.f32 %v1042, %v1118
      %v1120 = vpop.f32.mrf.mxu0
      %1121 = vdwg.mxu0
      %v1122 = vadd.f32 %v1092, %v776
      %v1123 = vadd.f32 %v1095, %v776
      %v1124 = vadd.f32 %v1100, %v776
      %v1125 = vadd.f32 %v1103, %v776
      %v1126 = vadd.f32 %v1108, %v776
      %v1127 = vadd.f32 %v1111, %v776
      %v1128 = vadd.f32 %v1116, %v776
      %v1129 = vadd.f32 %v1119, %v776
      %s1130 = scalar_lea.vmem %s1, 64
      %v1131 = vld [vmem:[%s1130] sm:$0xf]
      %v1132 = vld [vmem:[%s1130 + $0x4] sm:$0xf]
      %v1133 = vld [vmem:[%s1130 + $0x8] sm:$0xf]
      %v1134 = vld [vmem:[%s1130 + $0xc] sm:$0xf]
      %v1139 = vunpack.c.l.b16 %v1131
      %v1140 = vunpack.c.l.b16 %v1132
      %v1141 = vunpack.c.l.b16 %v1133
      %v1142 = vunpack.c.l.b16 %v1134
      %v1143 = vpack.c.b16 %v1140, %v1139
      %v1144 = vpack.c.b16 %v1142, %v1141
      %1147 = vmatprep.subr.bf16.mxu0 0
      %1148 = vmatpush1.bf16.msra.mxu0 0
      %1149 = vmatprep.subr.bf16.mxu0 0
      %1150 = vmatpush1.bf16.msra.mxu0 0
      %1151 = vmatprep.subr.bf16.mxu0 0
      %1152 = vmatpush1.bf16.msra.mxu0 0
      %1153 = vmatprep.subr.bf16.mxu0 0
      %1154 = vmatpush1.bf16.msra.mxu0 0
      %1155 = vmatprep.subr.bf16.mxu0 0
      %1156 = vmatpush1.bf16.msra.mxu0 0
      %1157 = vmatprep.subr.bf16.mxu0 0
      %1158 = vmatpush1.bf16.msra.mxu0 0
      %1159 = vmatprep.subr.bf16.mxu0 0
      %1160 = vmatpush1.bf16.msra.mxu0 %v1144
      %1161 = vmatprep.subr.bf16.mxu0 0
      %1162 = vmatpush1.bf16.msra.mxu0 %v1143
      %1163 = vmatprep.subr.bf16.mxu0 0
      %1164 = vmatpush2.bf16.msra.mxu0 0
      %1165 = vmatprep.subr.bf16.mxu0 0
      %1166 = vmatpush2.bf16.msra.mxu0 0
      %1167 = vmatprep.subr.bf16.mxu0 0
      %1168 = vmatpush2.bf16.msra.mxu0 0
      %1169 = vmatprep.subr.bf16.mxu0 0
      %1170 = vmatpush2.bf16.msra.mxu0 0
      %1171 = vmatprep.subr.bf16.mxu0 0
      %1172 = vmatpush2.bf16.msra.mxu0 0
      %1173 = vmatprep.subr.bf16.mxu0 0
      %1174 = vmatpush2.bf16.msra.mxu0 0
      %1175 = vmatprep.subr.bf16.mxu0 0
      %1176 = vmatpush2.bf16.msra.mxu0 0
      %1177 = vmatprep.subr.bf16.mxu0 0
      %1178 = vmatpush2.bf16.msra.mxu0 0
      %1179 = vmatprep.mubr.bf16.mxu0 0
      %1180 = vmatmul.mubr.bf16.gmra.mxu0 %v492
      %v1181 = vpop.f32.mrf.mxu0
      %v1182 = vadd.f32 %v776, %v1181
      %v1183 = vpop.f32.mrf.mxu0
      %v1184 = vpop.f32.mrf.mxu0
      %v1185 = vadd.f32 %v776, %v1184
      %v1186 = vpop.f32.mrf.mxu0
      %1187 = vmatprep.mubr.bf16.mxu0 0
      %1188 = vmatmul.mubr.bf16.gmra.mxu0 %v495
      %v1189 = vpop.f32.mrf.mxu0
      %v1190 = vadd.f32 %v776, %v1189
      %v1191 = vpop.f32.mrf.mxu0
      %v1192 = vpop.f32.mrf.mxu0
      %v1193 = vadd.f32 %v776, %v1192
      %v1194 = vpop.f32.mrf.mxu0
      %1195 = vmatprep.mubr.bf16.mxu0 0
      %1196 = vmatmul.mubr.bf16.gmra.mxu0 %v498
      %v1197 = vpop.f32.mrf.mxu0
      %v1198 = vadd.f32 %v776, %v1197
      %v1199 = vpop.f32.mrf.mxu0
      %v1200 = vpop.f32.mrf.mxu0
      %v1201 = vadd.f32 %v776, %v1200
      %v1202 = vpop.f32.mrf.mxu0
      %1203 = vmatprep.mubr.bf16.mxu0 0
      %1204 = vmatmul.mubr.bf16.gmra.mxu0 %v501
      %v1205 = vpop.f32.mrf.mxu0
      %v1206 = vadd.f32 %v776, %v1205
      %v1207 = vpop.f32.mrf.mxu0
      %v1208 = vpop.f32.mrf.mxu0
      %v1209 = vadd.f32 %v776, %v1208
      %v1210 = vpop.f32.mrf.mxu0
      %1211 = vdwg.mxu0
      %v1212 = vpack.c.bf16 %v778, %v778
      %v1213 = vpack.c.bf16 %v779, %v779
      %v1214 = vpack.c.bf16 %v780, %v780
      %v1215 = vpack.c.bf16 %v781, %v781
      %v1216 = vpack.c.bf16 %v782, %v782
      %v1217 = vpack.c.bf16 %v783, %v783
      %v1218 = vpack.c.bf16 %v784, %v784
      %v1219 = vpack.c.bf16 %v785, %v785
      %vm1220 = vcmask 125952
      %1221 = vst.msk [vmem:[%s273] sm:$0xf] %vm1220, %v1212
      %1222 = vst.msk [vmem:[%s273 + $0x4] sm:$0xf] %vm1220, %v1213
      %1223 = vst.msk [vmem:[%s273 + $0x8] sm:$0xf] %vm1220, %v1214
      %1224 = vst.msk [vmem:[%s273 + $0xc] sm:$0xf] %vm1220, %v1215
      %1225 = vst.msk [vmem:[%s273 + $0x10] sm:$0xf] %vm1220, %v1216
      %1226 = vst.msk [vmem:[%s273 + $0x14] sm:$0xf] %vm1220, %v1217
      %1227 = vst.msk [vmem:[%s273 + $0x18] sm:$0xf] %vm1220, %v1218
      %1228 = vst.msk [vmem:[%s273 + $0x1c] sm:$0xf] %vm1220, %v1219
      %v1229 = vpack.c.bf16 %v950, %v950
      %v1230 = vpack.c.bf16 %v951, %v951
      %v1231 = vpack.c.bf16 %v952, %v952
      %v1232 = vpack.c.bf16 %v953, %v953
      %v1233 = vpack.c.bf16 %v954, %v954
      %v1234 = vpack.c.bf16 %v955, %v955
      %v1235 = vpack.c.bf16 %v956, %v956
      %v1236 = vpack.c.bf16 %v957, %v957
      %1237 = vst.msk [vmem:[%s278] sm:$0xf] %vm1220, %v1229
      %1238 = vst.msk [vmem:[%s278 + $0x4] sm:$0xf] %vm1220, %v1230
      %1239 = vst.msk [vmem:[%s278 + $0x8] sm:$0xf] %vm1220, %v1231
      %1240 = vst.msk [vmem:[%s278 + $0xc] sm:$0xf] %vm1220, %v1232
      %1241 = vst.msk [vmem:[%s278 + $0x10] sm:$0xf] %vm1220, %v1233
      %1242 = vst.msk [vmem:[%s278 + $0x14] sm:$0xf] %vm1220, %v1234
      %1243 = vst.msk [vmem:[%s278 + $0x18] sm:$0xf] %vm1220, %v1235
      %1244 = vst.msk [vmem:[%s278 + $0x1c] sm:$0xf] %vm1220, %v1236
      %v1245 = vpack.c.bf16 %v1122, %v1122
      %v1246 = vpack.c.bf16 %v1123, %v1123
      %v1247 = vpack.c.bf16 %v1124, %v1124
      %v1248 = vpack.c.bf16 %v1125, %v1125
      %v1249 = vpack.c.bf16 %v1126, %v1126
      %v1250 = vpack.c.bf16 %v1127, %v1127
      %v1251 = vpack.c.bf16 %v1128, %v1128
      %v1252 = vpack.c.bf16 %v1129, %v1129
      %1253 = vst.msk [vmem:[%s283] sm:$0xf] %vm1220, %v1245
      %1254 = vst.msk [vmem:[%s283 + $0x4] sm:$0xf] %vm1220, %v1246
      %1255 = vst.msk [vmem:[%s283 + $0x8] sm:$0xf] %vm1220, %v1247
      %1256 = vst.msk [vmem:[%s283 + $0xc] sm:$0xf] %vm1220, %v1248
      %1257 = vst.msk [vmem:[%s283 + $0x10] sm:$0xf] %vm1220, %v1249
      %1258 = vst.msk [vmem:[%s283 + $0x14] sm:$0xf] %vm1220, %v1250
      %1259 = vst.msk [vmem:[%s283 + $0x18] sm:$0xf] %vm1220, %v1251
      %1260 = vst.msk [vmem:[%s283 + $0x1c] sm:$0xf] %vm1220, %v1252
      %v1261 = vpack.c.bf16 %v1182, %v1182
      %v1262 = vpack.c.bf16 %v1185, %v1185
      %v1263 = vpack.c.bf16 %v1190, %v1190
      %v1264 = vpack.c.bf16 %v1193, %v1193
      %v1265 = vpack.c.bf16 %v1198, %v1198
      %v1266 = vpack.c.bf16 %v1201, %v1201
      %v1267 = vpack.c.bf16 %v1206, %v1206
      %v1268 = vpack.c.bf16 %v1209, %v1209
      %1269 = vst.msk [vmem:[%s288] sm:$0xf] %vm1220, %v1261
      %1270 = vst.msk [vmem:[%s288 + $0x4] sm:$0xf] %vm1220, %v1262
      %1271 = vst.msk [vmem:[%s288 + $0x8] sm:$0xf] %vm1220, %v1263
      %1272 = vst.msk [vmem:[%s288 + $0xc] sm:$0xf] %vm1220, %v1264
      %1273 = vst.msk [vmem:[%s288 + $0x10] sm:$0xf] %vm1220, %v1265
      %1274 = vst.msk [vmem:[%s288 + $0x14] sm:$0xf] %vm1220, %v1266
      %1275 = vst.msk [vmem:[%s288 + $0x18] sm:$0xf] %vm1220, %v1267
      %1276 = vst.msk [vmem:[%s288 + $0x1c] sm:$0xf] %vm1220, %v1268
      %p1277 = scmp.lt.s32.totalorder %s18, 1
      %s1278 = scalar_select %p1277, %s18, 1
      %s1279 = smul.addr %s1278, 8
      %s1280 = smul.addr %s1279, 4
      %s1281 = scalar_lea.vmem %s3, %s1280
      %p1282 = scmp.lt.s32.totalorder %s18, 1
      %s1283 = scalar_select %p1282, %s18, 1
      %s1284 = smul.addr %s1283, 8
      %s1285 = smul.addr %s1284, 4
      %s1286 = scalar_lea.vmem %s4, %s1285
      %p1287 = scmp.lt.s32.totalorder %s18, 1
      %s1288 = scalar_select %p1287, %s18, 1
      %s1289 = smul.addr %s1288, 8
      %s1290 = smul.addr %s1289, 4
      %s1291 = scalar_lea.vmem %s5, %s1290
      %p1292 = scmp.lt.s32.totalorder %s18, 1
      %s1293 = scalar_select %p1292, %s18, 1
      %s1294 = smul.addr %s1293, 8
      %s1295 = smul.addr %s1294, 4
      %s1296 = scalar_lea.vmem %s6, %s1295
      // Predicated region
      $region33: #{up_forward.4} parent=31 // pred_check
        %p1297 = pneg %p104
      $region34: #{up_forward.4} parent=31 // pred_check_branch
        %1299 = sbr.rel (%p1297) target = $region36
      $region35: #{up_forward.4} parent=31 // pred_region
        _
      $region36: #{up_forward.4} parent=31 // pred_fallthru
        _
      // Predicated region
      $region37: #{up_forward.4} parent=31 // pred_check
        %p1300 = pneg %p130
      $region38: #{up_forward.4} parent=31 // pred_check_branch
        %1302 = sbr.rel (%p1300) target = $region40
      $region39: #{up_forward.4} parent=31 // pred_region
        _
      $region40: #{up_forward.4} parent=31 // pred_fallthru
        _
      // Predicated region
      $region41: #{up_forward.4} parent=31 // pred_check
        %p1303 = pneg %p156
      $region42: #{up_forward.4} parent=31 // pred_check_branch
        %1305 = sbr.rel (%p1303) target = $region44
      $region43: #{up_forward.4} parent=31 // pred_region
        _
      $region44: #{up_forward.4} parent=31 // pred_fallthru
        _
      // Predicated region
      $region45: #{up_forward.4} parent=31 // pred_check
        %p1306 = pneg %p182
      $region46: #{up_forward.4} parent=31 // pred_check_branch
        %1308 = sbr.rel (%p1306) target = $region48
      $region47: #{up_forward.4} parent=31 // pred_region
        _
      $region48: #{up_forward.4} parent=31 // pred_fallthru
        _
    $region32: #{up_forward.4} parent=5 // pred_fallthru
      _
    %p1309 = scmp.le.s32.totalorder 2, %s13
    // Predicated region
    $region49: #{up_forward.4} parent=5 // pred_check
      %p1310 = pneg %p1309
    $region50: #{up_forward.4} parent=5 // pred_check_branch
      %1312 = sbr.rel (%p1310) target = $region52
    $region51: #{up_forward.4} parent=5 // pred_region
      %s1313 = ssub.s32 %s13, 2
      // Predicated region
      $region53: #{up_forward.4} parent=51 // pred_check
        %p1314 = pneg %p110
      $region54: #{up_forward.4} parent=51 // pred_check_branch
        %1316 = sbr.rel (%p1314) target = $region56
      $region55: #{up_forward.4} parent=51 // pred_region
        %p1317 = scmp.lt.s32.totalorder %s19, 1
        %s1318 = scalar_select %p1317, %s19, 1
        %s1319 = smul.addr %s1318, 8
        %s1320 = smul.addr %s1319, 4
        %s1321 = scalar_lea.vmem %s3, %s1320
      $region56: #{up_forward.4} parent=51 // pred_fallthru
        _
      // Predicated region
      $region57: #{up_forward.4} parent=51 // pred_check
        %p1322 = pneg %p136
      $region58: #{up_forward.4} parent=51 // pred_check_branch
        %1324 = sbr.rel (%p1322) target = $region60
      $region59: #{up_forward.4} parent=51 // pred_region
        %p1325 = scmp.lt.s32.totalorder %s19, 1
        %s1326 = scalar_select %p1325, %s19, 1
        %s1327 = smul.addr %s1326, 8
        %s1328 = smul.addr %s1327, 4
        %s1329 = scalar_lea.vmem %s4, %s1328
      $region60: #{up_forward.4} parent=51 // pred_fallthru
        _
      // Predicated region
      $region61: #{up_forward.4} parent=51 // pred_check
        %p1330 = pneg %p162
      $region62: #{up_forward.4} parent=51 // pred_check_branch
        %1332 = sbr.rel (%p1330) target = $region64
      $region63: #{up_forward.4} parent=51 // pred_region
        %p1333 = scmp.lt.s32.totalorder %s19, 1
        %s1334 = scalar_select %p1333, %s19, 1
        %s1335 = smul.addr %s1334, 8
        %s1336 = smul.addr %s1335, 4
        %s1337 = scalar_lea.vmem %s5, %s1336
      $region64: #{up_forward.4} parent=51 // pred_fallthru
        _
      // Predicated region
      $region65: #{up_forward.4} parent=51 // pred_check
        %p1338 = pneg %p188
      $region66: #{up_forward.4} parent=51 // pred_check_branch
        %1340 = sbr.rel (%p1338) target = $region68
      $region67: #{up_forward.4} parent=51 // pred_region
        %p1341 = scmp.lt.s32.totalorder %s19, 1
        %s1342 = scalar_select %p1341, %s19, 1
        %s1343 = smul.addr %s1342, 8
        %s1344 = smul.addr %s1343, 4
        %s1345 = scalar_lea.vmem %s6, %s1344
      $region68: #{up_forward.4} parent=51 // pred_fallthru
        _
    $region52: #{up_forward.4} parent=5 // pred_fallthru
      _
  $region6: #{up_forward.4} parent=0 // loop_footer
    %s17 = sadd.s32 1, %s13
  $region7: #{up_forward.4} parent=0 // loop_footer_branch
    %12 = sbr.rel target = $region3
  $region8: #{up_forward.4} parent=0 // loop_exit
    _

// kernel: up_forward.7
$region0: #{up_forward.7}
  #allocation0 [shape = 'u32[]', space=smem, size = 0x4, offset = 0x4, fixed_abs, tag = 'smem constant byte address 0x4 - core index']
  #allocation1 [shape = 'u32[144,128]{1,0:T(1,128)}', space=vmem, size = 0x12000, scoped, tag = 'internal scratch']
  %s0 = inlined_call_operand.vmem [shape: f32[2,256,16], index: 0, kind: input, shape index: {}]
  %s1 = inlined_call_operand.vmem [shape: bf16[2,256,16], index: 1, kind: input, shape index: {}]
  %s2 = inlined_call_operand.vmem [shape: f32[1,16], index: 2, kind: input, shape index: {}]
  %s3 = inlined_call_operand.vmem [shape: f32[1,16], index: 3, kind: input, shape index: {}]
  %s4 = inlined_call_operand.hbm [shape: f32[2,256,32], index: 4, kind: output, shape index: {}]
  %s5 = sld [smem:[#allocation0]]
  $region49: #{up_forward.7} parent=0
    _
  %s7 = ssub.s32 1, %s5
  %s8 = scalar_select 0, %s7, %s5
  $region1: #{up_forward.7} parent=0
    #allocation2 [shape = 'u8[262144]{0}', space=vmem, size = 0x40000, scoped, tag = 'output window, operand 0']
    #allocation3 [shape = 's32[2]{0}', space=sflag, size = 0x8, scoped, tag = 'scoped memory for up_forward.7']
    %9 = vsyncpa [#allocation3], 0
    %s10 = scalar_lea.sflag [#allocation3], 1
    %11 = vsyncpa %s10, 0
    loop: start=0, step=1, limit=4
    $region2: #{up_forward.7} parent=1 // loop_pre_header
      _
    $region3: #{up_forward.7} parent=1 // loop_header
      %s13 = sphi 0, %s17
      %p14 = scmp.ge.s32.totalorder %s13, 4
      %s23 = sphi 0, %s25
      %s26 = sphi 0, %s23
      %s27 = sphi 0, %s26
      %s43 = sphi 0, %s27
      %s49 = sphi 0, %s51
      %s52 = sphi 0, %s49
      %s53 = sphi 0, %s52
      %s69 = sphi 0, %s53
      %s73 = sphi 0, %s73
      %s75 = sphi 0, %s73
      %s76 = sphi 0, %s75
      %s90 = sphi 0, %s76
      %s94 = sphi 0, %s94
      %s96 = sphi 0, %s94
      %s97 = sphi 0, %s96
      %s111 = sphi 0, %s97
      %s117 = sphi 0, %s119
      %s120 = sphi 0, %s117
      %s121 = sphi 0, %s120
      %s137 = sphi 0, %s121
    $region4: #{up_forward.7} parent=1 // loop_header_branch
      %16 = sbr.rel (%p14) target = $region8
    $region5: #{up_forward.7} parent=1 // loop_body
      %s18 = ssub.s32 %s13, 1
      %s19 = ssub.s32 %s13, 2
      %s20 = sadd.s32 %s13, 1
      %s21 = ssub.s32 %s13, %s20
      %p22 = scmp.eq.s32.totalorder %s21, 0
      %s24 = sadd.s32 %s23, 1
      %s25 = scalar_select %p22, %s23, %s24
      %p28 = pneg %p22
      %p29 = scmp.eq.s32.totalorder %s13, 1
      %p30 = por %p28, %p29
      %p31 = scmp.ne.s32.totalorder %s23, %s26
      %p32 = scmp.eq.s32.totalorder %s13, 0
      %p33 = por %p31, %p32
      %p34 = scmp.ne.s32.totalorder %s23, %s26
      %p35 = scmp.eq.s32.totalorder %s18, 1
      %p36 = por %p34, %p35
      %p37 = scmp.ne.s32.totalorder %s26, %s27
      %p38 = scmp.eq.s32.totalorder %s18, 0
      %p39 = por %p37, %p38
      %p40 = scmp.ne.s32.totalorder %s26, %s27
      %p41 = scmp.eq.s32.totalorder %s19, 1
      %p42 = por %p40, %p41
      %p44 = scmp.ne.s32.totalorder %s27, %s43
      %p45 = scmp.eq.s32.totalorder %s19, 0
      %p46 = por %p44, %p45
      %s47 = ssub.s32 %s13, %s20
      %p48 = scmp.eq.s32.totalorder %s47, 0
      %s50 = sadd.s32 %s49, 1
      %s51 = scalar_select %p48, %s49, %s50
      %p54 = pneg %p48
      %p55 = scmp.eq.s32.totalorder %s13, 1
      %p56 = por %p54, %p55
      %p57 = scmp.ne.s32.totalorder %s49, %s52
      %p58 = scmp.eq.s32.totalorder %s13, 0
      %p59 = por %p57, %p58
      %p60 = scmp.ne.s32.totalorder %s49, %s52
      %p61 = scmp.eq.s32.totalorder %s18, 1
      %p62 = por %p60, %p61
      %p63 = scmp.ne.s32.totalorder %s52, %s53
      %p64 = scmp.eq.s32.totalorder %s18, 0
      %p65 = por %p63, %p64
      %p66 = scmp.ne.s32.totalorder %s52, %s53
      %p67 = scmp.eq.s32.totalorder %s19, 1
      %p68 = por %p66, %p67
      %p70 = scmp.ne.s32.totalorder %s53, %s69
      %p71 = scmp.eq.s32.totalorder %s19, 0
      %p72 = por %p70, %p71
      %s74 = sadd.s32 %s73, 1
      %p77 = scmp.eq.s32.totalorder %s13, 1
      %p78 = scmp.ne.s32.totalorder %s73, %s75
      %p79 = scmp.eq.s32.totalorder %s13, 0
      %p80 = por %p78, %p79
      %p81 = scmp.ne.s32.totalorder %s73, %s75
      %p82 = scmp.eq.s32.totalorder %s18, 1
      %p83 = por %p81, %p82
      %p84 = scmp.ne.s32.totalorder %s75, %s76
      %p85 = scmp.eq.s32.totalorder %s18, 0
      %p86 = por %p84, %p85
      %p87 = scmp.ne.s32.totalorder %s75, %s76
      %p88 = scmp.eq.s32.totalorder %s19, 1
      %p89 = por %p87, %p88
      %p91 = scmp.ne.s32.totalorder %s76, %s90
      %p92 = scmp.eq.s32.totalorder %s19, 0
      %p93 = por %p91, %p92
      %s95 = sadd.s32 %s94, 1
      %p98 = scmp.eq.s32.totalorder %s13, 1
      %p99 = scmp.ne.s32.totalorder %s94, %s96
      %p100 = scmp.eq.s32.totalorder %s13, 0
      %p101 = por %p99, %p100
      %p102 = scmp.ne.s32.totalorder %s94, %s96
      %p103 = scmp.eq.s32.totalorder %s18, 1
      %p104 = por %p102, %p103
      %p105 = scmp.ne.s32.totalorder %s96, %s97
      %p106 = scmp.eq.s32.totalorder %s18, 0
      %p107 = por %p105, %p106
      %p108 = scmp.ne.s32.totalorder %s96, %s97
      %p109 = scmp.eq.s32.totalorder %s19, 1
      %p110 = por %p108, %p109
      %p112 = scmp.ne.s32.totalorder %s97, %s111
      %p113 = scmp.eq.s32.totalorder %s19, 0
      %p114 = por %p112, %p113
      %s115 = ssub.s32 %s13, %s20
      %p116 = scmp.eq.s32.totalorder %s115, 0
      %s118 = sadd.s32 %s117, 1
      %s119 = scalar_select %p116, %s117, %s118
      %p122 = pneg %p116
      %p123 = scmp.eq.s32.totalorder %s13, 1
      %p124 = por %p122, %p123
      %p125 = scmp.ne.s32.totalorder %s117, %s120
      %p126 = scmp.eq.s32.totalorder %s13, 0
      %p127 = por %p125, %p126
      %p128 = scmp.ne.s32.totalorder %s117, %s120
      %p129 = scmp.eq.s32.totalorder %s18, 1
      %p130 = por %p128, %p129
      %p131 = scmp.ne.s32.totalorder %s120, %s121
      %p132 = scmp.eq.s32.totalorder %s18, 0
      %p133 = por %p131, %p132
      %p134 = scmp.ne.s32.totalorder %s120, %s121
      %p135 = scmp.eq.s32.totalorder %s19, 1
      %p136 = por %p134, %p135
      %p138 = scmp.ne.s32.totalorder %s121, %s137
      %p139 = scmp.eq.s32.totalorder %s19, 0
      %p140 = por %p138, %p139
      %p141 = scmp.le.s32.totalorder 1, %s13
      %p142 = scmp.lt.s32.totalorder %s13, 3
      %p143 = pnand %p141, %p142
      %p144 = pneg %p143
      // Predicated region
      $region9: #{up_forward.7} parent=5 // pred_check
        _
      $region10: #{up_forward.7} parent=5 // pred_check_branch
        %146 = sbr.rel (%p143) target = $region12
      $region11: #{up_forward.7} parent=5 // pred_region
        %s147 = ssub.s32 %s13, 1
        // Predicated region
        $region13: #{up_forward.7} parent=11 // pred_check
          %p148 = pneg %p86
        $region14: #{up_forward.7} parent=11 // pred_check_branch
          %150 = sbr.rel (%p148) target = $region16
        $region15: #{up_forward.7} parent=11 // pred_region
          _
        $region16: #{up_forward.7} parent=11 // pred_fallthru
          _
        // Predicated region
        $region17: #{up_forward.7} parent=11 // pred_check
          %p151 = pneg %p107
        $region18: #{up_forward.7} parent=11 // pred_check_branch
          %153 = sbr.rel (%p151) target = $region20
        $region19: #{up_forward.7} parent=11 // pred_region
          _
        $region20: #{up_forward.7} parent=11 // pred_fallthru
          _
      $region12: #{up_forward.7} parent=5 // pred_fallthru
        _
      %p154 = scmp.lt.s32.totalorder %s13, 2
      // Predicated region
      $region21: #{up_forward.7} parent=5 // pred_check
        %p155 = pneg %p154
      $region22: #{up_forward.7} parent=5 // pred_check_branch
        %157 = sbr.rel (%p155) target = $region24
      $region23: #{up_forward.7} parent=5 // pred_region
        // Predicated region
        $region25: #{up_forward.7} parent=23 // pred_check
          %p158 = pneg %p33
        $region26: #{up_forward.7} parent=23 // pred_check_branch
          %160 = sbr.rel (%p158) target = $region28
        $region27: #{up_forward.7} parent=23 // pred_region
          %p161 = scmp.lt.s32.totalorder %s13, 1
          %s162 = scalar_select %p161, %s13, 1
          %s163 = smul.addr %s162, 32
          %s164 = smul.addr %s163, 8
          %s165 = scalar_lea.vmem %s0, %s164
        $region28: #{up_forward.7} parent=23 // pred_fallthru
          _
        // Predicated region
        $region29: #{up_forward.7} parent=23 // pred_check
          %p166 = pneg %p59
        $region30: #{up_forward.7} parent=23 // pred_check_branch
          %168 = sbr.rel (%p166) target = $region32
        $region31: #{up_forward.7} parent=23 // pred_region
          %p169 = scmp.lt.s32.totalorder %s13, 1
          %s170 = scalar_select %p169, %s13, 1
          %s171 = smul.addr %s170, 32
          %s172 = smul.addr %s171, 4
          %s173 = scalar_lea.vmem %s1, %s172
        $region32: #{up_forward.7} parent=23 // pred_fallthru
          _
      $region24: #{up_forward.7} parent=5 // pred_fallthru
        _
      %p174 = scmp.le.s32.totalorder 1, %s13
      %p175 = scmp.lt.s32.totalorder %s13, 3
      %p176 = pnand %p174, %p175
      %p177 = pneg %p176
      // Predicated region
      $region33: #{up_forward.7} parent=5 // pred_check
        _
      $region34: #{up_forward.7} parent=5 // pred_check_branch
        %179 = sbr.rel (%p176) target = $region36
      $region35: #{up_forward.7} parent=5 // pred_region
        %s180 = ssub.s32 %s13, 1
        %p181 = scmp.lt.s32.totalorder %s18, 1
        %s182 = scalar_select %p181, %s18, 1
        %s183 = smul.addr %s182, 32
        %s184 = smul.addr %s183, 8
        %s185 = scalar_lea.vmem %s0, %s184
        %p186 = pneg %p39
        %p187 = pneg %p36
        %p188 = scmp.lt.s32.totalorder %s18, 1
        %s189 = scalar_select %p188, %s18, 1
        %s190 = smul.addr %s189, 32
        %s191 = smul.addr %s190, 4
        %s192 = scalar_lea.vmem %s1, %s191
        %p193 = pneg %p65
        %p194 = pneg %p62
        %p195 = pneg %p86
        %p196 = pneg %p83
        %p197 = pneg %p107
        %p198 = pneg %p104
        %p199 = pneg %p133
        %p200 = pneg %p130
        %s201 = sand.u32 %s120, 1
        %s202 = scalar_lea.sflag [#allocation3], %s201
        %s203 = sand.u32 %s120, 1
        %s204 = smul.addr %s203, 256
        %s205 = scalar_lea.vmem [#allocation2], %s204
        %p206 = scmp.lt.s32.totalorder %s18, 1
        %s207 = scalar_select %p206, %s18, 1
        %s208 = smul.addr %s207, 32
        %s209 = smul.addr %s208, 8
        %s210 = scalar_lea.vmem %s0, %s209
        %p211 = scmp.lt.s32.totalorder %s18, 1
        %s212 = scalar_select %p211, %s18, 1
        %s213 = smul.addr %s212, 32
        %s214 = smul.addr %s213, 4
        %s215 = scalar_lea.vmem %s1, %s214
        %v216 = vld [vmem:[%s210] sm:$0xff]
        %v217 = vld [vmem:[%s210 + $0x8] sm:$0xff]
        %v218 = vld [vmem:[%s210 + $0x10] sm:$0xff]
        %v219 = vld [vmem:[%s210 + $0x18] sm:$0xff]
        %v220 = vld [vmem:[%s210 + $0x20] sm:$0xff]
        %v221 = vld [vmem:[%s210 + $0x28] sm:$0xff]
        %v222 = vld [vmem:[%s210 + $0x30] sm:$0xff]
        %v223 = vld [vmem:[%s210 + $0x38] sm:$0xff]
        %v224 = vld [vmem:[%s210 + $0x40] sm:$0xff]
        %v225 = vld [vmem:[%s210 + $0x48] sm:$0xff]
        %v226 = vld [vmem:[%s210 + $0x50] sm:$0xff]
        %v227 = vld [vmem:[%s210 + $0x58] sm:$0xff]
        %v228 = vld [vmem:[%s210 + $0x60] sm:$0xff]
        %v229 = vld [vmem:[%s210 + $0x68] sm:$0xff]
        %v230 = vld [vmem:[%s210 + $0x70] sm:$0xff]
        %v231 = vld [vmem:[%s210 + $0x78] sm:$0xff]
        %v232 = vld [vmem:[%s210 + $0x80] sm:$0xff]
        %v233 = vld [vmem:[%s210 + $0x88] sm:$0xff]
        %v234 = vld [vmem:[%s210 + $0x90] sm:$0xff]
        %v235 = vld [vmem:[%s210 + $0x98] sm:$0xff]
        %v236 = vld [vmem:[%s210 + $0xa0] sm:$0xff]
        %v237 = vld [vmem:[%s210 + $0xa8] sm:$0xff]
        %v238 = vld [vmem:[%s210 + $0xb0] sm:$0xff]
        %v239 = vld [vmem:[%s210 + $0xb8] sm:$0xff]
        %v240 = vld [vmem:[%s210 + $0xc0] sm:$0xff]
        %v241 = vld [vmem:[%s210 + $0xc8] sm:$0xff]
        %v242 = vld [vmem:[%s210 + $0xd0] sm:$0xff]
        %v243 = vld [vmem:[%s210 + $0xd8] sm:$0xff]
        %v244 = vld [vmem:[%s210 + $0xe0] sm:$0xff]
        %v245 = vld [vmem:[%s210 + $0xe8] sm:$0xff]
        %v246 = vld [vmem:[%s210 + $0xf0] sm:$0xff]
        %v247 = vld [vmem:[%s210 + $0xf8] sm:$0xff]
        %vm248 = vcmask 130048
        %249 = vst.msk [vmem:[%s205] sm:$0xff] %vm248, %v216
        %250 = vst.msk [vmem:[%s205 + $0x8] sm:$0xff] %vm248, %v217
        %251 = vst.msk [vmem:[%s205 + $0x10] sm:$0xff] %vm248, %v218
        %252 = vst.msk [vmem:[%s205 + $0x18] sm:$0xff] %vm248, %v219
        %253 = vst.msk [vmem:[%s205 + $0x20] sm:$0xff] %vm248, %v220
        %254 = vst.msk [vmem:[%s205 + $0x28] sm:$0xff] %vm248, %v221
        %255 = vst.msk [vmem:[%s205 + $0x30] sm:$0xff] %vm248, %v222
        %256 = vst.msk [vmem:[%s205 + $0x38] sm:$0xff] %vm248, %v223
        %257 = vst.msk [vmem:[%s205 + $0x40] sm:$0xff] %vm248, %v224
        %258 = vst.msk [vmem:[%s205 + $0x48] sm:$0xff] %vm248, %v225
        %259 = vst.msk [vmem:[%s205 + $0x50] sm:$0xff] %vm248, %v226
        %260 = vst.msk [vmem:[%s205 + $0x58] sm:$0xff] %vm248, %v227
        %261 = vst.msk [vmem:[%s205 + $0x60] sm:$0xff] %vm248, %v228
        %262 = vst.msk [vmem:[%s205 + $0x68] sm:$0xff] %vm248, %v229
        %263 = vst.msk [vmem:[%s205 + $0x70] sm:$0xff] %vm248, %v230
        %264 = vst.msk [vmem:[%s205 + $0x78] sm:$0xff] %vm248, %v231
        %265 = vst.msk [vmem:[%s205 + $0x80] sm:$0xff] %vm248, %v232
        %266 = vst.msk [vmem:[%s205 + $0x88] sm:$0xff] %vm248, %v233
        %267 = vst.msk [vmem:[%s205 + $0x90] sm:$0xff] %vm248, %v234
        %268 = vst.msk [vmem:[%s205 + $0x98] sm:$0xff] %vm248, %v235
        %269 = vst.msk [vmem:[%s205 + $0xa0] sm:$0xff] %vm248, %v236
        %270 = vst.msk [vmem:[%s205 + $0xa8] sm:$0xff] %vm248, %v237
        %271 = vst.msk [vmem:[%s205 + $0xb0] sm:$0xff] %vm248, %v238
        %272 = vst.msk [vmem:[%s205 + $0xb8] sm:$0xff] %vm248, %v239
        %273 = vst.msk [vmem:[%s205 + $0xc0] sm:$0xff] %vm248, %v240
        %274 = vst.msk [vmem:[%s205 + $0xc8] sm:$0xff] %vm248, %v241
        %275 = vst.msk [vmem:[%s205 + $0xd0] sm:$0xff] %vm248, %v242
        %276 = vst.msk [vmem:[%s205 + $0xd8] sm:$0xff] %vm248, %v243
        %277 = vst.msk [vmem:[%s205 + $0xe0] sm:$0xff] %vm248, %v244
        %278 = vst.msk [vmem:[%s205 + $0xe8] sm:$0xff] %vm248, %v245
        %279 = vst.msk [vmem:[%s205 + $0xf0] sm:$0xff] %vm248, %v246
        %280 = vst.msk [vmem:[%s205 + $0xf8] sm:$0xff] %vm248, %v247
        %v281 = vld [vmem:[%s215] sm:$0xf]
        %v282 = vld [vmem:[%s215 + $0x4] sm:$0xf]
        %v283 = vld [vmem:[%s215 + $0x8] sm:$0xf]
        %v284 = vld [vmem:[%s215 + $0xc] sm:$0xf]
        %v285 = vld [vmem:[%s215 + $0x10] sm:$0xf]
        %v286 = vld [vmem:[%s215 + $0x14] sm:$0xf]
        %v287 = vld [vmem:[%s215 + $0x18] sm:$0xf]
        %v288 = vld [vmem:[%s215 + $0x1c] sm:$0xf]
        %v289 = vld [vmem:[%s215 + $0x20] sm:$0xf]
        %v290 = vld [vmem:[%s215 + $0x24] sm:$0xf]
        %v291 = vld [vmem:[%s215 + $0x28] sm:$0xf]
        %v292 = vld [vmem:[%s215 + $0x2c] sm:$0xf]
        %v293 = vld [vmem:[%s215 + $0x30] sm:$0xf]
        %v294 = vld [vmem:[%s215 + $0x34] sm:$0xf]
        %v295 = vld [vmem:[%s215 + $0x38] sm:$0xf]
        %v296 = vld [vmem:[%s215 + $0x3c] sm:$0xf]
        %v297 = vld [vmem:[%s215 + $0x40] sm:$0xf]
        %v298 = vld [vmem:[%s215 + $0x44] sm:$0xf]
        %v299 = vld [vmem:[%s215 + $0x48] sm:$0xf]
        %v300 = vld [vmem:[%s215 + $0x4c] sm:$0xf]
        %v301 = vld [vmem:[%s215 + $0x50] sm:$0xf]
        %v302 = vld [vmem:[%s215 + $0x54] sm:$0xf]
        %v303 = vld [vmem:[%s215 + $0x58] sm:$0xf]
        %v304 = vld [vmem:[%s215 + $0x5c] sm:$0xf]
        %v305 = vld [vmem:[%s215 + $0x60] sm:$0xf]
        %v306 = vld [vmem:[%s215 + $0x64] sm:$0xf]
        %v307 = vld [vmem:[%s215 + $0x68] sm:$0xf]
        %v308 = vld [vmem:[%s215 + $0x6c] sm:$0xf]
        %v309 = vld [vmem:[%s215 + $0x70] sm:$0xf]
        %v310 = vld [vmem:[%s215 + $0x74] sm:$0xf]
        %v311 = vld [vmem:[%s215 + $0x78] sm:$0xf]
        %v312 = vld [vmem:[%s215 + $0x7c] sm:$0xf]
        %v313 = vunpack.c.l.bf16 %v281
        %v314 = vunpack.c.l.bf16 %v282
        %v315 = vunpack.c.l.bf16 %v283
        %v316 = vunpack.c.l.bf16 %v284
        %v317 = vunpack.c.l.bf16 %v285
        %v318 = vunpack.c.l.bf16 %v286
        %v319 = vunpack.c.l.bf16 %v287
        %v320 = vunpack.c.l.bf16 %v288
        %v321 = vunpack.c.l.bf16 %v289
        %v322 = vunpack.c.l.bf16 %v290
        %v323 = vunpack.c.l.bf16 %v291
        %v324 = vunpack.c.l.bf16 %v292
        %v325 = vunpack.c.l.bf16 %v293
        %v326 = vunpack.c.l.bf16 %v294
        %v327 = vunpack.c.l.bf16 %v295
        %v328 = vunpack.c.l.bf16 %v296
        %v329 = vunpack.c.l.bf16 %v297
        %v330 = vunpack.c.l.bf16 %v298
        %v331 = vunpack.c.l.bf16 %v299
        %v332 = vunpack.c.l.bf16 %v300
        %v333 = vunpack.c.l.bf16 %v301
        %v334 = vunpack.c.l.bf16 %v302
        %v335 = vunpack.c.l.bf16 %v303
        %v336 = vunpack.c.l.bf16 %v304
        %v337 = vunpack.c.l.bf16 %v305
        %v338 = vunpack.c.l.bf16 %v306
        %v339 = vunpack.c.l.bf16 %v307
        %v340 = vunpack.c.l.bf16 %v308
        %v341 = vunpack.c.l.bf16 %v309
        %v342 = vunpack.c.l.bf16 %v310
        %v343 = vunpack.c.l.bf16 %v311
        %v344 = vunpack.c.l.bf16 %v312
        %v345 = vld [vmem:[%s2] sm:$0x1]
        %v347 = vlaneseq
        %v348 = vshrl.u32 %v347, 7
        %v349 = vsub.s32 0, %v348
        %v350 = vrot.slane %v345, %v349
        %v352 = vmul.f32 %v313, %v350
        %v353 = vmul.f32 %v314, %v350
        %v354 = vmul.f32 %v315, %v350
        %v355 = vmul.f32 %v316, %v350
        %v356 = vmul.f32 %v317, %v350
        %v357 = vmul.f32 %v318, %v350
        %v358 = vmul.f32 %v319, %v350
        %v359 = vmul.f32 %v320, %v350
        %v360 = vmul.f32 %v321, %v350
        %v361 = vmul.f32 %v322, %v350
        %v362 = vmul.f32 %v323, %v350
        %v363 = vmul.f32 %v324, %v350
        %v364 = vmul.f32 %v325, %v350
        %v365 = vmul.f32 %v326, %v350
        %v366 = vmul.f32 %v327, %v350
        %v367 = vmul.f32 %v328, %v350
        %v368 = vmul.f32 %v329, %v350
        %v369 = vmul.f32 %v330, %v350
        %v370 = vmul.f32 %v331, %v350
        %v371 = vmul.f32 %v332, %v350
        %v372 = vmul.f32 %v333, %v350
        %v373 = vmul.f32 %v334, %v350
        %v374 = vmul.f32 %v335, %v350
        %v375 = vmul.f32 %v336, %v350
        %v376 = vmul.f32 %v337, %v350
        %v377 = vmul.f32 %v338, %v350
        %v378 = vmul.f32 %v339, %v350
        %v379 = vmul.f32 %v340, %v350
        %v380 = vmul.f32 %v341, %v350
        %v381 = vmul.f32 %v342, %v350
        %v382 = vmul.f32 %v343, %v350
        %v383 = vmul.f32 %v344, %v350
        %v384 = vld [vmem:[%s3] sm:$0x1]
        %v386 = vlaneseq
        %v387 = vshrl.u32 %v386, 7
        %v388 = vsub.s32 0, %v387
        %v389 = vrot.slane %v384, %v388
        %v391 = vadd.f32 %v352, %v389
        %v392 = vadd.f32 %v353, %v389
        %v393 = vadd.f32 %v354, %v389
        %v394 = vadd.f32 %v355, %v389
        %v395 = vadd.f32 %v356, %v389
        %v396 = vadd.f32 %v357, %v389
        %v397 = vadd.f32 %v358, %v389
        %v398 = vadd.f32 %v359, %v389
        %v399 = vadd.f32 %v360, %v389
        %v400 = vadd.f32 %v361, %v389
        %v401 = vadd.f32 %v362, %v389
        %v402 = vadd.f32 %v363, %v389
        %v403 = vadd.f32 %v364, %v389
        %v404 = vadd.f32 %v365, %v389
        %v405 = vadd.f32 %v366, %v389
        %v406 = vadd.f32 %v367, %v389
        %v407 = vadd.f32 %v368, %v389
        %v408 = vadd.f32 %v369, %v389
        %v409 = vadd.f32 %v370, %v389
        %v410 = vadd.f32 %v371, %v389
        %v411 = vadd.f32 %v372, %v389
        %v412 = vadd.f32 %v373, %v389
        %v413 = vadd.f32 %v374, %v389
        %v414 = vadd.f32 %v375, %v389
        %v415 = vadd.f32 %v376, %v389
        %v416 = vadd.f32 %v377, %v389
        %v417 = vadd.f32 %v378, %v389
        %v418 = vadd.f32 %v379, %v389
        %v419 = vadd.f32 %v380, %v389
        %v420 = vadd.f32 %v381, %v389
        %v421 = vadd.f32 %v382, %v389
        %v422 = vadd.f32 %v383, %v389
        %v423 = vmul.f32 %v391, 0.70710677
        %v424 = vmul.f32 %v392, 0.70710677
        %v425 = vmul.f32 %v393, 0.70710677
        %v426 = vmul.f32 %v394, 0.70710677
        %v427 = vmul.f32 %v395, 0.70710677
        %v428 = vmul.f32 %v396, 0.70710677
        %v429 = vmul.f32 %v397, 0.70710677
        %v430 = vmul.f32 %v398, 0.70710677
        %v431 = vmul.f32 %v399, 0.70710677
        %v432 = vmul.f32 %v400, 0.70710677
        %v433 = vmul.f32 %v401, 0.70710677
        %v434 = vmul.f32 %v402, 0.70710677
        %v435 = vmul.f32 %v403, 0.70710677
        %v436 = vmul.f32 %v404, 0.70710677
        %v437 = vmul.f32 %v405, 0.70710677
        %v438 = vmul.f32 %v406, 0.70710677
        %v439 = vmul.f32 %v407, 0.70710677
        %v440 = vmul.f32 %v408, 0.70710677
        %v441 = vmul.f32 %v409, 0.70710677
        %v442 = vmul.f32 %v410, 0.70710677
        %v443 = vmul.f32 %v411, 0.70710677
        %v444 = vmul.f32 %v412, 0.70710677
        %v445 = vmul.f32 %v413, 0.70710677
        %v446 = vmul.f32 %v414, 0.70710677
        %v447 = vmul.f32 %v415, 0.70710677
        %v448 = vmul.f32 %v416, 0.70710677
        %v449 = vmul.f32 %v417, 0.70710677
        %v450 = vmul.f32 %v418, 0.70710677
        %v451 = vmul.f32 %v419, 0.70710677
        %v452 = vmul.f32 %v420, 0.70710677
        %v453 = vmul.f32 %v421, 0.70710677
        %v454 = vmul.f32 %v422, 0.70710677
        %v455 = vand.u32 2147483647, %v423
        %v456 = vand.u32 2147483647, %v424
        %v457 = vand.u32 2147483647, %v425
        %v458 = vand.u32 2147483647, %v426
        %v459 = vand.u32 2147483647, %v427
        %v460 = vand.u32 2147483647, %v428
        %v461 = vand.u32 2147483647, %v429
        %v462 = vand.u32 2147483647, %v430
        %v463 = vand.u32 2147483647, %v431
        %v464 = vand.u32 2147483647, %v432
        %v465 = vand.u32 2147483647, %v433
        %v466 = vand.u32 2147483647, %v434
        %v467 = vand.u32 2147483647, %v435
        %v468 = vand.u32 2147483647, %v436
        %v469 = vand.u32 2147483647, %v437
        %v470 = vand.u32 2147483647, %v438
        %v471 = vand.u32 2147483647, %v439
        %v472 = vand.u32 2147483647, %v440
        %v473 = vand.u32 2147483647, %v441
        %v474 = vand.u32 2147483647, %v442
        %v475 = vand.u32 2147483647, %v443
        %v476 = vand.u32 2147483647, %v444
        %v477 = vand.u32 2147483647, %v445
        %v478 = vand.u32 2147483647, %v446
        %v479 = vand.u32 2147483647, %v447
        %v480 = vand.u32 2147483647, %v448
        %v481 = vand.u32 2147483647, %v449
        %v482 = vand.u32 2147483647, %v450
        %v483 = vand.u32 2147483647, %v451
        %v484 = vand.u32 2147483647, %v452
        %v485 = vand.u32 2147483647, %v453
        %v486 = vand.u32 2147483647, %v454
        %v487 = vmul.f32 %v455, 0.3275911
        %v488 = vmul.f32 %v456, 0.3275911
        %v489 = vmul.f32 %v457, 0.3275911
        %v490 = vmul.f32 %v458, 0.3275911
        %v491 = vmul.f32 %v459, 0.3275911
        %v492 = vmul.f32 %v460, 0.3275911
        %v493 = vmul.f32 %v461, 0.3275911
        %v494 = vmul.f32 %v462, 0.3275911
        %v495 = vmul.f32 %v463, 0.3275911
        %v496 = vmul.f32 %v464, 0.3275911
        %v497 = vmul.f32 %v465, 0.3275911
        %v498 = vmul.f32 %v466, 0.3275911
        %v499 = vmul.f32 %v467, 0.3275911
        %v500 = vmul.f32 %v468, 0.3275911
        %v501 = vmul.f32 %v469, 0.3275911
        %v502 = vmul.f32 %v470, 0.3275911
        %v503 = vmul.f32 %v471, 0.3275911
        %v504 = vmul.f32 %v472, 0.3275911
        %v505 = vmul.f32 %v473, 0.3275911
        %v506 = vmul.f32 %v474, 0.3275911
        %v507 = vmul.f32 %v475, 0.3275911
        %v508 = vmul.f32 %v476, 0.3275911
        %v509 = vmul.f32 %v477, 0.3275911
        %v510 = vmul.f32 %v478, 0.3275911
        %v511 = vmul.f32 %v479, 0.3275911
        %v512 = vmul.f32 %v480, 0.3275911
        %v513 = vmul.f32 %v481, 0.3275911
        %v514 = vmul.f32 %v482, 0.3275911
        %v515 = vmul.f32 %v483, 0.3275911
        %v516 = vmul.f32 %v484, 0.3275911
        %v517 = vmul.f32 %v485, 0.3275911
        %v518 = vmul.f32 %v486, 0.3275911
        %v519 = vadd.f32 %v487, 1.0
        %v520 = vadd.f32 %v488, 1.0
        %v521 = vadd.f32 %v489, 1.0
        %v522 = vadd.f32 %v490, 1.0
        %v523 = vadd.f32 %v491, 1.0
        %v524 = vadd.f32 %v492, 1.0
        %v525 = vadd.f32 %v493, 1.0
        %v526 = vadd.f32 %v494, 1.0
        %v527 = vadd.f32 %v495, 1.0
        %v528 = vadd.f32 %v496, 1.0
        %v529 = vadd.f32 %v497, 1.0
        %v530 = vadd.f32 %v498, 1.0
        %v531 = vadd.f32 %v499, 1.0
        %v532 = vadd.f32 %v500, 1.0
        %v533 = vadd.f32 %v501, 1.0
        %v534 = vadd.f32 %v502, 1.0
        %v535 = vadd.f32 %v503, 1.0
        %v536 = vadd.f32 %v504, 1.0
        %v537 = vadd.f32 %v505, 1.0
        %v538 = vadd.f32 %v506, 1.0
        %v539 = vadd.f32 %v507, 1.0
        %v540 = vadd.f32 %v508, 1.0
        %v541 = vadd.f32 %v509, 1.0
        %v542 = vadd.f32 %v510, 1.0
        %v543 = vadd.f32 %v511, 1.0
        %v544 = vadd.f32 %v512, 1.0
        %v545 = vadd.f32 %v513, 1.0
        %v546 = vadd.f32 %v514, 1.0
        %v547 = vadd.f32 %v515, 1.0
        %v548 = vadd.f32 %v516, 1.0
        %v549 = vadd.f32 %v517, 1.0
        %v550 = vadd.f32 %v518, 1.0
        %v551 = vrcp.pop %v519
        %v552 = vmul.f32 1.0, %v551
        %v553 = vrcp.pop %v520
        %v554 = vmul.f32 1.0, %v553
        %v555 = vrcp.pop %v521
        %v556 = vmul.f32 1.0, %v555
        %v557 = vrcp.pop %v522
        %v558 = vmul.f32 1.0, %v557
        %v559 = vrcp.pop %v523
        %v560 = vmul.f32 1.0, %v559
        %v561 = vrcp.pop %v524
        %v562 = vmul.f32 1.0, %v561
        %v563 = vrcp.pop %v525
        %v564 = vmul.f32 1.0, %v563
        %v565 = vrcp.pop %v526
        %v566 = vmul.f32 1.0, %v565
        %v567 = vrcp.pop %v527
        %v568 = vmul.f32 1.0, %v567
        %v569 = vrcp.pop %v528
        %v570 = vmul.f32 1.0, %v569
        %v571 = vrcp.pop %v529
        %v572 = vmul.f32 1.0, %v571
        %v573 = vrcp.pop %v530
        %v574 = vmul.f32 1.0, %v573
        %v575 = vrcp.pop %v531
        %v576 = vmul.f32 1.0, %v575
        %v577 = vrcp.pop %v532
        %v578 = vmul.f32 1.0, %v577
        %v579 = vrcp.pop %v533
        %v580 = vmul.f32 1.0, %v579
        %v581 = vrcp.pop %v534
        %v582 = vmul.f32 1.0, %v581
        %v583 = vrcp.pop %v535
        %v584 = vmul.f32 1.0, %v583
        %v585 = vrcp.pop %v536
        %v586 = vmul.f32 1.0, %v585
        %v587 = vrcp.pop %v537
        %v588 = vmul.f32 1.0, %v587
        %v589 = vrcp.pop %v538
        %v590 = vmul.f32 1.0, %v589
        %v591 = vrcp.pop %v539
        %v592 = vmul.f32 1.0, %v591
        %v593 = vrcp.pop %v540
        %v594 = vmul.f32 1.0, %v593
        %v595 = vrcp.pop %v541
        %v596 = vmul.f32 1.0, %v595
        %v597 = vrcp.pop %v542
        %v598 = vmul.f32 1.0, %v597
        %v599 = vrcp.pop %v543
        %v600 = vmul.f32 1.0, %v599
        %v601 = vrcp.pop %v544
        %v602 = vmul.f32 1.0, %v601
        %v603 = vrcp.pop %v545
        %v604 = vmul.f32 1.0, %v603
        %v605 = vrcp.pop %v546
        %v606 = vmul.f32 1.0, %v605
        %v607 = vrcp.pop %v547
        %v608 = vmul.f32 1.0, %v607
        %v609 = vrcp.pop %v548
        %v610 = vmul.f32 1.0, %v609
        %v611 = vrcp.pop %v549
        %v612 = vmul.f32 1.0, %v611
        %v613 = vrcp.pop %v550
        %v614 = vmul.f32 1.0, %v613
        %v615 = vmul.f32 %v552, 1.0614054
        %v616 = vmul.f32 %v554, 1.0614054
        %v617 = vmul.f32 %v556, 1.0614054
        %v618 = vmul.f32 %v558, 1.0614054
        %v619 = vmul.f32 %v560, 1.0614054
        %v620 = vmul.f32 %v562, 1.0614054
        %v621 = vmul.f32 %v564, 1.0614054
        %v622 = vmul.f32 %v566, 1.0614054
        %v623 = vmul.f32 %v568, 1.0614054
        %v624 = vmul.f32 %v570, 1.0614054
        %v625 = vmul.f32 %v572, 1.0614054
        %v626 = vmul.f32 %v574, 1.0614054
        %v627 = vmul.f32 %v576, 1.0614054
        %v628 = vmul.f32 %v578, 1.0614054
        %v629 = vmul.f32 %v580, 1.0614054
        %v630 = vmul.f32 %v582, 1.0614054
        %v631 = vmul.f32 %v584, 1.0614054
        %v632 = vmul.f32 %v586, 1.0614054
        %v633 = vmul.f32 %v588, 1.0614054
        %v634 = vmul.f32 %v590, 1.0614054
        %v635 = vmul.f32 %v592, 1.0614054
        %v636 = vmul.f32 %v594, 1.0614054
        %v637 = vmul.f32 %v596, 1.0614054
        %v638 = vmul.f32 %v598, 1.0614054
        %v639 = vmul.f32 %v600, 1.0614054
        %v640 = vmul.f32 %v602, 1.0614054
        %v641 = vmul.f32 %v604, 1.0614054
        %v642 = vmul.f32 %v606, 1.0614054
        %v643 = vmul.f32 %v608, 1.0614054
        %v644 = vmul.f32 %v610, 1.0614054
        %v645 = vmul.f32 %v612, 1.0614054
        %v646 = vmul.f32 %v614, 1.0614054
        %v647 = vadd.f32 %v615, -1.4531521
        %v648 = vadd.f32 %v616, -1.4531521
        %v649 = vadd.f32 %v617, -1.4531521
        %v650 = vadd.f32 %v618, -1.4531521
        %v651 = vadd.f32 %v619, -1.4531521
        %v652 = vadd.f32 %v620, -1.4531521
        %v653 = vadd.f32 %v621, -1.4531521
        %v654 = vadd.f32 %v622, -1.4531521
        %v655 = vadd.f32 %v623, -1.4531521
        %v656 = vadd.f32 %v624, -1.4531521
        %v657 = vadd.f32 %v625, -1.4531521
        %v658 = vadd.f32 %v626, -1.4531521
        %v659 = vadd.f32 %v627, -1.4531521
        %v660 = vadd.f32 %v628, -1.4531521
        %v661 = vadd.f32 %v629, -1.4531521
        %v662 = vadd.f32 %v630, -1.4531521
        %v663 = vadd.f32 %v631, -1.4531521
        %v664 = vadd.f32 %v632, -1.4531521
        %v665 = vadd.f32 %v633, -1.4531521
        %v666 = vadd.f32 %v634, -1.4531521
        %v667 = vadd.f32 %v635, -1.4531521
        %v668 = vadd.f32 %v636, -1.4531521
        %v669 = vadd.f32 %v637, -1.4531521
        %v670 = vadd.f32 %v638, -1.4531521
        %v671 = vadd.f32 %v639, -1.4531521
        %v672 = vadd.f32 %v640, -1.4531521
        %v673 = vadd.f32 %v641, -1.4531521
        %v674 = vadd.f32 %v642, -1.4531521
        %v675 = vadd.f32 %v643, -1.4531521
        %v676 = vadd.f32 %v644, -1.4531521
        %v677 = vadd.f32 %v645, -1.4531521
        %v678 = vadd.f32 %v646, -1.4531521
        %v679 = vmul.f32 %v647, %v552
        %v680 = vmul.f32 %v648, %v554
        %v681 = vmul.f32 %v649, %v556
        %v682 = vmul.f32 %v650, %v558
        %v683 = vmul.f32 %v651, %v560
        %v684 = vmul.f32 %v652, %v562
        %v685 = vmul.f32 %v653, %v564
        %v686 = vmul.f32 %v654, %v566
        %v687 = vmul.f32 %v655, %v568
        %v688 = vmul.f32 %v656, %v570
        %v689 = vmul.f32 %v657, %v572
        %v690 = vmul.f32 %v658, %v574
        %v691 = vmul.f32 %v659, %v576
        %v692 = vmul.f32 %v660, %v578
        %v693 = vmul.f32 %v661, %v580
        %v694 = vmul.f32 %v662, %v582
        %v695 = vmul.f32 %v663, %v584
        %v696 = vmul.f32 %v664, %v586
        %v697 = vmul.f32 %v665, %v588
        %v698 = vmul.f32 %v666, %v590
        %v699 = vmul.f32 %v667, %v592
        %v700 = vmul.f32 %v668, %v594
        %v701 = vmul.f32 %v669, %v596
        %v702 = vmul.f32 %v670, %v598
        %v703 = vmul.f32 %v671, %v600
        %v704 = vmul.f32 %v672, %v602
        %v705 = vmul.f32 %v673, %v604
        %v706 = vmul.f32 %v674, %v606
        %v707 = vmul.f32 %v675, %v608
        %v708 = vmul.f32 %v676, %v610
        %v709 = vmul.f32 %v677, %v612
        %v710 = vmul.f32 %v678, %v614
        %v711 = vadd.f32 %v679, 1.4214138
        %v712 = vadd.f32 %v680, 1.4214138
        %v713 = vadd.f32 %v681, 1.4214138
        %v714 = vadd.f32 %v682, 1.4214138
        %v715 = vadd.f32 %v683, 1.4214138
        %v716 = vadd.f32 %v684, 1.4214138
        %v717 = vadd.f32 %v685, 1.4214138
        %v718 = vadd.f32 %v686, 1.4214138
        %v719 = vadd.f32 %v687, 1.4214138
        %v720 = vadd.f32 %v688, 1.4214138
        %v721 = vadd.f32 %v689, 1.4214138
        %v722 = vadd.f32 %v690, 1.4214138
        %v723 = vadd.f32 %v691, 1.4214138
        %v724 = vadd.f32 %v692, 1.4214138
        %v725 = vadd.f32 %v693, 1.4214138
        %v726 = vadd.f32 %v694, 1.4214138
        %v727 = vadd.f32 %v695, 1.4214138
        %v728 = vadd.f32 %v696, 1.4214138
        %v729 = vadd.f32 %v697, 1.4214138
        %v730 = vadd.f32 %v698, 1.4214138
        %v731 = vadd.f32 %v699, 1.4214138
        %v732 = vadd.f32 %v700, 1.4214138
        %v733 = vadd.f32 %v701, 1.4214138
        %v734 = vadd.f32 %v702, 1.4214138
        %v735 = vadd.f32 %v703, 1.4214138
        %v736 = vadd.f32 %v704, 1.4214138
        %v737 = vadd.f32 %v705, 1.4214138
        %v738 = vadd.f32 %v706, 1.4214138
        %v739 = vadd.f32 %v707, 1.4214138
        %v740 = vadd.f32 %v708, 1.4214138
        %v741 = vadd.f32 %v709, 1.4214138
        %v742 = vadd.f32 %v710, 1.4214138
        %v743 = vmul.f32 %v711, %v552
        %v744 = vmul.f32 %v712, %v554
        %v745 = vmul.f32 %v713, %v556
        %v746 = vmul.f32 %v714, %v558
        %v747 = vmul.f32 %v715, %v560
        %v748 = vmul.f32 %v716, %v562
        %v749 = vmul.f32 %v717, %v564
        %v750 = vmul.f32 %v718, %v566
        %v751 = vmul.f32 %v719, %v568
        %v752 = vmul.f32 %v720, %v570
        %v753 = vmul.f32 %v721, %v572
        %v754 = vmul.f32 %v722, %v574
        %v755 = vmul.f32 %v723, %v576
        %v756 = vmul.f32 %v724, %v578
        %v757 = vmul.f32 %v725, %v580
        %v758 = vmul.f32 %v726, %v582
        %v759 = vmul.f32 %v727, %v584
        %v760 = vmul.f32 %v728, %v586
        %v761 = vmul.f32 %v729, %v588
        %v762 = vmul.f32 %v730, %v590
        %v763 = vmul.f32 %v731, %v592
        %v764 = vmul.f32 %v732, %v594
        %v765 = vmul.f32 %v733, %v596
        %v766 = vmul.f32 %v734, %v598
        %v767 = vmul.f32 %v735, %v600
        %v768 = vmul.f32 %v736, %v602
        %v769 = vmul.f32 %v737, %v604
        %v770 = vmul.f32 %v738, %v606
        %v771 = vmul.f32 %v739, %v608
        %v772 = vmul.f32 %v740, %v610
        %v773 = vmul.f32 %v741, %v612
        %v774 = vmul.f32 %v742, %v614
        %v775 = vadd.f32 %v743, -0.28449672
        %v776 = vadd.f32 %v744, -0.28449672
        %v777 = vadd.f32 %v745, -0.28449672
        %v778 = vadd.f32 %v746, -0.28449672
        %v779 = vadd.f32 %v747, -0.28449672
        %v780 = vadd.f32 %v748, -0.28449672
        %v781 = vadd.f32 %v749, -0.28449672
        %v782 = vadd.f32 %v750, -0.28449672
        %v783 = vadd.f32 %v751, -0.28449672
        %v784 = vadd.f32 %v752, -0.28449672
        %v785 = vadd.f32 %v753, -0.28449672
        %v786 = vadd.f32 %v754, -0.28449672
        %v787 = vadd.f32 %v755, -0.28449672
        %v788 = vadd.f32 %v756, -0.28449672
        %v789 = vadd.f32 %v757, -0.28449672
        %v790 = vadd.f32 %v758, -0.28449672
        %v791 = vadd.f32 %v759, -0.28449672
        %v792 = vadd.f32 %v760, -0.28449672
        %v793 = vadd.f32 %v761, -0.28449672
        %v794 = vadd.f32 %v762, -0.28449672
        %v795 = vadd.f32 %v763, -0.28449672
        %v796 = vadd.f32 %v764, -0.28449672
        %v797 = vadd.f32 %v765, -0.28449672
        %v798 = vadd.f32 %v766, -0.28449672
        %v799 = vadd.f32 %v767, -0.28449672
        %v800 = vadd.f32 %v768, -0.28449672
        %v801 = vadd.f32 %v769, -0.28449672
        %v802 = vadd.f32 %v770, -0.28449672
        %v803 = vadd.f32 %v771, -0.28449672
        %v804 = vadd.f32 %v772, -0.28449672
        %v805 = vadd.f32 %v773, -0.28449672
        %v806 = vadd.f32 %v774, -0.28449672
        %v807 = vmul.f32 %v775, %v552
        %v808 = vmul.f32 %v776, %v554
        %v809 = vmul.f32 %v777, %v556
        %v810 = vmul.f32 %v778, %v558
        %v811 = vmul.f32 %v779, %v560
        %v812 = vmul.f32 %v780, %v562
        %v813 = vmul.f32 %v781, %v564
        %v814 = vmul.f32 %v782, %v566
        %v815 = vmul.f32 %v783, %v568
        %v816 = vmul.f32 %v784, %v570
        %v817 = vmul.f32 %v785, %v572
        %v818 = vmul.f32 %v786, %v574
        %v819 = vmul.f32 %v787, %v576
        %v820 = vmul.f32 %v788, %v578
        %v821 = vmul.f32 %v789, %v580
        %v822 = vmul.f32 %v790, %v582
        %v823 = vmul.f32 %v791, %v584
        %v824 = vmul.f32 %v792, %v586
        %v825 = vmul.f32 %v793, %v588
        %v826 = vmul.f32 %v794, %v590
        %v827 = vmul.f32 %v795, %v592
        %v828 = vmul.f32 %v796, %v594
        %v829 = vmul.f32 %v797, %v596
        %v830 = vmul.f32 %v798, %v598
        %v831 = vmul.f32 %v799, %v600
        %v832 = vmul.f32 %v800, %v602
        %v833 = vmul.f32 %v801, %v604
        %v834 = vmul.f32 %v802, %v606
        %v835 = vmul.f32 %v803, %v608
        %v836 = vmul.f32 %v804, %v610
        %v837 = vmul.f32 %v805, %v612
        %v838 = vmul.f32 %v806, %v614
        %v839 = vadd.f32 %v807, 0.2548296
        %v840 = vadd.f32 %v808, 0.2548296
        %v841 = vadd.f32 %v809, 0.2548296
        %v842 = vadd.f32 %v810, 0.2548296
        %v843 = vadd.f32 %v811, 0.2548296
        %v844 = vadd.f32 %v812, 0.2548296
        %v845 = vadd.f32 %v813, 0.2548296
        %v846 = vadd.f32 %v814, 0.2548296
        %v847 = vadd.f32 %v815, 0.2548296
        %v848 = vadd.f32 %v816, 0.2548296
        %v849 = vadd.f32 %v817, 0.2548296
        %v850 = vadd.f32 %v818, 0.2548296
        %v851 = vadd.f32 %v819, 0.2548296
        %v852 = vadd.f32 %v820, 0.2548296
        %v853 = vadd.f32 %v821, 0.2548296
        %v854 = vadd.f32 %v822, 0.2548296
        %v855 = vadd.f32 %v823, 0.2548296
        %v856 = vadd.f32 %v824, 0.2548296
        %v857 = vadd.f32 %v825, 0.2548296
        %v858 = vadd.f32 %v826, 0.2548296
        %v859 = vadd.f32 %v827, 0.2548296
        %v860 = vadd.f32 %v828, 0.2548296
        %v861 = vadd.f32 %v829, 0.2548296
        %v862 = vadd.f32 %v830, 0.2548296
        %v863 = vadd.f32 %v831, 0.2548296
        %v864 = vadd.f32 %v832, 0.2548296
        %v865 = vadd.f32 %v833, 0.2548296
        %v866 = vadd.f32 %v834, 0.2548296
        %v867 = vadd.f32 %v835, 0.2548296
        %v868 = vadd.f32 %v836, 0.2548296
        %v869 = vadd.f32 %v837, 0.2548296
        %v870 = vadd.f32 %v838, 0.2548296
        %v871 = vmul.f32 %v839, %v552
        %v872 = vmul.f32 %v840, %v554
        %v873 = vmul.f32 %v841, %v556
        %v874 = vmul.f32 %v842, %v558
        %v875 = vmul.f32 %v843, %v560
        %v876 = vmul.f32 %v844, %v562
        %v877 = vmul.f32 %v845, %v564
        %v878 = vmul.f32 %v846, %v566
        %v879 = vmul.f32 %v847, %v568
        %v880 = vmul.f32 %v848, %v570
        %v881 = vmul.f32 %v849, %v572
        %v882 = vmul.f32 %v850, %v574
        %v883 = vmul.f32 %v851, %v576
        %v884 = vmul.f32 %v852, %v578
        %v885 = vmul.f32 %v853, %v580
        %v886 = vmul.f32 %v854, %v582
        %v887 = vmul.f32 %v855, %v584
        %v888 = vmul.f32 %v856, %v586
        %v889 = vmul.f32 %v857, %v588
        %v890 = vmul.f32 %v858, %v590
        %v891 = vmul.f32 %v859, %v592
        %v892 = vmul.f32 %v860, %v594
        %v893 = vmul.f32 %v861, %v596
        %v894 = vmul.f32 %v862, %v598
        %v895 = vmul.f32 %v863, %v600
        %v896 = vmul.f32 %v864, %v602
        %v897 = vmul.f32 %v865, %v604
        %v898 = vmul.f32 %v866, %v606
        %v899 = vmul.f32 %v867, %v608
        %v900 = vmul.f32 %v868, %v610
        %v901 = vmul.f32 %v869, %v612
        %v902 = vmul.f32 %v870, %v614
        %v903 = vsub.f32 0.0, %v455
        %v904 = vsub.f32 0.0, %v456
        %v905 = vsub.f32 0.0, %v457
        %v906 = vsub.f32 0.0, %v458
        %v907 = vsub.f32 0.0, %v459
        %v908 = vsub.f32 0.0, %v460
        %v909 = vsub.f32 0.0, %v461
        %v910 = vsub.f32 0.0, %v462
        %v911 = vsub.f32 0.0, %v463
        %v912 = vsub.f32 0.0, %v464
        %v913 = vsub.f32 0.0, %v465
        %v914 = vsub.f32 0.0, %v466
        %v915 = vsub.f32 0.0, %v467
        %v916 = vsub.f32 0.0, %v468
        %v917 = vsub.f32 0.0, %v469
        %v918 = vsub.f32 0.0, %v470
        %v919 = vsub.f32 0.0, %v471
        %v920 = vsub.f32 0.0, %v472
        %v921 = vsub.f32 0.0, %v473
        %v922 = vsub.f32 0.0, %v474
        %v923 = vsub.f32 0.0, %v475
        %v924 = vsub.f32 0.0, %v476
        %v925 = vsub.f32 0.0, %v477
        %v926 = vsub.f32 0.0, %v478
        %v927 = vsub.f32 0.0, %v479
        %v928 = vsub.f32 0.0, %v480
        %v929 = vsub.f32 0.0, %v481
        %v930 = vsub.f32 0.0, %v482
        %v931 = vsub.f32 0.0, %v483
        %v932 = vsub.f32 0.0, %v484
        %v933 = vsub.f32 0.0, %v485
        %v934 = vsub.f32 0.0, %v486
        %v935 = vmul.f32 %v903, %v455
        %v936 = vmul.f32 %v904, %v456
        %v937 = vmul.f32 %v905, %v457
        %v938 = vmul.f32 %v906, %v458
        %v939 = vmul.f32 %v907, %v459
        %v940 = vmul.f32 %v908, %v460
        %v941 = vmul.f32 %v909, %v461
        %v942 = vmul.f32 %v910, %v462
        %v943 = vmul.f32 %v911, %v463
        %v944 = vmul.f32 %v912, %v464
        %v945 = vmul.f32 %v913, %v465
        %v946 = vmul.f32 %v914, %v466
        %v947 = vmul.f32 %v915, %v467
        %v948 = vmul.f32 %v916, %v468
        %v949 = vmul.f32 %v917, %v469
        %v950 = vmul.f32 %v918, %v470
        %v951 = vmul.f32 %v919, %v471
        %v952 = vmul.f32 %v920, %v472
        %v953 = vmul.f32 %v921, %v473
        %v954 = vmul.f32 %v922, %v474
        %v955 = vmul.f32 %v923, %v475
        %v956 = vmul.f32 %v924, %v476
        %v957 = vmul.f32 %v925, %v477
        %v958 = vmul.f32 %v926, %v478
        %v959 = vmul.f32 %v927, %v479
        %v960 = vmul.f32 %v928, %v480
        %v961 = vmul.f32 %v929, %v481
        %v962 = vmul.f32 %v930, %v482
        %v963 = vmul.f32 %v931, %v483
        %v964 = vmul.f32 %v932, %v484
        %v965 = vmul.f32 %v933, %v485
        %v966 = vmul.f32 %v934, %v486
        %v967 = vmul.f32 %v935, 1.442695
        %v968 = vpow.pop %v967
        %v969 = vmul.f32 %v936, 1.442695
        %v970 = vpow.pop %v969
        %v971 = vmul.f32 %v937, 1.442695
        %v972 = vpow.pop %v971
        %v973 = vmul.f32 %v938, 1.442695
        %v974 = vpow.pop %v973
        %v975 = vmul.f32 %v939, 1.442695
        %v976 = vpow.pop %v975
        %v977 = vmul.f32 %v940, 1.442695
        %v978 = vpow.pop %v977
        %v979 = vmul.f32 %v941, 1.442695
        %v980 = vpow.pop %v979
        %v981 = vmul.f32 %v942, 1.442695
        %v982 = vpow.pop %v981
        %v983 = vmul.f32 %v943, 1.442695
        %v984 = vpow.pop %v983
        %v985 = vmul.f32 %v944, 1.442695
        %v986 = vpow.pop %v985
        %v987 = vmul.f32 %v945, 1.442695
        %v988 = vpow.pop %v987
        %v989 = vmul.f32 %v946, 1.442695
        %v990 = vpow.pop %v989
        %v991 = vmul.f32 %v947, 1.442695
        %v992 = vpow.pop %v991
        %v993 = vmul.f32 %v948, 1.442695
        %v994 = vpow.pop %v993
        %v995 = vmul.f32 %v949, 1.442695
        %v996 = vpow.pop %v995
        %v997 = vmul.f32 %v950, 1.442695
        %v998 = vpow.pop %v997
        %v999 = vmul.f32 %v951, 1.442695
        %v1000 = vpow.pop %v999
        %v1001 = vmul.f32 %v952, 1.442695
        %v1002 = vpow.pop %v1001
        %v1003 = vmul.f32 %v953, 1.442695
        %v1004 = vpow.pop %v1003
        %v1005 = vmul.f32 %v954, 1.442695
        %v1006 = vpow.pop %v1005
        %v1007 = vmul.f32 %v955, 1.442695
        %v1008 = vpow.pop %v1007
        %v1009 = vmul.f32 %v956, 1.442695
        %v1010 = vpow.pop %v1009
        %v1011 = vmul.f32 %v957, 1.442695
        %v1012 = vpow.pop %v1011
        %v1013 = vmul.f32 %v958, 1.442695
        %v1014 = vpow.pop %v1013
        %v1015 = vmul.f32 %v959, 1.442695
        %v1016 = vpow.pop %v1015
        %v1017 = vmul.f32 %v960, 1.442695
        %v1018 = vpow.pop %v1017
        %v1019 = vmul.f32 %v961, 1.442695
        %v1020 = vpow.pop %v1019
        %v1021 = vmul.f32 %v962, 1.442695
        %v1022 = vpow.pop %v1021
        %v1023 = vmul.f32 %v963, 1.442695
        %v1024 = vpow.pop %v1023
        %v1025 = vmul.f32 %v964, 1.442695
        %v1026 = vpow.pop %v1025
        %v1027 = vmul.f32 %v965, 1.442695
        %v1028 = vpow.pop %v1027
        %v1029 = vmul.f32 %v966, 1.442695
        %v1030 = vpow.pop %v1029
        %v1031 = vmul.f32 %v871, %v968
        %v1032 = vmul.f32 %v872, %v970
        %v1033 = vmul.f32 %v873, %v972
        %v1034 = vmul.f32 %v874, %v974
        %v1035 = vmul.f32 %v875, %v976
        %v1036 = vmul.f32 %v876, %v978
        %v1037 = vmul.f32 %v877, %v980
        %v1038 = vmul.f32 %v878, %v982
        %v1039 = vmul.f32 %v879, %v984
        %v1040 = vmul.f32 %v880, %v986
        %v1041 = vmul.f32 %v881, %v988
        %v1042 = vmul.f32 %v882, %v990
        %v1043 = vmul.f32 %v883, %v992
        %v1044 = vmul.f32 %v884, %v994
        %v1045 = vmul.f32 %v885, %v996
        %v1046 = vmul.f32 %v886, %v998
        %v1047 = vmul.f32 %v887, %v1000
        %v1048 = vmul.f32 %v888, %v1002
        %v1049 = vmul.f32 %v889, %v1004
        %v1050 = vmul.f32 %v890, %v1006
        %v1051 = vmul.f32 %v891, %v1008
        %v1052 = vmul.f32 %v892, %v1010
        %v1053 = vmul.f32 %v893, %v1012
        %v1054 = vmul.f32 %v894, %v1014
        %v1055 = vmul.f32 %v895, %v1016
        %v1056 = vmul.f32 %v896, %v1018
        %v1057 = vmul.f32 %v897, %v1020
        %v1058 = vmul.f32 %v898, %v1022
        %v1059 = vmul.f32 %v899, %v1024
        %v1060 = vmul.f32 %v900, %v1026
        %v1061 = vmul.f32 %v901, %v1028
        %v1062 = vmul.f32 %v902, %v1030
        %v1063 = vsub.f32 1.0, %v1031
        %v1064 = vsub.f32 1.0, %v1032
        %v1065 = vsub.f32 1.0, %v1033
        %v1066 = vsub.f32 1.0, %v1034
        %v1067 = vsub.f32 1.0, %v1035
        %v1068 = vsub.f32 1.0, %v1036
        %v1069 = vsub.f32 1.0, %v1037
        %v1070 = vsub.f32 1.0, %v1038
        %v1071 = vsub.f32 1.0, %v1039
        %v1072 = vsub.f32 1.0, %v1040
        %v1073 = vsub.f32 1.0, %v1041
        %v1074 = vsub.f32 1.0, %v1042
        %v1075 = vsub.f32 1.0, %v1043
        %v1076 = vsub.f32 1.0, %v1044
        %v1077 = vsub.f32 1.0, %v1045
        %v1078 = vsub.f32 1.0, %v1046
        %v1079 = vsub.f32 1.0, %v1047
        %v1080 = vsub.f32 1.0, %v1048
        %v1081 = vsub.f32 1.0, %v1049
        %v1082 = vsub.f32 1.0, %v1050
        %v1083 = vsub.f32 1.0, %v1051
        %v1084 = vsub.f32 1.0, %v1052
        %v1085 = vsub.f32 1.0, %v1053
        %v1086 = vsub.f32 1.0, %v1054
        %v1087 = vsub.f32 1.0, %v1055
        %v1088 = vsub.f32 1.0, %v1056
        %v1089 = vsub.f32 1.0, %v1057
        %v1090 = vsub.f32 1.0, %v1058
        %v1091 = vsub.f32 1.0, %v1059
        %v1092 = vsub.f32 1.0, %v1060
        %v1093 = vsub.f32 1.0, %v1061
        %v1094 = vsub.f32 1.0, %v1062
        %vm1095 = vcmp.ge.f32.partialorder %v423, 0.0
        %vm1096 = vcmp.ge.f32.partialorder %v424, 0.0
        %vm1097 = vcmp.ge.f32.partialorder %v425, 0.0
        %vm1098 = vcmp.ge.f32.partialorder %v426, 0.0
        %vm1099 = vcmp.ge.f32.partialorder %v427, 0.0
        %vm1100 = vcmp.ge.f32.partialorder %v428, 0.0
        %vm1101 = vcmp.ge.f32.partialorder %v429, 0.0
        %vm1102 = vcmp.ge.f32.partialorder %v430, 0.0
        %vm1103 = vcmp.ge.f32.partialorder %v431, 0.0
        %vm1104 = vcmp.ge.f32.partialorder %v432, 0.0
        %vm1105 = vcmp.ge.f32.partialorder %v433, 0.0
        %vm1106 = vcmp.ge.f32.partialorder %v434, 0.0
        %vm1107 = vcmp.ge.f32.partialorder %v435, 0.0
        %vm1108 = vcmp.ge.f32.partialorder %v436, 0.0
        %vm1109 = vcmp.ge.f32.partialorder %v437, 0.0
        %vm1110 = vcmp.ge.f32.partialorder %v438, 0.0
        %vm1111 = vcmp.ge.f32.partialorder %v439, 0.0
        %vm1112 = vcmp.ge.f32.partialorder %v440, 0.0
        %vm1113 = vcmp.ge.f32.partialorder %v441, 0.0
        %vm1114 = vcmp.ge.f32.partialorder %v442, 0.0
        %vm1115 = vcmp.ge.f32.partialorder %v443, 0.0
        %vm1116 = vcmp.ge.f32.partialorder %v444, 0.0
        %vm1117 = vcmp.ge.f32.partialorder %v445, 0.0
        %vm1118 = vcmp.ge.f32.partialorder %v446, 0.0
        %vm1119 = vcmp.ge.f32.partialorder %v447, 0.0
        %vm1120 = vcmp.ge.f32.partialorder %v448, 0.0
        %vm1121 = vcmp.ge.f32.partialorder %v449, 0.0
        %vm1122 = vcmp.ge.f32.partialorder %v450, 0.0
        %vm1123 = vcmp.ge.f32.partialorder %v451, 0.0
        %vm1124 = vcmp.ge.f32.partialorder %v452, 0.0
        %vm1125 = vcmp.ge.f32.partialorder %v453, 0.0
        %vm1126 = vcmp.ge.f32.partialorder %v454, 0.0
        %v1127 = vsub.f32 0.0, %v1063
        %v1128 = vsub.f32 0.0, %v1064
        %v1129 = vsub.f32 0.0, %v1065
        %v1130 = vsub.f32 0.0, %v1066
        %v1131 = vsub.f32 0.0, %v1067
        %v1132 = vsub.f32 0.0, %v1068
        %v1133 = vsub.f32 0.0, %v1069
        %v1134 = vsub.f32 0.0, %v1070
        %v1135 = vsub.f32 0.0, %v1071
        %v1136 = vsub.f32 0.0, %v1072
        %v1137 = vsub.f32 0.0, %v1073
        %v1138 = vsub.f32 0.0, %v1074
        %v1139 = vsub.f32 0.0, %v1075
        %v1140 = vsub.f32 0.0, %v1076
        %v1141 = vsub.f32 0.0, %v1077
        %v1142 = vsub.f32 0.0, %v1078
        %v1143 = vsub.f32 0.0, %v1079
        %v1144 = vsub.f32 0.0, %v1080
        %v1145 = vsub.f32 0.0, %v1081
        %v1146 = vsub.f32 0.0, %v1082
        %v1147 = vsub.f32 0.0, %v1083
        %v1148 = vsub.f32 0.0, %v1084
        %v1149 = vsub.f32 0.0, %v1085
        %v1150 = vsub.f32 0.0, %v1086
        %v1151 = vsub.f32 0.0, %v1087
        %v1152 = vsub.f32 0.0, %v1088
        %v1153 = vsub.f32 0.0, %v1089
        %v1154 = vsub.f32 0.0, %v1090
        %v1155 = vsub.f32 0.0, %v1091
        %v1156 = vsub.f32 0.0, %v1092
        %v1157 = vsub.f32 0.0, %v1093
        %v1158 = vsub.f32 0.0, %v1094
        %v1159 = vsel %vm1095, %v1063, %v1127
        %v1160 = vsel %vm1096, %v1064, %v1128
        %v1161 = vsel %vm1097, %v1065, %v1129
        %v1162 = vsel %vm1098, %v1066, %v1130
        %v1163 = vsel %vm1099, %v1067, %v1131
        %v1164 = vsel %vm1100, %v1068, %v1132
        %v1165 = vsel %vm1101, %v1069, %v1133
        %v1166 = vsel %vm1102, %v1070, %v1134
        %v1167 = vsel %vm1103, %v1071, %v1135
        %v1168 = vsel %vm1104, %v1072, %v1136
        %v1169 = vsel %vm1105, %v1073, %v1137
        %v1170 = vsel %vm1106, %v1074, %v1138
        %v1171 = vsel %vm1107, %v1075, %v1139
        %v1172 = vsel %vm1108, %v1076, %v1140
        %v1173 = vsel %vm1109, %v1077, %v1141
        %v1174 = vsel %vm1110, %v1078, %v1142
        %v1175 = vsel %vm1111, %v1079, %v1143
        %v1176 = vsel %vm1112, %v1080, %v1144
        %v1177 = vsel %vm1113, %v1081, %v1145
        %v1178 = vsel %vm1114, %v1082, %v1146
        %v1179 = vsel %vm1115, %v1083, %v1147
        %v1180 = vsel %vm1116, %v1084, %v1148
        %v1181 = vsel %vm1117, %v1085, %v1149
        %v1182 = vsel %vm1118, %v1086, %v1150
        %v1183 = vsel %vm1119, %v1087, %v1151
        %v1184 = vsel %vm1120, %v1088, %v1152
        %v1185 = vsel %vm1121, %v1089, %v1153
        %v1186 = vsel %vm1122, %v1090, %v1154
        %v1187 = vsel %vm1123, %v1091, %v1155
        %v1188 = vsel %vm1124, %v1092, %v1156
        %v1189 = vsel %vm1125, %v1093, %v1157
        %v1190 = vsel %vm1126, %v1094, %v1158
        %v1191 = vmul.f32 %v391, 0.5
        %v1192 = vmul.f32 %v392, 0.5
        %v1193 = vmul.f32 %v393, 0.5
        %v1194 = vmul.f32 %v394, 0.5
        %v1195 = vmul.f32 %v395, 0.5
        %v1196 = vmul.f32 %v396, 0.5
        %v1197 = vmul.f32 %v397, 0.5
        %v1198 = vmul.f32 %v398, 0.5
        %v1199 = vmul.f32 %v399, 0.5
        %v1200 = vmul.f32 %v400, 0.5
        %v1201 = vmul.f32 %v401, 0.5
        %v1202 = vmul.f32 %v402, 0.5
        %v1203 = vmul.f32 %v403, 0.5
        %v1204 = vmul.f32 %v404, 0.5
        %v1205 = vmul.f32 %v405, 0.5
        %v1206 = vmul.f32 %v406, 0.5
        %v1207 = vmul.f32 %v407, 0.5
        %v1208 = vmul.f32 %v408, 0.5
        %v1209 = vmul.f32 %v409, 0.5
        %v1210 = vmul.f32 %v410, 0.5
        %v1211 = vmul.f32 %v411, 0.5
        %v1212 = vmul.f32 %v412, 0.5
        %v1213 = vmul.f32 %v413, 0.5
        %v1214 = vmul.f32 %v414, 0.5
        %v1215 = vmul.f32 %v415, 0.5
        %v1216 = vmul.f32 %v416, 0.5
        %v1217 = vmul.f32 %v417, 0.5
        %v1218 = vmul.f32 %v418, 0.5
        %v1219 = vmul.f32 %v419, 0.5
        %v1220 = vmul.f32 %v420, 0.5
        %v1221 = vmul.f32 %v421, 0.5
        %v1222 = vmul.f32 %v422, 0.5
        %v1223 = vadd.f32 %v1159, 1.0
        %v1224 = vadd.f32 %v1160, 1.0
        %v1225 = vadd.f32 %v1161, 1.0
        %v1226 = vadd.f32 %v1162, 1.0
        %v1227 = vadd.f32 %v1163, 1.0
        %v1228 = vadd.f32 %v1164, 1.0
        %v1229 = vadd.f32 %v1165, 1.0
        %v1230 = vadd.f32 %v1166, 1.0
        %v1231 = vadd.f32 %v1167, 1.0
        %v1232 = vadd.f32 %v1168, 1.0
        %v1233 = vadd.f32 %v1169, 1.0
        %v1234 = vadd.f32 %v1170, 1.0
        %v1235 = vadd.f32 %v1171, 1.0
        %v1236 = vadd.f32 %v1172, 1.0
        %v1237 = vadd.f32 %v1173, 1.0
        %v1238 = vadd.f32 %v1174, 1.0
        %v1239 = vadd.f32 %v1175, 1.0
        %v1240 = vadd.f32 %v1176, 1.0
        %v1241 = vadd.f32 %v1177, 1.0
        %v1242 = vadd.f32 %v1178, 1.0
        %v1243 = vadd.f32 %v1179, 1.0
        %v1244 = vadd.f32 %v1180, 1.0
        %v1245 = vadd.f32 %v1181, 1.0
        %v1246 = vadd.f32 %v1182, 1.0
        %v1247 = vadd.f32 %v1183, 1.0
        %v1248 = vadd.f32 %v1184, 1.0
        %v1249 = vadd.f32 %v1185, 1.0
        %v1250 = vadd.f32 %v1186, 1.0
        %v1251 = vadd.f32 %v1187, 1.0
        %v1252 = vadd.f32 %v1188, 1.0
        %v1253 = vadd.f32 %v1189, 1.0
        %v1254 = vadd.f32 %v1190, 1.0
        %v1255 = vmul.f32 %v1191, %v1223
        %v1256 = vmul.f32 %v1192, %v1224
        %v1257 = vmul.f32 %v1193, %v1225
        %v1258 = vmul.f32 %v1194, %v1226
        %v1259 = vmul.f32 %v1195, %v1227
        %v1260 = vmul.f32 %v1196, %v1228
        %v1261 = vmul.f32 %v1197, %v1229
        %v1262 = vmul.f32 %v1198, %v1230
        %v1263 = vmul.f32 %v1199, %v1231
        %v1264 = vmul.f32 %v1200, %v1232
        %v1265 = vmul.f32 %v1201, %v1233
        %v1266 = vmul.f32 %v1202, %v1234
        %v1267 = vmul.f32 %v1203, %v1235
        %v1268 = vmul.f32 %v1204, %v1236
        %v1269 = vmul.f32 %v1205, %v1237
        %v1270 = vmul.f32 %v1206, %v1238
        %v1271 = vmul.f32 %v1207, %v1239
        %v1272 = vmul.f32 %v1208, %v1240
        %v1273 = vmul.f32 %v1209, %v1241
        %v1274 = vmul.f32 %v1210, %v1242
        %v1275 = vmul.f32 %v1211, %v1243
        %v1276 = vmul.f32 %v1212, %v1244
        %v1277 = vmul.f32 %v1213, %v1245
        %v1278 = vmul.f32 %v1214, %v1246
        %v1279 = vmul.f32 %v1215, %v1247
        %v1280 = vmul.f32 %v1216, %v1248
        %v1281 = vmul.f32 %v1217, %v1249
        %v1282 = vmul.f32 %v1218, %v1250
        %v1283 = vmul.f32 %v1219, %v1251
        %v1284 = vmul.f32 %v1220, %v1252
        %v1285 = vmul.f32 %v1221, %v1253
        %v1286 = vmul.f32 %v1222, %v1254
        %1319 = vrot.lane.b32.xlu0 %v1255, 16
        %v1320 = vpop.permute.xlu0 %1319
        %1321 = vrot.lane.b32.xlu0 %v1256, 16
        %v1322 = vpop.permute.xlu0 %1321
        %1323 = vrot.lane.b32.xlu0 %v1257, 16
        %v1324 = vpop.permute.xlu0 %1323
        %1325 = vrot.lane.b32.xlu0 %v1258, 16
        %v1326 = vpop.permute.xlu0 %1325
        %1327 = vrot.lane.b32.xlu0 %v1259, 16
        %v1328 = vpop.permute.xlu0 %1327
        %1329 = vrot.lane.b32.xlu0 %v1260, 16
        %v1330 = vpop.permute.xlu0 %1329
        %1331 = vrot.lane.b32.xlu0 %v1261, 16
        %v1332 = vpop.permute.xlu0 %1331
        %1333 = vrot.lane.b32.xlu0 %v1262, 16
        %v1334 = vpop.permute.xlu0 %1333
        %1335 = vrot.lane.b32.xlu0 %v1263, 16
        %v1336 = vpop.permute.xlu0 %1335
        %1337 = vrot.lane.b32.xlu0 %v1264, 16
        %v1338 = vpop.permute.xlu0 %1337
        %1339 = vrot.lane.b32.xlu0 %v1265, 16
        %v1340 = vpop.permute.xlu0 %1339
        %1341 = vrot.lane.b32.xlu0 %v1266, 16
        %v1342 = vpop.permute.xlu0 %1341
        %1343 = vrot.lane.b32.xlu0 %v1267, 16
        %v1344 = vpop.permute.xlu0 %1343
        %1345 = vrot.lane.b32.xlu0 %v1268, 16
        %v1346 = vpop.permute.xlu0 %1345
        %1347 = vrot.lane.b32.xlu0 %v1269, 16
        %v1348 = vpop.permute.xlu0 %1347
        %1349 = vrot.lane.b32.xlu0 %v1270, 16
        %v1350 = vpop.permute.xlu0 %1349
        %1351 = vrot.lane.b32.xlu0 %v1271, 16
        %v1352 = vpop.permute.xlu0 %1351
        %1353 = vrot.lane.b32.xlu0 %v1272, 16
        %v1354 = vpop.permute.xlu0 %1353
        %1355 = vrot.lane.b32.xlu0 %v1273, 16
        %v1356 = vpop.permute.xlu0 %1355
        %1357 = vrot.lane.b32.xlu0 %v1274, 16
        %v1358 = vpop.permute.xlu0 %1357
        %1359 = vrot.lane.b32.xlu0 %v1275, 16
        %v1360 = vpop.permute.xlu0 %1359
        %1361 = vrot.lane.b32.xlu0 %v1276, 16
        %v1362 = vpop.permute.xlu0 %1361
        %1363 = vrot.lane.b32.xlu0 %v1277, 16
        %v1364 = vpop.permute.xlu0 %1363
        %1365 = vrot.lane.b32.xlu0 %v1278, 16
        %v1366 = vpop.permute.xlu0 %1365
        %1367 = vrot.lane.b32.xlu0 %v1279, 16
        %v1368 = vpop.permute.xlu0 %1367
        %1369 = vrot.lane.b32.xlu0 %v1280, 16
        %v1370 = vpop.permute.xlu0 %1369
        %1371 = vrot.lane.b32.xlu0 %v1281, 16
        %v1372 = vpop.permute.xlu0 %1371
        %1373 = vrot.lane.b32.xlu0 %v1282, 16
        %v1374 = vpop.permute.xlu0 %1373
        %1375 = vrot.lane.b32.xlu0 %v1283, 16
        %v1376 = vpop.permute.xlu0 %1375
        %1377 = vrot.lane.b32.xlu0 %v1284, 16
        %v1378 = vpop.permute.xlu0 %1377
        %1379 = vrot.lane.b32.xlu0 %v1285, 16
        %v1380 = vpop.permute.xlu0 %1379
        %1381 = vrot.lane.b32.xlu0 %v1286, 16
        %v1382 = vpop.permute.xlu0 %1381
        %vm1415 = vcmask 261248
        %1416 = vst.msk [vmem:[%s205] sm:$0xff] %vm1415, %v1320
        %1417 = vst.msk [vmem:[%s205 + $0x8] sm:$0xff] %vm1415, %v1322
        %1418 = vst.msk [vmem:[%s205 + $0x10] sm:$0xff] %vm1415, %v1324
        %1419 = vst.msk [vmem:[%s205 + $0x18] sm:$0xff] %vm1415, %v1326
        %1420 = vst.msk [vmem:[%s205 + $0x20] sm:$0xff] %vm1415, %v1328
        %1421 = vst.msk [vmem:[%s205 + $0x28] sm:$0xff] %vm1415, %v1330
        %1422 = vst.msk [vmem:[%s205 + $0x30] sm:$0xff] %vm1415, %v1332
        %1423 = vst.msk [vmem:[%s205 + $0x38] sm:$0xff] %vm1415, %v1334
        %1424 = vst.msk [vmem:[%s205 + $0x40] sm:$0xff] %vm1415, %v1336
        %1425 = vst.msk [vmem:[%s205 + $0x48] sm:$0xff] %vm1415, %v1338
        %1426 = vst.msk [vmem:[%s205 + $0x50] sm:$0xff] %vm1415, %v1340
        %1427 = vst.msk [vmem:[%s205 + $0x58] sm:$0xff] %vm1415, %v1342
        %1428 = vst.msk [vmem:[%s205 + $0x60] sm:$0xff] %vm1415, %v1344
        %1429 = vst.msk [vmem:[%s205 + $0x68] sm:$0xff] %vm1415, %v1346
        %1430 = vst.msk [vmem:[%s205 + $0x70] sm:$0xff] %vm1415, %v1348
        %1431 = vst.msk [vmem:[%s205 + $0x78] sm:$0xff] %vm1415, %v1350
        %1432 = vst.msk [vmem:[%s205 + $0x80] sm:$0xff] %vm1415, %v1352
        %1433 = vst.msk [vmem:[%s205 + $0x88] sm:$0xff] %vm1415, %v1354
        %1434 = vst.msk [vmem:[%s205 + $0x90] sm:$0xff] %vm1415, %v1356
        %1435 = vst.msk [vmem:[%s205 + $0x98] sm:$0xff] %vm1415, %v1358
        %1436 = vst.msk [vmem:[%s205 + $0xa0] sm:$0xff] %vm1415, %v1360
        %1437 = vst.msk [vmem:[%s205 + $0xa8] sm:$0xff] %vm1415, %v1362
        %1438 = vst.msk [vmem:[%s205 + $0xb0] sm:$0xff] %vm1415, %v1364
        %1439 = vst.msk [vmem:[%s205 + $0xb8] sm:$0xff] %vm1415, %v1366
        %1440 = vst.msk [vmem:[%s205 + $0xc0] sm:$0xff] %vm1415, %v1368
        %1441 = vst.msk [vmem:[%s205 + $0xc8] sm:$0xff] %vm1415, %v1370
        %1442 = vst.msk [vmem:[%s205 + $0xd0] sm:$0xff] %vm1415, %v1372
        %1443 = vst.msk [vmem:[%s205 + $0xd8] sm:$0xff] %vm1415, %v1374
        %1444 = vst.msk [vmem:[%s205 + $0xe0] sm:$0xff] %vm1415, %v1376
        %1445 = vst.msk [vmem:[%s205 + $0xe8] sm:$0xff] %vm1415, %v1378
        %1446 = vst.msk [vmem:[%s205 + $0xf0] sm:$0xff] %vm1415, %v1380
        %1447 = vst.msk [vmem:[%s205 + $0xf8] sm:$0xff] %vm1415, %v1382
        %s1448 = sand.u32 %s120, 1
        %s1449 = scalar_lea.sflag [#allocation3], %s1448
        %s1450 = sand.u32 %s120, 1
        %s1451 = smul.addr %s1450, 256
        %s1452 = scalar_lea.vmem [#allocation2], %s1451
        // Predicated region
        $region37: #{up_forward.7} parent=35 // pred_check
          %p1453 = pneg %p130
        $region38: #{up_forward.7} parent=35 // pred_check_branch
          %1455 = sbr.rel (%p1453) target = $region40
        $region39: #{up_forward.7} parent=35 // pred_region
          %s1457 = ssub.s32 4096, 4096
          %1458 = vsyncadd %s1449, %s1457
          %s1459 = smul.addr %s18, 32
          %s1460 = smul.addr %s1459, 128
          %s1461 = scalar_lea.hbm %s4, %s1460
          %s1462 = sshll.u32 %s1452, 4
          %s1463 = int_to_ptr.vmem [resolvable:$true] %s1462
          %1468 = dma.vmem_to_hbm [thread:$0]  %s1463, 4096, %s1461, %s1449, 128, 128, 8
        $region40: #{up_forward.7} parent=35 // pred_fallthru
          _
      $region36: #{up_forward.7} parent=5 // pred_fallthru
        _
      %p1469 = scmp.le.s32.totalorder 2, %s13
      // Predicated region
      $region41: #{up_forward.7} parent=5 // pred_check
        %p1470 = pneg %p1469
      $region42: #{up_forward.7} parent=5 // pred_check_branch
        %1472 = sbr.rel (%p1470) target = $region44
      $region43: #{up_forward.7} parent=5 // pred_region
        %s1473 = ssub.s32 %s13, 2
        // Predicated region
        $region45: #{up_forward.7} parent=43 // pred_check
          %p1474 = pneg %p136
        $region46: #{up_forward.7} parent=43 // pred_check_branch
          %1476 = sbr.rel (%p1474) target = $region48
        $region47: #{up_forward.7} parent=43 // pred_region
          %s1477 = sand.u32 %s121, 1
          %s1478 = scalar_lea.sflag [#allocation3], %s1477
          %s1479 = sand.u32 %s121, 1
          %s1480 = smul.addr %s1479, 256
          %s1481 = scalar_lea.vmem [#allocation2], %s1480
          %1482 = dma.done %s1478, 4096
        $region48: #{up_forward.7} parent=43 // pred_fallthru
          _
      $region44: #{up_forward.7} parent=5 // pred_fallthru
        _
    $region6: #{up_forward.7} parent=1 // loop_footer
      %s17 = sadd.s32 1, %s13
    $region7: #{up_forward.7} parent=1 // loop_footer_branch
      %12 = sbr.rel target = $region3
    $region8: #{up_forward.7} parent=1 // loop_exit
      _
    %1483 = vsyncpa [#allocation3], 1
    %s1484 = scalar_lea.sflag [#allocation3], 1
    %1485 = vsyncpa %s1484, 1

// kernel: up_forward.5
$region0: #{up_forward.5}
  #allocation0 [shape = 'u32[]', space=smem, size = 0x4, offset = 0x4, fixed_abs, tag = 'smem constant byte address 0x4 - core index']
  #allocation1 [shape = 'u32[144,128]{1,0:T(1,128)}', space=vmem, size = 0x12000, scoped, tag = 'internal scratch']
  %s0 = inlined_call_operand.vmem [shape: bf16[2,18,18,16], index: 0, kind: input, shape index: {}]
  %s1 = inlined_call_operand.vmem [shape: bf16[9,16,16], index: 1, kind: input, shape index: {}]
  %s2 = inlined_call_operand.vmem [shape: f32[1,16], index: 2, kind: input, shape index: {}]
  %s3 = inlined_call_operand.vmem [shape: f32[1,16], index: 3, kind: input, shape index: {}]
  %s4 = inlined_call_operand.vmem [shape: f32[1,16], index: 4, kind: input, shape index: {}]
  %s5 = inlined_call_operand.vmem [shape: bf16[2,16,16,16], index: 5, kind: output, shape index: {0}]
  %s6 = inlined_call_operand.vmem [shape: f32[2,2,16], index: 6, kind: output, shape index: {1}]
  %7 = xla_tuple %s5, %s6
  %s8 = sld [smem:[#allocation0]]
  $region61: #{up_forward.5} parent=0
    _
  %s10 = ssub.s32 1, %s8
  %s11 = scalar_select 0, %s10, %s8
  loop: start=0, step=1, limit=4
  $region2: #{up_forward.5} parent=0 // loop_pre_header
    _
  $region3: #{up_forward.5} parent=0 // loop_header
    %s13 = sphi 0, %s17
    %p14 = scmp.ge.s32.totalorder %s13, 4
    %s23 = sphi 0, %s25
    %s26 = sphi 0, %s23
    %s27 = sphi 0, %s26
    %s43 = sphi 0, %s27
    %s47 = sphi 0, %s47
    %s49 = sphi 0, %s47
    %s50 = sphi 0, %s49
    %s64 = sphi 0, %s50
    %s68 = sphi 0, %s68
    %s70 = sphi 0, %s68
    %s71 = sphi 0, %s70
    %s85 = sphi 0, %s71
    %s89 = sphi 0, %s89
    %s91 = sphi 0, %s89
    %s92 = sphi 0, %s91
    %s106 = sphi 0, %s92
    %s110 = sphi 0, %s110
    %s112 = sphi 0, %s110
    %s113 = sphi 0, %s112
    %s127 = sphi 0, %s113
    %s133 = sphi 0, %s135
    %s136 = sphi 0, %s133
    %s137 = sphi 0, %s136
    %s153 = sphi 0, %s137
    %s159 = sphi 0, %s161
    %s162 = sphi 0, %s159
    %s163 = sphi 0, %s162
    %s179 = sphi 0, %s163
  $region4: #{up_forward.5} parent=0 // loop_header_branch
    %16 = sbr.rel (%p14) target = $region8
  $region5: #{up_forward.5} parent=0 // loop_body
    %s18 = ssub.s32 %s13, 1
    %s19 = ssub.s32 %s13, 2
    %s20 = sadd.s32 %s13, 1
    %s21 = ssub.s32 %s13, %s20
    %p22 = scmp.eq.s32.totalorder %s21, 0
    %s24 = sadd.s32 %s23, 1
    %s25 = scalar_select %p22, %s23, %s24
    %p28 = pneg %p22
    %p29 = scmp.eq.s32.totalorder %s13, 1
    %p30 = por %p28, %p29
    %p31 = scmp.ne.s32.totalorder %s23, %s26
    %p32 = scmp.eq.s32.totalorder %s13, 0
    %p33 = por %p31, %p32
    %p34 = scmp.ne.s32.totalorder %s23, %s26
    %p35 = scmp.eq.s32.totalorder %s18, 1
    %p36 = por %p34, %p35
    %p37 = scmp.ne.s32.totalorder %s26, %s27
    %p38 = scmp.eq.s32.totalorder %s18, 0
    %p39 = por %p37, %p38
    %p40 = scmp.ne.s32.totalorder %s26, %s27
    %p41 = scmp.eq.s32.totalorder %s19, 1
    %p42 = por %p40, %p41
    %p44 = scmp.ne.s32.totalorder %s27, %s43
    %p45 = scmp.eq.s32.totalorder %s19, 0
    %p46 = por %p44, %p45
    %s48 = sadd.s32 %s47, 1
    %p51 = scmp.eq.s32.totalorder %s13, 1
    %p52 = scmp.ne.s32.totalorder %s47, %s49
    %p53 = scmp.eq.s32.totalorder %s13, 0
    %p54 = por %p52, %p53
    %p55 = scmp.ne.s32.totalorder %s47, %s49
    %p56 = scmp.eq.s32.totalorder %s18, 1
    %p57 = por %p55, %p56
    %p58 = scmp.ne.s32.totalorder %s49, %s50
    %p59 = scmp.eq.s32.totalorder %s18, 0
    %p60 = por %p58, %p59
    %p61 = scmp.ne.s32.totalorder %s49, %s50
    %p62 = scmp.eq.s32.totalorder %s19, 1
    %p63 = por %p61, %p62
    %p65 = scmp.ne.s32.totalorder %s50, %s64
    %p66 = scmp.eq.s32.totalorder %s19, 0
    %p67 = por %p65, %p66
    %s69 = sadd.s32 %s68, 1
    %p72 = scmp.eq.s32.totalorder %s13, 1
    %p73 = scmp.ne.s32.totalorder %s68, %s70
    %p74 = scmp.eq.s32.totalorder %s13, 0
    %p75 = por %p73, %p74
    %p76 = scmp.ne.s32.totalorder %s68, %s70
    %p77 = scmp.eq.s32.totalorder %s18, 1
    %p78 = por %p76, %p77
    %p79 = scmp.ne.s32.totalorder %s70, %s71
    %p80 = scmp.eq.s32.totalorder %s18, 0
    %p81 = por %p79, %p80
    %p82 = scmp.ne.s32.totalorder %s70, %s71
    %p83 = scmp.eq.s32.totalorder %s19, 1
    %p84 = por %p82, %p83
    %p86 = scmp.ne.s32.totalorder %s71, %s85
    %p87 = scmp.eq.s32.totalorder %s19, 0
    %p88 = por %p86, %p87
    %s90 = sadd.s32 %s89, 1
    %p93 = scmp.eq.s32.totalorder %s13, 1
    %p94 = scmp.ne.s32.totalorder %s89, %s91
    %p95 = scmp.eq.s32.totalorder %s13, 0
    %p96 = por %p94, %p95
    %p97 = scmp.ne.s32.totalorder %s89, %s91
    %p98 = scmp.eq.s32.totalorder %s18, 1
    %p99 = por %p97, %p98
    %p100 = scmp.ne.s32.totalorder %s91, %s92
    %p101 = scmp.eq.s32.totalorder %s18, 0
    %p102 = por %p100, %p101
    %p103 = scmp.ne.s32.totalorder %s91, %s92
    %p104 = scmp.eq.s32.totalorder %s19, 1
    %p105 = por %p103, %p104
    %p107 = scmp.ne.s32.totalorder %s92, %s106
    %p108 = scmp.eq.s32.totalorder %s19, 0
    %p109 = por %p107, %p108
    %s111 = sadd.s32 %s110, 1
    %p114 = scmp.eq.s32.totalorder %s13, 1
    %p115 = scmp.ne.s32.totalorder %s110, %s112
    %p116 = scmp.eq.s32.totalorder %s13, 0
    %p117 = por %p115, %p116
    %p118 = scmp.ne.s32.totalorder %s110, %s112
    %p119 = scmp.eq.s32.totalorder %s18, 1
    %p120 = por %p118, %p119
    %p121 = scmp.ne.s32.totalorder %s112, %s113
    %p122 = scmp.eq.s32.totalorder %s18, 0
    %p123 = por %p121, %p122
    %p124 = scmp.ne.s32.totalorder %s112, %s113
    %p125 = scmp.eq.s32.totalorder %s19, 1
    %p126 = por %p124, %p125
    %p128 = scmp.ne.s32.totalorder %s113, %s127
    %p129 = scmp.eq.s32.totalorder %s19, 0
    %p130 = por %p128, %p129
    %s131 = ssub.s32 %s13, %s20
    %p132 = scmp.eq.s32.totalorder %s131, 0
    %s134 = sadd.s32 %s133, 1
    %s135 = scalar_select %p132, %s133, %s134
    %p138 = pneg %p132
    %p139 = scmp.eq.s32.totalorder %s13, 1
    %p140 = por %p138, %p139
    %p141 = scmp.ne.s32.totalorder %s133, %s136
    %p142 = scmp.eq.s32.totalorder %s13, 0
    %p143 = por %p141, %p142
    %p144 = scmp.ne.s32.totalorder %s133, %s136
    %p145 = scmp.eq.s32.totalorder %s18, 1
    %p146 = por %p144, %p145
    %p147 = scmp.ne.s32.totalorder %s136, %s137
    %p148 = scmp.eq.s32.totalorder %s18, 0
    %p149 = por %p147, %p148
    %p150 = scmp.ne.s32.totalorder %s136, %s137
    %p151 = scmp.eq.s32.totalorder %s19, 1
    %p152 = por %p150, %p151
    %p154 = scmp.ne.s32.totalorder %s137, %s153
    %p155 = scmp.eq.s32.totalorder %s19, 0
    %p156 = por %p154, %p155
    %s157 = ssub.s32 %s13, %s20
    %p158 = scmp.eq.s32.totalorder %s157, 0
    %s160 = sadd.s32 %s159, 1
    %s161 = scalar_select %p158, %s159, %s160
    %p164 = pneg %p158
    %p165 = scmp.eq.s32.totalorder %s13, 1
    %p166 = por %p164, %p165
    %p167 = scmp.ne.s32.totalorder %s159, %s162
    %p168 = scmp.eq.s32.totalorder %s13, 0
    %p169 = por %p167, %p168
    %p170 = scmp.ne.s32.totalorder %s159, %s162
    %p171 = scmp.eq.s32.totalorder %s18, 1
    %p172 = por %p170, %p171
    %p173 = scmp.ne.s32.totalorder %s162, %s163
    %p174 = scmp.eq.s32.totalorder %s18, 0
    %p175 = por %p173, %p174
    %p176 = scmp.ne.s32.totalorder %s162, %s163
    %p177 = scmp.eq.s32.totalorder %s19, 1
    %p178 = por %p176, %p177
    %p180 = scmp.ne.s32.totalorder %s163, %s179
    %p181 = scmp.eq.s32.totalorder %s19, 0
    %p182 = por %p180, %p181
    %p183 = scmp.le.s32.totalorder 1, %s13
    %p184 = scmp.lt.s32.totalorder %s13, 3
    %p185 = pnand %p183, %p184
    %p186 = pneg %p185
    // Predicated region
    $region9: #{up_forward.5} parent=5 // pred_check
      _
    $region10: #{up_forward.5} parent=5 // pred_check_branch
      %188 = sbr.rel (%p185) target = $region12
    $region11: #{up_forward.5} parent=5 // pred_region
      %s189 = ssub.s32 %s13, 1
      // Predicated region
      $region13: #{up_forward.5} parent=11 // pred_check
        %p190 = pneg %p60
      $region14: #{up_forward.5} parent=11 // pred_check_branch
        %192 = sbr.rel (%p190) target = $region16
      $region15: #{up_forward.5} parent=11 // pred_region
        _
      $region16: #{up_forward.5} parent=11 // pred_fallthru
        _
      // Predicated region
      $region17: #{up_forward.5} parent=11 // pred_check
        %p193 = pneg %p81
      $region18: #{up_forward.5} parent=11 // pred_check_branch
        %195 = sbr.rel (%p193) target = $region20
      $region19: #{up_forward.5} parent=11 // pred_region
        _
      $region20: #{up_forward.5} parent=11 // pred_fallthru
        _
      // Predicated region
      $region21: #{up_forward.5} parent=11 // pred_check
        %p196 = pneg %p102
      $region22: #{up_forward.5} parent=11 // pred_check_branch
        %198 = sbr.rel (%p196) target = $region24
      $region23: #{up_forward.5} parent=11 // pred_region
        _
      $region24: #{up_forward.5} parent=11 // pred_fallthru
        _
      // Predicated region
      $region25: #{up_forward.5} parent=11 // pred_check
        %p199 = pneg %p123
      $region26: #{up_forward.5} parent=11 // pred_check_branch
        %201 = sbr.rel (%p199) target = $region28
      $region27: #{up_forward.5} parent=11 // pred_region
        _
      $region28: #{up_forward.5} parent=11 // pred_fallthru
        _
    $region12: #{up_forward.5} parent=5 // pred_fallthru
      _
    %p202 = scmp.lt.s32.totalorder %s13, 2
    // Predicated region
    $region29: #{up_forward.5} parent=5 // pred_check
      %p203 = pneg %p202
    $region30: #{up_forward.5} parent=5 // pred_check_branch
      %205 = sbr.rel (%p203) target = $region32
    $region31: #{up_forward.5} parent=5 // pred_region
      // Predicated region
      $region33: #{up_forward.5} parent=31 // pred_check
        %p206 = pneg %p33
      $region34: #{up_forward.5} parent=31 // pred_check_branch
        %208 = sbr.rel (%p206) target = $region36
      $region35: #{up_forward.5} parent=31 // pred_region
        %p209 = scmp.lt.s32.totalorder %s13, 1
        %s210 = scalar_select %p209, %s13, 1
        %s211 = smul.addr %s210, 54
        %s212 = smul.addr %s211, 4
        %s213 = scalar_lea.vmem %s0, %s212
      $region36: #{up_forward.5} parent=31 // pred_fallthru
        _
    $region32: #{up_forward.5} parent=5 // pred_fallthru
      _
    %p214 = scmp.le.s32.totalorder 1, %s13
    %p215 = scmp.lt.s32.totalorder %s13, 3
    %p216 = pnand %p214, %p215
    %p217 = pneg %p216
    // Predicated region
    $region37: #{up_forward.5} parent=5 // pred_check
      _
    $region38: #{up_forward.5} parent=5 // pred_check_branch
      %219 = sbr.rel (%p216) target = $region40
    $region39: #{up_forward.5} parent=5 // pred_region
      %s220 = ssub.s32 %s13, 1
      %p221 = scmp.lt.s32.totalorder %s18, 1
      %s222 = scalar_select %p221, %s18, 1
      %s223 = smul.addr %s222, 54
      %s224 = smul.addr %s223, 4
      %s225 = scalar_lea.vmem %s0, %s224
      %p226 = pneg %p39
      %p227 = pneg %p36
      %p228 = pneg %p60
      %p229 = pneg %p57
      %p230 = pneg %p81
      %p231 = pneg %p78
      %p232 = pneg %p102
      %p233 = pneg %p99
      %p234 = pneg %p123
      %p235 = pneg %p120
      %p236 = pneg %p149
      %p237 = pneg %p146
      %p238 = scmp.lt.s32.totalorder %s18, 1
      %s239 = scalar_select %p238, %s18, 1
      %s240 = smul.addr %s239, 32
      %s241 = smul.addr %s240, 4
      %s242 = scalar_lea.vmem %s5, %s241
      %p243 = pneg %p175
      %p244 = pneg %p172
      %p245 = scmp.lt.s32.totalorder %s18, 1
      %s246 = scalar_select %p245, %s18, 1
      %s247 = smul.addr %s246, 2
      %s248 = scalar_lea.vmem %s6, %s247
      %p249 = scmp.lt.s32.totalorder %s18, 1
      %s250 = scalar_select %p249, %s18, 1
      %s251 = smul.addr %s250, 54
      %s252 = smul.addr %s251, 4
      %s253 = scalar_lea.vmem %s0, %s252
      %p254 = scmp.lt.s32.totalorder %s18, 1
      %s255 = scalar_select %p254, %s18, 1
      %s256 = smul.addr %s255, 32
      %s257 = smul.addr %s256, 4
      %s258 = scalar_lea.vmem %s5, %s257
      %p259 = scmp.lt.s32.totalorder %s18, 1
      %s260 = scalar_select %p259, %s18, 1
      %s261 = smul.addr %s260, 2
      %s262 = scalar_lea.vmem %s6, %s261
      %v264 = vld [vmem:[%s253] sm:$0xf]
      %v265 = vld [vmem:[%s253 + $0x4] sm:$0xf]
      %v266 = vld [vmem:[%s253 + $0x8] sm:$0x1]
      %v267 = vld [vmem:[%s253 + $0xc] sm:$0xf]
      %v268 = vld [vmem:[%s253 + $0x10] sm:$0xf]
      %v269 = vld [vmem:[%s253 + $0x14] sm:$0x1]
      %v270 = vld [vmem:[%s253 + $0x18] sm:$0xf]
      %v271 = vld [vmem:[%s253 + $0x1c] sm:$0xf]
      %v272 = vld [vmem:[%s253 + $0x20] sm:$0x1]
      %v273 = vld [vmem:[%s253 + $0x24] sm:$0xf]
      %v274 = vld [vmem:[%s253 + $0x28] sm:$0xf]
      %v275 = vld [vmem:[%s253 + $0x2c] sm:$0x1]
      %v276 = vld [vmem:[%s253 + $0x30] sm:$0xf]
      %v277 = vld [vmem:[%s253 + $0x34] sm:$0xf]
      %v278 = vld [vmem:[%s253 + $0x38] sm:$0x1]
      %v279 = vld [vmem:[%s253 + $0x3c] sm:$0xf]
      %v280 = vld [vmem:[%s253 + $0x40] sm:$0xf]
      %v281 = vld [vmem:[%s253 + $0x44] sm:$0x1]
      %v282 = vld [vmem:[%s253 + $0x48] sm:$0xf]
      %v283 = vld [vmem:[%s253 + $0x4c] sm:$0xf]
      %v284 = vld [vmem:[%s253 + $0x50] sm:$0x1]
      %v285 = vld [vmem:[%s253 + $0x54] sm:$0xf]
      %v286 = vld [vmem:[%s253 + $0x58] sm:$0xf]
      %v287 = vld [vmem:[%s253 + $0x5c] sm:$0x1]
      %v288 = vld [vmem:[%s253 + $0x60] sm:$0xf]
      %v289 = vld [vmem:[%s253 + $0x64] sm:$0xf]
      %v290 = vld [vmem:[%s253 + $0x68] sm:$0x1]
      %v291 = vld [vmem:[%s253 + $0x6c] sm:$0xf]
      %v292 = vld [vmem:[%s253 + $0x70] sm:$0xf]
      %v293 = vld [vmem:[%s253 + $0x74] sm:$0x1]
      %v294 = vld [vmem:[%s253 + $0x78] sm:$0xf]
      %v295 = vld [vmem:[%s253 + $0x7c] sm:$0xf]
      %v296 = vld [vmem:[%s253 + $0x80] sm:$0x1]
      %v297 = vld [vmem:[%s253 + $0x84] sm:$0xf]
      %v298 = vld [vmem:[%s253 + $0x88] sm:$0xf]
      %v299 = vld [vmem:[%s253 + $0x8c] sm:$0x1]
      %v300 = vld [vmem:[%s253 + $0x90] sm:$0xf]
      %v301 = vld [vmem:[%s253 + $0x94] sm:$0xf]
      %v302 = vld [vmem:[%s253 + $0x98] sm:$0x1]
      %v303 = vld [vmem:[%s253 + $0x9c] sm:$0xf]
      %v304 = vld [vmem:[%s253 + $0xa0] sm:$0xf]
      %v305 = vld [vmem:[%s253 + $0xa4] sm:$0x1]
      %v306 = vld [vmem:[%s253 + $0xa8] sm:$0xf]
      %v307 = vld [vmem:[%s253 + $0xac] sm:$0xf]
      %v308 = vld [vmem:[%s253 + $0xb0] sm:$0x1]
      %v309 = vld [vmem:[%s253 + $0xb4] sm:$0xf]
      %v310 = vld [vmem:[%s253 + $0xb8] sm:$0xf]
      %v311 = vld [vmem:[%s253 + $0xbc] sm:$0x1]
      %v312 = vld [vmem:[%s253 + $0xc0] sm:$0xf]
      %v313 = vld [vmem:[%s253 + $0xc4] sm:$0xf]
      %v314 = vld [vmem:[%s253 + $0xc8] sm:$0x1]
      %v315 = vld [vmem:[%s253 + $0xcc] sm:$0xf]
      %v316 = vld [vmem:[%s253 + $0xd0] sm:$0xf]
      %v317 = vld [vmem:[%s253 + $0xd4] sm:$0x1]
      %v318 = vld [vmem:[%s1] sm:$0xf]
      %v319 = vld [vmem:[%s1 + $0x4] sm:$0xf]
      %vm320 = vsmask.f32 3328
      %vm321 = vsmask.f32 7440
      %vm322 = vmor %vm320, %vm321
      %v324 = vshrl.u32 %v264, 16
      %v326 = vrot.slane %v324, 4
      %v327 = vshll.u32 %v264, 16
      %v329 = vrot.slane %v327, 5
      %v330 = vor.u32 %v326, %v329
      %v331 = vrot.slane %v330, 4
      %v333 = vshll.u32 %v265, 16
      %v335 = vrot.slane %v333, 5
      %v336 = vsel %vm322, %v331, %v335
      %v337 = vshrl.u32 %v265, 16
      %v339 = vrot.slane %v337, 4
      %v340 = vor.u32 %v339, %v335
      %v341 = vrot.slane %v340, 4
      %v343 = vshll.u32 %v266, 16
      %v345 = vrot.slane %v343, 5
      %v346 = vsel %vm322, %v341, %v345
      %v348 = vshrl.u32 %v267, 16
      %v350 = vrot.slane %v348, 4
      %v351 = vshll.u32 %v267, 16
      %v353 = vrot.slane %v351, 5
      %v354 = vor.u32 %v350, %v353
      %v355 = vrot.slane %v354, 4
      %v357 = vshll.u32 %v268, 16
      %v359 = vrot.slane %v357, 5
      %v360 = vsel %vm322, %v355, %v359
      %v361 = vshrl.u32 %v268, 16
      %v363 = vrot.slane %v361, 4
      %v364 = vor.u32 %v363, %v359
      %v365 = vrot.slane %v364, 4
      %v367 = vshll.u32 %v269, 16
      %v369 = vrot.slane %v367, 5
      %v370 = vsel %vm322, %v365, %v369
      %v372 = vshrl.u32 %v270, 16
      %v374 = vrot.slane %v372, 4
      %v375 = vshll.u32 %v270, 16
      %v377 = vrot.slane %v375, 5
      %v378 = vor.u32 %v374, %v377
      %v379 = vrot.slane %v378, 4
      %v381 = vshll.u32 %v271, 16
      %v383 = vrot.slane %v381, 5
      %v384 = vsel %vm322, %v379, %v383
      %v385 = vshrl.u32 %v271, 16
      %v387 = vrot.slane %v385, 4
      %v388 = vor.u32 %v387, %v383
      %v389 = vrot.slane %v388, 4
      %v391 = vshll.u32 %v272, 16
      %v393 = vrot.slane %v391, 5
      %v394 = vsel %vm322, %v389, %v393
      %v396 = vshrl.u32 %v273, 16
      %v398 = vrot.slane %v396, 4
      %v399 = vshll.u32 %v273, 16
      %v401 = vrot.slane %v399, 5
      %v402 = vor.u32 %v398, %v401
      %v403 = vrot.slane %v402, 4
      %v405 = vshll.u32 %v274, 16
      %v407 = vrot.slane %v405, 5
      %v408 = vsel %vm322, %v403, %v407
      %v409 = vshrl.u32 %v274, 16
      %v411 = vrot.slane %v409, 4
      %v412 = vor.u32 %v411, %v407
      %v413 = vrot.slane %v412, 4
      %v415 = vshll.u32 %v275, 16
      %v417 = vrot.slane %v415, 5
      %v418 = vsel %vm322, %v413, %v417
      %v420 = vshrl.u32 %v276, 16
      %v422 = vrot.slane %v420, 4
      %v423 = vshll.u32 %v276, 16
      %v425 = vrot.slane %v423, 5
      %v426 = vor.u32 %v422, %v425
      %v427 = vrot.slane %v426, 4
      %v429 = vshll.u32 %v277, 16
      %v431 = vrot.slane %v429, 5
      %v432 = vsel %vm322, %v427, %v431
      %v433 = vshrl.u32 %v277, 16
      %v435 = vrot.slane %v433, 4
      %v436 = vor.u32 %v435, %v431
      %v437 = vrot.slane %v436, 4
      %v439 = vshll.u32 %v278, 16
      %v441 = vrot.slane %v439, 5
      %v442 = vsel %vm322, %v437, %v441
      %v444 = vshrl.u32 %v279, 16
      %v446 = vrot.slane %v444, 4
      %v447 = vshll.u32 %v279, 16
      %v449 = vrot.slane %v447, 5
      %v450 = vor.u32 %v446, %v449
      %v451 = vrot.slane %v450, 4
      %v453 = vshll.u32 %v280, 16
      %v455 = vrot.slane %v453, 5
      %v456 = vsel %vm322, %v451, %v455
      %v457 = vshrl.u32 %v280, 16
      %v459 = vrot.slane %v457, 4
      %v460 = vor.u32 %v459, %v455
      %v461 = vrot.slane %v460, 4
      %v463 = vshll.u32 %v281, 16
      %v465 = vrot.slane %v463, 5
      %v466 = vsel %vm322, %v461, %v465
      %v468 = vshrl.u32 %v282, 16
      %v470 = vrot.slane %v468, 4
      %v471 = vshll.u32 %v282, 16
      %v473 = vrot.slane %v471, 5
      %v474 = vor.u32 %v470, %v473
      %v475 = vrot.slane %v474, 4
      %v477 = vshll.u32 %v283, 16
      %v479 = vrot.slane %v477, 5
      %v480 = vsel %vm322, %v475, %v479
      %v481 = vshrl.u32 %v283, 16
      %v483 = vrot.slane %v481, 4
      %v484 = vor.u32 %v483, %v479
      %v485 = vrot.slane %v484, 4
      %v487 = vshll.u32 %v284, 16
      %v489 = vrot.slane %v487, 5
      %v490 = vsel %vm322, %v485, %v489
      %v492 = vshrl.u32 %v285, 16
      %v494 = vrot.slane %v492, 4
      %v495 = vshll.u32 %v285, 16
      %v497 = vrot.slane %v495, 5
      %v498 = vor.u32 %v494, %v497
      %v499 = vrot.slane %v498, 4
      %v501 = vshll.u32 %v286, 16
      %v503 = vrot.slane %v501, 5
      %v504 = vsel %vm322, %v499, %v503
      %v505 = vshrl.u32 %v286, 16
      %v507 = vrot.slane %v505, 4
      %v508 = vor.u32 %v507, %v503
      %v509 = vrot.slane %v508, 4
      %v511 = vshll.u32 %v287, 16
      %v513 = vrot.slane %v511, 5
      %v514 = vsel %vm322, %v509, %v513
      %v516 = vshrl.u32 %v288, 16
      %v518 = vrot.slane %v516, 4
      %v519 = vshll.u32 %v288, 16
      %v521 = vrot.slane %v519, 5
      %v522 = vor.u32 %v518, %v521
      %v523 = vrot.slane %v522, 4
      %v525 = vshll.u32 %v289, 16
      %v527 = vrot.slane %v525, 5
      %v528 = vsel %vm322, %v523, %v527
      %v529 = vshrl.u32 %v289, 16
      %v531 = vrot.slane %v529, 4
      %v532 = vor.u32 %v531, %v527
      %v533 = vrot.slane %v532, 4
      %v535 = vshll.u32 %v290, 16
      %v537 = vrot.slane %v535, 5
      %v538 = vsel %vm322, %v533, %v537
      %v540 = vshrl.u32 %v291, 16
      %v542 = vrot.slane %v540, 4
      %v543 = vshll.u32 %v291, 16
      %v545 = vrot.slane %v543, 5
      %v546 = vor.u32 %v542, %v545
      %v547 = vrot.slane %v546, 4
      %v549 = vshll.u32 %v292, 16
      %v551 = vrot.slane %v549, 5
      %v552 = vsel %vm322, %v547, %v551
      %v553 = vshrl.u32 %v292, 16
      %v555 = vrot.slane %v553, 4
      %v556 = vor.u32 %v555, %v551
      %v557 = vrot.slane %v556, 4
      %v559 = vshll.u32 %v293, 16
      %v561 = vrot.slane %v559, 5
      %v562 = vsel %vm322, %v557, %v561
      %v564 = vshrl.u32 %v294, 16
      %v566 = vrot.slane %v564, 4
      %v567 = vshll.u32 %v294, 16
      %v569 = vrot.slane %v567, 5
      %v570 = vor.u32 %v566, %v569
      %v571 = vrot.slane %v570, 4
      %v573 = vshll.u32 %v295, 16
      %v575 = vrot.slane %v573, 5
      %v576 = vsel %vm322, %v571, %v575
      %v577 = vshrl.u32 %v295, 16
      %v579 = vrot.slane %v577, 4
      %v580 = vor.u32 %v579, %v575
      %v581 = vrot.slane %v580, 4
      %v583 = vshll.u32 %v296, 16
      %v585 = vrot.slane %v583, 5
      %v586 = vsel %vm322, %v581, %v585
      %v588 = vshrl.u32 %v297, 16
      %v590 = vrot.slane %v588, 4
      %v591 = vshll.u32 %v297, 16
      %v593 = vrot.slane %v591, 5
      %v594 = vor.u32 %v590, %v593
      %v595 = vrot.slane %v594, 4
      %v597 = vshll.u32 %v298, 16
      %v599 = vrot.slane %v597, 5
      %v600 = vsel %vm322, %v595, %v599
      %v601 = vshrl.u32 %v298, 16
      %v603 = vrot.slane %v601, 4
      %v604 = vor.u32 %v603, %v599
      %v605 = vrot.slane %v604, 4
      %v607 = vshll.u32 %v299, 16
      %v609 = vrot.slane %v607, 5
      %v610 = vsel %vm322, %v605, %v609
      %v612 = vshrl.u32 %v300, 16
      %v614 = vrot.slane %v612, 4
      %v615 = vshll.u32 %v300, 16
      %v617 = vrot.slane %v615, 5
      %v618 = vor.u32 %v614, %v617
      %v619 = vrot.slane %v618, 4
      %v621 = vshll.u32 %v301, 16
      %v623 = vrot.slane %v621, 5
      %v624 = vsel %vm322, %v619, %v623
      %v625 = vshrl.u32 %v301, 16
      %v627 = vrot.slane %v625, 4
      %v628 = vor.u32 %v627, %v623
      %v629 = vrot.slane %v628, 4
      %v631 = vshll.u32 %v302, 16
      %v633 = vrot.slane %v631, 5
      %v634 = vsel %vm322, %v629, %v633
      %v636 = vshrl.u32 %v303, 16
      %v638 = vrot.slane %v636, 4
      %v639 = vshll.u32 %v303, 16
      %v641 = vrot.slane %v639, 5
      %v642 = vor.u32 %v638, %v641
      %v643 = vrot.slane %v642, 4
      %v645 = vshll.u32 %v304, 16
      %v647 = vrot.slane %v645, 5
      %v648 = vsel %vm322, %v643, %v647
      %v649 = vshrl.u32 %v304, 16
      %v651 = vrot.slane %v649, 4
      %v652 = vor.u32 %v651, %v647
      %v653 = vrot.slane %v652, 4
      %v655 = vshll.u32 %v305, 16
      %v657 = vrot.slane %v655, 5
      %v658 = vsel %vm322, %v653, %v657
      %v660 = vshrl.u32 %v306, 16
      %v662 = vrot.slane %v660, 4
      %v663 = vshll.u32 %v306, 16
      %v665 = vrot.slane %v663, 5
      %v666 = vor.u32 %v662, %v665
      %v667 = vrot.slane %v666, 4
      %v669 = vshll.u32 %v307, 16
      %v671 = vrot.slane %v669, 5
      %v672 = vsel %vm322, %v667, %v671
      %v673 = vshrl.u32 %v307, 16
      %v675 = vrot.slane %v673, 4
      %v676 = vor.u32 %v675, %v671
      %v677 = vrot.slane %v676, 4
      %v679 = vshll.u32 %v308, 16
      %v681 = vrot.slane %v679, 5
      %v682 = vsel %vm322, %v677, %v681
      %v684 = vshrl.u32 %v309, 16
      %v686 = vrot.slane %v684, 4
      %v687 = vshll.u32 %v309, 16
      %v689 = vrot.slane %v687, 5
      %v690 = vor.u32 %v686, %v689
      %v691 = vrot.slane %v690, 4
      %v693 = vshll.u32 %v310, 16
      %v695 = vrot.slane %v693, 5
      %v696 = vsel %vm322, %v691, %v695
      %v697 = vshrl.u32 %v310, 16
      %v699 = vrot.slane %v697, 4
      %v700 = vor.u32 %v699, %v695
      %v701 = vrot.slane %v700, 4
      %v703 = vshll.u32 %v311, 16
      %v705 = vrot.slane %v703, 5
      %v706 = vsel %vm322, %v701, %v705
      %s707 = scalar_lea.vmem %s1, 8
      %v708 = vld [vmem:[%s707] sm:$0xf]
      %v709 = vld [vmem:[%s707 + $0x4] sm:$0xf]
      %v710 = vunpack.c.l.b16 %v336
      %v711 = vunpack.c.l.b16 %v346
      %v712 = vunpack.c.l.b16 %v360
      %v713 = vunpack.c.l.b16 %v370
      %v714 = vunpack.c.l.b16 %v384
      %v715 = vunpack.c.l.b16 %v394
      %v716 = vunpack.c.l.b16 %v408
      %v717 = vunpack.c.l.b16 %v418
      %v718 = vunpack.c.l.b16 %v432
      %v719 = vunpack.c.l.b16 %v442
      %v720 = vunpack.c.l.b16 %v456
      %v721 = vunpack.c.l.b16 %v466
      %v722 = vunpack.c.l.b16 %v480
      %v723 = vunpack.c.l.b16 %v490
      %v724 = vunpack.c.l.b16 %v504
      %v725 = vunpack.c.l.b16 %v514
      %v726 = vunpack.c.l.b16 %v528
      %v727 = vunpack.c.l.b16 %v538
      %v728 = vunpack.c.l.b16 %v552
      %v729 = vunpack.c.l.b16 %v562
      %v730 = vunpack.c.l.b16 %v576
      %v731 = vunpack.c.l.b16 %v586
      %v732 = vunpack.c.l.b16 %v600
      %v733 = vunpack.c.l.b16 %v610
      %v734 = vunpack.c.l.b16 %v624
      %v735 = vunpack.c.l.b16 %v634
      %v736 = vunpack.c.l.b16 %v648
      %v737 = vunpack.c.l.b16 %v658
      %v738 = vunpack.c.l.b16 %v672
      %v739 = vunpack.c.l.b16 %v682
      %v740 = vunpack.c.l.b16 %v696
      %v741 = vunpack.c.l.b16 %v706
      %v742 = vpack.c.b16 %v711, %v710
      %v743 = vpack.c.b16 %v713, %v712
      %v744 = vpack.c.b16 %v715, %v714
      %v745 = vpack.c.b16 %v717, %v716
      %v746 = vpack.c.b16 %v719, %v718
      %v747 = vpack.c.b16 %v721, %v720
      %v748 = vpack.c.b16 %v723, %v722
      %v749 = vpack.c.b16 %v725, %v724
      %v750 = vpack.c.b16 %v727, %v726
      %v751 = vpack.c.b16 %v729, %v728
      %v752 = vpack.c.b16 %v731, %v730
      %v753 = vpack.c.b16 %v733, %v732
      %v754 = vpack.c.b16 %v735, %v734
      %v755 = vpack.c.b16 %v737, %v736
      %v756 = vpack.c.b16 %v739, %v738
      %v757 = vpack.c.b16 %v741, %v740
      %v760 = vunpack.c.l.b16 %v708
      %v761 = vunpack.c.l.b16 %v709
      %v762 = vpack.c.b16 %v761, %v760
      %vm764 = vcmask 130048
      %v766 = vsel %vm764, %v742, 0
      %v769 = vsel %vm764, %v743, 0
      %v772 = vsel %vm764, %v744, 0
      %v775 = vsel %vm764, %v745, 0
      %v778 = vsel %vm764, %v746, 0
      %v781 = vsel %vm764, %v747, 0
      %v784 = vsel %vm764, %v748, 0
      %v787 = vsel %vm764, %v749, 0
      %v790 = vsel %vm764, %v750, 0
      %v793 = vsel %vm764, %v751, 0
      %v796 = vsel %vm764, %v752, 0
      %v799 = vsel %vm764, %v753, 0
      %v802 = vsel %vm764, %v754, 0
      %v805 = vsel %vm764, %v755, 0
      %v808 = vsel %vm764, %v756, 0
      %v811 = vsel %vm764, %v757, 0
      %813 = vmatprep.subr.bf16.mxu0 0
      %814 = vmatpush1.bf16.msra.mxu0 0
      %815 = vmatprep.subr.bf16.mxu0 0
      %816 = vmatpush1.bf16.msra.mxu0 0
      %817 = vmatprep.subr.bf16.mxu0 0
      %818 = vmatpush1.bf16.msra.mxu0 0
      %819 = vmatprep.subr.bf16.mxu0 0
      %820 = vmatpush1.bf16.msra.mxu0 0
      %821 = vmatprep.subr.bf16.mxu0 0
      %822 = vmatpush1.bf16.msra.mxu0 0
      %823 = vmatprep.subr.bf16.mxu0 0
      %824 = vmatpush1.bf16.msra.mxu0 0
      %825 = vmatprep.subr.bf16.mxu0 0
      %826 = vmatpush1.bf16.msra.mxu0 0
      %827 = vmatprep.subr.bf16.mxu0 0
      %828 = vmatpush1.bf16.msra.mxu0 %v762
      %829 = vmatprep.subr.bf16.mxu0 0
      %830 = vmatpush2.bf16.msra.mxu0 0
      %831 = vmatprep.subr.bf16.mxu0 0
      %832 = vmatpush2.bf16.msra.mxu0 0
      %833 = vmatprep.subr.bf16.mxu0 0
      %834 = vmatpush2.bf16.msra.mxu0 0
      %835 = vmatprep.subr.bf16.mxu0 0
      %836 = vmatpush2.bf16.msra.mxu0 0
      %837 = vmatprep.subr.bf16.mxu0 0
      %838 = vmatpush2.bf16.msra.mxu0 0
      %839 = vmatprep.subr.bf16.mxu0 0
      %840 = vmatpush2.bf16.msra.mxu0 0
      %841 = vmatprep.subr.bf16.mxu0 0
      %842 = vmatpush2.bf16.msra.mxu0 0
      %843 = vmatprep.subr.bf16.mxu0 0
      %844 = vmatpush2.bf16.msra.mxu0 0
      %845 = vmatprep.mubr.bf16.mxu0 0
      %846 = vmatmul.mubr.bf16.gmra.mxu0 %v766
      %v847 = vpop.f32.mrf.mxu0
      %v848 = vadd.f32 0.0, %v847
      %v849 = vpop.f32.mrf.mxu0
      %v850 = vpop.f32.mrf.mxu0
      %v851 = vadd.f32 0.0, %v850
      %v852 = vpop.f32.mrf.mxu0
      %853 = vmatprep.mubr.bf16.mxu0 0
      %854 = vmatmul.mubr.bf16.gmra.mxu0 %v769
      %v855 = vpop.f32.mrf.mxu0
      %v856 = vadd.f32 0.0, %v855
      %v857 = vpop.f32.mrf.mxu0
      %v858 = vpop.f32.mrf.mxu0
      %v859 = vadd.f32 0.0, %v858
      %v860 = vpop.f32.mrf.mxu0
      %861 = vmatprep.mubr.bf16.mxu0 0
      %862 = vmatmul.mubr.bf16.gmra.mxu0 %v772
      %v863 = vpop.f32.mrf.mxu0
      %v864 = vadd.f32 0.0, %v863
      %v865 = vpop.f32.mrf.mxu0
      %v866 = vpop.f32.mrf.mxu0
      %v867 = vadd.f32 0.0, %v866
      %v868 = vpop.f32.mrf.mxu0
      %869 = vmatprep.mubr.bf16.mxu0 0
      %870 = vmatmul.mubr.bf16.gmra.mxu0 %v775
      %v871 = vpop.f32.mrf.mxu0
      %v872 = vadd.f32 0.0, %v871
      %v873 = vpop.f32.mrf.mxu0
      %v874 = vpop.f32.mrf.mxu0
      %v875 = vadd.f32 0.0, %v874
      %v876 = vpop.f32.mrf.mxu0
      %877 = vmatprep.mubr.bf16.mxu0 0
      %878 = vmatmul.mubr.bf16.gmra.mxu0 %v778
      %v879 = vpop.f32.mrf.mxu0
      %v880 = vadd.f32 0.0, %v879
      %v881 = vpop.f32.mrf.mxu0
      %v882 = vpop.f32.mrf.mxu0
      %v883 = vadd.f32 0.0, %v882
      %v884 = vpop.f32.mrf.mxu0
      %885 = vmatprep.mubr.bf16.mxu0 0
      %886 = vmatmul.mubr.bf16.gmra.mxu0 %v781
      %v887 = vpop.f32.mrf.mxu0
      %v888 = vadd.f32 0.0, %v887
      %v889 = vpop.f32.mrf.mxu0
      %v890 = vpop.f32.mrf.mxu0
      %v891 = vadd.f32 0.0, %v890
      %v892 = vpop.f32.mrf.mxu0
      %893 = vmatprep.mubr.bf16.mxu0 0
      %894 = vmatmul.mubr.bf16.gmra.mxu0 %v784
      %v895 = vpop.f32.mrf.mxu0
      %v896 = vadd.f32 0.0, %v895
      %v897 = vpop.f32.mrf.mxu0
      %v898 = vpop.f32.mrf.mxu0
      %v899 = vadd.f32 0.0, %v898
      %v900 = vpop.f32.mrf.mxu0
      %901 = vmatprep.mubr.bf16.mxu0 0
      %902 = vmatmul.mubr.bf16.gmra.mxu0 %v787
      %v903 = vpop.f32.mrf.mxu0
      %v904 = vadd.f32 0.0, %v903
      %v905 = vpop.f32.mrf.mxu0
      %v906 = vpop.f32.mrf.mxu0
      %v907 = vadd.f32 0.0, %v906
      %v908 = vpop.f32.mrf.mxu0
      %909 = vmatprep.mubr.bf16.mxu0 0
      %910 = vmatmul.mubr.bf16.gmra.mxu0 %v790
      %v911 = vpop.f32.mrf.mxu0
      %v912 = vadd.f32 0.0, %v911
      %v913 = vpop.f32.mrf.mxu0
      %v914 = vpop.f32.mrf.mxu0
      %v915 = vadd.f32 0.0, %v914
      %v916 = vpop.f32.mrf.mxu0
      %917 = vmatprep.mubr.bf16.mxu0 0
      %918 = vmatmul.mubr.bf16.gmra.mxu0 %v793
      %v919 = vpop.f32.mrf.mxu0
      %v920 = vadd.f32 0.0, %v919
      %v921 = vpop.f32.mrf.mxu0
      %v922 = vpop.f32.mrf.mxu0
      %v923 = vadd.f32 0.0, %v922
      %v924 = vpop.f32.mrf.mxu0
      %925 = vmatprep.mubr.bf16.mxu0 0
      %926 = vmatmul.mubr.bf16.gmra.mxu0 %v796
      %v927 = vpop.f32.mrf.mxu0
      %v928 = vadd.f32 0.0, %v927
      %v929 = vpop.f32.mrf.mxu0
      %v930 = vpop.f32.mrf.mxu0
      %v931 = vadd.f32 0.0, %v930
      %v932 = vpop.f32.mrf.mxu0
      %933 = vmatprep.mubr.bf16.mxu0 0
      %934 = vmatmul.mubr.bf16.gmra.mxu0 %v799
      %v935 = vpop.f32.mrf.mxu0
      %v936 = vadd.f32 0.0, %v935
      %v937 = vpop.f32.mrf.mxu0
      %v938 = vpop.f32.mrf.mxu0
      %v939 = vadd.f32 0.0, %v938
      %v940 = vpop.f32.mrf.mxu0
      %941 = vmatprep.mubr.bf16.mxu0 0
      %942 = vmatmul.mubr.bf16.gmra.mxu0 %v802
      %v943 = vpop.f32.mrf.mxu0
      %v944 = vadd.f32 0.0, %v943
      %v945 = vpop.f32.mrf.mxu0
      %v946 = vpop.f32.mrf.mxu0
      %v947 = vadd.f32 0.0, %v946
      %v948 = vpop.f32.mrf.mxu0
      %949 = vmatprep.mubr.bf16.mxu0 0
      %950 = vmatmul.mubr.bf16.gmra.mxu0 %v805
      %v951 = vpop.f32.mrf.mxu0
      %v952 = vadd.f32 0.0, %v951
      %v953 = vpop.f32.mrf.mxu0
      %v954 = vpop.f32.mrf.mxu0
      %v955 = vadd.f32 0.0, %v954
      %v956 = vpop.f32.mrf.mxu0
      %957 = vmatprep.mubr.bf16.mxu0 0
      %958 = vmatmul.mubr.bf16.gmra.mxu0 %v808
      %v959 = vpop.f32.mrf.mxu0
      %v960 = vadd.f32 0.0, %v959
      %v961 = vpop.f32.mrf.mxu0
      %v962 = vpop.f32.mrf.mxu0
      %v963 = vadd.f32 0.0, %v962
      %v964 = vpop.f32.mrf.mxu0
      %965 = vmatprep.mubr.bf16.mxu0 0
      %966 = vmatmul.mubr.bf16.gmra.mxu0 %v811
      %v967 = vpop.f32.mrf.mxu0
      %v968 = vadd.f32 0.0, %v967
      %v969 = vpop.f32.mrf.mxu0
      %v970 = vpop.f32.mrf.mxu0
      %v971 = vadd.f32 0.0, %v970
      %v972 = vpop.f32.mrf.mxu0
      %973 = vdwg.mxu0
      %v1006 = vunpack.c.l.b16 %v264
      %v1007 = vunpack.c.l.b16 %v265
      %v1008 = vunpack.c.l.b16 %v267
      %v1009 = vunpack.c.l.b16 %v268
      %v1010 = vunpack.c.l.b16 %v270
      %v1011 = vunpack.c.l.b16 %v271
      %v1012 = vunpack.c.l.b16 %v273
      %v1013 = vunpack.c.l.b16 %v274
      %v1014 = vunpack.c.l.b16 %v276
      %v1015 = vunpack.c.l.b16 %v277
      %v1016 = vunpack.c.l.b16 %v279
      %v1017 = vunpack.c.l.b16 %v280
      %v1018 = vunpack.c.l.b16 %v282
      %v1019 = vunpack.c.l.b16 %v283
      %v1020 = vunpack.c.l.b16 %v285
      %v1021 = vunpack.c.l.b16 %v286
      %v1022 = vunpack.c.l.b16 %v288
      %v1023 = vunpack.c.l.b16 %v289
      %v1024 = vunpack.c.l.b16 %v291
      %v1025 = vunpack.c.l.b16 %v292
      %v1026 = vunpack.c.l.b16 %v294
      %v1027 = vunpack.c.l.b16 %v295
      %v1028 = vunpack.c.l.b16 %v297
      %v1029 = vunpack.c.l.b16 %v298
      %v1030 = vunpack.c.l.b16 %v300
      %v1031 = vunpack.c.l.b16 %v301
      %v1032 = vunpack.c.l.b16 %v303
      %v1033 = vunpack.c.l.b16 %v304
      %v1034 = vunpack.c.l.b16 %v306
      %v1035 = vunpack.c.l.b16 %v307
      %v1036 = vunpack.c.l.b16 %v309
      %v1037 = vunpack.c.l.b16 %v310
      %v1038 = vpack.c.b16 %v1007, %v1006
      %v1039 = vpack.c.b16 %v1009, %v1008
      %v1040 = vpack.c.b16 %v1011, %v1010
      %v1041 = vpack.c.b16 %v1013, %v1012
      %v1042 = vpack.c.b16 %v1015, %v1014
      %v1043 = vpack.c.b16 %v1017, %v1016
      %v1044 = vpack.c.b16 %v1019, %v1018
      %v1045 = vpack.c.b16 %v1021, %v1020
      %v1046 = vpack.c.b16 %v1023, %v1022
      %v1047 = vpack.c.b16 %v1025, %v1024
      %v1048 = vpack.c.b16 %v1027, %v1026
      %v1049 = vpack.c.b16 %v1029, %v1028
      %v1050 = vpack.c.b16 %v1031, %v1030
      %v1051 = vpack.c.b16 %v1033, %v1032
      %v1052 = vpack.c.b16 %v1035, %v1034
      %v1053 = vpack.c.b16 %v1037, %v1036
      %v1056 = vunpack.c.l.b16 %v318
      %v1057 = vunpack.c.l.b16 %v319
      %v1058 = vpack.c.b16 %v1057, %v1056
      %v1061 = vsel %vm764, %v1038, 0
      %v1064 = vsel %vm764, %v1039, 0
      %v1067 = vsel %vm764, %v1040, 0
      %v1070 = vsel %vm764, %v1041, 0
      %v1073 = vsel %vm764, %v1042, 0
      %v1076 = vsel %vm764, %v1043, 0
      %v1079 = vsel %vm764, %v1044, 0
      %v1082 = vsel %vm764, %v1045, 0
      %v1085 = vsel %vm764, %v1046, 0
      %v1088 = vsel %vm764, %v1047, 0
      %v1091 = vsel %vm764, %v1048, 0
      %v1094 = vsel %vm764, %v1049, 0
      %v1097 = vsel %vm764, %v1050, 0
      %v1100 = vsel %vm764, %v1051, 0
      %v1103 = vsel %vm764, %v1052, 0
      %v1106 = vsel %vm764, %v1053, 0
      %1108 = vmatprep.subr.bf16.mxu0 0
      %1109 = vmatpush1.bf16.msra.mxu0 0
      %1110 = vmatprep.subr.bf16.mxu0 0
      %1111 = vmatpush1.bf16.msra.mxu0 0
      %1112 = vmatprep.subr.bf16.mxu0 0
      %1113 = vmatpush1.bf16.msra.mxu0 0
      %1114 = vmatprep.subr.bf16.mxu0 0
      %1115 = vmatpush1.bf16.msra.mxu0 0
      %1116 = vmatprep.subr.bf16.mxu0 0
      %1117 = vmatpush1.bf16.msra.mxu0 0
      %1118 = vmatprep.subr.bf16.mxu0 0
      %1119 = vmatpush1.bf16.msra.mxu0 0
      %1120 = vmatprep.subr.bf16.mxu0 0
      %1121 = vmatpush1.bf16.msra.mxu0 0
      %1122 = vmatprep.subr.bf16.mxu0 0
      %1123 = vmatpush1.bf16.msra.mxu0 %v1058
      %1124 = vmatprep.subr.bf16.mxu0 0
      %1125 = vmatpush2.bf16.msra.mxu0 0
      %1126 = vmatprep.subr.bf16.mxu0 0
      %1127 = vmatpush2.bf16.msra.mxu0 0
      %1128 = vmatprep.subr.bf16.mxu0 0
      %1129 = vmatpush2.bf16.msra.mxu0 0
      %1130 = vmatprep.subr.bf16.mxu0 0
      %1131 = vmatpush2.bf16.msra.mxu0 0
      %1132 = vmatprep.subr.bf16.mxu0 0
      %1133 = vmatpush2.bf16.msra.mxu0 0
      %1134 = vmatprep.subr.bf16.mxu0 0
      %1135 = vmatpush2.bf16.msra.mxu0 0
      %1136 = vmatprep.subr.bf16.mxu0 0
      %1137 = vmatpush2.bf16.msra.mxu0 0
      %1138 = vmatprep.subr.bf16.mxu0 0
      %1139 = vmatpush2.bf16.msra.mxu0 0
      %1140 = vmatprep.mubr.bf16.mxu0 0
      %1141 = vmatmul.mubr.bf16.gmra.mxu0 %v1061
      %v1142 = vpop.f32.mrf.mxu0
      %v1143 = vadd.f32 %v848, %v1142
      %v1144 = vpop.f32.mrf.mxu0
      %v1145 = vpop.f32.mrf.mxu0
      %v1146 = vadd.f32 %v851, %v1145
      %v1147 = vpop.f32.mrf.mxu0
      %1148 = vmatprep.mubr.bf16.mxu0 0
      %1149 = vmatmul.mubr.bf16.gmra.mxu0 %v1064
      %v1150 = vpop.f32.mrf.mxu0
      %v1151 = vadd.f32 %v856, %v1150
      %v1152 = vpop.f32.mrf.mxu0
      %v1153 = vpop.f32.mrf.mxu0
      %v1154 = vadd.f32 %v859, %v1153
      %v1155 = vpop.f32.mrf.mxu0
      %1156 = vmatprep.mubr.bf16.mxu0 0
      %1157 = vmatmul.mubr.bf16.gmra.mxu0 %v1067
      %v1158 = vpop.f32.mrf.mxu0
      %v1159 = vadd.f32 %v864, %v1158
      %v1160 = vpop.f32.mrf.mxu0
      %v1161 = vpop.f32.mrf.mxu0
      %v1162 = vadd.f32 %v867, %v1161
      %v1163 = vpop.f32.mrf.mxu0
      %1164 = vmatprep.mubr.bf16.mxu0 0
      %1165 = vmatmul.mubr.bf16.gmra.mxu0 %v1070
      %v1166 = vpop.f32.mrf.mxu0
      %v1167 = vadd.f32 %v872, %v1166
      %v1168 = vpop.f32.mrf.mxu0
      %v1169 = vpop.f32.mrf.mxu0
      %v1170 = vadd.f32 %v875, %v1169
      %v1171 = vpop.f32.mrf.mxu0
      %1172 = vmatprep.mubr.bf16.mxu0 0
      %1173 = vmatmul.mubr.bf16.gmra.mxu0 %v1073
      %v1174 = vpop.f32.mrf.mxu0
      %v1175 = vadd.f32 %v880, %v1174
      %v1176 = vpop.f32.mrf.mxu0
      %v1177 = vpop.f32.mrf.mxu0
      %v1178 = vadd.f32 %v883, %v1177
      %v1179 = vpop.f32.mrf.mxu0
      %1180 = vmatprep.mubr.bf16.mxu0 0
      %1181 = vmatmul.mubr.bf16.gmra.mxu0 %v1076
      %v1182 = vpop.f32.mrf.mxu0
      %v1183 = vadd.f32 %v888, %v1182
      %v1184 = vpop.f32.mrf.mxu0
      %v1185 = vpop.f32.mrf.mxu0
      %v1186 = vadd.f32 %v891, %v1185
      %v1187 = vpop.f32.mrf.mxu0
      %1188 = vmatprep.mubr.bf16.mxu0 0
      %1189 = vmatmul.mubr.bf16.gmra.mxu0 %v1079
      %v1190 = vpop.f32.mrf.mxu0
      %v1191 = vadd.f32 %v896, %v1190
      %v1192 = vpop.f32.mrf.mxu0
      %v1193 = vpop.f32.mrf.mxu0
      %v1194 = vadd.f32 %v899, %v1193
      %v1195 = vpop.f32.mrf.mxu0
      %1196 = vmatprep.mubr.bf16.mxu0 0
      %1197 = vmatmul.mubr.bf16.gmra.mxu0 %v1082
      %v1198 = vpop.f32.mrf.mxu0
      %v1199 = vadd.f32 %v904, %v1198
      %v1200 = vpop.f32.mrf.mxu0
      %v1201 = vpop.f32.mrf.mxu0
      %v1202 = vadd.f32 %v907, %v1201
      %v1203 = vpop.f32.mrf.mxu0
      %1204 = vmatprep.mubr.bf16.mxu0 0
      %1205 = vmatmul.mubr.bf16.gmra.mxu0 %v1085
      %v1206 = vpop.f32.mrf.mxu0
      %v1207 = vadd.f32 %v912, %v1206
      %v1208 = vpop.f32.mrf.mxu0
      %v1209 = vpop.f32.mrf.mxu0
      %v1210 = vadd.f32 %v915, %v1209
      %v1211 = vpop.f32.mrf.mxu0
      %1212 = vmatprep.mubr.bf16.mxu0 0
      %1213 = vmatmul.mubr.bf16.gmra.mxu0 %v1088
      %v1214 = vpop.f32.mrf.mxu0
      %v1215 = vadd.f32 %v920, %v1214
      %v1216 = vpop.f32.mrf.mxu0
      %v1217 = vpop.f32.mrf.mxu0
      %v1218 = vadd.f32 %v923, %v1217
      %v1219 = vpop.f32.mrf.mxu0
      %1220 = vmatprep.mubr.bf16.mxu0 0
      %1221 = vmatmul.mubr.bf16.gmra.mxu0 %v1091
      %v1222 = vpop.f32.mrf.mxu0
      %v1223 = vadd.f32 %v928, %v1222
      %v1224 = vpop.f32.mrf.mxu0
      %v1225 = vpop.f32.mrf.mxu0
      %v1226 = vadd.f32 %v931, %v1225
      %v1227 = vpop.f32.mrf.mxu0
      %1228 = vmatprep.mubr.bf16.mxu0 0
      %1229 = vmatmul.mubr.bf16.gmra.mxu0 %v1094
      %v1230 = vpop.f32.mrf.mxu0
      %v1231 = vadd.f32 %v936, %v1230
      %v1232 = vpop.f32.mrf.mxu0
      %v1233 = vpop.f32.mrf.mxu0
      %v1234 = vadd.f32 %v939, %v1233
      %v1235 = vpop.f32.mrf.mxu0
      %1236 = vmatprep.mubr.bf16.mxu0 0
      %1237 = vmatmul.mubr.bf16.gmra.mxu0 %v1097
      %v1238 = vpop.f32.mrf.mxu0
      %v1239 = vadd.f32 %v944, %v1238
      %v1240 = vpop.f32.mrf.mxu0
      %v1241 = vpop.f32.mrf.mxu0
      %v1242 = vadd.f32 %v947, %v1241
      %v1243 = vpop.f32.mrf.mxu0
      %1244 = vmatprep.mubr.bf16.mxu0 0
      %1245 = vmatmul.mubr.bf16.gmra.mxu0 %v1100
      %v1246 = vpop.f32.mrf.mxu0
      %v1247 = vadd.f32 %v952, %v1246
      %v1248 = vpop.f32.mrf.mxu0
      %v1249 = vpop.f32.mrf.mxu0
      %v1250 = vadd.f32 %v955, %v1249
      %v1251 = vpop.f32.mrf.mxu0
      %1252 = vmatprep.mubr.bf16.mxu0 0
      %1253 = vmatmul.mubr.bf16.gmra.mxu0 %v1103
      %v1254 = vpop.f32.mrf.mxu0
      %v1255 = vadd.f32 %v960, %v1254
      %v1256 = vpop.f32.mrf.mxu0
      %v1257 = vpop.f32.mrf.mxu0
      %v1258 = vadd.f32 %v963, %v1257
      %v1259 = vpop.f32.mrf.mxu0
      %1260 = vmatprep.mubr.bf16.mxu0 0
      %1261 = vmatmul.mubr.bf16.gmra.mxu0 %v1106
      %v1262 = vpop.f32.mrf.mxu0
      %v1263 = vadd.f32 %v968, %v1262
      %v1264 = vpop.f32.mrf.mxu0
      %v1265 = vpop.f32.mrf.mxu0
      %v1266 = vadd.f32 %v971, %v1265
      %v1267 = vpop.f32.mrf.mxu0
      %1268 = vdwg.mxu0
      %vm1285 = vcmask 1042432
      %vm1286 = vcmask 1046532
      %vm1287 = vmor %vm1285, %vm1286
      %v1288 = vrot.slane %v264, 5
      %v1289 = vrot.slane %v1288, 4
      %v1290 = vrot.slane %v265, 5
      %v1291 = vsel %vm1287, %v1289, %v1290
      %v1292 = vrot.slane %v1290, 4
      %v1293 = vrot.slane %v266, 5
      %v1294 = vsel %vm1287, %v1292, %v1293
      %v1295 = vrot.slane %v267, 5
      %v1296 = vrot.slane %v1295, 4
      %v1297 = vrot.slane %v268, 5
      %v1298 = vsel %vm1287, %v1296, %v1297
      %v1299 = vrot.slane %v1297, 4
      %v1300 = vrot.slane %v269, 5
      %v1301 = vsel %vm1287, %v1299, %v1300
      %v1302 = vrot.slane %v270, 5
      %v1303 = vrot.slane %v1302, 4
      %v1304 = vrot.slane %v271, 5
      %v1305 = vsel %vm1287, %v1303, %v1304
      %v1306 = vrot.slane %v1304, 4
      %v1307 = vrot.slane %v272, 5
      %v1308 = vsel %vm1287, %v1306, %v1307
      %v1309 = vrot.slane %v273, 5
      %v1310 = vrot.slane %v1309, 4
      %v1311 = vrot.slane %v274, 5
      %v1312 = vsel %vm1287, %v1310, %v1311
      %v1313 = vrot.slane %v1311, 4
      %v1314 = vrot.slane %v275, 5
      %v1315 = vsel %vm1287, %v1313, %v1314
      %v1316 = vrot.slane %v276, 5
      %v1317 = vrot.slane %v1316, 4
      %v1318 = vrot.slane %v277, 5
      %v1319 = vsel %vm1287, %v1317, %v1318
      %v1320 = vrot.slane %v1318, 4
      %v1321 = vrot.slane %v278, 5
      %v1322 = vsel %vm1287, %v1320, %v1321
      %v1323 = vrot.slane %v279, 5
      %v1324 = vrot.slane %v1323, 4
      %v1325 = vrot.slane %v280, 5
      %v1326 = vsel %vm1287, %v1324, %v1325
      %v1327 = vrot.slane %v1325, 4
      %v1328 = vrot.slane %v281, 5
      %v1329 = vsel %vm1287, %v1327, %v1328
      %v1330 = vrot.slane %v282, 5
      %v1331 = vrot.slane %v1330, 4
      %v1332 = vrot.slane %v283, 5
      %v1333 = vsel %vm1287, %v1331, %v1332
      %v1334 = vrot.slane %v1332, 4
      %v1335 = vrot.slane %v284, 5
      %v1336 = vsel %vm1287, %v1334, %v1335
      %v1337 = vrot.slane %v285, 5
      %v1338 = vrot.slane %v1337, 4
      %v1339 = vrot.slane %v286, 5
      %v1340 = vsel %vm1287, %v1338, %v1339
      %v1341 = vrot.slane %v1339, 4
      %v1342 = vrot.slane %v287, 5
      %v1343 = vsel %vm1287, %v1341, %v1342
      %v1344 = vrot.slane %v288, 5
      %v1345 = vrot.slane %v1344, 4
      %v1346 = vrot.slane %v289, 5
      %v1347 = vsel %vm1287, %v1345, %v1346
      %v1348 = vrot.slane %v1346, 4
      %v1349 = vrot.slane %v290, 5
      %v1350 = vsel %vm1287, %v1348, %v1349
      %v1351 = vrot.slane %v291, 5
      %v1352 = vrot.slane %v1351, 4
      %v1353 = vrot.slane %v292, 5
      %v1354 = vsel %vm1287, %v1352, %v1353
      %v1355 = vrot.slane %v1353, 4
      %v1356 = vrot.slane %v293, 5
      %v1357 = vsel %vm1287, %v1355, %v1356
      %v1358 = vrot.slane %v294, 5
      %v1359 = vrot.slane %v1358, 4
      %v1360 = vrot.slane %v295, 5
      %v1361 = vsel %vm1287, %v1359, %v1360
      %v1362 = vrot.slane %v1360, 4
      %v1363 = vrot.slane %v296, 5
      %v1364 = vsel %vm1287, %v1362, %v1363
      %v1365 = vrot.slane %v297, 5
      %v1366 = vrot.slane %v1365, 4
      %v1367 = vrot.slane %v298, 5
      %v1368 = vsel %vm1287, %v1366, %v1367
      %v1369 = vrot.slane %v1367, 4
      %v1370 = vrot.slane %v299, 5
      %v1371 = vsel %vm1287, %v1369, %v1370
      %v1372 = vrot.slane %v300, 5
      %v1373 = vrot.slane %v1372, 4
      %v1374 = vrot.slane %v301, 5
      %v1375 = vsel %vm1287, %v1373, %v1374
      %v1376 = vrot.slane %v1374, 4
      %v1377 = vrot.slane %v302, 5
      %v1378 = vsel %vm1287, %v1376, %v1377
      %v1379 = vrot.slane %v303, 5
      %v1380 = vrot.slane %v1379, 4
      %v1381 = vrot.slane %v304, 5
      %v1382 = vsel %vm1287, %v1380, %v1381
      %v1383 = vrot.slane %v1381, 4
      %v1384 = vrot.slane %v305, 5
      %v1385 = vsel %vm1287, %v1383, %v1384
      %v1386 = vrot.slane %v306, 5
      %v1387 = vrot.slane %v1386, 4
      %v1388 = vrot.slane %v307, 5
      %v1389 = vsel %vm1287, %v1387, %v1388
      %v1390 = vrot.slane %v1388, 4
      %v1391 = vrot.slane %v308, 5
      %v1392 = vsel %vm1287, %v1390, %v1391
      %v1393 = vrot.slane %v309, 5
      %v1394 = vrot.slane %v1393, 4
      %v1395 = vrot.slane %v310, 5
      %v1396 = vsel %vm1287, %v1394, %v1395
      %v1397 = vrot.slane %v1395, 4
      %v1398 = vrot.slane %v311, 5
      %v1399 = vsel %vm1287, %v1397, %v1398
      %s1400 = scalar_lea.vmem %s1, 16
      %v1401 = vld [vmem:[%s1400] sm:$0xf]
      %v1402 = vld [vmem:[%s1400 + $0x4] sm:$0xf]
      %v1403 = vunpack.c.l.b16 %v1291
      %v1404 = vunpack.c.l.b16 %v1294
      %v1405 = vunpack.c.l.b16 %v1298
      %v1406 = vunpack.c.l.b16 %v1301
      %v1407 = vunpack.c.l.b16 %v1305
      %v1408 = vunpack.c.l.b16 %v1308
      %v1409 = vunpack.c.l.b16 %v1312
      %v1410 = vunpack.c.l.b16 %v1315
      %v1411 = vunpack.c.l.b16 %v1319
      %v1412 = vunpack.c.l.b16 %v1322
      %v1413 = vunpack.c.l.b16 %v1326
      %v1414 = vunpack.c.l.b16 %v1329
      %v1415 = vunpack.c.l.b16 %v1333
      %v1416 = vunpack.c.l.b16 %v1336
      %v1417 = vunpack.c.l.b16 %v1340
      %v1418 = vunpack.c.l.b16 %v1343
      %v1419 = vunpack.c.l.b16 %v1347
      %v1420 = vunpack.c.l.b16 %v1350
      %v1421 = vunpack.c.l.b16 %v1354
      %v1422 = vunpack.c.l.b16 %v1357
      %v1423 = vunpack.c.l.b16 %v1361
      %v1424 = vunpack.c.l.b16 %v1364
      %v1425 = vunpack.c.l.b16 %v1368
      %v1426 = vunpack.c.l.b16 %v1371
      %v1427 = vunpack.c.l.b16 %v1375
      %v1428 = vunpack.c.l.b16 %v1378
      %v1429 = vunpack.c.l.b16 %v1382
      %v1430 = vunpack.c.l.b16 %v1385
      %v1431 = vunpack.c.l.b16 %v1389
      %v1432 = vunpack.c.l.b16 %v1392
      %v1433 = vunpack.c.l.b16 %v1396
      %v1434 = vunpack.c.l.b16 %v1399
      %v1435 = vpack.c.b16 %v1404, %v1403
      %v1436 = vpack.c.b16 %v1406, %v1405
      %v1437 = vpack.c.b16 %v1408, %v1407
      %v1438 = vpack.c.b16 %v1410, %v1409
      %v1439 = vpack.c.b16 %v1412, %v1411
      %v1440 = vpack.c.b16 %v1414, %v1413
      %v1441 = vpack.c.b16 %v1416, %v1415
      %v1442 = vpack.c.b16 %v1418, %v1417
      %v1443 = vpack.c.b16 %v1420, %v1419
      %v1444 = vpack.c.b16 %v1422, %v1421
      %v1445 = vpack.c.b16 %v1424, %v1423
      %v1446 = vpack.c.b16 %v1426, %v1425
      %v1447 = vpack.c.b16 %v1428, %v1427
      %v1448 = vpack.c.b16 %v1430, %v1429
      %v1449 = vpack.c.b16 %v1432, %v1431
      %v1450 = vpack.c.b16 %v1434, %v1433
      %v1453 = vunpack.c.l.b16 %v1401
      %v1454 = vunpack.c.l.b16 %v1402
      %v1455 = vpack.c.b16 %v1454, %v1453
      %v1458 = vsel %vm764, %v1435, 0
      %v1461 = vsel %vm764, %v1436, 0
      %v1464 = vsel %vm764, %v1437, 0
      %v1467 = vsel %vm764, %v1438, 0
      %v1470 = vsel %vm764, %v1439, 0
      %v1473 = vsel %vm764, %v1440, 0
      %v1476 = vsel %vm764, %v1441, 0
      %v1479 = vsel %vm764, %v1442, 0
      %v1482 = vsel %vm764, %v1443, 0
      %v1485 = vsel %vm764, %v1444, 0
      %v1488 = vsel %vm764, %v1445, 0
      %v1491 = vsel %vm764, %v1446, 0
      %v1494 = vsel %vm764, %v1447, 0
      %v1497 = vsel %vm764, %v1448, 0
      %v1500 = vsel %vm764, %v1449, 0
      %v1503 = vsel %vm764, %v1450, 0
      %1505 = vmatprep.subr.bf16.mxu0 0
      %1506 = vmatpush1.bf16.msra.mxu0 0
      %1507 = vmatprep.subr.bf16.mxu0 0
      %1508 = vmatpush1.bf16.msra.mxu0 0
      %1509 = vmatprep.subr.bf16.mxu0 0
      %1510 = vmatpush1.bf16.msra.mxu0 0
      %1511 = vmatprep.subr.bf16.mxu0 0
      %1512 = vmatpush1.bf16.msra.mxu0 0
      %1513 = vmatprep.subr.bf16.mxu0 0
      %1514 = vmatpush1.bf16.msra.mxu0 0
      %1515 = vmatprep.subr.bf16.mxu0 0
      %1516 = vmatpush1.bf16.msra.mxu0 0
      %1517 = vmatprep.subr.bf16.mxu0 0
      %1518 = vmatpush1.bf16.msra.mxu0 0
      %1519 = vmatprep.subr.bf16.mxu0 0
      %1520 = vmatpush1.bf16.msra.mxu0 %v1455
      %1521 = vmatprep.subr.bf16.mxu0 0
      %1522 = vmatpush2.bf16.msra.mxu0 0
      %1523 = vmatprep.subr.bf16.mxu0 0
      %1524 = vmatpush2.bf16.msra.mxu0 0
      %1525 = vmatprep.subr.bf16.mxu0 0
      %1526 = vmatpush2.bf16.msra.mxu0 0
      %1527 = vmatprep.subr.bf16.mxu0 0
      %1528 = vmatpush2.bf16.msra.mxu0 0
      %1529 = vmatprep.subr.bf16.mxu0 0
      %1530 = vmatpush2.bf16.msra.mxu0 0
      %1531 = vmatprep.subr.bf16.mxu0 0
      %1532 = vmatpush2.bf16.msra.mxu0 0
      %1533 = vmatprep.subr.bf16.mxu0 0
      %1534 = vmatpush2.bf16.msra.mxu0 0
      %1535 = vmatprep.subr.bf16.mxu0 0
      %1536 = vmatpush2.bf16.msra.mxu0 0
      %1537 = vmatprep.mubr.bf16.mxu0 0
      %1538 = vmatmul.mubr.bf16.gmra.mxu0 %v1458
      %v1539 = vpop.f32.mrf.mxu0
      %v1540 = vadd.f32 0.0, %v1539
      %v1541 = vpop.f32.mrf.mxu0
      %v1542 = vpop.f32.mrf.mxu0
      %v1543 = vadd.f32 0.0, %v1542
      %v1544 = vpop.f32.mrf.mxu0
      %1545 = vmatprep.mubr.bf16.mxu0 0
      %1546 = vmatmul.mubr.bf16.gmra.mxu0 %v1461
      %v1547 = vpop.f32.mrf.mxu0
      %v1548 = vadd.f32 0.0, %v1547
      %v1549 = vpop.f32.mrf.mxu0
      %v1550 = vpop.f32.mrf.mxu0
      %v1551 = vadd.f32 0.0, %v1550
      %v1552 = vpop.f32.mrf.mxu0
      %1553 = vmatprep.mubr.bf16.mxu0 0
      %1554 = vmatmul.mubr.bf16.gmra.mxu0 %v1464
      %v1555 = vpop.f32.mrf.mxu0
      %v1556 = vadd.f32 0.0, %v1555
      %v1557 = vpop.f32.mrf.mxu0
      %v1558 = vpop.f32.mrf.mxu0
      %v1559 = vadd.f32 0.0, %v1558
      %v1560 = vpop.f32.mrf.mxu0
      %1561 = vmatprep.mubr.bf16.mxu0 0
      %1562 = vmatmul.mubr.bf16.gmra.mxu0 %v1467
      %v1563 = vpop.f32.mrf.mxu0
      %v1564 = vadd.f32 0.0, %v1563
      %v1565 = vpop.f32.mrf.mxu0
      %v1566 = vpop.f32.mrf.mxu0
      %v1567 = vadd.f32 0.0, %v1566
      %v1568 = vpop.f32.mrf.mxu0
      %1569 = vmatprep.mubr.bf16.mxu0 0
      %1570 = vmatmul.mubr.bf16.gmra.mxu0 %v1470
      %v1571 = vpop.f32.mrf.mxu0
      %v1572 = vadd.f32 0.0, %v1571
      %v1573 = vpop.f32.mrf.mxu0
      %v1574 = vpop.f32.mrf.mxu0
      %v1575 = vadd.f32 0.0, %v1574
      %v1576 = vpop.f32.mrf.mxu0
      %1577 = vmatprep.mubr.bf16.mxu0 0
      %1578 = vmatmul.mubr.bf16.gmra.mxu0 %v1473
      %v1579 = vpop.f32.mrf.mxu0
      %v1580 = vadd.f32 0.0, %v1579
      %v1581 = vpop.f32.mrf.mxu0
      %v1582 = vpop.f32.mrf.mxu0
      %v1583 = vadd.f32 0.0, %v1582
      %v1584 = vpop.f32.mrf.mxu0
      %1585 = vmatprep.mubr.bf16.mxu0 0
      %1586 = vmatmul.mubr.bf16.gmra.mxu0 %v1476
      %v1587 = vpop.f32.mrf.mxu0
      %v1588 = vadd.f32 0.0, %v1587
      %v1589 = vpop.f32.mrf.mxu0
      %v1590 = vpop.f32.mrf.mxu0
      %v1591 = vadd.f32 0.0, %v1590
      %v1592 = vpop.f32.mrf.mxu0
      %1593 = vmatprep.mubr.bf16.mxu0 0
      %1594 = vmatmul.mubr.bf16.gmra.mxu0 %v1479
      %v1595 = vpop.f32.mrf.mxu0
      %v1596 = vadd.f32 0.0, %v1595
      %v1597 = vpop.f32.mrf.mxu0
      %v1598 = vpop.f32.mrf.mxu0
      %v1599 = vadd.f32 0.0, %v1598
      %v1600 = vpop.f32.mrf.mxu0
      %1601 = vmatprep.mubr.bf16.mxu0 0
      %1602 = vmatmul.mubr.bf16.gmra.mxu0 %v1482
      %v1603 = vpop.f32.mrf.mxu0
      %v1604 = vadd.f32 0.0, %v1603
      %v1605 = vpop.f32.mrf.mxu0
      %v1606 = vpop.f32.mrf.mxu0
      %v1607 = vadd.f32 0.0, %v1606
      %v1608 = vpop.f32.mrf.mxu0
      %1609 = vmatprep.mubr.bf16.mxu0 0
      %1610 = vmatmul.mubr.bf16.gmra.mxu0 %v1485
      %v1611 = vpop.f32.mrf.mxu0
      %v1612 = vadd.f32 0.0, %v1611
      %v1613 = vpop.f32.mrf.mxu0
      %v1614 = vpop.f32.mrf.mxu0
      %v1615 = vadd.f32 0.0, %v1614
      %v1616 = vpop.f32.mrf.mxu0
      %1617 = vmatprep.mubr.bf16.mxu0 0
      %1618 = vmatmul.mubr.bf16.gmra.mxu0 %v1488
      %v1619 = vpop.f32.mrf.mxu0
      %v1620 = vadd.f32 0.0, %v1619
      %v1621 = vpop.f32.mrf.mxu0
      %v1622 = vpop.f32.mrf.mxu0
      %v1623 = vadd.f32 0.0, %v1622
      %v1624 = vpop.f32.mrf.mxu0
      %1625 = vmatprep.mubr.bf16.mxu0 0
      %1626 = vmatmul.mubr.bf16.gmra.mxu0 %v1491
      %v1627 = vpop.f32.mrf.mxu0
      %v1628 = vadd.f32 0.0, %v1627
      %v1629 = vpop.f32.mrf.mxu0
      %v1630 = vpop.f32.mrf.mxu0
      %v1631 = vadd.f32 0.0, %v1630
      %v1632 = vpop.f32.mrf.mxu0
      %1633 = vmatprep.mubr.bf16.mxu0 0
      %1634 = vmatmul.mubr.bf16.gmra.mxu0 %v1494
      %v1635 = vpop.f32.mrf.mxu0
      %v1636 = vadd.f32 0.0, %v1635
      %v1637 = vpop.f32.mrf.mxu0
      %v1638 = vpop.f32.mrf.mxu0
      %v1639 = vadd.f32 0.0, %v1638
      %v1640 = vpop.f32.mrf.mxu0
      %1641 = vmatprep.mubr.bf16.mxu0 0
      %1642 = vmatmul.mubr.bf16.gmra.mxu0 %v1497
      %v1643 = vpop.f32.mrf.mxu0
      %v1644 = vadd.f32 0.0, %v1643
      %v1645 = vpop.f32.mrf.mxu0
      %v1646 = vpop.f32.mrf.mxu0
      %v1647 = vadd.f32 0.0, %v1646
      %v1648 = vpop.f32.mrf.mxu0
      %1649 = vmatprep.mubr.bf16.mxu0 0
      %1650 = vmatmul.mubr.bf16.gmra.mxu0 %v1500
      %v1651 = vpop.f32.mrf.mxu0
      %v1652 = vadd.f32 0.0, %v1651
      %v1653 = vpop.f32.mrf.mxu0
      %v1654 = vpop.f32.mrf.mxu0
      %v1655 = vadd.f32 0.0, %v1654
      %v1656 = vpop.f32.mrf.mxu0
      %1657 = vmatprep.mubr.bf16.mxu0 0
      %1658 = vmatmul.mubr.bf16.gmra.mxu0 %v1503
      %v1659 = vpop.f32.mrf.mxu0
      %v1660 = vadd.f32 0.0, %v1659
      %v1661 = vpop.f32.mrf.mxu0
      %v1662 = vpop.f32.mrf.mxu0
      %v1663 = vadd.f32 0.0, %v1662
      %v1664 = vpop.f32.mrf.mxu0
      %1665 = vdwg.mxu0
      %v1666 = vadd.f32 %v1143, %v1540
      %v1667 = vadd.f32 %v1146, %v1543
      %v1668 = vadd.f32 %v1151, %v1548
      %v1669 = vadd.f32 %v1154, %v1551
      %v1670 = vadd.f32 %v1159, %v1556
      %v1671 = vadd.f32 %v1162, %v1559
      %v1672 = vadd.f32 %v1167, %v1564
      %v1673 = vadd.f32 %v1170, %v1567
      %v1674 = vadd.f32 %v1175, %v1572
      %v1675 = vadd.f32 %v1178, %v1575
      %v1676 = vadd.f32 %v1183, %v1580
      %v1677 = vadd.f32 %v1186, %v1583
      %v1678 = vadd.f32 %v1191, %v1588
      %v1679 = vadd.f32 %v1194, %v1591
      %v1680 = vadd.f32 %v1199, %v1596
      %v1681 = vadd.f32 %v1202, %v1599
      %v1682 = vadd.f32 %v1207, %v1604
      %v1683 = vadd.f32 %v1210, %v1607
      %v1684 = vadd.f32 %v1215, %v1612
      %v1685 = vadd.f32 %v1218, %v1615
      %v1686 = vadd.f32 %v1223, %v1620
      %v1687 = vadd.f32 %v1226, %v1623
      %v1688 = vadd.f32 %v1231, %v1628
      %v1689 = vadd.f32 %v1234, %v1631
      %v1690 = vadd.f32 %v1239, %v1636
      %v1691 = vadd.f32 %v1242, %v1639
      %v1692 = vadd.f32 %v1247, %v1644
      %v1693 = vadd.f32 %v1250, %v1647
      %v1694 = vadd.f32 %v1255, %v1652
      %v1695 = vadd.f32 %v1258, %v1655
      %v1696 = vadd.f32 %v1263, %v1660
      %v1697 = vadd.f32 %v1266, %v1663
      %s1698 = scalar_lea.vmem %s1, 24
      %v1699 = vld [vmem:[%s1698] sm:$0xf]
      %v1700 = vld [vmem:[%s1698 + $0x4] sm:$0xf]
      %v1703 = vunpack.c.l.b16 %v312
      %v1704 = vunpack.c.l.b16 %v313
      %v1705 = vpack.c.b16 %v1704, %v1703
      %v1708 = vunpack.c.l.b16 %v1699
      %v1709 = vunpack.c.l.b16 %v1700
      %v1710 = vpack.c.b16 %v1709, %v1708
      %v1713 = vsel %vm764, %v1705, 0
      %1715 = vmatprep.subr.bf16.mxu0 0
      %1716 = vmatpush1.bf16.msra.mxu0 0
      %1717 = vmatprep.subr.bf16.mxu0 0
      %1718 = vmatpush1.bf16.msra.mxu0 0
      %1719 = vmatprep.subr.bf16.mxu0 0
      %1720 = vmatpush1.bf16.msra.mxu0 0
      %1721 = vmatprep.subr.bf16.mxu0 0
      %1722 = vmatpush1.bf16.msra.mxu0 0
      %1723 = vmatprep.subr.bf16.mxu0 0
      %1724 = vmatpush1.bf16.msra.mxu0 0
      %1725 = vmatprep.subr.bf16.mxu0 0
      %1726 = vmatpush1.bf16.msra.mxu0 0
      %1727 = vmatprep.subr.bf16.mxu0 0
      %1728 = vmatpush1.bf16.msra.mxu0 0
      %1729 = vmatprep.subr.bf16.mxu0 0
      %1730 = vmatpush1.bf16.msra.mxu0 %v1710
      %1731 = vmatprep.subr.bf16.mxu0 0
      %1732 = vmatpush2.bf16.msra.mxu0 0
      %1733 = vmatprep.subr.bf16.mxu0 0
      %1734 = vmatpush2.bf16.msra.mxu0 0
      %1735 = vmatprep.subr.bf16.mxu0 0
      %1736 = vmatpush2.bf16.msra.mxu0 0
      %1737 = vmatprep.subr.bf16.mxu0 0
      %1738 = vmatpush2.bf16.msra.mxu0 0
      %1739 = vmatprep.subr.bf16.mxu0 0
      %1740 = vmatpush2.bf16.msra.mxu0 0
      %1741 = vmatprep.subr.bf16.mxu0 0
      %1742 = vmatpush2.bf16.msra.mxu0 0
      %1743 = vmatprep.subr.bf16.mxu0 0
      %1744 = vmatpush2.bf16.msra.mxu0 0
      %1745 = vmatprep.subr.bf16.mxu0 0
      %1746 = vmatpush2.bf16.msra.mxu0 0
      %1747 = vmatprep.mubr.bf16.mxu0 0
      %1748 = vmatmul.mubr.bf16.gmra.mxu0 %v1064
      %v1749 = vpop.f32.mrf.mxu0
      %v1750 = vadd.f32 0.0, %v1749
      %v1751 = vpop.f32.mrf.mxu0
      %v1752 = vpop.f32.mrf.mxu0
      %v1753 = vadd.f32 0.0, %v1752
      %v1754 = vpop.f32.mrf.mxu0
      %1755 = vmatprep.mubr.bf16.mxu0 0
      %1756 = vmatmul.mubr.bf16.gmra.mxu0 %v1067
      %v1757 = vpop.f32.mrf.mxu0
      %v1758 = vadd.f32 0.0, %v1757
      %v1759 = vpop.f32.mrf.mxu0
      %v1760 = vpop.f32.mrf.mxu0
      %v1761 = vadd.f32 0.0, %v1760
      %v1762 = vpop.f32.mrf.mxu0
      %1763 = vmatprep.mubr.bf16.mxu0 0
      %1764 = vmatmul.mubr.bf16.gmra.mxu0 %v1070
      %v1765 = vpop.f32.mrf.mxu0
      %v1766 = vadd.f32 0.0, %v1765
      %v1767 = vpop.f32.mrf.mxu0
      %v1768 = vpop.f32.mrf.mxu0
      %v1769 = vadd.f32 0.0, %v1768
      %v1770 = vpop.f32.mrf.mxu0
      %1771 = vmatprep.mubr.bf16.mxu0 0
      %1772 = vmatmul.mubr.bf16.gmra.mxu0 %v1073
      %v1773 = vpop.f32.mrf.mxu0
      %v1774 = vadd.f32 0.0, %v1773
      %v1775 = vpop.f32.mrf.mxu0
      %v1776 = vpop.f32.mrf.mxu0
      %v1777 = vadd.f32 0.0, %v1776
      %v1778 = vpop.f32.mrf.mxu0
      %1779 = vmatprep.mubr.bf16.mxu0 0
      %1780 = vmatmul.mubr.bf16.gmra.mxu0 %v1076
      %v1781 = vpop.f32.mrf.mxu0
      %v1782 = vadd.f32 0.0, %v1781
      %v1783 = vpop.f32.mrf.mxu0
      %v1784 = vpop.f32.mrf.mxu0
      %v1785 = vadd.f32 0.0, %v1784
      %v1786 = vpop.f32.mrf.mxu0
      %1787 = vmatprep.mubr.bf16.mxu0 0
      %1788 = vmatmul.mubr.bf16.gmra.mxu0 %v1079
      %v1789 = vpop.f32.mrf.mxu0
      %v1790 = vadd.f32 0.0, %v1789
      %v1791 = vpop.f32.mrf.mxu0
      %v1792 = vpop.f32.mrf.mxu0
      %v1793 = vadd.f32 0.0, %v1792
      %v1794 = vpop.f32.mrf.mxu0
      %1795 = vmatprep.mubr.bf16.mxu0 0
      %1796 = vmatmul.mubr.bf16.gmra.mxu0 %v1082
      %v1797 = vpop.f32.mrf.mxu0
      %v1798 = vadd.f32 0.0, %v1797
      %v1799 = vpop.f32.mrf.mxu0
      %v1800 = vpop.f32.mrf.mxu0
      %v1801 = vadd.f32 0.0, %v1800
      %v1802 = vpop.f32.mrf.mxu0
      %1803 = vmatprep.mubr.bf16.mxu0 0
      %1804 = vmatmul.mubr.bf16.gmra.mxu0 %v1085
      %v1805 = vpop.f32.mrf.mxu0
      %v1806 = vadd.f32 0.0, %v1805
      %v1807 = vpop.f32.mrf.mxu0
      %v1808 = vpop.f32.mrf.mxu0
      %v1809 = vadd.f32 0.0, %v1808
      %v1810 = vpop.f32.mrf.mxu0
      %1811 = vmatprep.mubr.bf16.mxu0 0
      %1812 = vmatmul.mubr.bf16.gmra.mxu0 %v1088
      %v1813 = vpop.f32.mrf.mxu0
      %v1814 = vadd.f32 0.0, %v1813
      %v1815 = vpop.f32.mrf.mxu0
      %v1816 = vpop.f32.mrf.mxu0
      %v1817 = vadd.f32 0.0, %v1816
      %v1818 = vpop.f32.mrf.mxu0
      %1819 = vmatprep.mubr.bf16.mxu0 0
      %1820 = vmatmul.mubr.bf16.gmra.mxu0 %v1091
      %v1821 = vpop.f32.mrf.mxu0
      %v1822 = vadd.f32 0.0, %v1821
      %v1823 = vpop.f32.mrf.mxu0
      %v1824 = vpop.f32.mrf.mxu0
      %v1825 = vadd.f32 0.0, %v1824
      %v1826 = vpop.f32.mrf.mxu0
      %1827 = vmatprep.mubr.bf16.mxu0 0
      %1828 = vmatmul.mubr.bf16.gmra.mxu0 %v1094
      %v1829 = vpop.f32.mrf.mxu0
      %v1830 = vadd.f32 0.0, %v1829
      %v1831 = vpop.f32.mrf.mxu0
      %v1832 = vpop.f32.mrf.mxu0
      %v1833 = vadd.f32 0.0, %v1832
      %v1834 = vpop.f32.mrf.mxu0
      %1835 = vmatprep.mubr.bf16.mxu0 0
      %1836 = vmatmul.mubr.bf16.gmra.mxu0 %v1097
      %v1837 = vpop.f32.mrf.mxu0
      %v1838 = vadd.f32 0.0, %v1837
      %v1839 = vpop.f32.mrf.mxu0
      %v1840 = vpop.f32.mrf.mxu0
      %v1841 = vadd.f32 0.0, %v1840
      %v1842 = vpop.f32.mrf.mxu0
      %1843 = vmatprep.mubr.bf16.mxu0 0
      %1844 = vmatmul.mubr.bf16.gmra.mxu0 %v1100
      %v1845 = vpop.f32.mrf.mxu0
      %v1846 = vadd.f32 0.0, %v1845
      %v1847 = vpop.f32.mrf.mxu0
      %v1848 = vpop.f32.mrf.mxu0
      %v1849 = vadd.f32 0.0, %v1848
      %v1850 = vpop.f32.mrf.mxu0
      %1851 = vmatprep.mubr.bf16.mxu0 0
      %1852 = vmatmul.mubr.bf16.gmra.mxu0 %v1103
      %v1853 = vpop.f32.mrf.mxu0
      %v1854 = vadd.f32 0.0, %v1853
      %v1855 = vpop.f32.mrf.mxu0
      %v1856 = vpop.f32.mrf.mxu0
      %v1857 = vadd.f32 0.0, %v1856
      %v1858 = vpop.f32.mrf.mxu0
      %1859 = vmatprep.mubr.bf16.mxu0 0
      %1860 = vmatmul.mubr.bf16.gmra.mxu0 %v1106
      %v1861 = vpop.f32.mrf.mxu0
      %v1862 = vadd.f32 0.0, %v1861
      %v1863 = vpop.f32.mrf.mxu0
      %v1864 = vpop.f32.mrf.mxu0
      %v1865 = vadd.f32 0.0, %v1864
      %v1866 = vpop.f32.mrf.mxu0
      %1867 = vmatprep.mubr.bf16.mxu0 0
      %1868 = vmatmul.mubr.bf16.gmra.mxu0 %v1713
      %v1869 = vpop.f32.mrf.mxu0
      %v1870 = vadd.f32 0.0, %v1869
      %v1871 = vpop.f32.mrf.mxu0
      %v1872 = vpop.f32.mrf.mxu0
      %v1873 = vadd.f32 0.0, %v1872
      %v1874 = vpop.f32.mrf.mxu0
      %1875 = vdwg.mxu0
      %v1876 = vadd.f32 %v1666, %v1750
      %v1877 = vadd.f32 %v1667, %v1753
      %v1878 = vadd.f32 %v1668, %v1758
      %v1879 = vadd.f32 %v1669, %v1761
      %v1880 = vadd.f32 %v1670, %v1766
      %v1881 = vadd.f32 %v1671, %v1769
      %v1882 = vadd.f32 %v1672, %v1774
      %v1883 = vadd.f32 %v1673, %v1777
      %v1884 = vadd.f32 %v1674, %v1782
      %v1885 = vadd.f32 %v1675, %v1785
      %v1886 = vadd.f32 %v1676, %v1790
      %v1887 = vadd.f32 %v1677, %v1793
      %v1888 = vadd.f32 %v1678, %v1798
      %v1889 = vadd.f32 %v1679, %v1801
      %v1890 = vadd.f32 %v1680, %v1806
      %v1891 = vadd.f32 %v1681, %v1809
      %v1892 = vadd.f32 %v1682, %v1814
      %v1893 = vadd.f32 %v1683, %v1817
      %v1894 = vadd.f32 %v1684, %v1822
      %v1895 = vadd.f32 %v1685, %v1825
      %v1896 = vadd.f32 %v1686, %v1830
      %v1897 = vadd.f32 %v1687, %v1833
      %v1898 = vadd.f32 %v1688, %v1838
      %v1899 = vadd.f32 %v1689, %v1841
      %v1900 = vadd.f32 %v1690, %v1846
      %v1901 = vadd.f32 %v1691, %v1849
      %v1902 = vadd.f32 %v1692, %v1854
      %v1903 = vadd.f32 %v1693, %v1857
      %v1904 = vadd.f32 %v1694, %v1862
      %v1905 = vadd.f32 %v1695, %v1865
      %v1906 = vadd.f32 %v1696, %v1870
      %v1907 = vadd.f32 %v1697, %v1873
      %v1909 = vshrl.u32 %v312, 16
      %v1911 = vrot.slane %v1909, 4
      %v1912 = vshll.u32 %v312, 16
      %v1914 = vrot.slane %v1912, 5
      %v1915 = vor.u32 %v1911, %v1914
      %v1916 = vrot.slane %v1915, 4
      %v1918 = vshll.u32 %v313, 16
      %v1920 = vrot.slane %v1918, 5
      %v1921 = vsel %vm322, %v1916, %v1920
      %v1922 = vshrl.u32 %v313, 16
      %v1924 = vrot.slane %v1922, 4
      %v1925 = vor.u32 %v1924, %v1920
      %v1926 = vrot.slane %v1925, 4
      %v1928 = vshll.u32 %v314, 16
      %v1930 = vrot.slane %v1928, 5
      %v1931 = vsel %vm322, %v1926, %v1930
      %s1932 = scalar_lea.vmem %s1, 32
      %v1933 = vld [vmem:[%s1932] sm:$0xf]
      %v1934 = vld [vmem:[%s1932 + $0x4] sm:$0xf]
      %v1935 = vunpack.c.l.b16 %v1921
      %v1936 = vunpack.c.l.b16 %v1931
      %v1937 = vpack.c.b16 %v1936, %v1935
      %v1940 = vunpack.c.l.b16 %v1933
      %v1941 = vunpack.c.l.b16 %v1934
      %v1942 = vpack.c.b16 %v1941, %v1940
      %v1945 = vsel %vm764, %v1937, 0
      %1947 = vmatprep.subr.bf16.mxu0 0
      %1948 = vmatpush1.bf16.msra.mxu0 0
      %1949 = vmatprep.subr.bf16.mxu0 0
      %1950 = vmatpush1.bf16.msra.mxu0 0
      %1951 = vmatprep.subr.bf16.mxu0 0
      %1952 = vmatpush1.bf16.msra.mxu0 0
      %1953 = vmatprep.subr.bf16.mxu0 0
      %1954 = vmatpush1.bf16.msra.mxu0 0
      %1955 = vmatprep.subr.bf16.mxu0 0
      %1956 = vmatpush1.bf16.msra.mxu0 0
      %1957 = vmatprep.subr.bf16.mxu0 0
      %1958 = vmatpush1.bf16.msra.mxu0 0
      %1959 = vmatprep.subr.bf16.mxu0 0
      %1960 = vmatpush1.bf16.msra.mxu0 0
      %1961 = vmatprep.subr.bf16.mxu0 0
      %1962 = vmatpush1.bf16.msra.mxu0 %v1942
      %1963 = vmatprep.subr.bf16.mxu0 0
      %1964 = vmatpush2.bf16.msra.mxu0 0
      %1965 = vmatprep.subr.bf16.mxu0 0
      %1966 = vmatpush2.bf16.msra.mxu0 0
      %1967 = vmatprep.subr.bf16.mxu0 0
      %1968 = vmatpush2.bf16.msra.mxu0 0
      %1969 = vmatprep.subr.bf16.mxu0 0
      %1970 = vmatpush2.bf16.msra.mxu0 0
      %1971 = vmatprep.subr.bf16.mxu0 0
      %1972 = vmatpush2.bf16.msra.mxu0 0
      %1973 = vmatprep.subr.bf16.mxu0 0
      %1974 = vmatpush2.bf16.msra.mxu0 0
      %1975 = vmatprep.subr.bf16.mxu0 0
      %1976 = vmatpush2.bf16.msra.mxu0 0
      %1977 = vmatprep.subr.bf16.mxu0 0
      %1978 = vmatpush2.bf16.msra.mxu0 0
      %1979 = vmatprep.mubr.bf16.mxu0 0
      %1980 = vmatmul.mubr.bf16.gmra.mxu0 %v769
      %v1981 = vpop.f32.mrf.mxu0
      %v1982 = vadd.f32 0.0, %v1981
      %v1983 = vpop.f32.mrf.mxu0
      %v1984 = vpop.f32.mrf.mxu0
      %v1985 = vadd.f32 0.0, %v1984
      %v1986 = vpop.f32.mrf.mxu0
      %1987 = vmatprep.mubr.bf16.mxu0 0
      %1988 = vmatmul.mubr.bf16.gmra.mxu0 %v772
      %v1989 = vpop.f32.mrf.mxu0
      %v1990 = vadd.f32 0.0, %v1989
      %v1991 = vpop.f32.mrf.mxu0
      %v1992 = vpop.f32.mrf.mxu0
      %v1993 = vadd.f32 0.0, %v1992
      %v1994 = vpop.f32.mrf.mxu0
      %1995 = vmatprep.mubr.bf16.mxu0 0
      %1996 = vmatmul.mubr.bf16.gmra.mxu0 %v775
      %v1997 = vpop.f32.mrf.mxu0
      %v1998 = vadd.f32 0.0, %v1997
      %v1999 = vpop.f32.mrf.mxu0
      %v2000 = vpop.f32.mrf.mxu0
      %v2001 = vadd.f32 0.0, %v2000
      %v2002 = vpop.f32.mrf.mxu0
      %2003 = vmatprep.mubr.bf16.mxu0 0
      %2004 = vmatmul.mubr.bf16.gmra.mxu0 %v778
      %v2005 = vpop.f32.mrf.mxu0
      %v2006 = vadd.f32 0.0, %v2005
      %v2007 = vpop.f32.mrf.mxu0
      %v2008 = vpop.f32.mrf.mxu0
      %v2009 = vadd.f32 0.0, %v2008
      %v2010 = vpop.f32.mrf.mxu0
      %2011 = vmatprep.mubr.bf16.mxu0 0
      %2012 = vmatmul.mubr.bf16.gmra.mxu0 %v781
      %v2013 = vpop.f32.mrf.mxu0
      %v2014 = vadd.f32 0.0, %v2013
      %v2015 = vpop.f32.mrf.mxu0
      %v2016 = vpop.f32.mrf.mxu0
      %v2017 = vadd.f32 0.0, %v2016
      %v2018 = vpop.f32.mrf.mxu0
      %2019 = vmatprep.mubr.bf16.mxu0 0
      %2020 = vmatmul.mubr.bf16.gmra.mxu0 %v784
      %v2021 = vpop.f32.mrf.mxu0
      %v2022 = vadd.f32 0.0, %v2021
      %v2023 = vpop.f32.mrf.mxu0
      %v2024 = vpop.f32.mrf.mxu0
      %v2025 = vadd.f32 0.0, %v2024
      %v2026 = vpop.f32.mrf.mxu0
      %2027 = vmatprep.mubr.bf16.mxu0 0
      %2028 = vmatmul.mubr.bf16.gmra.mxu0 %v787
      %v2029 = vpop.f32.mrf.mxu0
      %v2030 = vadd.f32 0.0, %v2029
      %v2031 = vpop.f32.mrf.mxu0
      %v2032 = vpop.f32.mrf.mxu0
      %v2033 = vadd.f32 0.0, %v2032
      %v2034 = vpop.f32.mrf.mxu0
      %2035 = vmatprep.mubr.bf16.mxu0 0
      %2036 = vmatmul.mubr.bf16.gmra.mxu0 %v790
      %v2037 = vpop.f32.mrf.mxu0
      %v2038 = vadd.f32 0.0, %v2037
      %v2039 = vpop.f32.mrf.mxu0
      %v2040 = vpop.f32.mrf.mxu0
      %v2041 = vadd.f32 0.0, %v2040
      %v2042 = vpop.f32.mrf.mxu0
      %2043 = vmatprep.mubr.bf16.mxu0 0
      %2044 = vmatmul.mubr.bf16.gmra.mxu0 %v793
      %v2045 = vpop.f32.mrf.mxu0
      %v2046 = vadd.f32 0.0, %v2045
      %v2047 = vpop.f32.mrf.mxu0
      %v2048 = vpop.f32.mrf.mxu0
      %v2049 = vadd.f32 0.0, %v2048
      %v2050 = vpop.f32.mrf.mxu0
      %2051 = vmatprep.mubr.bf16.mxu0 0
      %2052 = vmatmul.mubr.bf16.gmra.mxu0 %v796
      %v2053 = vpop.f32.mrf.mxu0
      %v2054 = vadd.f32 0.0, %v2053
      %v2055 = vpop.f32.mrf.mxu0
      %v2056 = vpop.f32.mrf.mxu0
      %v2057 = vadd.f32 0.0, %v2056
      %v2058 = vpop.f32.mrf.mxu0
      %2059 = vmatprep.mubr.bf16.mxu0 0
      %2060 = vmatmul.mubr.bf16.gmra.mxu0 %v799
      %v2061 = vpop.f32.mrf.mxu0
      %v2062 = vadd.f32 0.0, %v2061
      %v2063 = vpop.f32.mrf.mxu0
      %v2064 = vpop.f32.mrf.mxu0
      %v2065 = vadd.f32 0.0, %v2064
      %v2066 = vpop.f32.mrf.mxu0
      %2067 = vmatprep.mubr.bf16.mxu0 0
      %2068 = vmatmul.mubr.bf16.gmra.mxu0 %v802
      %v2069 = vpop.f32.mrf.mxu0
      %v2070 = vadd.f32 0.0, %v2069
      %v2071 = vpop.f32.mrf.mxu0
      %v2072 = vpop.f32.mrf.mxu0
      %v2073 = vadd.f32 0.0, %v2072
      %v2074 = vpop.f32.mrf.mxu0
      %2075 = vmatprep.mubr.bf16.mxu0 0
      %2076 = vmatmul.mubr.bf16.gmra.mxu0 %v805
      %v2077 = vpop.f32.mrf.mxu0
      %v2078 = vadd.f32 0.0, %v2077
      %v2079 = vpop.f32.mrf.mxu0
      %v2080 = vpop.f32.mrf.mxu0
      %v2081 = vadd.f32 0.0, %v2080
      %v2082 = vpop.f32.mrf.mxu0
      %2083 = vmatprep.mubr.bf16.mxu0 0
      %2084 = vmatmul.mubr.bf16.gmra.mxu0 %v808
      %v2085 = vpop.f32.mrf.mxu0
      %v2086 = vadd.f32 0.0, %v2085
      %v2087 = vpop.f32.mrf.mxu0
      %v2088 = vpop.f32.mrf.mxu0
      %v2089 = vadd.f32 0.0, %v2088
      %v2090 = vpop.f32.mrf.mxu0
      %2091 = vmatprep.mubr.bf16.mxu0 0
      %2092 = vmatmul.mubr.bf16.gmra.mxu0 %v811
      %v2093 = vpop.f32.mrf.mxu0
      %v2094 = vadd.f32 0.0, %v2093
      %v2095 = vpop.f32.mrf.mxu0
      %v2096 = vpop.f32.mrf.mxu0
      %v2097 = vadd.f32 0.0, %v2096
      %v2098 = vpop.f32.mrf.mxu0
      %2099 = vmatprep.mubr.bf16.mxu0 0
      %2100 = vmatmul.mubr.bf16.gmra.mxu0 %v1945
      %v2101 = vpop.f32.mrf.mxu0
      %v2102 = vadd.f32 0.0, %v2101
      %v2103 = vpop.f32.mrf.mxu0
      %v2104 = vpop.f32.mrf.mxu0
      %v2105 = vadd.f32 0.0, %v2104
      %v2106 = vpop.f32.mrf.mxu0
      %2107 = vdwg.mxu0
      %v2108 = vadd.f32 %v1876, %v1982
      %v2109 = vadd.f32 %v1877, %v1985
      %v2110 = vadd.f32 %v1878, %v1990
      %v2111 = vadd.f32 %v1879, %v1993
      %v2112 = vadd.f32 %v1880, %v1998
      %v2113 = vadd.f32 %v1881, %v2001
      %v2114 = vadd.f32 %v1882, %v2006
      %v2115 = vadd.f32 %v1883, %v2009
      %v2116 = vadd.f32 %v1884, %v2014
      %v2117 = vadd.f32 %v1885, %v2017
      %v2118 = vadd.f32 %v1886, %v2022
      %v2119 = vadd.f32 %v1887, %v2025
      %v2120 = vadd.f32 %v1888, %v2030
      %v2121 = vadd.f32 %v1889, %v2033
      %v2122 = vadd.f32 %v1890, %v2038
      %v2123 = vadd.f32 %v1891, %v2041
      %v2124 = vadd.f32 %v1892, %v2046
      %v2125 = vadd.f32 %v1893, %v2049
      %v2126 = vadd.f32 %v1894, %v2054
      %v2127 = vadd.f32 %v1895, %v2057
      %v2128 = vadd.f32 %v1896, %v2062
      %v2129 = vadd.f32 %v1897, %v2065
      %v2130 = vadd.f32 %v1898, %v2070
      %v2131 = vadd.f32 %v1899, %v2073
      %v2132 = vadd.f32 %v1900, %v2078
      %v2133 = vadd.f32 %v1901, %v2081
      %v2134 = vadd.f32 %v1902, %v2086
      %v2135 = vadd.f32 %v1903, %v2089
      %v2136 = vadd.f32 %v1904, %v2094
      %v2137 = vadd.f32 %v1905, %v2097
      %v2138 = vadd.f32 %v1906, %v2102
      %v2139 = vadd.f32 %v1907, %v2105
      %v2141 = vrot.slane %v312, 5
      %v2142 = vrot.slane %v2141, 4
      %v2143 = vrot.slane %v313, 5
      %v2144 = vsel %vm1287, %v2142, %v2143
      %v2145 = vrot.slane %v2143, 4
      %v2146 = vrot.slane %v314, 5
      %v2147 = vsel %vm1287, %v2145, %v2146
      %s2148 = scalar_lea.vmem %s1, 40
      %v2149 = vld [vmem:[%s2148] sm:$0xf]
      %v2150 = vld [vmem:[%s2148 + $0x4] sm:$0xf]
      %v2151 = vunpack.c.l.b16 %v2144
      %v2152 = vunpack.c.l.b16 %v2147
      %v2153 = vpack.c.b16 %v2152, %v2151
      %v2156 = vunpack.c.l.b16 %v2149
      %v2157 = vunpack.c.l.b16 %v2150
      %v2158 = vpack.c.b16 %v2157, %v2156
      %v2161 = vsel %vm764, %v2153, 0
      %2163 = vmatprep.subr.bf16.mxu0 0
      %2164 = vmatpush1.bf16.msra.mxu0 0
      %2165 = vmatprep.subr.bf16.mxu0 0
      %2166 = vmatpush1.bf16.msra.mxu0 0
      %2167 = vmatprep.subr.bf16.mxu0 0
      %2168 = vmatpush1.bf16.msra.mxu0 0
      %2169 = vmatprep.subr.bf16.mxu0 0
      %2170 = vmatpush1.bf16.msra.mxu0 0
      %2171 = vmatprep.subr.bf16.mxu0 0
      %2172 = vmatpush1.bf16.msra.mxu0 0
      %2173 = vmatprep.subr.bf16.mxu0 0
      %2174 = vmatpush1.bf16.msra.mxu0 0
      %2175 = vmatprep.subr.bf16.mxu0 0
      %2176 = vmatpush1.bf16.msra.mxu0 0
      %2177 = vmatprep.subr.bf16.mxu0 0
      %2178 = vmatpush1.bf16.msra.mxu0 %v2158
      %2179 = vmatprep.subr.bf16.mxu0 0
      %2180 = vmatpush2.bf16.msra.mxu0 0
      %2181 = vmatprep.subr.bf16.mxu0 0
      %2182 = vmatpush2.bf16.msra.mxu0 0
      %2183 = vmatprep.subr.bf16.mxu0 0
      %2184 = vmatpush2.bf16.msra.mxu0 0
      %2185 = vmatprep.subr.bf16.mxu0 0
      %2186 = vmatpush2.bf16.msra.mxu0 0
      %2187 = vmatprep.subr.bf16.mxu0 0
      %2188 = vmatpush2.bf16.msra.mxu0 0
      %2189 = vmatprep.subr.bf16.mxu0 0
      %2190 = vmatpush2.bf16.msra.mxu0 0
      %2191 = vmatprep.subr.bf16.mxu0 0
      %2192 = vmatpush2.bf16.msra.mxu0 0
      %2193 = vmatprep.subr.bf16.mxu0 0
      %2194 = vmatpush2.bf16.msra.mxu0 0
      %2195 = vmatprep.mubr.bf16.mxu0 0
      %2196 = vmatmul.mubr.bf16.gmra.mxu0 %v1461
      %v2197 = vpop.f32.mrf.mxu0
      %v2198 = vadd.f32 0.0, %v2197
      %v2199 = vpop.f32.mrf.mxu0
      %v2200 = vpop.f32.mrf.mxu0
      %v2201 = vadd.f32 0.0, %v2200
      %v2202 = vpop.f32.mrf.mxu0
      %2203 = vmatprep.mubr.bf16.mxu0 0
      %2204 = vmatmul.mubr.bf16.gmra.mxu0 %v1464
      %v2205 = vpop.f32.mrf.mxu0
      %v2206 = vadd.f32 0.0, %v2205
      %v2207 = vpop.f32.mrf.mxu0
      %v2208 = vpop.f32.mrf.mxu0
      %v2209 = vadd.f32 0.0, %v2208
      %v2210 = vpop.f32.mrf.mxu0
      %2211 = vmatprep.mubr.bf16.mxu0 0
      %2212 = vmatmul.mubr.bf16.gmra.mxu0 %v1467
      %v2213 = vpop.f32.mrf.mxu0
      %v2214 = vadd.f32 0.0, %v2213
      %v2215 = vpop.f32.mrf.mxu0
      %v2216 = vpop.f32.mrf.mxu0
      %v2217 = vadd.f32 0.0, %v2216
      %v2218 = vpop.f32.mrf.mxu0
      %2219 = vmatprep.mubr.bf16.mxu0 0
      %2220 = vmatmul.mubr.bf16.gmra.mxu0 %v1470
      %v2221 = vpop.f32.mrf.mxu0
      %v2222 = vadd.f32 0.0, %v2221
      %v2223 = vpop.f32.mrf.mxu0
      %v2224 = vpop.f32.mrf.mxu0
      %v2225 = vadd.f32 0.0, %v2224
      %v2226 = vpop.f32.mrf.mxu0
      %2227 = vmatprep.mubr.bf16.mxu0 0
      %2228 = vmatmul.mubr.bf16.gmra.mxu0 %v1473
      %v2229 = vpop.f32.mrf.mxu0
      %v2230 = vadd.f32 0.0, %v2229
      %v2231 = vpop.f32.mrf.mxu0
      %v2232 = vpop.f32.mrf.mxu0
      %v2233 = vadd.f32 0.0, %v2232
      %v2234 = vpop.f32.mrf.mxu0
      %2235 = vmatprep.mubr.bf16.mxu0 0
      %2236 = vmatmul.mubr.bf16.gmra.mxu0 %v1476
      %v2237 = vpop.f32.mrf.mxu0
      %v2238 = vadd.f32 0.0, %v2237
      %v2239 = vpop.f32.mrf.mxu0
      %v2240 = vpop.f32.mrf.mxu0
      %v2241 = vadd.f32 0.0, %v2240
      %v2242 = vpop.f32.mrf.mxu0
      %2243 = vmatprep.mubr.bf16.mxu0 0
      %2244 = vmatmul.mubr.bf16.gmra.mxu0 %v1479
      %v2245 = vpop.f32.mrf.mxu0
      %v2246 = vadd.f32 0.0, %v2245
      %v2247 = vpop.f32.mrf.mxu0
      %v2248 = vpop.f32.mrf.mxu0
      %v2249 = vadd.f32 0.0, %v2248
      %v2250 = vpop.f32.mrf.mxu0
      %2251 = vmatprep.mubr.bf16.mxu0 0
      %2252 = vmatmul.mubr.bf16.gmra.mxu0 %v1482
      %v2253 = vpop.f32.mrf.mxu0
      %v2254 = vadd.f32 0.0, %v2253
      %v2255 = vpop.f32.mrf.mxu0
      %v2256 = vpop.f32.mrf.mxu0
      %v2257 = vadd.f32 0.0, %v2256
      %v2258 = vpop.f32.mrf.mxu0
      %2259 = vmatprep.mubr.bf16.mxu0 0
      %2260 = vmatmul.mubr.bf16.gmra.mxu0 %v1485
      %v2261 = vpop.f32.mrf.mxu0
      %v2262 = vadd.f32 0.0, %v2261
      %v2263 = vpop.f32.mrf.mxu0
      %v2264 = vpop.f32.mrf.mxu0
      %v2265 = vadd.f32 0.0, %v2264
      %v2266 = vpop.f32.mrf.mxu0
      %2267 = vmatprep.mubr.bf16.mxu0 0
      %2268 = vmatmul.mubr.bf16.gmra.mxu0 %v1488
      %v2269 = vpop.f32.mrf.mxu0
      %v2270 = vadd.f32 0.0, %v2269
      %v2271 = vpop.f32.mrf.mxu0
      %v2272 = vpop.f32.mrf.mxu0
      %v2273 = vadd.f32 0.0, %v2272
      %v2274 = vpop.f32.mrf.mxu0
      %2275 = vmatprep.mubr.bf16.mxu0 0
      %2276 = vmatmul.mubr.bf16.gmra.mxu0 %v1491
      %v2277 = vpop.f32.mrf.mxu0
      %v2278 = vadd.f32 0.0, %v2277
      %v2279 = vpop.f32.mrf.mxu0
      %v2280 = vpop.f32.mrf.mxu0
      %v2281 = vadd.f32 0.0, %v2280
      %v2282 = vpop.f32.mrf.mxu0
      %2283 = vmatprep.mubr.bf16.mxu0 0
      %2284 = vmatmul.mubr.bf16.gmra.mxu0 %v1494
      %v2285 = vpop.f32.mrf.mxu0
      %v2286 = vadd.f32 0.0, %v2285
      %v2287 = vpop.f32.mrf.mxu0
      %v2288 = vpop.f32.mrf.mxu0
      %v2289 = vadd.f32 0.0, %v2288
      %v2290 = vpop.f32.mrf.mxu0
      %2291 = vmatprep.mubr.bf16.mxu0 0
      %2292 = vmatmul.mubr.bf16.gmra.mxu0 %v1497
      %v2293 = vpop.f32.mrf.mxu0
      %v2294 = vadd.f32 0.0, %v2293
      %v2295 = vpop.f32.mrf.mxu0
      %v2296 = vpop.f32.mrf.mxu0
      %v2297 = vadd.f32 0.0, %v2296
      %v2298 = vpop.f32.mrf.mxu0
      %2299 = vmatprep.mubr.bf16.mxu0 0
      %2300 = vmatmul.mubr.bf16.gmra.mxu0 %v1500
      %v2301 = vpop.f32.mrf.mxu0
      %v2302 = vadd.f32 0.0, %v2301
      %v2303 = vpop.f32.mrf.mxu0
      %v2304 = vpop.f32.mrf.mxu0
      %v2305 = vadd.f32 0.0, %v2304
      %v2306 = vpop.f32.mrf.mxu0
      %2307 = vmatprep.mubr.bf16.mxu0 0
      %2308 = vmatmul.mubr.bf16.gmra.mxu0 %v1503
      %v2309 = vpop.f32.mrf.mxu0
      %v2310 = vadd.f32 0.0, %v2309
      %v2311 = vpop.f32.mrf.mxu0
      %v2312 = vpop.f32.mrf.mxu0
      %v2313 = vadd.f32 0.0, %v2312
      %v2314 = vpop.f32.mrf.mxu0
      %2315 = vmatprep.mubr.bf16.mxu0 0
      %2316 = vmatmul.mubr.bf16.gmra.mxu0 %v2161
      %v2317 = vpop.f32.mrf.mxu0
      %v2318 = vadd.f32 0.0, %v2317
      %v2319 = vpop.f32.mrf.mxu0
      %v2320 = vpop.f32.mrf.mxu0
      %v2321 = vadd.f32 0.0, %v2320
      %v2322 = vpop.f32.mrf.mxu0
      %2323 = vdwg.mxu0
      %v2324 = vadd.f32 %v2108, %v2198
      %v2325 = vadd.f32 %v2109, %v2201
      %v2326 = vadd.f32 %v2110, %v2206
      %v2327 = vadd.f32 %v2111, %v2209
      %v2328 = vadd.f32 %v2112, %v2214
      %v2329 = vadd.f32 %v2113, %v2217
      %v2330 = vadd.f32 %v2114, %v2222
      %v2331 = vadd.f32 %v2115, %v2225
      %v2332 = vadd.f32 %v2116, %v2230
      %v2333 = vadd.f32 %v2117, %v2233
      %v2334 = vadd.f32 %v2118, %v2238
      %v2335 = vadd.f32 %v2119, %v2241
      %v2336 = vadd.f32 %v2120, %v2246
      %v2337 = vadd.f32 %v2121, %v2249
      %v2338 = vadd.f32 %v2122, %v2254
      %v2339 = vadd.f32 %v2123, %v2257
      %v2340 = vadd.f32 %v2124, %v2262
      %v2341 = vadd.f32 %v2125, %v2265
      %v2342 = vadd.f32 %v2126, %v2270
      %v2343 = vadd.f32 %v2127, %v2273
      %v2344 = vadd.f32 %v2128, %v2278
      %v2345 = vadd.f32 %v2129, %v2281
      %v2346 = vadd.f32 %v2130, %v2286
      %v2347 = vadd.f32 %v2131, %v2289
      %v2348 = vadd.f32 %v2132, %v2294
      %v2349 = vadd.f32 %v2133, %v2297
      %v2350 = vadd.f32 %v2134, %v2302
      %v2351 = vadd.f32 %v2135, %v2305
      %v2352 = vadd.f32 %v2136, %v2310
      %v2353 = vadd.f32 %v2137, %v2313
      %v2354 = vadd.f32 %v2138, %v2318
      %v2355 = vadd.f32 %v2139, %v2321
      %s2356 = scalar_lea.vmem %s1, 48
      %v2357 = vld [vmem:[%s2356] sm:$0xf]
      %v2358 = vld [vmem:[%s2356 + $0x4] sm:$0xf]
      %v2361 = vunpack.c.l.b16 %v315
      %v2362 = vunpack.c.l.b16 %v316
      %v2363 = vpack.c.b16 %v2362, %v2361
      %v2366 = vunpack.c.l.b16 %v2357
      %v2367 = vunpack.c.l.b16 %v2358
      %v2368 = vpack.c.b16 %v2367, %v2366
      %v2371 = vsel %vm764, %v2363, 0
      %2373 = vmatprep.subr.bf16.mxu0 0
      %2374 = vmatpush1.bf16.msra.mxu0 0
      %2375 = vmatprep.subr.bf16.mxu0 0
      %2376 = vmatpush1.bf16.msra.mxu0 0
      %2377 = vmatprep.subr.bf16.mxu0 0
      %2378 = vmatpush1.bf16.msra.mxu0 0
      %2379 = vmatprep.subr.bf16.mxu0 0
      %2380 = vmatpush1.bf16.msra.mxu0 0
      %2381 = vmatprep.subr.bf16.mxu0 0
      %2382 = vmatpush1.bf16.msra.mxu0 0
      %2383 = vmatprep.subr.bf16.mxu0 0
      %2384 = vmatpush1.bf16.msra.mxu0 0
      %2385 = vmatprep.subr.bf16.mxu0 0
      %2386 = vmatpush1.bf16.msra.mxu0 0
      %2387 = vmatprep.subr.bf16.mxu0 0
      %2388 = vmatpush1.bf16.msra.mxu0 %v2368
      %2389 = vmatprep.subr.bf16.mxu0 0
      %2390 = vmatpush2.bf16.msra.mxu0 0
      %2391 = vmatprep.subr.bf16.mxu0 0
      %2392 = vmatpush2.bf16.msra.mxu0 0
      %2393 = vmatprep.subr.bf16.mxu0 0
      %2394 = vmatpush2.bf16.msra.mxu0 0
      %2395 = vmatprep.subr.bf16.mxu0 0
      %2396 = vmatpush2.bf16.msra.mxu0 0
      %2397 = vmatprep.subr.bf16.mxu0 0
      %2398 = vmatpush2.bf16.msra.mxu0 0
      %2399 = vmatprep.subr.bf16.mxu0 0
      %2400 = vmatpush2.bf16.msra.mxu0 0
      %2401 = vmatprep.subr.bf16.mxu0 0
      %2402 = vmatpush2.bf16.msra.mxu0 0
      %2403 = vmatprep.subr.bf16.mxu0 0
      %2404 = vmatpush2.bf16.msra.mxu0 0
      %2405 = vmatprep.mubr.bf16.mxu0 0
      %2406 = vmatmul.mubr.bf16.gmra.mxu0 %v1067
      %v2407 = vpop.f32.mrf.mxu0
      %v2408 = vadd.f32 0.0, %v2407
      %v2409 = vpop.f32.mrf.mxu0
      %v2410 = vpop.f32.mrf.mxu0
      %v2411 = vadd.f32 0.0, %v2410
      %v2412 = vpop.f32.mrf.mxu0
      %2413 = vmatprep.mubr.bf16.mxu0 0
      %2414 = vmatmul.mubr.bf16.gmra.mxu0 %v1070
      %v2415 = vpop.f32.mrf.mxu0
      %v2416 = vadd.f32 0.0, %v2415
      %v2417 = vpop.f32.mrf.mxu0
      %v2418 = vpop.f32.mrf.mxu0
      %v2419 = vadd.f32 0.0, %v2418
      %v2420 = vpop.f32.mrf.mxu0
      %2421 = vmatprep.mubr.bf16.mxu0 0
      %2422 = vmatmul.mubr.bf16.gmra.mxu0 %v1073
      %v2423 = vpop.f32.mrf.mxu0
      %v2424 = vadd.f32 0.0, %v2423
      %v2425 = vpop.f32.mrf.mxu0
      %v2426 = vpop.f32.mrf.mxu0
      %v2427 = vadd.f32 0.0, %v2426
      %v2428 = vpop.f32.mrf.mxu0
      %2429 = vmatprep.mubr.bf16.mxu0 0
      %2430 = vmatmul.mubr.bf16.gmra.mxu0 %v1076
      %v2431 = vpop.f32.mrf.mxu0
      %v2432 = vadd.f32 0.0, %v2431
      %v2433 = vpop.f32.mrf.mxu0
      %v2434 = vpop.f32.mrf.mxu0
      %v2435 = vadd.f32 0.0, %v2434
      %v2436 = vpop.f32.mrf.mxu0
      %2437 = vmatprep.mubr.bf16.mxu0 0
      %2438 = vmatmul.mubr.bf16.gmra.mxu0 %v1079
      %v2439 = vpop.f32.mrf.mxu0
      %v2440 = vadd.f32 0.0, %v2439
      %v2441 = vpop.f32.mrf.mxu0
      %v2442 = vpop.f32.mrf.mxu0
      %v2443 = vadd.f32 0.0, %v2442
      %v2444 = vpop.f32.mrf.mxu0
      %2445 = vmatprep.mubr.bf16.mxu0 0
      %2446 = vmatmul.mubr.bf16.gmra.mxu0 %v1082
      %v2447 = vpop.f32.mrf.mxu0
      %v2448 = vadd.f32 0.0, %v2447
      %v2449 = vpop.f32.mrf.mxu0
      %v2450 = vpop.f32.mrf.mxu0
      %v2451 = vadd.f32 0.0, %v2450
      %v2452 = vpop.f32.mrf.mxu0
      %2453 = vmatprep.mubr.bf16.mxu0 0
      %2454 = vmatmul.mubr.bf16.gmra.mxu0 %v1085
      %v2455 = vpop.f32.mrf.mxu0
      %v2456 = vadd.f32 0.0, %v2455
      %v2457 = vpop.f32.mrf.mxu0
      %v2458 = vpop.f32.mrf.mxu0
      %v2459 = vadd.f32 0.0, %v2458
      %v2460 = vpop.f32.mrf.mxu0
      %2461 = vmatprep.mubr.bf16.mxu0 0
      %2462 = vmatmul.mubr.bf16.gmra.mxu0 %v1088
      %v2463 = vpop.f32.mrf.mxu0
      %v2464 = vadd.f32 0.0, %v2463
      %v2465 = vpop.f32.mrf.mxu0
      %v2466 = vpop.f32.mrf.mxu0
      %v2467 = vadd.f32 0.0, %v2466
      %v2468 = vpop.f32.mrf.mxu0
      %2469 = vmatprep.mubr.bf16.mxu0 0
      %2470 = vmatmul.mubr.bf16.gmra.mxu0 %v1091
      %v2471 = vpop.f32.mrf.mxu0
      %v2472 = vadd.f32 0.0, %v2471
      %v2473 = vpop.f32.mrf.mxu0
      %v2474 = vpop.f32.mrf.mxu0
      %v2475 = vadd.f32 0.0, %v2474
      %v2476 = vpop.f32.mrf.mxu0
      %2477 = vmatprep.mubr.bf16.mxu0 0
      %2478 = vmatmul.mubr.bf16.gmra.mxu0 %v1094
      %v2479 = vpop.f32.mrf.mxu0
      %v2480 = vadd.f32 0.0, %v2479
      %v2481 = vpop.f32.mrf.mxu0
      %v2482 = vpop.f32.mrf.mxu0
      %v2483 = vadd.f32 0.0, %v2482
      %v2484 = vpop.f32.mrf.mxu0
      %2485 = vmatprep.mubr.bf16.mxu0 0
      %2486 = vmatmul.mubr.bf16.gmra.mxu0 %v1097
      %v2487 = vpop.f32.mrf.mxu0
      %v2488 = vadd.f32 0.0, %v2487
      %v2489 = vpop.f32.mrf.mxu0
      %v2490 = vpop.f32.mrf.mxu0
      %v2491 = vadd.f32 0.0, %v2490
      %v2492 = vpop.f32.mrf.mxu0
      %2493 = vmatprep.mubr.bf16.mxu0 0
      %2494 = vmatmul.mubr.bf16.gmra.mxu0 %v1100
      %v2495 = vpop.f32.mrf.mxu0
      %v2496 = vadd.f32 0.0, %v2495
      %v2497 = vpop.f32.mrf.mxu0
      %v2498 = vpop.f32.mrf.mxu0
      %v2499 = vadd.f32 0.0, %v2498
      %v2500 = vpop.f32.mrf.mxu0
      %2501 = vmatprep.mubr.bf16.mxu0 0
      %2502 = vmatmul.mubr.bf16.gmra.mxu0 %v1103
      %v2503 = vpop.f32.mrf.mxu0
      %v2504 = vadd.f32 0.0, %v2503
      %v2505 = vpop.f32.mrf.mxu0
      %v2506 = vpop.f32.mrf.mxu0
      %v2507 = vadd.f32 0.0, %v2506
      %v2508 = vpop.f32.mrf.mxu0
      %2509 = vmatprep.mubr.bf16.mxu0 0
      %2510 = vmatmul.mubr.bf16.gmra.mxu0 %v1106
      %v2511 = vpop.f32.mrf.mxu0
      %v2512 = vadd.f32 0.0, %v2511
      %v2513 = vpop.f32.mrf.mxu0
      %v2514 = vpop.f32.mrf.mxu0
      %v2515 = vadd.f32 0.0, %v2514
      %v2516 = vpop.f32.mrf.mxu0
      %2517 = vmatprep.mubr.bf16.mxu0 0
      %2518 = vmatmul.mubr.bf16.gmra.mxu0 %v1713
      %v2519 = vpop.f32.mrf.mxu0
      %v2520 = vadd.f32 0.0, %v2519
      %v2521 = vpop.f32.mrf.mxu0
      %v2522 = vpop.f32.mrf.mxu0
      %v2523 = vadd.f32 0.0, %v2522
      %v2524 = vpop.f32.mrf.mxu0
      %2525 = vmatprep.mubr.bf16.mxu0 0
      %2526 = vmatmul.mubr.bf16.gmra.mxu0 %v2371
      %v2527 = vpop.f32.mrf.mxu0
      %v2528 = vadd.f32 0.0, %v2527
      %v2529 = vpop.f32.mrf.mxu0
      %v2530 = vpop.f32.mrf.mxu0
      %v2531 = vadd.f32 0.0, %v2530
      %v2532 = vpop.f32.mrf.mxu0
      %2533 = vdwg.mxu0
      %v2534 = vadd.f32 %v2324, %v2408
      %v2535 = vadd.f32 %v2325, %v2411
      %v2536 = vadd.f32 %v2326, %v2416
      %v2537 = vadd.f32 %v2327, %v2419
      %v2538 = vadd.f32 %v2328, %v2424
      %v2539 = vadd.f32 %v2329, %v2427
      %v2540 = vadd.f32 %v2330, %v2432
      %v2541 = vadd.f32 %v2331, %v2435
      %v2542 = vadd.f32 %v2332, %v2440
      %v2543 = vadd.f32 %v2333, %v2443
      %v2544 = vadd.f32 %v2334, %v2448
      %v2545 = vadd.f32 %v2335, %v2451
      %v2546 = vadd.f32 %v2336, %v2456
      %v2547 = vadd.f32 %v2337, %v2459
      %v2548 = vadd.f32 %v2338, %v2464
      %v2549 = vadd.f32 %v2339, %v2467
      %v2550 = vadd.f32 %v2340, %v2472
      %v2551 = vadd.f32 %v2341, %v2475
      %v2552 = vadd.f32 %v2342, %v2480
      %v2553 = vadd.f32 %v2343, %v2483
      %v2554 = vadd.f32 %v2344, %v2488
      %v2555 = vadd.f32 %v2345, %v2491
      %v2556 = vadd.f32 %v2346, %v2496
      %v2557 = vadd.f32 %v2347, %v2499
      %v2558 = vadd.f32 %v2348, %v2504
      %v2559 = vadd.f32 %v2349, %v2507
      %v2560 = vadd.f32 %v2350, %v2512
      %v2561 = vadd.f32 %v2351, %v2515
      %v2562 = vadd.f32 %v2352, %v2520
      %v2563 = vadd.f32 %v2353, %v2523
      %v2564 = vadd.f32 %v2354, %v2528
      %v2565 = vadd.f32 %v2355, %v2531
      %v2567 = vshrl.u32 %v315, 16
      %v2569 = vrot.slane %v2567, 4
      %v2570 = vshll.u32 %v315, 16
      %v2572 = vrot.slane %v2570, 5
      %v2573 = vor.u32 %v2569, %v2572
      %v2574 = vrot.slane %v2573, 4
      %v2576 = vshll.u32 %v316, 16
      %v2578 = vrot.slane %v2576, 5
      %v2579 = vsel %vm322, %v2574, %v2578
      %v2580 = vshrl.u32 %v316, 16
      %v2582 = vrot.slane %v2580, 4
      %v2583 = vor.u32 %v2582, %v2578
      %v2584 = vrot.slane %v2583, 4
      %v2586 = vshll.u32 %v317, 16
      %v2588 = vrot.slane %v2586, 5
      %v2589 = vsel %vm322, %v2584, %v2588
      %s2590 = scalar_lea.vmem %s1, 56
      %v2591 = vld [vmem:[%s2590] sm:$0xf]
      %v2592 = vld [vmem:[%s2590 + $0x4] sm:$0xf]
      %v2593 = vunpack.c.l.b16 %v2579
      %v2594 = vunpack.c.l.b16 %v2589
      %v2595 = vpack.c.b16 %v2594, %v2593
      %v2598 = vunpack.c.l.b16 %v2591
      %v2599 = vunpack.c.l.b16 %v2592
      %v2600 = vpack.c.b16 %v2599, %v2598
      %v2603 = vsel %vm764, %v2595, 0
      %2605 = vmatprep.subr.bf16.mxu0 0
      %2606 = vmatpush1.bf16.msra.mxu0 0
      %2607 = vmatprep.subr.bf16.mxu0 0
      %2608 = vmatpush1.bf16.msra.mxu0 0
      %2609 = vmatprep.subr.bf16.mxu0 0
      %2610 = vmatpush1.bf16.msra.mxu0 0
      %2611 = vmatprep.subr.bf16.mxu0 0
      %2612 = vmatpush1.bf16.msra.mxu0 0
      %2613 = vmatprep.subr.bf16.mxu0 0
      %2614 = vmatpush1.bf16.msra.mxu0 0
      %2615 = vmatprep.subr.bf16.mxu0 0
      %2616 = vmatpush1.bf16.msra.mxu0 0
      %2617 = vmatprep.subr.bf16.mxu0 0
      %2618 = vmatpush1.bf16.msra.mxu0 0
      %2619 = vmatprep.subr.bf16.mxu0 0
      %2620 = vmatpush1.bf16.msra.mxu0 %v2600
      %2621 = vmatprep.subr.bf16.mxu0 0
      %2622 = vmatpush2.bf16.msra.mxu0 0
      %2623 = vmatprep.subr.bf16.mxu0 0
      %2624 = vmatpush2.bf16.msra.mxu0 0
      %2625 = vmatprep.subr.bf16.mxu0 0
      %2626 = vmatpush2.bf16.msra.mxu0 0
      %2627 = vmatprep.subr.bf16.mxu0 0
      %2628 = vmatpush2.bf16.msra.mxu0 0
      %2629 = vmatprep.subr.bf16.mxu0 0
      %2630 = vmatpush2.bf16.msra.mxu0 0
      %2631 = vmatprep.subr.bf16.mxu0 0
      %2632 = vmatpush2.bf16.msra.mxu0 0
      %2633 = vmatprep.subr.bf16.mxu0 0
      %2634 = vmatpush2.bf16.msra.mxu0 0
      %2635 = vmatprep.subr.bf16.mxu0 0
      %2636 = vmatpush2.bf16.msra.mxu0 0
      %2637 = vmatprep.mubr.bf16.mxu0 0
      %2638 = vmatmul.mubr.bf16.gmra.mxu0 %v772
      %v2639 = vpop.f32.mrf.mxu0
      %v2640 = vadd.f32 0.0, %v2639
      %v2641 = vpop.f32.mrf.mxu0
      %v2642 = vpop.f32.mrf.mxu0
      %v2643 = vadd.f32 0.0, %v2642
      %v2644 = vpop.f32.mrf.mxu0
      %2645 = vmatprep.mubr.bf16.mxu0 0
      %2646 = vmatmul.mubr.bf16.gmra.mxu0 %v775
      %v2647 = vpop.f32.mrf.mxu0
      %v2648 = vadd.f32 0.0, %v2647
      %v2649 = vpop.f32.mrf.mxu0
      %v2650 = vpop.f32.mrf.mxu0
      %v2651 = vadd.f32 0.0, %v2650
      %v2652 = vpop.f32.mrf.mxu0
      %2653 = vmatprep.mubr.bf16.mxu0 0
      %2654 = vmatmul.mubr.bf16.gmra.mxu0 %v778
      %v2655 = vpop.f32.mrf.mxu0
      %v2656 = vadd.f32 0.0, %v2655
      %v2657 = vpop.f32.mrf.mxu0
      %v2658 = vpop.f32.mrf.mxu0
      %v2659 = vadd.f32 0.0, %v2658
      %v2660 = vpop.f32.mrf.mxu0
      %2661 = vmatprep.mubr.bf16.mxu0 0
      %2662 = vmatmul.mubr.bf16.gmra.mxu0 %v781
      %v2663 = vpop.f32.mrf.mxu0
      %v2664 = vadd.f32 0.0, %v2663
      %v2665 = vpop.f32.mrf.mxu0
      %v2666 = vpop.f32.mrf.mxu0
      %v2667 = vadd.f32 0.0, %v2666
      %v2668 = vpop.f32.mrf.mxu0
      %2669 = vmatprep.mubr.bf16.mxu0 0
      %2670 = vmatmul.mubr.bf16.gmra.mxu0 %v784
      %v2671 = vpop.f32.mrf.mxu0
      %v2672 = vadd.f32 0.0, %v2671
      %v2673 = vpop.f32.mrf.mxu0
      %v2674 = vpop.f32.mrf.mxu0
      %v2675 = vadd.f32 0.0, %v2674
      %v2676 = vpop.f32.mrf.mxu0
      %2677 = vmatprep.mubr.bf16.mxu0 0
      %2678 = vmatmul.mubr.bf16.gmra.mxu0 %v787
      %v2679 = vpop.f32.mrf.mxu0
      %v2680 = vadd.f32 0.0, %v2679
      %v2681 = vpop.f32.mrf.mxu0
      %v2682 = vpop.f32.mrf.mxu0
      %v2683 = vadd.f32 0.0, %v2682
      %v2684 = vpop.f32.mrf.mxu0
      %2685 = vmatprep.mubr.bf16.mxu0 0
      %2686 = vmatmul.mubr.bf16.gmra.mxu0 %v790
      %v2687 = vpop.f32.mrf.mxu0
      %v2688 = vadd.f32 0.0, %v2687
      %v2689 = vpop.f32.mrf.mxu0
      %v2690 = vpop.f32.mrf.mxu0
      %v2691 = vadd.f32 0.0, %v2690
      %v2692 = vpop.f32.mrf.mxu0
      %2693 = vmatprep.mubr.bf16.mxu0 0
      %2694 = vmatmul.mubr.bf16.gmra.mxu0 %v793
      %v2695 = vpop.f32.mrf.mxu0
      %v2696 = vadd.f32 0.0, %v2695
      %v2697 = vpop.f32.mrf.mxu0
      %v2698 = vpop.f32.mrf.mxu0
      %v2699 = vadd.f32 0.0, %v2698
      %v2700 = vpop.f32.mrf.mxu0
      %2701 = vmatprep.mubr.bf16.mxu0 0
      %2702 = vmatmul.mubr.bf16.gmra.mxu0 %v796
      %v2703 = vpop.f32.mrf.mxu0
      %v2704 = vadd.f32 0.0, %v2703
      %v2705 = vpop.f32.mrf.mxu0
      %v2706 = vpop.f32.mrf.mxu0
      %v2707 = vadd.f32 0.0, %v2706
      %v2708 = vpop.f32.mrf.mxu0
      %2709 = vmatprep.mubr.bf16.mxu0 0
      %2710 = vmatmul.mubr.bf16.gmra.mxu0 %v799
      %v2711 = vpop.f32.mrf.mxu0
      %v2712 = vadd.f32 0.0, %v2711
      %v2713 = vpop.f32.mrf.mxu0
      %v2714 = vpop.f32.mrf.mxu0
      %v2715 = vadd.f32 0.0, %v2714
      %v2716 = vpop.f32.mrf.mxu0
      %2717 = vmatprep.mubr.bf16.mxu0 0
      %2718 = vmatmul.mubr.bf16.gmra.mxu0 %v802
      %v2719 = vpop.f32.mrf.mxu0
      %v2720 = vadd.f32 0.0, %v2719
      %v2721 = vpop.f32.mrf.mxu0
      %v2722 = vpop.f32.mrf.mxu0
      %v2723 = vadd.f32 0.0, %v2722
      %v2724 = vpop.f32.mrf.mxu0
      %2725 = vmatprep.mubr.bf16.mxu0 0
      %2726 = vmatmul.mubr.bf16.gmra.mxu0 %v805
      %v2727 = vpop.f32.mrf.mxu0
      %v2728 = vadd.f32 0.0, %v2727
      %v2729 = vpop.f32.mrf.mxu0
      %v2730 = vpop.f32.mrf.mxu0
      %v2731 = vadd.f32 0.0, %v2730
      %v2732 = vpop.f32.mrf.mxu0
      %2733 = vmatprep.mubr.bf16.mxu0 0
      %2734 = vmatmul.mubr.bf16.gmra.mxu0 %v808
      %v2735 = vpop.f32.mrf.mxu0
      %v2736 = vadd.f32 0.0, %v2735
      %v2737 = vpop.f32.mrf.mxu0
      %v2738 = vpop.f32.mrf.mxu0
      %v2739 = vadd.f32 0.0, %v2738
      %v2740 = vpop.f32.mrf.mxu0
      %2741 = vmatprep.mubr.bf16.mxu0 0
      %2742 = vmatmul.mubr.bf16.gmra.mxu0 %v811
      %v2743 = vpop.f32.mrf.mxu0
      %v2744 = vadd.f32 0.0, %v2743
      %v2745 = vpop.f32.mrf.mxu0
      %v2746 = vpop.f32.mrf.mxu0
      %v2747 = vadd.f32 0.0, %v2746
      %v2748 = vpop.f32.mrf.mxu0
      %2749 = vmatprep.mubr.bf16.mxu0 0
      %2750 = vmatmul.mubr.bf16.gmra.mxu0 %v1945
      %v2751 = vpop.f32.mrf.mxu0
      %v2752 = vadd.f32 0.0, %v2751
      %v2753 = vpop.f32.mrf.mxu0
      %v2754 = vpop.f32.mrf.mxu0
      %v2755 = vadd.f32 0.0, %v2754
      %v2756 = vpop.f32.mrf.mxu0
      %2757 = vmatprep.mubr.bf16.mxu0 0
      %2758 = vmatmul.mubr.bf16.gmra.mxu0 %v2603
      %v2759 = vpop.f32.mrf.mxu0
      %v2760 = vadd.f32 0.0, %v2759
      %v2761 = vpop.f32.mrf.mxu0
      %v2762 = vpop.f32.mrf.mxu0
      %v2763 = vadd.f32 0.0, %v2762
      %v2764 = vpop.f32.mrf.mxu0
      %2765 = vdwg.mxu0
      %v2766 = vadd.f32 %v2534, %v2640
      %v2767 = vadd.f32 %v2535, %v2643
      %v2768 = vadd.f32 %v2536, %v2648
      %v2769 = vadd.f32 %v2537, %v2651
      %v2770 = vadd.f32 %v2538, %v2656
      %v2771 = vadd.f32 %v2539, %v2659
      %v2772 = vadd.f32 %v2540, %v2664
      %v2773 = vadd.f32 %v2541, %v2667
      %v2774 = vadd.f32 %v2542, %v2672
      %v2775 = vadd.f32 %v2543, %v2675
      %v2776 = vadd.f32 %v2544, %v2680
      %v2777 = vadd.f32 %v2545, %v2683
      %v2778 = vadd.f32 %v2546, %v2688
      %v2779 = vadd.f32 %v2547, %v2691
      %v2780 = vadd.f32 %v2548, %v2696
      %v2781 = vadd.f32 %v2549, %v2699
      %v2782 = vadd.f32 %v2550, %v2704
      %v2783 = vadd.f32 %v2551, %v2707
      %v2784 = vadd.f32 %v2552, %v2712
      %v2785 = vadd.f32 %v2553, %v2715
      %v2786 = vadd.f32 %v2554, %v2720
      %v2787 = vadd.f32 %v2555, %v2723
      %v2788 = vadd.f32 %v2556, %v2728
      %v2789 = vadd.f32 %v2557, %v2731
      %v2790 = vadd.f32 %v2558, %v2736
      %v2791 = vadd.f32 %v2559, %v2739
      %v2792 = vadd.f32 %v2560, %v2744
      %v2793 = vadd.f32 %v2561, %v2747
      %v2794 = vadd.f32 %v2562, %v2752
      %v2795 = vadd.f32 %v2563, %v2755
      %v2796 = vadd.f32 %v2564, %v2760
      %v2797 = vadd.f32 %v2565, %v2763
      %v2799 = vrot.slane %v315, 5
      %v2800 = vrot.slane %v2799, 4
      %v2801 = vrot.slane %v316, 5
      %v2802 = vsel %vm1287, %v2800, %v2801
      %v2803 = vrot.slane %v2801, 4
      %v2804 = vrot.slane %v317, 5
      %v2805 = vsel %vm1287, %v2803, %v2804
      %s2806 = scalar_lea.vmem %s1, 64
      %v2807 = vld [vmem:[%s2806] sm:$0xf]
      %v2808 = vld [vmem:[%s2806 + $0x4] sm:$0xf]
      %v2809 = vunpack.c.l.b16 %v2802
      %v2810 = vunpack.c.l.b16 %v2805
      %v2811 = vpack.c.b16 %v2810, %v2809
      %v2814 = vunpack.c.l.b16 %v2807
      %v2815 = vunpack.c.l.b16 %v2808
      %v2816 = vpack.c.b16 %v2815, %v2814
      %v2819 = vsel %vm764, %v2811, 0
      %2821 = vmatprep.subr.bf16.mxu0 0
      %2822 = vmatpush1.bf16.msra.mxu0 0
      %2823 = vmatprep.subr.bf16.mxu0 0
      %2824 = vmatpush1.bf16.msra.mxu0 0
      %2825 = vmatprep.subr.bf16.mxu0 0
      %2826 = vmatpush1.bf16.msra.mxu0 0
      %2827 = vmatprep.subr.bf16.mxu0 0
      %2828 = vmatpush1.bf16.msra.mxu0 0
      %2829 = vmatprep.subr.bf16.mxu0 0
      %2830 = vmatpush1.bf16.msra.mxu0 0
      %2831 = vmatprep.subr.bf16.mxu0 0
      %2832 = vmatpush1.bf16.msra.mxu0 0
      %2833 = vmatprep.subr.bf16.mxu0 0
      %2834 = vmatpush1.bf16.msra.mxu0 0
      %2835 = vmatprep.subr.bf16.mxu0 0
      %2836 = vmatpush1.bf16.msra.mxu0 %v2816
      %2837 = vmatprep.subr.bf16.mxu0 0
      %2838 = vmatpush2.bf16.msra.mxu0 0
      %2839 = vmatprep.subr.bf16.mxu0 0
      %2840 = vmatpush2.bf16.msra.mxu0 0
      %2841 = vmatprep.subr.bf16.mxu0 0
      %2842 = vmatpush2.bf16.msra.mxu0 0
      %2843 = vmatprep.subr.bf16.mxu0 0
      %2844 = vmatpush2.bf16.msra.mxu0 0
      %2845 = vmatprep.subr.bf16.mxu0 0
      %2846 = vmatpush2.bf16.msra.mxu0 0
      %2847 = vmatprep.subr.bf16.mxu0 0
      %2848 = vmatpush2.bf16.msra.mxu0 0
      %2849 = vmatprep.subr.bf16.mxu0 0
      %2850 = vmatpush2.bf16.msra.mxu0 0
      %2851 = vmatprep.subr.bf16.mxu0 0
      %2852 = vmatpush2.bf16.msra.mxu0 0
      %2853 = vmatprep.mubr.bf16.mxu0 0
      %2854 = vmatmul.mubr.bf16.gmra.mxu0 %v1464
      %v2855 = vpop.f32.mrf.mxu0
      %v2856 = vadd.f32 0.0, %v2855
      %v2857 = vpop.f32.mrf.mxu0
      %v2858 = vpop.f32.mrf.mxu0
      %v2859 = vadd.f32 0.0, %v2858
      %v2860 = vpop.f32.mrf.mxu0
      %2861 = vmatprep.mubr.bf16.mxu0 0
      %2862 = vmatmul.mubr.bf16.gmra.mxu0 %v1467
      %v2863 = vpop.f32.mrf.mxu0
      %v2864 = vadd.f32 0.0, %v2863
      %v2865 = vpop.f32.mrf.mxu0
      %v2866 = vpop.f32.mrf.mxu0
      %v2867 = vadd.f32 0.0, %v2866
      %v2868 = vpop.f32.mrf.mxu0
      %2869 = vmatprep.mubr.bf16.mxu0 0
      %2870 = vmatmul.mubr.bf16.gmra.mxu0 %v1470
      %v2871 = vpop.f32.mrf.mxu0
      %v2872 = vadd.f32 0.0, %v2871
      %v2873 = vpop.f32.mrf.mxu0
      %v2874 = vpop.f32.mrf.mxu0
      %v2875 = vadd.f32 0.0, %v2874
      %v2876 = vpop.f32.mrf.mxu0
      %2877 = vmatprep.mubr.bf16.mxu0 0
      %2878 = vmatmul.mubr.bf16.gmra.mxu0 %v1473
      %v2879 = vpop.f32.mrf.mxu0
      %v2880 = vadd.f32 0.0, %v2879
      %v2881 = vpop.f32.mrf.mxu0
      %v2882 = vpop.f32.mrf.mxu0
      %v2883 = vadd.f32 0.0, %v2882
      %v2884 = vpop.f32.mrf.mxu0
      %2885 = vmatprep.mubr.bf16.mxu0 0
      %2886 = vmatmul.mubr.bf16.gmra.mxu0 %v1476
      %v2887 = vpop.f32.mrf.mxu0
      %v2888 = vadd.f32 0.0, %v2887
      %v2889 = vpop.f32.mrf.mxu0
      %v2890 = vpop.f32.mrf.mxu0
      %v2891 = vadd.f32 0.0, %v2890
      %v2892 = vpop.f32.mrf.mxu0
      %2893 = vmatprep.mubr.bf16.mxu0 0
      %2894 = vmatmul.mubr.bf16.gmra.mxu0 %v1479
      %v2895 = vpop.f32.mrf.mxu0
      %v2896 = vadd.f32 0.0, %v2895
      %v2897 = vpop.f32.mrf.mxu0
      %v2898 = vpop.f32.mrf.mxu0
      %v2899 = vadd.f32 0.0, %v2898
      %v2900 = vpop.f32.mrf.mxu0
      %2901 = vmatprep.mubr.bf16.mxu0 0
      %2902 = vmatmul.mubr.bf16.gmra.mxu0 %v1482
      %v2903 = vpop.f32.mrf.mxu0
      %v2904 = vadd.f32 0.0, %v2903
      %v2905 = vpop.f32.mrf.mxu0
      %v2906 = vpop.f32.mrf.mxu0
      %v2907 = vadd.f32 0.0, %v2906
      %v2908 = vpop.f32.mrf.mxu0
      %2909 = vmatprep.mubr.bf16.mxu0 0
      %2910 = vmatmul.mubr.bf16.gmra.mxu0 %v1485
      %v2911 = vpop.f32.mrf.mxu0
      %v2912 = vadd.f32 0.0, %v2911
      %v2913 = vpop.f32.mrf.mxu0
      %v2914 = vpop.f32.mrf.mxu0
      %v2915 = vadd.f32 0.0, %v2914
      %v2916 = vpop.f32.mrf.mxu0
      %2917 = vmatprep.mubr.bf16.mxu0 0
      %2918 = vmatmul.mubr.bf16.gmra.mxu0 %v1488
      %v2919 = vpop.f32.mrf.mxu0
      %v2920 = vadd.f32 0.0, %v2919
      %v2921 = vpop.f32.mrf.mxu0
      %v2922 = vpop.f32.mrf.mxu0
      %v2923 = vadd.f32 0.0, %v2922
      %v2924 = vpop.f32.mrf.mxu0
      %2925 = vmatprep.mubr.bf16.mxu0 0
      %2926 = vmatmul.mubr.bf16.gmra.mxu0 %v1491
      %v2927 = vpop.f32.mrf.mxu0
      %v2928 = vadd.f32 0.0, %v2927
      %v2929 = vpop.f32.mrf.mxu0
      %v2930 = vpop.f32.mrf.mxu0
      %v2931 = vadd.f32 0.0, %v2930
      %v2932 = vpop.f32.mrf.mxu0
      %2933 = vmatprep.mubr.bf16.mxu0 0
      %2934 = vmatmul.mubr.bf16.gmra.mxu0 %v1494
      %v2935 = vpop.f32.mrf.mxu0
      %v2936 = vadd.f32 0.0, %v2935
      %v2937 = vpop.f32.mrf.mxu0
      %v2938 = vpop.f32.mrf.mxu0
      %v2939 = vadd.f32 0.0, %v2938
      %v2940 = vpop.f32.mrf.mxu0
      %2941 = vmatprep.mubr.bf16.mxu0 0
      %2942 = vmatmul.mubr.bf16.gmra.mxu0 %v1497
      %v2943 = vpop.f32.mrf.mxu0
      %v2944 = vadd.f32 0.0, %v2943
      %v2945 = vpop.f32.mrf.mxu0
      %v2946 = vpop.f32.mrf.mxu0
      %v2947 = vadd.f32 0.0, %v2946
      %v2948 = vpop.f32.mrf.mxu0
      %2949 = vmatprep.mubr.bf16.mxu0 0
      %2950 = vmatmul.mubr.bf16.gmra.mxu0 %v1500
      %v2951 = vpop.f32.mrf.mxu0
      %v2952 = vadd.f32 0.0, %v2951
      %v2953 = vpop.f32.mrf.mxu0
      %v2954 = vpop.f32.mrf.mxu0
      %v2955 = vadd.f32 0.0, %v2954
      %v2956 = vpop.f32.mrf.mxu0
      %2957 = vmatprep.mubr.bf16.mxu0 0
      %2958 = vmatmul.mubr.bf16.gmra.mxu0 %v1503
      %v2959 = vpop.f32.mrf.mxu0
      %v2960 = vadd.f32 0.0, %v2959
      %v2961 = vpop.f32.mrf.mxu0
      %v2962 = vpop.f32.mrf.mxu0
      %v2963 = vadd.f32 0.0, %v2962
      %v2964 = vpop.f32.mrf.mxu0
      %2965 = vmatprep.mubr.bf16.mxu0 0
      %2966 = vmatmul.mubr.bf16.gmra.mxu0 %v2161
      %v2967 = vpop.f32.mrf.mxu0
      %v2968 = vadd.f32 0.0, %v2967
      %v2969 = vpop.f32.mrf.mxu0
      %v2970 = vpop.f32.mrf.mxu0
      %v2971 = vadd.f32 0.0, %v2970
      %v2972 = vpop.f32.mrf.mxu0
      %2973 = vmatprep.mubr.bf16.mxu0 0
      %2974 = vmatmul.mubr.bf16.gmra.mxu0 %v2819
      %v2975 = vpop.f32.mrf.mxu0
      %v2976 = vadd.f32 0.0, %v2975
      %v2977 = vpop.f32.mrf.mxu0
      %v2978 = vpop.f32.mrf.mxu0
      %v2979 = vadd.f32 0.0, %v2978
      %v2980 = vpop.f32.mrf.mxu0
      %2981 = vdwg.mxu0
      %v2982 = vadd.f32 %v2766, %v2856
      %v2983 = vadd.f32 %v2767, %v2859
      %v2984 = vadd.f32 %v2768, %v2864
      %v2985 = vadd.f32 %v2769, %v2867
      %v2986 = vadd.f32 %v2770, %v2872
      %v2987 = vadd.f32 %v2771, %v2875
      %v2988 = vadd.f32 %v2772, %v2880
      %v2989 = vadd.f32 %v2773, %v2883
      %v2990 = vadd.f32 %v2774, %v2888
      %v2991 = vadd.f32 %v2775, %v2891
      %v2992 = vadd.f32 %v2776, %v2896
      %v2993 = vadd.f32 %v2777, %v2899
      %v2994 = vadd.f32 %v2778, %v2904
      %v2995 = vadd.f32 %v2779, %v2907
      %v2996 = vadd.f32 %v2780, %v2912
      %v2997 = vadd.f32 %v2781, %v2915
      %v2998 = vadd.f32 %v2782, %v2920
      %v2999 = vadd.f32 %v2783, %v2923
      %v3000 = vadd.f32 %v2784, %v2928
      %v3001 = vadd.f32 %v2785, %v2931
      %v3002 = vadd.f32 %v2786, %v2936
      %v3003 = vadd.f32 %v2787, %v2939
      %v3004 = vadd.f32 %v2788, %v2944
      %v3005 = vadd.f32 %v2789, %v2947
      %v3006 = vadd.f32 %v2790, %v2952
      %v3007 = vadd.f32 %v2791, %v2955
      %v3008 = vadd.f32 %v2792, %v2960
      %v3009 = vadd.f32 %v2793, %v2963
      %v3010 = vadd.f32 %v2794, %v2968
      %v3011 = vadd.f32 %v2795, %v2971
      %v3012 = vadd.f32 %v2796, %v2976
      %v3013 = vadd.f32 %v2797, %v2979
      %v3014 = vld [vmem:[%s2] sm:$0x1]
      %v3016 = vlaneseq
      %v3017 = vshrl.u32 %v3016, 7
      %v3018 = vsub.s32 0, %v3017
      %v3019 = vrot.slane %v3014, %v3018
      %v3021 = vadd.f32 %v2982, %v3019
      %v3022 = vadd.f32 %v2983, %v3019
      %v3023 = vadd.f32 %v2984, %v3019
      %v3024 = vadd.f32 %v2985, %v3019
      %v3025 = vadd.f32 %v2986, %v3019
      %v3026 = vadd.f32 %v2987, %v3019
      %v3027 = vadd.f32 %v2988, %v3019
      %v3028 = vadd.f32 %v2989, %v3019
      %v3029 = vadd.f32 %v2990, %v3019
      %v3030 = vadd.f32 %v2991, %v3019
      %v3031 = vadd.f32 %v2992, %v3019
      %v3032 = vadd.f32 %v2993, %v3019
      %v3033 = vadd.f32 %v2994, %v3019
      %v3034 = vadd.f32 %v2995, %v3019
      %v3035 = vadd.f32 %v2996, %v3019
      %v3036 = vadd.f32 %v2997, %v3019
      %v3037 = vadd.f32 %v2998, %v3019
      %v3038 = vadd.f32 %v2999, %v3019
      %v3039 = vadd.f32 %v3000, %v3019
      %v3040 = vadd.f32 %v3001, %v3019
      %v3041 = vadd.f32 %v3002, %v3019
      %v3042 = vadd.f32 %v3003, %v3019
      %v3043 = vadd.f32 %v3004, %v3019
      %v3044 = vadd.f32 %v3005, %v3019
      %v3045 = vadd.f32 %v3006, %v3019
      %v3046 = vadd.f32 %v3007, %v3019
      %v3047 = vadd.f32 %v3008, %v3019
      %v3048 = vadd.f32 %v3009, %v3019
      %v3049 = vadd.f32 %v3010, %v3019
      %v3050 = vadd.f32 %v3011, %v3019
      %v3051 = vadd.f32 %v3012, %v3019
      %v3052 = vadd.f32 %v3013, %v3019
      %v3053 = vsel %vm764, %v3021, 0.0
      %v3054 = vsel %vm764, %v3022, 0.0
      %v3055 = vadd.f32 %v3053, %v3054
      %v3056 = vsel %vm764, %v3023, 0.0
      %v3057 = vadd.f32 %v3055, %v3056
      %v3058 = vsel %vm764, %v3024, 0.0
      %v3059 = vadd.f32 %v3057, %v3058
      %v3060 = vsel %vm764, %v3025, 0.0
      %v3061 = vadd.f32 %v3059, %v3060
      %v3062 = vsel %vm764, %v3026, 0.0
      %v3063 = vadd.f32 %v3061, %v3062
      %v3064 = vsel %vm764, %v3027, 0.0
      %v3065 = vadd.f32 %v3063, %v3064
      %v3066 = vsel %vm764, %v3028, 0.0
      %v3067 = vadd.f32 %v3065, %v3066
      %v3068 = vsel %vm764, %v3029, 0.0
      %v3069 = vadd.f32 %v3067, %v3068
      %v3070 = vsel %vm764, %v3030, 0.0
      %v3071 = vadd.f32 %v3069, %v3070
      %v3072 = vsel %vm764, %v3031, 0.0
      %v3073 = vadd.f32 %v3071, %v3072
      %v3074 = vsel %vm764, %v3032, 0.0
      %v3075 = vadd.f32 %v3073, %v3074
      %v3076 = vsel %vm764, %v3033, 0.0
      %v3077 = vadd.f32 %v3075, %v3076
      %v3078 = vsel %vm764, %v3034, 0.0
      %v3079 = vadd.f32 %v3077, %v3078
      %v3080 = vsel %vm764, %v3035, 0.0
      %v3081 = vadd.f32 %v3079, %v3080
      %v3082 = vsel %vm764, %v3036, 0.0
      %v3083 = vadd.f32 %v3081, %v3082
      %v3084 = vsel %vm764, %v3037, 0.0
      %v3085 = vadd.f32 %v3083, %v3084
      %v3086 = vsel %vm764, %v3038, 0.0
      %v3087 = vadd.f32 %v3085, %v3086
      %v3088 = vsel %vm764, %v3039, 0.0
      %v3089 = vadd.f32 %v3087, %v3088
      %v3090 = vsel %vm764, %v3040, 0.0
      %v3091 = vadd.f32 %v3089, %v3090
      %v3092 = vsel %vm764, %v3041, 0.0
      %v3093 = vadd.f32 %v3091, %v3092
      %v3094 = vsel %vm764, %v3042, 0.0
      %v3095 = vadd.f32 %v3093, %v3094
      %v3096 = vsel %vm764, %v3043, 0.0
      %v3097 = vadd.f32 %v3095, %v3096
      %v3098 = vsel %vm764, %v3044, 0.0
      %v3099 = vadd.f32 %v3097, %v3098
      %v3100 = vsel %vm764, %v3045, 0.0
      %v3101 = vadd.f32 %v3099, %v3100
      %v3102 = vsel %vm764, %v3046, 0.0
      %v3103 = vadd.f32 %v3101, %v3102
      %v3104 = vsel %vm764, %v3047, 0.0
      %v3105 = vadd.f32 %v3103, %v3104
      %v3106 = vsel %vm764, %v3048, 0.0
      %v3107 = vadd.f32 %v3105, %v3106
      %v3108 = vsel %vm764, %v3049, 0.0
      %v3109 = vadd.f32 %v3107, %v3108
      %v3110 = vsel %vm764, %v3050, 0.0
      %v3111 = vadd.f32 %v3109, %v3110
      %v3112 = vsel %vm764, %v3051, 0.0
      %v3113 = vadd.f32 %v3111, %v3112
      %v3114 = vsel %vm764, %v3052, 0.0
      %v3115 = vadd.f32 %v3113, %v3114
      %v3116 = vrot.slane %v3115, 4
      %v3117 = vadd.f32 %v3115, %v3116
      %v3118 = vrot.slane %v3117, 2
      %v3119 = vadd.f32 %v3117, %v3118
      %v3120 = vrot.slane %v3119, 1
      %v3121 = vadd.f32 %v3119, %v3120
      %vm3122 = vcmask 122880
      %3123 = vst.msk [vmem:[%s262] sm:$0x1] %vm3122, %v3121
      %v3124 = vmul.f32 %v3021, %v3021
      %v3125 = vmul.f32 %v3022, %v3022
      %v3126 = vmul.f32 %v3023, %v3023
      %v3127 = vmul.f32 %v3024, %v3024
      %v3128 = vmul.f32 %v3025, %v3025
      %v3129 = vmul.f32 %v3026, %v3026
      %v3130 = vmul.f32 %v3027, %v3027
      %v3131 = vmul.f32 %v3028, %v3028
      %v3132 = vmul.f32 %v3029, %v3029
      %v3133 = vmul.f32 %v3030, %v3030
      %v3134 = vmul.f32 %v3031, %v3031
      %v3135 = vmul.f32 %v3032, %v3032
      %v3136 = vmul.f32 %v3033, %v3033
      %v3137 = vmul.f32 %v3034, %v3034
      %v3138 = vmul.f32 %v3035, %v3035
      %v3139 = vmul.f32 %v3036, %v3036
      %v3140 = vmul.f32 %v3037, %v3037
      %v3141 = vmul.f32 %v3038, %v3038
      %v3142 = vmul.f32 %v3039, %v3039
      %v3143 = vmul.f32 %v3040, %v3040
      %v3144 = vmul.f32 %v3041, %v3041
      %v3145 = vmul.f32 %v3042, %v3042
      %v3146 = vmul.f32 %v3043, %v3043
      %v3147 = vmul.f32 %v3044, %v3044
      %v3148 = vmul.f32 %v3045, %v3045
      %v3149 = vmul.f32 %v3046, %v3046
      %v3150 = vmul.f32 %v3047, %v3047
      %v3151 = vmul.f32 %v3048, %v3048
      %v3152 = vmul.f32 %v3049, %v3049
      %v3153 = vmul.f32 %v3050, %v3050
      %v3154 = vmul.f32 %v3051, %v3051
      %v3155 = vmul.f32 %v3052, %v3052
      %v3156 = vsel %vm764, %v3124, 0.0
      %v3157 = vsel %vm764, %v3125, 0.0
      %v3158 = vadd.f32 %v3156, %v3157
      %v3159 = vsel %vm764, %v3126, 0.0
      %v3160 = vadd.f32 %v3158, %v3159
      %v3161 = vsel %vm764, %v3127, 0.0
      %v3162 = vadd.f32 %v3160, %v3161
      %v3163 = vsel %vm764, %v3128, 0.0
      %v3164 = vadd.f32 %v3162, %v3163
      %v3165 = vsel %vm764, %v3129, 0.0
      %v3166 = vadd.f32 %v3164, %v3165
      %v3167 = vsel %vm764, %v3130, 0.0
      %v3168 = vadd.f32 %v3166, %v3167
      %v3169 = vsel %vm764, %v3131, 0.0
      %v3170 = vadd.f32 %v3168, %v3169
      %v3171 = vsel %vm764, %v3132, 0.0
      %v3172 = vadd.f32 %v3170, %v3171
      %v3173 = vsel %vm764, %v3133, 0.0
      %v3174 = vadd.f32 %v3172, %v3173
      %v3175 = vsel %vm764, %v3134, 0.0
      %v3176 = vadd.f32 %v3174, %v3175
      %v3177 = vsel %vm764, %v3135, 0.0
      %v3178 = vadd.f32 %v3176, %v3177
      %v3179 = vsel %vm764, %v3136, 0.0
      %v3180 = vadd.f32 %v3178, %v3179
      %v3181 = vsel %vm764, %v3137, 0.0
      %v3182 = vadd.f32 %v3180, %v3181
      %v3183 = vsel %vm764, %v3138, 0.0
      %v3184 = vadd.f32 %v3182, %v3183
      %v3185 = vsel %vm764, %v3139, 0.0
      %v3186 = vadd.f32 %v3184, %v3185
      %v3187 = vsel %vm764, %v3140, 0.0
      %v3188 = vadd.f32 %v3186, %v3187
      %v3189 = vsel %vm764, %v3141, 0.0
      %v3190 = vadd.f32 %v3188, %v3189
      %v3191 = vsel %vm764, %v3142, 0.0
      %v3192 = vadd.f32 %v3190, %v3191
      %v3193 = vsel %vm764, %v3143, 0.0
      %v3194 = vadd.f32 %v3192, %v3193
      %v3195 = vsel %vm764, %v3144, 0.0
      %v3196 = vadd.f32 %v3194, %v3195
      %v3197 = vsel %vm764, %v3145, 0.0
      %v3198 = vadd.f32 %v3196, %v3197
      %v3199 = vsel %vm764, %v3146, 0.0
      %v3200 = vadd.f32 %v3198, %v3199
      %v3201 = vsel %vm764, %v3147, 0.0
      %v3202 = vadd.f32 %v3200, %v3201
      %v3203 = vsel %vm764, %v3148, 0.0
      %v3204 = vadd.f32 %v3202, %v3203
      %v3205 = vsel %vm764, %v3149, 0.0
      %v3206 = vadd.f32 %v3204, %v3205
      %v3207 = vsel %vm764, %v3150, 0.0
      %v3208 = vadd.f32 %v3206, %v3207
      %v3209 = vsel %vm764, %v3151, 0.0
      %v3210 = vadd.f32 %v3208, %v3209
      %v3211 = vsel %vm764, %v3152, 0.0
      %v3212 = vadd.f32 %v3210, %v3211
      %v3213 = vsel %vm764, %v3153, 0.0
      %v3214 = vadd.f32 %v3212, %v3213
      %v3215 = vsel %vm764, %v3154, 0.0
      %v3216 = vadd.f32 %v3214, %v3215
      %v3217 = vsel %vm764, %v3155, 0.0
      %v3218 = vadd.f32 %v3216, %v3217
      %v3219 = vrot.slane %v3218, 4
      %v3220 = vadd.f32 %v3218, %v3219
      %v3221 = vrot.slane %v3220, 2
      %v3222 = vadd.f32 %v3220, %v3221
      %v3223 = vrot.slane %v3222, 1
      %v3224 = vadd.f32 %v3222, %v3223
      %3225 = vst.msk [vmem:[%s262 + $0x1] sm:$0x1] %vm3122, %v3224
      %v3226 = vpack.c.bf16 %v3022, %v3021
      %v3227 = vpack.c.bf16 %v3024, %v3023
      %v3228 = vpack.c.bf16 %v3026, %v3025
      %v3229 = vpack.c.bf16 %v3028, %v3027
      %v3230 = vpack.c.bf16 %v3030, %v3029
      %v3231 = vpack.c.bf16 %v3032, %v3031
      %v3232 = vpack.c.bf16 %v3034, %v3033
      %v3233 = vpack.c.bf16 %v3036, %v3035
      %v3234 = vpack.c.bf16 %v3038, %v3037
      %v3235 = vpack.c.bf16 %v3040, %v3039
      %v3236 = vpack.c.bf16 %v3042, %v3041
      %v3237 = vpack.c.bf16 %v3044, %v3043
      %v3238 = vpack.c.bf16 %v3046, %v3045
      %v3239 = vpack.c.bf16 %v3048, %v3047
      %v3240 = vpack.c.bf16 %v3050, %v3049
      %v3241 = vpack.c.bf16 %v3052, %v3051
      %v3258 = vunpack.c.l.b16 %v3226
      %v3259 = vunpack.c.h.b16 %v3226
      %v3260 = vunpack.c.l.b16 %v3227
      %v3261 = vunpack.c.h.b16 %v3227
      %v3262 = vunpack.c.l.b16 %v3228
      %v3263 = vunpack.c.h.b16 %v3228
      %v3264 = vunpack.c.l.b16 %v3229
      %v3265 = vunpack.c.h.b16 %v3229
      %v3266 = vunpack.c.l.b16 %v3230
      %v3267 = vunpack.c.h.b16 %v3230
      %v3268 = vunpack.c.l.b16 %v3231
      %v3269 = vunpack.c.h.b16 %v3231
      %v3270 = vunpack.c.l.b16 %v3232
      %v3271 = vunpack.c.h.b16 %v3232
      %v3272 = vunpack.c.l.b16 %v3233
      %v3273 = vunpack.c.h.b16 %v3233
      %v3274 = vunpack.c.l.b16 %v3234
      %v3275 = vunpack.c.h.b16 %v3234
      %v3276 = vunpack.c.l.b16 %v3235
      %v3277 = vunpack.c.h.b16 %v3235
      %v3278 = vunpack.c.l.b16 %v3236
      %v3279 = vunpack.c.h.b16 %v3236
      %v3280 = vunpack.c.l.b16 %v3237
      %v3281 = vunpack.c.h.b16 %v3237
      %v3282 = vunpack.c.l.b16 %v3238
      %v3283 = vunpack.c.h.b16 %v3238
      %v3284 = vunpack.c.l.b16 %v3239
      %v3285 = vunpack.c.h.b16 %v3239
      %v3286 = vunpack.c.l.b16 %v3240
      %v3287 = vunpack.c.h.b16 %v3240
      %v3288 = vunpack.c.l.b16 %v3241
      %v3289 = vunpack.c.h.b16 %v3241
      %v3290 = vpack.c.b16 %v3258, %v3258
      %v3291 = vpack.c.b16 %v3259, %v3259
      %v3292 = vpack.c.b16 %v3260, %v3260
      %v3293 = vpack.c.b16 %v3261, %v3261
      %v3294 = vpack.c.b16 %v3262, %v3262
      %v3295 = vpack.c.b16 %v3263, %v3263
      %v3296 = vpack.c.b16 %v3264, %v3264
      %v3297 = vpack.c.b16 %v3265, %v3265
      %v3298 = vpack.c.b16 %v3266, %v3266
      %v3299 = vpack.c.b16 %v3267, %v3267
      %v3300 = vpack.c.b16 %v3268, %v3268
      %v3301 = vpack.c.b16 %v3269, %v3269
      %v3302 = vpack.c.b16 %v3270, %v3270
      %v3303 = vpack.c.b16 %v3271, %v3271
      %v3304 = vpack.c.b16 %v3272, %v3272
      %v3305 = vpack.c.b16 %v3273, %v3273
      %v3306 = vpack.c.b16 %v3274, %v3274
      %v3307 = vpack.c.b16 %v3275, %v3275
      %v3308 = vpack.c.b16 %v3276, %v3276
      %v3309 = vpack.c.b16 %v3277, %v3277
      %v3310 = vpack.c.b16 %v3278, %v3278
      %v3311 = vpack.c.b16 %v3279, %v3279
      %v3312 = vpack.c.b16 %v3280, %v3280
      %v3313 = vpack.c.b16 %v3281, %v3281
      %v3314 = vpack.c.b16 %v3282, %v3282
      %v3315 = vpack.c.b16 %v3283, %v3283
      %v3316 = vpack.c.b16 %v3284, %v3284
      %v3317 = vpack.c.b16 %v3285, %v3285
      %v3318 = vpack.c.b16 %v3286, %v3286
      %v3319 = vpack.c.b16 %v3287, %v3287
      %v3320 = vpack.c.b16 %v3288, %v3288
      %v3321 = vpack.c.b16 %v3289, %v3289
      %vm3354 = vcmask 125952
      %3355 = vst.msk [vmem:[%s258] sm:$0xf] %vm3354, %v3290
      %3356 = vst.msk [vmem:[%s258 + $0x4] sm:$0xf] %vm3354, %v3291
      %3357 = vst.msk [vmem:[%s258 + $0x8] sm:$0xf] %vm3354, %v3292
      %3358 = vst.msk [vmem:[%s258 + $0xc] sm:$0xf] %vm3354, %v3293
      %3359 = vst.msk [vmem:[%s258 + $0x10] sm:$0xf] %vm3354, %v3294
      %3360 = vst.msk [vmem:[%s258 + $0x14] sm:$0xf] %vm3354, %v3295
      %3361 = vst.msk [vmem:[%s258 + $0x18] sm:$0xf] %vm3354, %v3296
      %3362 = vst.msk [vmem:[%s258 + $0x1c] sm:$0xf] %vm3354, %v3297
      %3363 = vst.msk [vmem:[%s258 + $0x20] sm:$0xf] %vm3354, %v3298
      %3364 = vst.msk [vmem:[%s258 + $0x24] sm:$0xf] %vm3354, %v3299
      %3365 = vst.msk [vmem:[%s258 + $0x28] sm:$0xf] %vm3354, %v3300
      %3366 = vst.msk [vmem:[%s258 + $0x2c] sm:$0xf] %vm3354, %v3301
      %3367 = vst.msk [vmem:[%s258 + $0x30] sm:$0xf] %vm3354, %v3302
      %3368 = vst.msk [vmem:[%s258 + $0x34] sm:$0xf] %vm3354, %v3303
      %3369 = vst.msk [vmem:[%s258 + $0x38] sm:$0xf] %vm3354, %v3304
      %3370 = vst.msk [vmem:[%s258 + $0x3c] sm:$0xf] %vm3354, %v3305
      %3371 = vst.msk [vmem:[%s258 + $0x40] sm:$0xf] %vm3354, %v3306
      %3372 = vst.msk [vmem:[%s258 + $0x44] sm:$0xf] %vm3354, %v3307
      %3373 = vst.msk [vmem:[%s258 + $0x48] sm:$0xf] %vm3354, %v3308
      %3374 = vst.msk [vmem:[%s258 + $0x4c] sm:$0xf] %vm3354, %v3309
      %3375 = vst.msk [vmem:[%s258 + $0x50] sm:$0xf] %vm3354, %v3310
      %3376 = vst.msk [vmem:[%s258 + $0x54] sm:$0xf] %vm3354, %v3311
      %3377 = vst.msk [vmem:[%s258 + $0x58] sm:$0xf] %vm3354, %v3312
      %3378 = vst.msk [vmem:[%s258 + $0x5c] sm:$0xf] %vm3354, %v3313
      %3379 = vst.msk [vmem:[%s258 + $0x60] sm:$0xf] %vm3354, %v3314
      %3380 = vst.msk [vmem:[%s258 + $0x64] sm:$0xf] %vm3354, %v3315
      %3381 = vst.msk [vmem:[%s258 + $0x68] sm:$0xf] %vm3354, %v3316
      %3382 = vst.msk [vmem:[%s258 + $0x6c] sm:$0xf] %vm3354, %v3317
      %3383 = vst.msk [vmem:[%s258 + $0x70] sm:$0xf] %vm3354, %v3318
      %3384 = vst.msk [vmem:[%s258 + $0x74] sm:$0xf] %vm3354, %v3319
      %3385 = vst.msk [vmem:[%s258 + $0x78] sm:$0xf] %vm3354, %v3320
      %3386 = vst.msk [vmem:[%s258 + $0x7c] sm:$0xf] %vm3354, %v3321
      %p3387 = scmp.lt.s32.totalorder %s18, 1
      %s3388 = scalar_select %p3387, %s18, 1
      %s3389 = smul.addr %s3388, 32
      %s3390 = smul.addr %s3389, 4
      %s3391 = scalar_lea.vmem %s5, %s3390
      %p3392 = scmp.lt.s32.totalorder %s18, 1
      %s3393 = scalar_select %p3392, %s18, 1
      %s3394 = smul.addr %s3393, 2
      %s3395 = scalar_lea.vmem %s6, %s3394
      // Predicated region
      $region41: #{up_forward.5} parent=39 // pred_check
        %p3396 = pneg %p146
      $region42: #{up_forward.5} parent=39 // pred_check_branch
        %3398 = sbr.rel (%p3396) target = $region44
      $region43: #{up_forward.5} parent=39 // pred_region
        _
      $region44: #{up_forward.5} parent=39 // pred_fallthru
        _
      // Predicated region
      $region45: #{up_forward.5} parent=39 // pred_check
        %p3399 = pneg %p172
      $region46: #{up_forward.5} parent=39 // pred_check_branch
        %3401 = sbr.rel (%p3399) target = $region48
      $region47: #{up_forward.5} parent=39 // pred_region
        _
      $region48: #{up_forward.5} parent=39 // pred_fallthru
        _
    $region40: #{up_forward.5} parent=5 // pred_fallthru
      _
    %p3402 = scmp.le.s32.totalorder 2, %s13
    // Predicated region
    $region49: #{up_forward.5} parent=5 // pred_check
      %p3403 = pneg %p3402
    $region50: #{up_forward.5} parent=5 // pred_check_branch
      %3405 = sbr.rel (%p3403) target = $region52
    $region51: #{up_forward.5} parent=5 // pred_region
      %s3406 = ssub.s32 %s13, 2
      // Predicated region
      $region53: #{up_forward.5} parent=51 // pred_check
        %p3407 = pneg %p152
      $region54: #{up_forward.5} parent=51 // pred_check_branch
        %3409 = sbr.rel (%p3407) target = $region56
      $region55: #{up_forward.5} parent=51 // pred_region
        %p3410 = scmp.lt.s32.totalorder %s19, 1
        %s3411 = scalar_select %p3410, %s19, 1
        %s3412 = smul.addr %s3411, 32
        %s3413 = smul.addr %s3412, 4
        %s3414 = scalar_lea.vmem %s5, %s3413
      $region56: #{up_forward.5} parent=51 // pred_fallthru
        _
      // Predicated region
      $region57: #{up_forward.5} parent=51 // pred_check
        %p3415 = pneg %p178
      $region58: #{up_forward.5} parent=51 // pred_check_branch
        %3417 = sbr.rel (%p3415) target = $region60
      $region59: #{up_forward.5} parent=51 // pred_region
        %p3418 = scmp.lt.s32.totalorder %s19, 1
        %s3419 = scalar_select %p3418, %s19, 1
        %s3420 = smul.addr %s3419, 2
        %s3421 = scalar_lea.vmem %s6, %s3420
      $region60: #{up_forward.5} parent=51 // pred_fallthru
        _
    $region52: #{up_forward.5} parent=5 // pred_fallthru
      _
  $region6: #{up_forward.5} parent=0 // loop_footer
    %s17 = sadd.s32 1, %s13
  $region7: #{up_forward.5} parent=0 // loop_footer_branch
    %12 = sbr.rel target = $region3
  $region8: #{up_forward.5} parent=0 // loop_exit
    _

// kernel: up_forward.6
$region0: #{up_forward.6}
  #allocation0 [shape = 'u32[]', space=smem, size = 0x4, offset = 0x4, fixed_abs, tag = 'smem constant byte address 0x4 - core index']
  #allocation1 [shape = 'u32[144,128]{1,0:T(1,128)}', space=vmem, size = 0x12000, scoped, tag = 'internal scratch']
  %s0 = inlined_call_operand.vmem [shape: bf16[2,18,18,16], index: 0, kind: input, shape index: {}]
  %s1 = inlined_call_operand.vmem [shape: bf16[9,16,16], index: 1, kind: input, shape index: {}]
  %s2 = inlined_call_operand.vmem [shape: f32[1,16], index: 2, kind: input, shape index: {}]
  %s3 = inlined_call_operand.vmem [shape: f32[1,16], index: 3, kind: input, shape index: {}]
  %s4 = inlined_call_operand.vmem [shape: f32[1,16], index: 4, kind: input, shape index: {}]
  %s5 = inlined_call_operand.vmem [shape: bf16[2,16,16,16], index: 5, kind: output, shape index: {0}]
  %s6 = inlined_call_operand.vmem [shape: f32[2,2,16], index: 6, kind: output, shape index: {1}]
  %7 = xla_tuple %s5, %s6
  %s8 = sld [smem:[#allocation0]]
  $region61: #{up_forward.6} parent=0
    _
  %s10 = ssub.s32 1, %s8
  %s11 = scalar_select 0, %s10, %s8
  loop: start=0, step=1, limit=4
  $region2: #{up_forward.6} parent=0 // loop_pre_header
    _
  $region3: #{up_forward.6} parent=0 // loop_header
    %s13 = sphi 0, %s17
    %p14 = scmp.ge.s32.totalorder %s13, 4
    %s23 = sphi 0, %s25
    %s26 = sphi 0, %s23
    %s27 = sphi 0, %s26
    %s43 = sphi 0, %s27
    %s47 = sphi 0, %s47
    %s49 = sphi 0, %s47
    %s50 = sphi 0, %s49
    %s64 = sphi 0, %s50
    %s68 = sphi 0, %s68
    %s70 = sphi 0, %s68
    %s71 = sphi 0, %s70
    %s85 = sphi 0, %s71
    %s89 = sphi 0, %s89
    %s91 = sphi 0, %s89
    %s92 = sphi 0, %s91
    %s106 = sphi 0, %s92
    %s110 = sphi 0, %s110
    %s112 = sphi 0, %s110
    %s113 = sphi 0, %s112
    %s127 = sphi 0, %s113
    %s133 = sphi 0, %s135
    %s136 = sphi 0, %s133
    %s137 = sphi 0, %s136
    %s153 = sphi 0, %s137
    %s159 = sphi 0, %s161
    %s162 = sphi 0, %s159
    %s163 = sphi 0, %s162
    %s179 = sphi 0, %s163
  $region4: #{up_forward.6} parent=0 // loop_header_branch
    %16 = sbr.rel (%p14) target = $region8
  $region5: #{up_forward.6} parent=0 // loop_body
    %s18 = ssub.s32 %s13, 1
    %s19 = ssub.s32 %s13, 2
    %s20 = sadd.s32 %s13, 1
    %s21 = ssub.s32 %s13, %s20
    %p22 = scmp.eq.s32.totalorder %s21, 0
    %s24 = sadd.s32 %s23, 1
    %s25 = scalar_select %p22, %s23, %s24
    %p28 = pneg %p22
    %p29 = scmp.eq.s32.totalorder %s13, 1
    %p30 = por %p28, %p29
    %p31 = scmp.ne.s32.totalorder %s23, %s26
    %p32 = scmp.eq.s32.totalorder %s13, 0
    %p33 = por %p31, %p32
    %p34 = scmp.ne.s32.totalorder %s23, %s26
    %p35 = scmp.eq.s32.totalorder %s18, 1
    %p36 = por %p34, %p35
    %p37 = scmp.ne.s32.totalorder %s26, %s27
    %p38 = scmp.eq.s32.totalorder %s18, 0
    %p39 = por %p37, %p38
    %p40 = scmp.ne.s32.totalorder %s26, %s27
    %p41 = scmp.eq.s32.totalorder %s19, 1
    %p42 = por %p40, %p41
    %p44 = scmp.ne.s32.totalorder %s27, %s43
    %p45 = scmp.eq.s32.totalorder %s19, 0
    %p46 = por %p44, %p45
    %s48 = sadd.s32 %s47, 1
    %p51 = scmp.eq.s32.totalorder %s13, 1
    %p52 = scmp.ne.s32.totalorder %s47, %s49
    %p53 = scmp.eq.s32.totalorder %s13, 0
    %p54 = por %p52, %p53
    %p55 = scmp.ne.s32.totalorder %s47, %s49
    %p56 = scmp.eq.s32.totalorder %s18, 1
    %p57 = por %p55, %p56
    %p58 = scmp.ne.s32.totalorder %s49, %s50
    %p59 = scmp.eq.s32.totalorder %s18, 0
    %p60 = por %p58, %p59
    %p61 = scmp.ne.s32.totalorder %s49, %s50
    %p62 = scmp.eq.s32.totalorder %s19, 1
    %p63 = por %p61, %p62
    %p65 = scmp.ne.s32.totalorder %s50, %s64
    %p66 = scmp.eq.s32.totalorder %s19, 0
    %p67 = por %p65, %p66
    %s69 = sadd.s32 %s68, 1
    %p72 = scmp.eq.s32.totalorder %s13, 1
    %p73 = scmp.ne.s32.totalorder %s68, %s70
    %p74 = scmp.eq.s32.totalorder %s13, 0
    %p75 = por %p73, %p74
    %p76 = scmp.ne.s32.totalorder %s68, %s70
    %p77 = scmp.eq.s32.totalorder %s18, 1
    %p78 = por %p76, %p77
    %p79 = scmp.ne.s32.totalorder %s70, %s71
    %p80 = scmp.eq.s32.totalorder %s18, 0
    %p81 = por %p79, %p80
    %p82 = scmp.ne.s32.totalorder %s70, %s71
    %p83 = scmp.eq.s32.totalorder %s19, 1
    %p84 = por %p82, %p83
    %p86 = scmp.ne.s32.totalorder %s71, %s85
    %p87 = scmp.eq.s32.totalorder %s19, 0
    %p88 = por %p86, %p87
    %s90 = sadd.s32 %s89, 1
    %p93 = scmp.eq.s32.totalorder %s13, 1
    %p94 = scmp.ne.s32.totalorder %s89, %s91
    %p95 = scmp.eq.s32.totalorder %s13, 0
    %p96 = por %p94, %p95
    %p97 = scmp.ne.s32.totalorder %s89, %s91
    %p98 = scmp.eq.s32.totalorder %s18, 1
    %p99 = por %p97, %p98
    %p100 = scmp.ne.s32.totalorder %s91, %s92
    %p101 = scmp.eq.s32.totalorder %s18, 0
    %p102 = por %p100, %p101
    %p103 = scmp.ne.s32.totalorder %s91, %s92
    %p104 = scmp.eq.s32.totalorder %s19, 1
    %p105 = por %p103, %p104
    %p107 = scmp.ne.s32.totalorder %s92, %s106
    %p108 = scmp.eq.s32.totalorder %s19, 0
    %p109 = por %p107, %p108
    %s111 = sadd.s32 %s110, 1
    %p114 = scmp.eq.s32.totalorder %s13, 1
    %p115 = scmp.ne.s32.totalorder %s110, %s112
    %p116 = scmp.eq.s32.totalorder %s13, 0
    %p117 = por %p115, %p116
    %p118 = scmp.ne.s32.totalorder %s110, %s112
    %p119 = scmp.eq.s32.totalorder %s18, 1
    %p120 = por %p118, %p119
    %p121 = scmp.ne.s32.totalorder %s112, %s113
    %p122 = scmp.eq.s32.totalorder %s18, 0
    %p123 = por %p121, %p122
    %p124 = scmp.ne.s32.totalorder %s112, %s113
    %p125 = scmp.eq.s32.totalorder %s19, 1
    %p126 = por %p124, %p125
    %p128 = scmp.ne.s32.totalorder %s113, %s127
    %p129 = scmp.eq.s32.totalorder %s19, 0
    %p130 = por %p128, %p129
    %s131 = ssub.s32 %s13, %s20
    %p132 = scmp.eq.s32.totalorder %s131, 0
    %s134 = sadd.s32 %s133, 1
    %s135 = scalar_select %p132, %s133, %s134
    %p138 = pneg %p132
    %p139 = scmp.eq.s32.totalorder %s13, 1
    %p140 = por %p138, %p139
    %p141 = scmp.ne.s32.totalorder %s133, %s136
    %p142 = scmp.eq.s32.totalorder %s13, 0
    %p143 = por %p141, %p142
    %p144 = scmp.ne.s32.totalorder %s133, %s136
    %p145 = scmp.eq.s32.totalorder %s18, 1
    %p146 = por %p144, %p145
    %p147 = scmp.ne.s32.totalorder %s136, %s137
    %p148 = scmp.eq.s32.totalorder %s18, 0
    %p149 = por %p147, %p148
    %p150 = scmp.ne.s32.totalorder %s136, %s137
    %p151 = scmp.eq.s32.totalorder %s19, 1
    %p152 = por %p150, %p151
    %p154 = scmp.ne.s32.totalorder %s137, %s153
    %p155 = scmp.eq.s32.totalorder %s19, 0
    %p156 = por %p154, %p155
    %s157 = ssub.s32 %s13, %s20
    %p158 = scmp.eq.s32.totalorder %s157, 0
    %s160 = sadd.s32 %s159, 1
    %s161 = scalar_select %p158, %s159, %s160
    %p164 = pneg %p158
    %p165 = scmp.eq.s32.totalorder %s13, 1
    %p166 = por %p164, %p165
    %p167 = scmp.ne.s32.totalorder %s159, %s162
    %p168 = scmp.eq.s32.totalorder %s13, 0
    %p169 = por %p167, %p168
    %p170 = scmp.ne.s32.totalorder %s159, %s162
    %p171 = scmp.eq.s32.totalorder %s18, 1
    %p172 = por %p170, %p171
    %p173 = scmp.ne.s32.totalorder %s162, %s163
    %p174 = scmp.eq.s32.totalorder %s18, 0
    %p175 = por %p173, %p174
    %p176 = scmp.ne.s32.totalorder %s162, %s163
    %p177 = scmp.eq.s32.totalorder %s19, 1
    %p178 = por %p176, %p177
    %p180 = scmp.ne.s32.totalorder %s163, %s179
    %p181 = scmp.eq.s32.totalorder %s19, 0
    %p182 = por %p180, %p181
    %p183 = scmp.le.s32.totalorder 1, %s13
    %p184 = scmp.lt.s32.totalorder %s13, 3
    %p185 = pnand %p183, %p184
    %p186 = pneg %p185
    // Predicated region
    $region9: #{up_forward.6} parent=5 // pred_check
      _
    $region10: #{up_forward.6} parent=5 // pred_check_branch
      %188 = sbr.rel (%p185) target = $region12
    $region11: #{up_forward.6} parent=5 // pred_region
      %s189 = ssub.s32 %s13, 1
      // Predicated region
      $region13: #{up_forward.6} parent=11 // pred_check
        %p190 = pneg %p60
      $region14: #{up_forward.6} parent=11 // pred_check_branch
        %192 = sbr.rel (%p190) target = $region16
      $region15: #{up_forward.6} parent=11 // pred_region
        _
      $region16: #{up_forward.6} parent=11 // pred_fallthru
        _
      // Predicated region
      $region17: #{up_forward.6} parent=11 // pred_check
        %p193 = pneg %p81
      $region18: #{up_forward.6} parent=11 // pred_check_branch
        %195 = sbr.rel (%p193) target = $region20
      $region19: #{up_forward.6} parent=11 // pred_region
        _
      $region20: #{up_forward.6} parent=11 // pred_fallthru
        _
      // Predicated region
      $region21: #{up_forward.6} parent=11 // pred_check
        %p196 = pneg %p102
      $region22: #{up_forward.6} parent=11 // pred_check_branch
        %198 = sbr.rel (%p196) target = $region24
      $region23: #{up_forward.6} parent=11 // pred_region
        _
      $region24: #{up_forward.6} parent=11 // pred_fallthru
        _
      // Predicated region
      $region25: #{up_forward.6} parent=11 // pred_check
        %p199 = pneg %p123
      $region26: #{up_forward.6} parent=11 // pred_check_branch
        %201 = sbr.rel (%p199) target = $region28
      $region27: #{up_forward.6} parent=11 // pred_region
        _
      $region28: #{up_forward.6} parent=11 // pred_fallthru
        _
    $region12: #{up_forward.6} parent=5 // pred_fallthru
      _
    %p202 = scmp.lt.s32.totalorder %s13, 2
    // Predicated region
    $region29: #{up_forward.6} parent=5 // pred_check
      %p203 = pneg %p202
    $region30: #{up_forward.6} parent=5 // pred_check_branch
      %205 = sbr.rel (%p203) target = $region32
    $region31: #{up_forward.6} parent=5 // pred_region
      // Predicated region
      $region33: #{up_forward.6} parent=31 // pred_check
        %p206 = pneg %p33
      $region34: #{up_forward.6} parent=31 // pred_check_branch
        %208 = sbr.rel (%p206) target = $region36
      $region35: #{up_forward.6} parent=31 // pred_region
        %p209 = scmp.lt.s32.totalorder %s13, 1
        %s210 = scalar_select %p209, %s13, 1
        %s211 = smul.addr %s210, 54
        %s212 = smul.addr %s211, 4
        %s213 = scalar_lea.vmem %s0, %s212
      $region36: #{up_forward.6} parent=31 // pred_fallthru
        _
    $region32: #{up_forward.6} parent=5 // pred_fallthru
      _
    %p214 = scmp.le.s32.totalorder 1, %s13
    %p215 = scmp.lt.s32.totalorder %s13, 3
    %p216 = pnand %p214, %p215
    %p217 = pneg %p216
    // Predicated region
    $region37: #{up_forward.6} parent=5 // pred_check
      _
    $region38: #{up_forward.6} parent=5 // pred_check_branch
      %219 = sbr.rel (%p216) target = $region40
    $region39: #{up_forward.6} parent=5 // pred_region
      %s220 = ssub.s32 %s13, 1
      %p221 = scmp.lt.s32.totalorder %s18, 1
      %s222 = scalar_select %p221, %s18, 1
      %s223 = smul.addr %s222, 54
      %s224 = smul.addr %s223, 4
      %s225 = scalar_lea.vmem %s0, %s224
      %p226 = pneg %p39
      %p227 = pneg %p36
      %p228 = pneg %p60
      %p229 = pneg %p57
      %p230 = pneg %p81
      %p231 = pneg %p78
      %p232 = pneg %p102
      %p233 = pneg %p99
      %p234 = pneg %p123
      %p235 = pneg %p120
      %p236 = pneg %p149
      %p237 = pneg %p146
      %p238 = scmp.lt.s32.totalorder %s18, 1
      %s239 = scalar_select %p238, %s18, 1
      %s240 = smul.addr %s239, 32
      %s241 = smul.addr %s240, 4
      %s242 = scalar_lea.vmem %s5, %s241
      %p243 = pneg %p175
      %p244 = pneg %p172
      %p245 = scmp.lt.s32.totalorder %s18, 1
      %s246 = scalar_select %p245, %s18, 1
      %s247 = smul.addr %s246, 2
      %s248 = scalar_lea.vmem %s6, %s247
      %p249 = scmp.lt.s32.totalorder %s18, 1
      %s250 = scalar_select %p249, %s18, 1
      %s251 = smul.addr %s250, 54
      %s252 = smul.addr %s251, 4
      %s253 = scalar_lea.vmem %s0, %s252
      %p254 = scmp.lt.s32.totalorder %s18, 1
      %s255 = scalar_select %p254, %s18, 1
      %s256 = smul.addr %s255, 32
      %s257 = smul.addr %s256, 4
      %s258 = scalar_lea.vmem %s5, %s257
      %p259 = scmp.lt.s32.totalorder %s18, 1
      %s260 = scalar_select %p259, %s18, 1
      %s261 = smul.addr %s260, 2
      %s262 = scalar_lea.vmem %s6, %s261
      %v264 = vld [vmem:[%s253] sm:$0xf]
      %v265 = vld [vmem:[%s253 + $0x4] sm:$0xf]
      %v266 = vld [vmem:[%s253 + $0x8] sm:$0x1]
      %v267 = vld [vmem:[%s253 + $0xc] sm:$0xf]
      %v268 = vld [vmem:[%s253 + $0x10] sm:$0xf]
      %v269 = vld [vmem:[%s253 + $0x14] sm:$0x1]
      %v270 = vld [vmem:[%s253 + $0x18] sm:$0xf]
      %v271 = vld [vmem:[%s253 + $0x1c] sm:$0xf]
      %v272 = vld [vmem:[%s253 + $0x20] sm:$0x1]
      %v273 = vld [vmem:[%s253 + $0x24] sm:$0xf]
      %v274 = vld [vmem:[%s253 + $0x28] sm:$0xf]
      %v275 = vld [vmem:[%s253 + $0x2c] sm:$0x1]
      %v276 = vld [vmem:[%s253 + $0x30] sm:$0xf]
      %v277 = vld [vmem:[%s253 + $0x34] sm:$0xf]
      %v278 = vld [vmem:[%s253 + $0x38] sm:$0x1]
      %v279 = vld [vmem:[%s253 + $0x3c] sm:$0xf]
      %v280 = vld [vmem:[%s253 + $0x40] sm:$0xf]
      %v281 = vld [vmem:[%s253 + $0x44] sm:$0x1]
      %v282 = vld [vmem:[%s253 + $0x48] sm:$0xf]
      %v283 = vld [vmem:[%s253 + $0x4c] sm:$0xf]
      %v284 = vld [vmem:[%s253 + $0x50] sm:$0x1]
      %v285 = vld [vmem:[%s253 + $0x54] sm:$0xf]
      %v286 = vld [vmem:[%s253 + $0x58] sm:$0xf]
      %v287 = vld [vmem:[%s253 + $0x5c] sm:$0x1]
      %v288 = vld [vmem:[%s253 + $0x60] sm:$0xf]
      %v289 = vld [vmem:[%s253 + $0x64] sm:$0xf]
      %v290 = vld [vmem:[%s253 + $0x68] sm:$0x1]
      %v291 = vld [vmem:[%s253 + $0x6c] sm:$0xf]
      %v292 = vld [vmem:[%s253 + $0x70] sm:$0xf]
      %v293 = vld [vmem:[%s253 + $0x74] sm:$0x1]
      %v294 = vld [vmem:[%s253 + $0x78] sm:$0xf]
      %v295 = vld [vmem:[%s253 + $0x7c] sm:$0xf]
      %v296 = vld [vmem:[%s253 + $0x80] sm:$0x1]
      %v297 = vld [vmem:[%s253 + $0x84] sm:$0xf]
      %v298 = vld [vmem:[%s253 + $0x88] sm:$0xf]
      %v299 = vld [vmem:[%s253 + $0x8c] sm:$0x1]
      %v300 = vld [vmem:[%s253 + $0x90] sm:$0xf]
      %v301 = vld [vmem:[%s253 + $0x94] sm:$0xf]
      %v302 = vld [vmem:[%s253 + $0x98] sm:$0x1]
      %v303 = vld [vmem:[%s253 + $0x9c] sm:$0xf]
      %v304 = vld [vmem:[%s253 + $0xa0] sm:$0xf]
      %v305 = vld [vmem:[%s253 + $0xa4] sm:$0x1]
      %v306 = vld [vmem:[%s253 + $0xa8] sm:$0xf]
      %v307 = vld [vmem:[%s253 + $0xac] sm:$0xf]
      %v308 = vld [vmem:[%s253 + $0xb0] sm:$0x1]
      %v309 = vld [vmem:[%s253 + $0xb4] sm:$0xf]
      %v310 = vld [vmem:[%s253 + $0xb8] sm:$0xf]
      %v311 = vld [vmem:[%s253 + $0xbc] sm:$0x1]
      %v312 = vld [vmem:[%s253 + $0xc0] sm:$0xf]
      %v313 = vld [vmem:[%s253 + $0xc4] sm:$0xf]
      %v314 = vld [vmem:[%s253 + $0xc8] sm:$0x1]
      %v315 = vld [vmem:[%s253 + $0xcc] sm:$0xf]
      %v316 = vld [vmem:[%s253 + $0xd0] sm:$0xf]
      %v317 = vld [vmem:[%s253 + $0xd4] sm:$0x1]
      %v318 = vunpack.c.l.bf16 %v264
      %v319 = vunpack.c.l.bf16 %v265
      %v320 = vunpack.c.l.bf16 %v266
      %v321 = vunpack.c.l.bf16 %v267
      %v322 = vunpack.c.l.bf16 %v268
      %v323 = vunpack.c.l.bf16 %v269
      %v324 = vunpack.c.l.bf16 %v270
      %v325 = vunpack.c.l.bf16 %v271
      %v326 = vunpack.c.l.bf16 %v272
      %v327 = vunpack.c.l.bf16 %v273
      %v328 = vunpack.c.l.bf16 %v274
      %v329 = vunpack.c.l.bf16 %v275
      %v330 = vunpack.c.l.bf16 %v276
      %v331 = vunpack.c.l.bf16 %v277
      %v332 = vunpack.c.l.bf16 %v278
      %v333 = vunpack.c.l.bf16 %v279
      %v334 = vunpack.c.l.bf16 %v280
      %v335 = vunpack.c.l.bf16 %v281
      %v336 = vunpack.c.l.bf16 %v282
      %v337 = vunpack.c.l.bf16 %v283
      %v338 = vunpack.c.l.bf16 %v284
      %v339 = vunpack.c.l.bf16 %v285
      %v340 = vunpack.c.l.bf16 %v286
      %v341 = vunpack.c.l.bf16 %v287
      %v342 = vunpack.c.l.bf16 %v288
      %v343 = vunpack.c.l.bf16 %v289
      %v344 = vunpack.c.l.bf16 %v290
      %v345 = vunpack.c.l.bf16 %v291
      %v346 = vunpack.c.l.bf16 %v292
      %v347 = vunpack.c.l.bf16 %v293
      %v348 = vunpack.c.l.bf16 %v294
      %v349 = vunpack.c.l.bf16 %v295
      %v350 = vunpack.c.l.bf16 %v296
      %v351 = vunpack.c.l.bf16 %v297
      %v352 = vunpack.c.l.bf16 %v298
      %v353 = vunpack.c.l.bf16 %v299
      %v354 = vunpack.c.l.bf16 %v300
      %v355 = vunpack.c.l.bf16 %v301
      %v356 = vunpack.c.l.bf16 %v302
      %v357 = vunpack.c.l.bf16 %v303
      %v358 = vunpack.c.l.bf16 %v304
      %v359 = vunpack.c.l.bf16 %v305
      %v360 = vunpack.c.l.bf16 %v306
      %v361 = vunpack.c.l.bf16 %v307
      %v362 = vunpack.c.l.bf16 %v308
      %v363 = vunpack.c.l.bf16 %v309
      %v364 = vunpack.c.l.bf16 %v310
      %v365 = vunpack.c.l.bf16 %v311
      %v366 = vunpack.c.l.bf16 %v312
      %v367 = vunpack.c.l.bf16 %v313
      %v368 = vunpack.c.l.bf16 %v314
      %v369 = vunpack.c.l.bf16 %v315
      %v370 = vunpack.c.l.bf16 %v316
      %v371 = vunpack.c.l.bf16 %v317
      %v372 = vld [vmem:[%s3] sm:$0x1]
      %v374 = vlaneseq
      %v375 = vshrl.u32 %v374, 7
      %v376 = vsub.s32 0, %v375
      %v377 = vrot.slane %v372, %v376
      %v379 = vmul.f32 %v318, %v377
      %v380 = vmul.f32 %v319, %v377
      %v381 = vmul.f32 %v320, %v377
      %v382 = vmul.f32 %v321, %v377
      %v383 = vmul.f32 %v322, %v377
      %v384 = vmul.f32 %v323, %v377
      %v385 = vmul.f32 %v324, %v377
      %v386 = vmul.f32 %v325, %v377
      %v387 = vmul.f32 %v326, %v377
      %v388 = vmul.f32 %v327, %v377
      %v389 = vmul.f32 %v328, %v377
      %v390 = vmul.f32 %v329, %v377
      %v391 = vmul.f32 %v330, %v377
      %v392 = vmul.f32 %v331, %v377
      %v393 = vmul.f32 %v332, %v377
      %v394 = vmul.f32 %v333, %v377
      %v395 = vmul.f32 %v334, %v377
      %v396 = vmul.f32 %v335, %v377
      %v397 = vmul.f32 %v336, %v377
      %v398 = vmul.f32 %v337, %v377
      %v399 = vmul.f32 %v338, %v377
      %v400 = vmul.f32 %v339, %v377
      %v401 = vmul.f32 %v340, %v377
      %v402 = vmul.f32 %v341, %v377
      %v403 = vmul.f32 %v342, %v377
      %v404 = vmul.f32 %v343, %v377
      %v405 = vmul.f32 %v344, %v377
      %v406 = vmul.f32 %v345, %v377
      %v407 = vmul.f32 %v346, %v377
      %v408 = vmul.f32 %v347, %v377
      %v409 = vmul.f32 %v348, %v377
      %v410 = vmul.f32 %v349, %v377
      %v411 = vmul.f32 %v350, %v377
      %v412 = vmul.f32 %v351, %v377
      %v413 = vmul.f32 %v352, %v377
      %v414 = vmul.f32 %v353, %v377
      %v415 = vmul.f32 %v354, %v377
      %v416 = vmul.f32 %v355, %v377
      %v417 = vmul.f32 %v356, %v377
      %v418 = vmul.f32 %v357, %v377
      %v419 = vmul.f32 %v358, %v377
      %v420 = vmul.f32 %v359, %v377
      %v421 = vmul.f32 %v360, %v377
      %v422 = vmul.f32 %v361, %v377
      %v423 = vmul.f32 %v362, %v377
      %v424 = vmul.f32 %v363, %v377
      %v425 = vmul.f32 %v364, %v377
      %v426 = vmul.f32 %v365, %v377
      %v427 = vmul.f32 %v366, %v377
      %v428 = vmul.f32 %v367, %v377
      %v429 = vmul.f32 %v368, %v377
      %v430 = vmul.f32 %v369, %v377
      %v431 = vmul.f32 %v370, %v377
      %v432 = vmul.f32 %v371, %v377
      %v433 = vld [vmem:[%s4] sm:$0x1]
      %v435 = vlaneseq
      %v436 = vshrl.u32 %v435, 7
      %v437 = vsub.s32 0, %v436
      %v438 = vrot.slane %v433, %v437
      %v440 = vadd.f32 %v379, %v438
      %v441 = vadd.f32 %v380, %v438
      %v442 = vadd.f32 %v381, %v438
      %v443 = vadd.f32 %v382, %v438
      %v444 = vadd.f32 %v383, %v438
      %v445 = vadd.f32 %v384, %v438
      %v446 = vadd.f32 %v385, %v438
      %v447 = vadd.f32 %v386, %v438
      %v448 = vadd.f32 %v387, %v438
      %v449 = vadd.f32 %v388, %v438
      %v450 = vadd.f32 %v389, %v438
      %v451 = vadd.f32 %v390, %v438
      %v452 = vadd.f32 %v391, %v438
      %v453 = vadd.f32 %v392, %v438
      %v454 = vadd.f32 %v393, %v438
      %v455 = vadd.f32 %v394, %v438
      %v456 = vadd.f32 %v395, %v438
      %v457 = vadd.f32 %v396, %v438
      %v458 = vadd.f32 %v397, %v438
      %v459 = vadd.f32 %v398, %v438
      %v460 = vadd.f32 %v399, %v438
      %v461 = vadd.f32 %v400, %v438
      %v462 = vadd.f32 %v401, %v438
      %v463 = vadd.f32 %v402, %v438
      %v464 = vadd.f32 %v403, %v438
      %v465 = vadd.f32 %v404, %v438
      %v466 = vadd.f32 %v405, %v438
      %v467 = vadd.f32 %v406, %v438
      %v468 = vadd.f32 %v407, %v438
      %v469 = vadd.f32 %v408, %v438
      %v470 = vadd.f32 %v409, %v438
      %v471 = vadd.f32 %v410, %v438
      %v472 = vadd.f32 %v411, %v438
      %v473 = vadd.f32 %v412, %v438
      %v474 = vadd.f32 %v413, %v438
      %v475 = vadd.f32 %v414, %v438
      %v476 = vadd.f32 %v415, %v438
      %v477 = vadd.f32 %v416, %v438
      %v478 = vadd.f32 %v417, %v438
      %v479 = vadd.f32 %v418, %v438
      %v480 = vadd.f32 %v419, %v438
      %v481 = vadd.f32 %v420, %v438
      %v482 = vadd.f32 %v421, %v438
      %v483 = vadd.f32 %v422, %v438
      %v484 = vadd.f32 %v423, %v438
      %v485 = vadd.f32 %v424, %v438
      %v486 = vadd.f32 %v425, %v438
      %v487 = vadd.f32 %v426, %v438
      %v488 = vadd.f32 %v427, %v438
      %v489 = vadd.f32 %v428, %v438
      %v490 = vadd.f32 %v429, %v438
      %v491 = vadd.f32 %v430, %v438
      %v492 = vadd.f32 %v431, %v438
      %v493 = vadd.f32 %v432, %v438
      %v494 = vmul.f32 %v440, 0.70710677
      %v495 = vmul.f32 %v441, 0.70710677
      %v496 = vmul.f32 %v442, 0.70710677
      %v497 = vmul.f32 %v443, 0.70710677
      %v498 = vmul.f32 %v444, 0.70710677
      %v499 = vmul.f32 %v445, 0.70710677
      %v500 = vmul.f32 %v446, 0.70710677
      %v501 = vmul.f32 %v447, 0.70710677
      %v502 = vmul.f32 %v448, 0.70710677
      %v503 = vmul.f32 %v449, 0.70710677
      %v504 = vmul.f32 %v450, 0.70710677
      %v505 = vmul.f32 %v451, 0.70710677
      %v506 = vmul.f32 %v452, 0.70710677
      %v507 = vmul.f32 %v453, 0.70710677
      %v508 = vmul.f32 %v454, 0.70710677
      %v509 = vmul.f32 %v455, 0.70710677
      %v510 = vmul.f32 %v456, 0.70710677
      %v511 = vmul.f32 %v457, 0.70710677
      %v512 = vmul.f32 %v458, 0.70710677
      %v513 = vmul.f32 %v459, 0.70710677
      %v514 = vmul.f32 %v460, 0.70710677
      %v515 = vmul.f32 %v461, 0.70710677
      %v516 = vmul.f32 %v462, 0.70710677
      %v517 = vmul.f32 %v463, 0.70710677
      %v518 = vmul.f32 %v464, 0.70710677
      %v519 = vmul.f32 %v465, 0.70710677
      %v520 = vmul.f32 %v466, 0.70710677
      %v521 = vmul.f32 %v467, 0.70710677
      %v522 = vmul.f32 %v468, 0.70710677
      %v523 = vmul.f32 %v469, 0.70710677
      %v524 = vmul.f32 %v470, 0.70710677
      %v525 = vmul.f32 %v471, 0.70710677
      %v526 = vmul.f32 %v472, 0.70710677
      %v527 = vmul.f32 %v473, 0.70710677
      %v528 = vmul.f32 %v474, 0.70710677
      %v529 = vmul.f32 %v475, 0.70710677
      %v530 = vmul.f32 %v476, 0.70710677
      %v531 = vmul.f32 %v477, 0.70710677
      %v532 = vmul.f32 %v478, 0.70710677
      %v533 = vmul.f32 %v479, 0.70710677
      %v534 = vmul.f32 %v480, 0.70710677
      %v535 = vmul.f32 %v481, 0.70710677
      %v536 = vmul.f32 %v482, 0.70710677
      %v537 = vmul.f32 %v483, 0.70710677
      %v538 = vmul.f32 %v484, 0.70710677
      %v539 = vmul.f32 %v485, 0.70710677
      %v540 = vmul.f32 %v486, 0.70710677
      %v541 = vmul.f32 %v487, 0.70710677
      %v542 = vmul.f32 %v488, 0.70710677
      %v543 = vmul.f32 %v489, 0.70710677
      %v544 = vmul.f32 %v490, 0.70710677
      %v545 = vmul.f32 %v491, 0.70710677
      %v546 = vmul.f32 %v492, 0.70710677
      %v547 = vmul.f32 %v493, 0.70710677
      %v548 = vand.u32 2147483647, %v494
      %v549 = vand.u32 2147483647, %v495
      %v550 = vand.u32 2147483647, %v496
      %v551 = vand.u32 2147483647, %v497
      %v552 = vand.u32 2147483647, %v498
      %v553 = vand.u32 2147483647, %v499
      %v554 = vand.u32 2147483647, %v500
      %v555 = vand.u32 2147483647, %v501
      %v556 = vand.u32 2147483647, %v502
      %v557 = vand.u32 2147483647, %v503
      %v558 = vand.u32 2147483647, %v504
      %v559 = vand.u32 2147483647, %v505
      %v560 = vand.u32 2147483647, %v506
      %v561 = vand.u32 2147483647, %v507
      %v562 = vand.u32 2147483647, %v508
      %v563 = vand.u32 2147483647, %v509
      %v564 = vand.u32 2147483647, %v510
      %v565 = vand.u32 2147483647, %v511
      %v566 = vand.u32 2147483647, %v512
      %v567 = vand.u32 2147483647, %v513
      %v568 = vand.u32 2147483647, %v514
      %v569 = vand.u32 2147483647, %v515
      %v570 = vand.u32 2147483647, %v516
      %v571 = vand.u32 2147483647, %v517
      %v572 = vand.u32 2147483647, %v518
      %v573 = vand.u32 2147483647, %v519
      %v574 = vand.u32 2147483647, %v520
      %v575 = vand.u32 2147483647, %v521
      %v576 = vand.u32 2147483647, %v522
      %v577 = vand.u32 2147483647, %v523
      %v578 = vand.u32 2147483647, %v524
      %v579 = vand.u32 2147483647, %v525
      %v580 = vand.u32 2147483647, %v526
      %v581 = vand.u32 2147483647, %v527
      %v582 = vand.u32 2147483647, %v528
      %v583 = vand.u32 2147483647, %v529
      %v584 = vand.u32 2147483647, %v530
      %v585 = vand.u32 2147483647, %v531
      %v586 = vand.u32 2147483647, %v532
      %v587 = vand.u32 2147483647, %v533
      %v588 = vand.u32 2147483647, %v534
      %v589 = vand.u32 2147483647, %v535
      %v590 = vand.u32 2147483647, %v536
      %v591 = vand.u32 2147483647, %v537
      %v592 = vand.u32 2147483647, %v538
      %v593 = vand.u32 2147483647, %v539
      %v594 = vand.u32 2147483647, %v540
      %v595 = vand.u32 2147483647, %v541
      %v596 = vand.u32 2147483647, %v542
      %v597 = vand.u32 2147483647, %v543
      %v598 = vand.u32 2147483647, %v544
      %v599 = vand.u32 2147483647, %v545
      %v600 = vand.u32 2147483647, %v546
      %v601 = vand.u32 2147483647, %v547
      %v602 = vmul.f32 %v548, 0.3275911
      %v603 = vmul.f32 %v549, 0.3275911
      %v604 = vmul.f32 %v550, 0.3275911
      %v605 = vmul.f32 %v551, 0.3275911
      %v606 = vmul.f32 %v552, 0.3275911
      %v607 = vmul.f32 %v553, 0.3275911
      %v608 = vmul.f32 %v554, 0.3275911
      %v609 = vmul.f32 %v555, 0.3275911
      %v610 = vmul.f32 %v556, 0.3275911
      %v611 = vmul.f32 %v557, 0.3275911
      %v612 = vmul.f32 %v558, 0.3275911
      %v613 = vmul.f32 %v559, 0.3275911
      %v614 = vmul.f32 %v560, 0.3275911
      %v615 = vmul.f32 %v561, 0.3275911
      %v616 = vmul.f32 %v562, 0.3275911
      %v617 = vmul.f32 %v563, 0.3275911
      %v618 = vmul.f32 %v564, 0.3275911
      %v619 = vmul.f32 %v565, 0.3275911
      %v620 = vmul.f32 %v566, 0.3275911
      %v621 = vmul.f32 %v567, 0.3275911
      %v622 = vmul.f32 %v568, 0.3275911
      %v623 = vmul.f32 %v569, 0.3275911
      %v624 = vmul.f32 %v570, 0.3275911
      %v625 = vmul.f32 %v571, 0.3275911
      %v626 = vmul.f32 %v572, 0.3275911
      %v627 = vmul.f32 %v573, 0.3275911
      %v628 = vmul.f32 %v574, 0.3275911
      %v629 = vmul.f32 %v575, 0.3275911
      %v630 = vmul.f32 %v576, 0.3275911
      %v631 = vmul.f32 %v577, 0.3275911
      %v632 = vmul.f32 %v578, 0.3275911
      %v633 = vmul.f32 %v579, 0.3275911
      %v634 = vmul.f32 %v580, 0.3275911
      %v635 = vmul.f32 %v581, 0.3275911
      %v636 = vmul.f32 %v582, 0.3275911
      %v637 = vmul.f32 %v583, 0.3275911
      %v638 = vmul.f32 %v584, 0.3275911
      %v639 = vmul.f32 %v585, 0.3275911
      %v640 = vmul.f32 %v586, 0.3275911
      %v641 = vmul.f32 %v587, 0.3275911
      %v642 = vmul.f32 %v588, 0.3275911
      %v643 = vmul.f32 %v589, 0.3275911
      %v644 = vmul.f32 %v590, 0.3275911
      %v645 = vmul.f32 %v591, 0.3275911
      %v646 = vmul.f32 %v592, 0.3275911
      %v647 = vmul.f32 %v593, 0.3275911
      %v648 = vmul.f32 %v594, 0.3275911
      %v649 = vmul.f32 %v595, 0.3275911
      %v650 = vmul.f32 %v596, 0.3275911
      %v651 = vmul.f32 %v597, 0.3275911
      %v652 = vmul.f32 %v598, 0.3275911
      %v653 = vmul.f32 %v599, 0.3275911
      %v654 = vmul.f32 %v600, 0.3275911
      %v655 = vmul.f32 %v601, 0.3275911
      %v656 = vadd.f32 %v602, 1.0
      %v657 = vadd.f32 %v603, 1.0
      %v658 = vadd.f32 %v604, 1.0
      %v659 = vadd.f32 %v605, 1.0
      %v660 = vadd.f32 %v606, 1.0
      %v661 = vadd.f32 %v607, 1.0
      %v662 = vadd.f32 %v608, 1.0
      %v663 = vadd.f32 %v609, 1.0
      %v664 = vadd.f32 %v610, 1.0
      %v665 = vadd.f32 %v611, 1.0
      %v666 = vadd.f32 %v612, 1.0
      %v667 = vadd.f32 %v613, 1.0
      %v668 = vadd.f32 %v614, 1.0
      %v669 = vadd.f32 %v615, 1.0
      %v670 = vadd.f32 %v616, 1.0
      %v671 = vadd.f32 %v617, 1.0
      %v672 = vadd.f32 %v618, 1.0
      %v673 = vadd.f32 %v619, 1.0
      %v674 = vadd.f32 %v620, 1.0
      %v675 = vadd.f32 %v621, 1.0
      %v676 = vadd.f32 %v622, 1.0
      %v677 = vadd.f32 %v623, 1.0
      %v678 = vadd.f32 %v624, 1.0
      %v679 = vadd.f32 %v625, 1.0
      %v680 = vadd.f32 %v626, 1.0
      %v681 = vadd.f32 %v627, 1.0
      %v682 = vadd.f32 %v628, 1.0
      %v683 = vadd.f32 %v629, 1.0
      %v684 = vadd.f32 %v630, 1.0
      %v685 = vadd.f32 %v631, 1.0
      %v686 = vadd.f32 %v632, 1.0
      %v687 = vadd.f32 %v633, 1.0
      %v688 = vadd.f32 %v634, 1.0
      %v689 = vadd.f32 %v635, 1.0
      %v690 = vadd.f32 %v636, 1.0
      %v691 = vadd.f32 %v637, 1.0
      %v692 = vadd.f32 %v638, 1.0
      %v693 = vadd.f32 %v639, 1.0
      %v694 = vadd.f32 %v640, 1.0
      %v695 = vadd.f32 %v641, 1.0
      %v696 = vadd.f32 %v642, 1.0
      %v697 = vadd.f32 %v643, 1.0
      %v698 = vadd.f32 %v644, 1.0
      %v699 = vadd.f32 %v645, 1.0
      %v700 = vadd.f32 %v646, 1.0
      %v701 = vadd.f32 %v647, 1.0
      %v702 = vadd.f32 %v648, 1.0
      %v703 = vadd.f32 %v649, 1.0
      %v704 = vadd.f32 %v650, 1.0
      %v705 = vadd.f32 %v651, 1.0
      %v706 = vadd.f32 %v652, 1.0
      %v707 = vadd.f32 %v653, 1.0
      %v708 = vadd.f32 %v654, 1.0
      %v709 = vadd.f32 %v655, 1.0
      %v710 = vrcp.pop %v656
      %v711 = vmul.f32 1.0, %v710
      %v712 = vrcp.pop %v657
      %v713 = vmul.f32 1.0, %v712
      %v714 = vrcp.pop %v658
      %v715 = vmul.f32 1.0, %v714
      %v716 = vrcp.pop %v659
      %v717 = vmul.f32 1.0, %v716
      %v718 = vrcp.pop %v660
      %v719 = vmul.f32 1.0, %v718
      %v720 = vrcp.pop %v661
      %v721 = vmul.f32 1.0, %v720
      %v722 = vrcp.pop %v662
      %v723 = vmul.f32 1.0, %v722
      %v724 = vrcp.pop %v663
      %v725 = vmul.f32 1.0, %v724
      %v726 = vrcp.pop %v664
      %v727 = vmul.f32 1.0, %v726
      %v728 = vrcp.pop %v665
      %v729 = vmul.f32 1.0, %v728
      %v730 = vrcp.pop %v666
      %v731 = vmul.f32 1.0, %v730
      %v732 = vrcp.pop %v667
      %v733 = vmul.f32 1.0, %v732
      %v734 = vrcp.pop %v668
      %v735 = vmul.f32 1.0, %v734
      %v736 = vrcp.pop %v669
      %v737 = vmul.f32 1.0, %v736
      %v738 = vrcp.pop %v670
      %v739 = vmul.f32 1.0, %v738
      %v740 = vrcp.pop %v671
      %v741 = vmul.f32 1.0, %v740
      %v742 = vrcp.pop %v672
      %v743 = vmul.f32 1.0, %v742
      %v744 = vrcp.pop %v673
      %v745 = vmul.f32 1.0, %v744
      %v746 = vrcp.pop %v674
      %v747 = vmul.f32 1.0, %v746
      %v748 = vrcp.pop %v675
      %v749 = vmul.f32 1.0, %v748
      %v750 = vrcp.pop %v676
      %v751 = vmul.f32 1.0, %v750
      %v752 = vrcp.pop %v677
      %v753 = vmul.f32 1.0, %v752
      %v754 = vrcp.pop %v678
      %v755 = vmul.f32 1.0, %v754
      %v756 = vrcp.pop %v679
      %v757 = vmul.f32 1.0, %v756
      %v758 = vrcp.pop %v680
      %v759 = vmul.f32 1.0, %v758
      %v760 = vrcp.pop %v681
      %v761 = vmul.f32 1.0, %v760
      %v762 = vrcp.pop %v682
      %v763 = vmul.f32 1.0, %v762
      %v764 = vrcp.pop %v683
      %v765 = vmul.f32 1.0, %v764
      %v766 = vrcp.pop %v684
      %v767 = vmul.f32 1.0, %v766
      %v768 = vrcp.pop %v685
      %v769 = vmul.f32 1.0, %v768
      %v770 = vrcp.pop %v686
      %v771 = vmul.f32 1.0, %v770
      %v772 = vrcp.pop %v687
      %v773 = vmul.f32 1.0, %v772
      %v774 = vrcp.pop %v688
      %v775 = vmul.f32 1.0, %v774
      %v776 = vrcp.pop %v689
      %v777 = vmul.f32 1.0, %v776
      %v778 = vrcp.pop %v690
      %v779 = vmul.f32 1.0, %v778
      %v780 = vrcp.pop %v691
      %v781 = vmul.f32 1.0, %v780
      %v782 = vrcp.pop %v692
      %v783 = vmul.f32 1.0, %v782
      %v784 = vrcp.pop %v693
      %v785 = vmul.f32 1.0, %v784
      %v786 = vrcp.pop %v694
      %v787 = vmul.f32 1.0, %v786
      %v788 = vrcp.pop %v695
      %v789 = vmul.f32 1.0, %v788
      %v790 = vrcp.pop %v696
      %v791 = vmul.f32 1.0, %v790
      %v792 = vrcp.pop %v697
      %v793 = vmul.f32 1.0, %v792
      %v794 = vrcp.pop %v698
      %v795 = vmul.f32 1.0, %v794
      %v796 = vrcp.pop %v699
      %v797 = vmul.f32 1.0, %v796
      %v798 = vrcp.pop %v700
      %v799 = vmul.f32 1.0, %v798
      %v800 = vrcp.pop %v701
      %v801 = vmul.f32 1.0, %v800
      %v802 = vrcp.pop %v702
      %v803 = vmul.f32 1.0, %v802
      %v804 = vrcp.pop %v703
      %v805 = vmul.f32 1.0, %v804
      %v806 = vrcp.pop %v704
      %v807 = vmul.f32 1.0, %v806
      %v808 = vrcp.pop %v705
      %v809 = vmul.f32 1.0, %v808
      %v810 = vrcp.pop %v706
      %v811 = vmul.f32 1.0, %v810
      %v812 = vrcp.pop %v707
      %v813 = vmul.f32 1.0, %v812
      %v814 = vrcp.pop %v708
      %v815 = vmul.f32 1.0, %v814
      %v816 = vrcp.pop %v709
      %v817 = vmul.f32 1.0, %v816
      %v818 = vmul.f32 %v711, 1.0614054
      %v819 = vmul.f32 %v713, 1.0614054
      %v820 = vmul.f32 %v715, 1.0614054
      %v821 = vmul.f32 %v717, 1.0614054
      %v822 = vmul.f32 %v719, 1.0614054
      %v823 = vmul.f32 %v721, 1.0614054
      %v824 = vmul.f32 %v723, 1.0614054
      %v825 = vmul.f32 %v725, 1.0614054
      %v826 = vmul.f32 %v727, 1.0614054
      %v827 = vmul.f32 %v729, 1.0614054
      %v828 = vmul.f32 %v731, 1.0614054
      %v829 = vmul.f32 %v733, 1.0614054
      %v830 = vmul.f32 %v735, 1.0614054
      %v831 = vmul.f32 %v737, 1.0614054
      %v832 = vmul.f32 %v739, 1.0614054
      %v833 = vmul.f32 %v741, 1.0614054
      %v834 = vmul.f32 %v743, 1.0614054
      %v835 = vmul.f32 %v745, 1.0614054
      %v836 = vmul.f32 %v747, 1.0614054
      %v837 = vmul.f32 %v749, 1.0614054
      %v838 = vmul.f32 %v751, 1.0614054
      %v839 = vmul.f32 %v753, 1.0614054
      %v840 = vmul.f32 %v755, 1.0614054
      %v841 = vmul.f32 %v757, 1.0614054
      %v842 = vmul.f32 %v759, 1.0614054
      %v843 = vmul.f32 %v761, 1.0614054
      %v844 = vmul.f32 %v763, 1.0614054
      %v845 = vmul.f32 %v765, 1.0614054
      %v846 = vmul.f32 %v767, 1.0614054
      %v847 = vmul.f32 %v769, 1.0614054
      %v848 = vmul.f32 %v771, 1.0614054
      %v849 = vmul.f32 %v773, 1.0614054
      %v850 = vmul.f32 %v775, 1.0614054
      %v851 = vmul.f32 %v777, 1.0614054
      %v852 = vmul.f32 %v779, 1.0614054
      %v853 = vmul.f32 %v781, 1.0614054
      %v854 = vmul.f32 %v783, 1.0614054
      %v855 = vmul.f32 %v785, 1.0614054
      %v856 = vmul.f32 %v787, 1.0614054
      %v857 = vmul.f32 %v789, 1.0614054
      %v858 = vmul.f32 %v791, 1.0614054
      %v859 = vmul.f32 %v793, 1.0614054
      %v860 = vmul.f32 %v795, 1.0614054
      %v861 = vmul.f32 %v797, 1.0614054
      %v862 = vmul.f32 %v799, 1.0614054
      %v863 = vmul.f32 %v801, 1.0614054
      %v864 = vmul.f32 %v803, 1.0614054
      %v865 = vmul.f32 %v805, 1.0614054
      %v866 = vmul.f32 %v807, 1.0614054
      %v867 = vmul.f32 %v809, 1.0614054
      %v868 = vmul.f32 %v811, 1.0614054
      %v869 = vmul.f32 %v813, 1.0614054
      %v870 = vmul.f32 %v815, 1.0614054
      %v871 = vmul.f32 %v817, 1.0614054
      %v872 = vadd.f32 %v818, -1.4531521
      %v873 = vadd.f32 %v819, -1.4531521
      %v874 = vadd.f32 %v820, -1.4531521
      %v875 = vadd.f32 %v821, -1.4531521
      %v876 = vadd.f32 %v822, -1.4531521
      %v877 = vadd.f32 %v823, -1.4531521
      %v878 = vadd.f32 %v824, -1.4531521
      %v879 = vadd.f32 %v825, -1.4531521
      %v880 = vadd.f32 %v826, -1.4531521
      %v881 = vadd.f32 %v827, -1.4531521
      %v882 = vadd.f32 %v828, -1.4531521
      %v883 = vadd.f32 %v829, -1.4531521
      %v884 = vadd.f32 %v830, -1.4531521
      %v885 = vadd.f32 %v831, -1.4531521
      %v886 = vadd.f32 %v832, -1.4531521
      %v887 = vadd.f32 %v833, -1.4531521
      %v888 = vadd.f32 %v834, -1.4531521
      %v889 = vadd.f32 %v835, -1.4531521
      %v890 = vadd.f32 %v836, -1.4531521
      %v891 = vadd.f32 %v837, -1.4531521
      %v892 = vadd.f32 %v838, -1.4531521
      %v893 = vadd.f32 %v839, -1.4531521
      %v894 = vadd.f32 %v840, -1.4531521
      %v895 = vadd.f32 %v841, -1.4531521
      %v896 = vadd.f32 %v842, -1.4531521
      %v897 = vadd.f32 %v843, -1.4531521
      %v898 = vadd.f32 %v844, -1.4531521
      %v899 = vadd.f32 %v845, -1.4531521
      %v900 = vadd.f32 %v846, -1.4531521
      %v901 = vadd.f32 %v847, -1.4531521
      %v902 = vadd.f32 %v848, -1.4531521
      %v903 = vadd.f32 %v849, -1.4531521
      %v904 = vadd.f32 %v850, -1.4531521
      %v905 = vadd.f32 %v851, -1.4531521
      %v906 = vadd.f32 %v852, -1.4531521
      %v907 = vadd.f32 %v853, -1.4531521
      %v908 = vadd.f32 %v854, -1.4531521
      %v909 = vadd.f32 %v855, -1.4531521
      %v910 = vadd.f32 %v856, -1.4531521
      %v911 = vadd.f32 %v857, -1.4531521
      %v912 = vadd.f32 %v858, -1.4531521
      %v913 = vadd.f32 %v859, -1.4531521
      %v914 = vadd.f32 %v860, -1.4531521
      %v915 = vadd.f32 %v861, -1.4531521
      %v916 = vadd.f32 %v862, -1.4531521
      %v917 = vadd.f32 %v863, -1.4531521
      %v918 = vadd.f32 %v864, -1.4531521
      %v919 = vadd.f32 %v865, -1.4531521
      %v920 = vadd.f32 %v866, -1.4531521
      %v921 = vadd.f32 %v867, -1.4531521
      %v922 = vadd.f32 %v868, -1.4531521
      %v923 = vadd.f32 %v869, -1.4531521
      %v924 = vadd.f32 %v870, -1.4531521
      %v925 = vadd.f32 %v871, -1.4531521
      %v926 = vmul.f32 %v872, %v711
      %v927 = vmul.f32 %v873, %v713
      %v928 = vmul.f32 %v874, %v715
      %v929 = vmul.f32 %v875, %v717
      %v930 = vmul.f32 %v876, %v719
      %v931 = vmul.f32 %v877, %v721
      %v932 = vmul.f32 %v878, %v723
      %v933 = vmul.f32 %v879, %v725
      %v934 = vmul.f32 %v880, %v727
      %v935 = vmul.f32 %v881, %v729
      %v936 = vmul.f32 %v882, %v731
      %v937 = vmul.f32 %v883, %v733
      %v938 = vmul.f32 %v884, %v735
      %v939 = vmul.f32 %v885, %v737
      %v940 = vmul.f32 %v886, %v739
      %v941 = vmul.f32 %v887, %v741
      %v942 = vmul.f32 %v888, %v743
      %v943 = vmul.f32 %v889, %v745
      %v944 = vmul.f32 %v890, %v747
      %v945 = vmul.f32 %v891, %v749
      %v946 = vmul.f32 %v892, %v751
      %v947 = vmul.f32 %v893, %v753
      %v948 = vmul.f32 %v894, %v755
      %v949 = vmul.f32 %v895, %v757
      %v950 = vmul.f32 %v896, %v759
      %v951 = vmul.f32 %v897, %v761
      %v952 = vmul.f32 %v898, %v763
      %v953 = vmul.f32 %v899, %v765
      %v954 = vmul.f32 %v900, %v767
      %v955 = vmul.f32 %v901, %v769
      %v956 = vmul.f32 %v902, %v771
      %v957 = vmul.f32 %v903, %v773
      %v958 = vmul.f32 %v904, %v775
      %v959 = vmul.f32 %v905, %v777
      %v960 = vmul.f32 %v906, %v779
      %v961 = vmul.f32 %v907, %v781
      %v962 = vmul.f32 %v908, %v783
      %v963 = vmul.f32 %v909, %v785
      %v964 = vmul.f32 %v910, %v787
      %v965 = vmul.f32 %v911, %v789
      %v966 = vmul.f32 %v912, %v791
      %v967 = vmul.f32 %v913, %v793
      %v968 = vmul.f32 %v914, %v795
      %v969 = vmul.f32 %v915, %v797
      %v970 = vmul.f32 %v916, %v799
      %v971 = vmul.f32 %v917, %v801
      %v972 = vmul.f32 %v918, %v803
      %v973 = vmul.f32 %v919, %v805
      %v974 = vmul.f32 %v920, %v807
      %v975 = vmul.f32 %v921, %v809
      %v976 = vmul.f32 %v922, %v811
      %v977 = vmul.f32 %v923, %v813
      %v978 = vmul.f32 %v924, %v815
      %v979 = vmul.f32 %v925, %v817
      %v980 = vadd.f32 %v926, 1.4214138
      %v981 = vadd.f32 %v927, 1.4214138
      %v982 = vadd.f32 %v928, 1.4214138
      %v983 = vadd.f32 %v929, 1.4214138
      %v984 = vadd.f32 %v930, 1.4214138
      %v985 = vadd.f32 %v931, 1.4214138
      %v986 = vadd.f32 %v932, 1.4214138
      %v987 = vadd.f32 %v933, 1.4214138
      %v988 = vadd.f32 %v934, 1.4214138
      %v989 = vadd.f32 %v935, 1.4214138
      %v990 = vadd.f32 %v936, 1.4214138
      %v991 = vadd.f32 %v937, 1.4214138
      %v992 = vadd.f32 %v938, 1.4214138
      %v993 = vadd.f32 %v939, 1.4214138
      %v994 = vadd.f32 %v940, 1.4214138
      %v995 = vadd.f32 %v941, 1.4214138
      %v996 = vadd.f32 %v942, 1.4214138
      %v997 = vadd.f32 %v943, 1.4214138
      %v998 = vadd.f32 %v944, 1.4214138
      %v999 = vadd.f32 %v945, 1.4214138
      %v1000 = vadd.f32 %v946, 1.4214138
      %v1001 = vadd.f32 %v947, 1.4214138
      %v1002 = vadd.f32 %v948, 1.4214138
      %v1003 = vadd.f32 %v949, 1.4214138
      %v1004 = vadd.f32 %v950, 1.4214138
      %v1005 = vadd.f32 %v951, 1.4214138
      %v1006 = vadd.f32 %v952, 1.4214138
      %v1007 = vadd.f32 %v953, 1.4214138
      %v1008 = vadd.f32 %v954, 1.4214138
      %v1009 = vadd.f32 %v955, 1.4214138
      %v1010 = vadd.f32 %v956, 1.4214138
      %v1011 = vadd.f32 %v957, 1.4214138
      %v1012 = vadd.f32 %v958, 1.4214138
      %v1013 = vadd.f32 %v959, 1.4214138
      %v1014 = vadd.f32 %v960, 1.4214138
      %v1015 = vadd.f32 %v961, 1.4214138
      %v1016 = vadd.f32 %v962, 1.4214138
      %v1017 = vadd.f32 %v963, 1.4214138
      %v1018 = vadd.f32 %v964, 1.4214138
      %v1019 = vadd.f32 %v965, 1.4214138
      %v1020 = vadd.f32 %v966, 1.4214138
      %v1021 = vadd.f32 %v967, 1.4214138
      %v1022 = vadd.f32 %v968, 1.4214138
      %v1023 = vadd.f32 %v969, 1.4214138
      %v1024 = vadd.f32 %v970, 1.4214138
      %v1025 = vadd.f32 %v971, 1.4214138
      %v1026 = vadd.f32 %v972, 1.4214138
      %v1027 = vadd.f32 %v973, 1.4214138
      %v1028 = vadd.f32 %v974, 1.4214138
      %v1029 = vadd.f32 %v975, 1.4214138
      %v1030 = vadd.f32 %v976, 1.4214138
      %v1031 = vadd.f32 %v977, 1.4214138
      %v1032 = vadd.f32 %v978, 1.4214138
      %v1033 = vadd.f32 %v979, 1.4214138
      %v1034 = vmul.f32 %v980, %v711
      %v1035 = vmul.f32 %v981, %v713
      %v1036 = vmul.f32 %v982, %v715
      %v1037 = vmul.f32 %v983, %v717
      %v1038 = vmul.f32 %v984, %v719
      %v1039 = vmul.f32 %v985, %v721
      %v1040 = vmul.f32 %v986, %v723
      %v1041 = vmul.f32 %v987, %v725
      %v1042 = vmul.f32 %v988, %v727
      %v1043 = vmul.f32 %v989, %v729
      %v1044 = vmul.f32 %v990, %v731
      %v1045 = vmul.f32 %v991, %v733
      %v1046 = vmul.f32 %v992, %v735
      %v1047 = vmul.f32 %v993, %v737
      %v1048 = vmul.f32 %v994, %v739
      %v1049 = vmul.f32 %v995, %v741
      %v1050 = vmul.f32 %v996, %v743
      %v1051 = vmul.f32 %v997, %v745
      %v1052 = vmul.f32 %v998, %v747
      %v1053 = vmul.f32 %v999, %v749
      %v1054 = vmul.f32 %v1000, %v751
      %v1055 = vmul.f32 %v1001, %v753
      %v1056 = vmul.f32 %v1002, %v755
      %v1057 = vmul.f32 %v1003, %v757
      %v1058 = vmul.f32 %v1004, %v759
      %v1059 = vmul.f32 %v1005, %v761
      %v1060 = vmul.f32 %v1006, %v763
      %v1061 = vmul.f32 %v1007, %v765
      %v1062 = vmul.f32 %v1008, %v767
      %v1063 = vmul.f32 %v1009, %v769
      %v1064 = vmul.f32 %v1010, %v771
      %v1065 = vmul.f32 %v1011, %v773
      %v1066 = vmul.f32 %v1012, %v775
      %v1067 = vmul.f32 %v1013, %v777
      %v1068 = vmul.f32 %v1014, %v779
      %v1069 = vmul.f32 %v1015, %v781
      %v1070 = vmul.f32 %v1016, %v783
      %v1071 = vmul.f32 %v1017, %v785
      %v1072 = vmul.f32 %v1018, %v787
      %v1073 = vmul.f32 %v1019, %v789
      %v1074 = vmul.f32 %v1020, %v791
      %v1075 = vmul.f32 %v1021, %v793
      %v1076 = vmul.f32 %v1022, %v795
      %v1077 = vmul.f32 %v1023, %v797
      %v1078 = vmul.f32 %v1024, %v799
      %v1079 = vmul.f32 %v1025, %v801
      %v1080 = vmul.f32 %v1026, %v803
      %v1081 = vmul.f32 %v1027, %v805
      %v1082 = vmul.f32 %v1028, %v807
      %v1083 = vmul.f32 %v1029, %v809
      %v1084 = vmul.f32 %v1030, %v811
      %v1085 = vmul.f32 %v1031, %v813
      %v1086 = vmul.f32 %v1032, %v815
      %v1087 = vmul.f32 %v1033, %v817
      %v1088 = vadd.f32 %v1034, -0.28449672
      %v1089 = vadd.f32 %v1035, -0.28449672
      %v1090 = vadd.f32 %v1036, -0.28449672
      %v1091 = vadd.f32 %v1037, -0.28449672
      %v1092 = vadd.f32 %v1038, -0.28449672
      %v1093 = vadd.f32 %v1039, -0.28449672
      %v1094 = vadd.f32 %v1040, -0.28449672
      %v1095 = vadd.f32 %v1041, -0.28449672
      %v1096 = vadd.f32 %v1042, -0.28449672
      %v1097 = vadd.f32 %v1043, -0.28449672
      %v1098 = vadd.f32 %v1044, -0.28449672
      %v1099 = vadd.f32 %v1045, -0.28449672
      %v1100 = vadd.f32 %v1046, -0.28449672
      %v1101 = vadd.f32 %v1047, -0.28449672
      %v1102 = vadd.f32 %v1048, -0.28449672
      %v1103 = vadd.f32 %v1049, -0.28449672
      %v1104 = vadd.f32 %v1050, -0.28449672
      %v1105 = vadd.f32 %v1051, -0.28449672
      %v1106 = vadd.f32 %v1052, -0.28449672
      %v1107 = vadd.f32 %v1053, -0.28449672
      %v1108 = vadd.f32 %v1054, -0.28449672
      %v1109 = vadd.f32 %v1055, -0.28449672
      %v1110 = vadd.f32 %v1056, -0.28449672
      %v1111 = vadd.f32 %v1057, -0.28449672
      %v1112 = vadd.f32 %v1058, -0.28449672
      %v1113 = vadd.f32 %v1059, -0.28449672
      %v1114 = vadd.f32 %v1060, -0.28449672
      %v1115 = vadd.f32 %v1061, -0.28449672
      %v1116 = vadd.f32 %v1062, -0.28449672
      %v1117 = vadd.f32 %v1063, -0.28449672
      %v1118 = vadd.f32 %v1064, -0.28449672
      %v1119 = vadd.f32 %v1065, -0.28449672
      %v1120 = vadd.f32 %v1066, -0.28449672
      %v1121 = vadd.f32 %v1067, -0.28449672
      %v1122 = vadd.f32 %v1068, -0.28449672
      %v1123 = vadd.f32 %v1069, -0.28449672
      %v1124 = vadd.f32 %v1070, -0.28449672
      %v1125 = vadd.f32 %v1071, -0.28449672
      %v1126 = vadd.f32 %v1072, -0.28449672
      %v1127 = vadd.f32 %v1073, -0.28449672
      %v1128 = vadd.f32 %v1074, -0.28449672
      %v1129 = vadd.f32 %v1075, -0.28449672
      %v1130 = vadd.f32 %v1076, -0.28449672
      %v1131 = vadd.f32 %v1077, -0.28449672
      %v1132 = vadd.f32 %v1078, -0.28449672
      %v1133 = vadd.f32 %v1079, -0.28449672
      %v1134 = vadd.f32 %v1080, -0.28449672
      %v1135 = vadd.f32 %v1081, -0.28449672
      %v1136 = vadd.f32 %v1082, -0.28449672
      %v1137 = vadd.f32 %v1083, -0.28449672
      %v1138 = vadd.f32 %v1084, -0.28449672
      %v1139 = vadd.f32 %v1085, -0.28449672
      %v1140 = vadd.f32 %v1086, -0.28449672
      %v1141 = vadd.f32 %v1087, -0.28449672
      %v1142 = vmul.f32 %v1088, %v711
      %v1143 = vmul.f32 %v1089, %v713
      %v1144 = vmul.f32 %v1090, %v715
      %v1145 = vmul.f32 %v1091, %v717
      %v1146 = vmul.f32 %v1092, %v719
      %v1147 = vmul.f32 %v1093, %v721
      %v1148 = vmul.f32 %v1094, %v723
      %v1149 = vmul.f32 %v1095, %v725
      %v1150 = vmul.f32 %v1096, %v727
      %v1151 = vmul.f32 %v1097, %v729
      %v1152 = vmul.f32 %v1098, %v731
      %v1153 = vmul.f32 %v1099, %v733
      %v1154 = vmul.f32 %v1100, %v735
      %v1155 = vmul.f32 %v1101, %v737
      %v1156 = vmul.f32 %v1102, %v739
      %v1157 = vmul.f32 %v1103, %v741
      %v1158 = vmul.f32 %v1104, %v743
      %v1159 = vmul.f32 %v1105, %v745
      %v1160 = vmul.f32 %v1106, %v747
      %v1161 = vmul.f32 %v1107, %v749
      %v1162 = vmul.f32 %v1108, %v751
      %v1163 = vmul.f32 %v1109, %v753
      %v1164 = vmul.f32 %v1110, %v755
      %v1165 = vmul.f32 %v1111, %v757
      %v1166 = vmul.f32 %v1112, %v759
      %v1167 = vmul.f32 %v1113, %v761
      %v1168 = vmul.f32 %v1114, %v763
      %v1169 = vmul.f32 %v1115, %v765
      %v1170 = vmul.f32 %v1116, %v767
      %v1171 = vmul.f32 %v1117, %v769
      %v1172 = vmul.f32 %v1118, %v771
      %v1173 = vmul.f32 %v1119, %v773
      %v1174 = vmul.f32 %v1120, %v775
      %v1175 = vmul.f32 %v1121, %v777
      %v1176 = vmul.f32 %v1122, %v779
      %v1177 = vmul.f32 %v1123, %v781
      %v1178 = vmul.f32 %v1124, %v783
      %v1179 = vmul.f32 %v1125, %v785
      %v1180 = vmul.f32 %v1126, %v787
      %v1181 = vmul.f32 %v1127, %v789
      %v1182 = vmul.f32 %v1128, %v791
      %v1183 = vmul.f32 %v1129, %v793
      %v1184 = vmul.f32 %v1130, %v795
      %v1185 = vmul.f32 %v1131, %v797
      %v1186 = vmul.f32 %v1132, %v799
      %v1187 = vmul.f32 %v1133, %v801
      %v1188 = vmul.f32 %v1134, %v803
      %v1189 = vmul.f32 %v1135, %v805
      %v1190 = vmul.f32 %v1136, %v807
      %v1191 = vmul.f32 %v1137, %v809
      %v1192 = vmul.f32 %v1138, %v811
      %v1193 = vmul.f32 %v1139, %v813
      %v1194 = vmul.f32 %v1140, %v815
      %v1195 = vmul.f32 %v1141, %v817
      %v1196 = vadd.f32 %v1142, 0.2548296
      %v1197 = vadd.f32 %v1143, 0.2548296
      %v1198 = vadd.f32 %v1144, 0.2548296
      %v1199 = vadd.f32 %v1145, 0.2548296
      %v1200 = vadd.f32 %v1146, 0.2548296
      %v1201 = vadd.f32 %v1147, 0.2548296
      %v1202 = vadd.f32 %v1148, 0.2548296
      %v1203 = vadd.f32 %v1149, 0.2548296
      %v1204 = vadd.f32 %v1150, 0.2548296
      %v1205 = vadd.f32 %v1151, 0.2548296
      %v1206 = vadd.f32 %v1152, 0.2548296
      %v1207 = vadd.f32 %v1153, 0.2548296
      %v1208 = vadd.f32 %v1154, 0.2548296
      %v1209 = vadd.f32 %v1155, 0.2548296
      %v1210 = vadd.f32 %v1156, 0.2548296
      %v1211 = vadd.f32 %v1157, 0.2548296
      %v1212 = vadd.f32 %v1158, 0.2548296
      %v1213 = vadd.f32 %v1159, 0.2548296
      %v1214 = vadd.f32 %v1160, 0.2548296
      %v1215 = vadd.f32 %v1161, 0.2548296
      %v1216 = vadd.f32 %v1162, 0.2548296
      %v1217 = vadd.f32 %v1163, 0.2548296
      %v1218 = vadd.f32 %v1164, 0.2548296
      %v1219 = vadd.f32 %v1165, 0.2548296
      %v1220 = vadd.f32 %v1166, 0.2548296
      %v1221 = vadd.f32 %v1167, 0.2548296
      %v1222 = vadd.f32 %v1168, 0.2548296
      %v1223 = vadd.f32 %v1169, 0.2548296
      %v1224 = vadd.f32 %v1170, 0.2548296
      %v1225 = vadd.f32 %v1171, 0.2548296
      %v1226 = vadd.f32 %v1172, 0.2548296
      %v1227 = vadd.f32 %v1173, 0.2548296
      %v1228 = vadd.f32 %v1174, 0.2548296
      %v1229 = vadd.f32 %v1175, 0.2548296
      %v1230 = vadd.f32 %v1176, 0.2548296
      %v1231 = vadd.f32 %v1177, 0.2548296
      %v1232 = vadd.f32 %v1178, 0.2548296
      %v1233 = vadd.f32 %v1179, 0.2548296
      %v1234 = vadd.f32 %v1180, 0.2548296
      %v1235 = vadd.f32 %v1181, 0.2548296
      %v1236 = vadd.f32 %v1182, 0.2548296
      %v1237 = vadd.f32 %v1183, 0.2548296
      %v1238 = vadd.f32 %v1184, 0.2548296
      %v1239 = vadd.f32 %v1185, 0.2548296
      %v1240 = vadd.f32 %v1186, 0.2548296
      %v1241 = vadd.f32 %v1187, 0.2548296
      %v1242 = vadd.f32 %v1188, 0.2548296
      %v1243 = vadd.f32 %v1189, 0.2548296
      %v1244 = vadd.f32 %v1190, 0.2548296
      %v1245 = vadd.f32 %v1191, 0.2548296
      %v1246 = vadd.f32 %v1192, 0.2548296
      %v1247 = vadd.f32 %v1193, 0.2548296
      %v1248 = vadd.f32 %v1194, 0.2548296
      %v1249 = vadd.f32 %v1195, 0.2548296
      %v1250 = vmul.f32 %v1196, %v711
      %v1251 = vmul.f32 %v1197, %v713
      %v1252 = vmul.f32 %v1198, %v715
      %v1253 = vmul.f32 %v1199, %v717
      %v1254 = vmul.f32 %v1200, %v719
      %v1255 = vmul.f32 %v1201, %v721
      %v1256 = vmul.f32 %v1202, %v723
      %v1257 = vmul.f32 %v1203, %v725
      %v1258 = vmul.f32 %v1204, %v727
      %v1259 = vmul.f32 %v1205, %v729
      %v1260 = vmul.f32 %v1206, %v731
      %v1261 = vmul.f32 %v1207, %v733
      %v1262 = vmul.f32 %v1208, %v735
      %v1263 = vmul.f32 %v1209, %v737
      %v1264 = vmul.f32 %v1210, %v739
      %v1265 = vmul.f32 %v1211, %v741
      %v1266 = vmul.f32 %v1212, %v743
      %v1267 = vmul.f32 %v1213, %v745
      %v1268 = vmul.f32 %v1214, %v747
      %v1269 = vmul.f32 %v1215, %v749
      %v1270 = vmul.f32 %v1216, %v751
      %v1271 = vmul.f32 %v1217, %v753
      %v1272 = vmul.f32 %v1218, %v755
      %v1273 = vmul.f32 %v1219, %v757
      %v1274 = vmul.f32 %v1220, %v759
      %v1275 = vmul.f32 %v1221, %v761
      %v1276 = vmul.f32 %v1222, %v763
      %v1277 = vmul.f32 %v1223, %v765
      %v1278 = vmul.f32 %v1224, %v767
      %v1279 = vmul.f32 %v1225, %v769
      %v1280 = vmul.f32 %v1226, %v771
      %v1281 = vmul.f32 %v1227, %v773
      %v1282 = vmul.f32 %v1228, %v775
      %v1283 = vmul.f32 %v1229, %v777
      %v1284 = vmul.f32 %v1230, %v779
      %v1285 = vmul.f32 %v1231, %v781
      %v1286 = vmul.f32 %v1232, %v783
      %v1287 = vmul.f32 %v1233, %v785
      %v1288 = vmul.f32 %v1234, %v787
      %v1289 = vmul.f32 %v1235, %v789
      %v1290 = vmul.f32 %v1236, %v791
      %v1291 = vmul.f32 %v1237, %v793
      %v1292 = vmul.f32 %v1238, %v795
      %v1293 = vmul.f32 %v1239, %v797
      %v1294 = vmul.f32 %v1240, %v799
      %v1295 = vmul.f32 %v1241, %v801
      %v1296 = vmul.f32 %v1242, %v803
      %v1297 = vmul.f32 %v1243, %v805
      %v1298 = vmul.f32 %v1244, %v807
      %v1299 = vmul.f32 %v1245, %v809
      %v1300 = vmul.f32 %v1246, %v811
      %v1301 = vmul.f32 %v1247, %v813
      %v1302 = vmul.f32 %v1248, %v815
      %v1303 = vmul.f32 %v1249, %v817
      %v1304 = vsub.f32 0.0, %v548
      %v1305 = vsub.f32 0.0, %v549
      %v1306 = vsub.f32 0.0, %v550
      %v1307 = vsub.f32 0.0, %v551
      %v1308 = vsub.f32 0.0, %v552
      %v1309 = vsub.f32 0.0, %v553
      %v1310 = vsub.f32 0.0, %v554
      %v1311 = vsub.f32 0.0, %v555
      %v1312 = vsub.f32 0.0, %v556
      %v1313 = vsub.f32 0.0, %v557
      %v1314 = vsub.f32 0.0, %v558
      %v1315 = vsub.f32 0.0, %v559
      %v1316 = vsub.f32 0.0, %v560
      %v1317 = vsub.f32 0.0, %v561
      %v1318 = vsub.f32 0.0, %v562
      %v1319 = vsub.f32 0.0, %v563
      %v1320 = vsub.f32 0.0, %v564
      %v1321 = vsub.f32 0.0, %v565
      %v1322 = vsub.f32 0.0, %v566
      %v1323 = vsub.f32 0.0, %v567
      %v1324 = vsub.f32 0.0, %v568
      %v1325 = vsub.f32 0.0, %v569
      %v1326 = vsub.f32 0.0, %v570
      %v1327 = vsub.f32 0.0, %v571
      %v1328 = vsub.f32 0.0, %v572
      %v1329 = vsub.f32 0.0, %v573
      %v1330 = vsub.f32 0.0, %v574
      %v1331 = vsub.f32 0.0, %v575
      %v1332 = vsub.f32 0.0, %v576
      %v1333 = vsub.f32 0.0, %v577
      %v1334 = vsub.f32 0.0, %v578
      %v1335 = vsub.f32 0.0, %v579
      %v1336 = vsub.f32 0.0, %v580
      %v1337 = vsub.f32 0.0, %v581
      %v1338 = vsub.f32 0.0, %v582
      %v1339 = vsub.f32 0.0, %v583
      %v1340 = vsub.f32 0.0, %v584
      %v1341 = vsub.f32 0.0, %v585
      %v1342 = vsub.f32 0.0, %v586
      %v1343 = vsub.f32 0.0, %v587
      %v1344 = vsub.f32 0.0, %v588
      %v1345 = vsub.f32 0.0, %v589
      %v1346 = vsub.f32 0.0, %v590
      %v1347 = vsub.f32 0.0, %v591
      %v1348 = vsub.f32 0.0, %v592
      %v1349 = vsub.f32 0.0, %v593
      %v1350 = vsub.f32 0.0, %v594
      %v1351 = vsub.f32 0.0, %v595
      %v1352 = vsub.f32 0.0, %v596
      %v1353 = vsub.f32 0.0, %v597
      %v1354 = vsub.f32 0.0, %v598
      %v1355 = vsub.f32 0.0, %v599
      %v1356 = vsub.f32 0.0, %v600
      %v1357 = vsub.f32 0.0, %v601
      %v1358 = vmul.f32 %v1304, %v548
      %v1359 = vmul.f32 %v1305, %v549
      %v1360 = vmul.f32 %v1306, %v550
      %v1361 = vmul.f32 %v1307, %v551
      %v1362 = vmul.f32 %v1308, %v552
      %v1363 = vmul.f32 %v1309, %v553
      %v1364 = vmul.f32 %v1310, %v554
      %v1365 = vmul.f32 %v1311, %v555
      %v1366 = vmul.f32 %v1312, %v556
      %v1367 = vmul.f32 %v1313, %v557
      %v1368 = vmul.f32 %v1314, %v558
      %v1369 = vmul.f32 %v1315, %v559
      %v1370 = vmul.f32 %v1316, %v560
      %v1371 = vmul.f32 %v1317, %v561
      %v1372 = vmul.f32 %v1318, %v562
      %v1373 = vmul.f32 %v1319, %v563
      %v1374 = vmul.f32 %v1320, %v564
      %v1375 = vmul.f32 %v1321, %v565
      %v1376 = vmul.f32 %v1322, %v566
      %v1377 = vmul.f32 %v1323, %v567
      %v1378 = vmul.f32 %v1324, %v568
      %v1379 = vmul.f32 %v1325, %v569
      %v1380 = vmul.f32 %v1326, %v570
      %v1381 = vmul.f32 %v1327, %v571
      %v1382 = vmul.f32 %v1328, %v572
      %v1383 = vmul.f32 %v1329, %v573
      %v1384 = vmul.f32 %v1330, %v574
      %v1385 = vmul.f32 %v1331, %v575
      %v1386 = vmul.f32 %v1332, %v576
      %v1387 = vmul.f32 %v1333, %v577
      %v1388 = vmul.f32 %v1334, %v578
      %v1389 = vmul.f32 %v1335, %v579
      %v1390 = vmul.f32 %v1336, %v580
      %v1391 = vmul.f32 %v1337, %v581
      %v1392 = vmul.f32 %v1338, %v582
      %v1393 = vmul.f32 %v1339, %v583
      %v1394 = vmul.f32 %v1340, %v584
      %v1395 = vmul.f32 %v1341, %v585
      %v1396 = vmul.f32 %v1342, %v586
      %v1397 = vmul.f32 %v1343, %v587
      %v1398 = vmul.f32 %v1344, %v588
      %v1399 = vmul.f32 %v1345, %v589
      %v1400 = vmul.f32 %v1346, %v590
      %v1401 = vmul.f32 %v1347, %v591
      %v1402 = vmul.f32 %v1348, %v592
      %v1403 = vmul.f32 %v1349, %v593
      %v1404 = vmul.f32 %v1350, %v594
      %v1405 = vmul.f32 %v1351, %v595
      %v1406 = vmul.f32 %v1352, %v596
      %v1407 = vmul.f32 %v1353, %v597
      %v1408 = vmul.f32 %v1354, %v598
      %v1409 = vmul.f32 %v1355, %v599
      %v1410 = vmul.f32 %v1356, %v600
      %v1411 = vmul.f32 %v1357, %v601
      %v1412 = vmul.f32 %v1358, 1.442695
      %v1413 = vpow.pop %v1412
      %v1414 = vmul.f32 %v1359, 1.442695
      %v1415 = vpow.pop %v1414
      %v1416 = vmul.f32 %v1360, 1.442695
      %v1417 = vpow.pop %v1416
      %v1418 = vmul.f32 %v1361, 1.442695
      %v1419 = vpow.pop %v1418
      %v1420 = vmul.f32 %v1362, 1.442695
      %v1421 = vpow.pop %v1420
      %v1422 = vmul.f32 %v1363, 1.442695
      %v1423 = vpow.pop %v1422
      %v1424 = vmul.f32 %v1364, 1.442695
      %v1425 = vpow.pop %v1424
      %v1426 = vmul.f32 %v1365, 1.442695
      %v1427 = vpow.pop %v1426
      %v1428 = vmul.f32 %v1366, 1.442695
      %v1429 = vpow.pop %v1428
      %v1430 = vmul.f32 %v1367, 1.442695
      %v1431 = vpow.pop %v1430
      %v1432 = vmul.f32 %v1368, 1.442695
      %v1433 = vpow.pop %v1432
      %v1434 = vmul.f32 %v1369, 1.442695
      %v1435 = vpow.pop %v1434
      %v1436 = vmul.f32 %v1370, 1.442695
      %v1437 = vpow.pop %v1436
      %v1438 = vmul.f32 %v1371, 1.442695
      %v1439 = vpow.pop %v1438
      %v1440 = vmul.f32 %v1372, 1.442695
      %v1441 = vpow.pop %v1440
      %v1442 = vmul.f32 %v1373, 1.442695
      %v1443 = vpow.pop %v1442
      %v1444 = vmul.f32 %v1374, 1.442695
      %v1445 = vpow.pop %v1444
      %v1446 = vmul.f32 %v1375, 1.442695
      %v1447 = vpow.pop %v1446
      %v1448 = vmul.f32 %v1376, 1.442695
      %v1449 = vpow.pop %v1448
      %v1450 = vmul.f32 %v1377, 1.442695
      %v1451 = vpow.pop %v1450
      %v1452 = vmul.f32 %v1378, 1.442695
      %v1453 = vpow.pop %v1452
      %v1454 = vmul.f32 %v1379, 1.442695
      %v1455 = vpow.pop %v1454
      %v1456 = vmul.f32 %v1380, 1.442695
      %v1457 = vpow.pop %v1456
      %v1458 = vmul.f32 %v1381, 1.442695
      %v1459 = vpow.pop %v1458
      %v1460 = vmul.f32 %v1382, 1.442695
      %v1461 = vpow.pop %v1460
      %v1462 = vmul.f32 %v1383, 1.442695
      %v1463 = vpow.pop %v1462
      %v1464 = vmul.f32 %v1384, 1.442695
      %v1465 = vpow.pop %v1464
      %v1466 = vmul.f32 %v1385, 1.442695
      %v1467 = vpow.pop %v1466
      %v1468 = vmul.f32 %v1386, 1.442695
      %v1469 = vpow.pop %v1468
      %v1470 = vmul.f32 %v1387, 1.442695
      %v1471 = vpow.pop %v1470
      %v1472 = vmul.f32 %v1388, 1.442695
      %v1473 = vpow.pop %v1472
      %v1474 = vmul.f32 %v1389, 1.442695
      %v1475 = vpow.pop %v1474
      %v1476 = vmul.f32 %v1390, 1.442695
      %v1477 = vpow.pop %v1476
      %v1478 = vmul.f32 %v1391, 1.442695
      %v1479 = vpow.pop %v1478
      %v1480 = vmul.f32 %v1392, 1.442695
      %v1481 = vpow.pop %v1480
      %v1482 = vmul.f32 %v1393, 1.442695
      %v1483 = vpow.pop %v1482
      %v1484 = vmul.f32 %v1394, 1.442695
      %v1485 = vpow.pop %v1484
      %v1486 = vmul.f32 %v1395, 1.442695
      %v1487 = vpow.pop %v1486
      %v1488 = vmul.f32 %v1396, 1.442695
      %v1489 = vpow.pop %v1488
      %v1490 = vmul.f32 %v1397, 1.442695
      %v1491 = vpow.pop %v1490
      %v1492 = vmul.f32 %v1398, 1.442695
      %v1493 = vpow.pop %v1492
      %v1494 = vmul.f32 %v1399, 1.442695
      %v1495 = vpow.pop %v1494
      %v1496 = vmul.f32 %v1400, 1.442695
      %v1497 = vpow.pop %v1496
      %v1498 = vmul.f32 %v1401, 1.442695
      %v1499 = vpow.pop %v1498
      %v1500 = vmul.f32 %v1402, 1.442695
      %v1501 = vpow.pop %v1500
      %v1502 = vmul.f32 %v1403, 1.442695
      %v1503 = vpow.pop %v1502
      %v1504 = vmul.f32 %v1404, 1.442695
      %v1505 = vpow.pop %v1504
      %v1506 = vmul.f32 %v1405, 1.442695
      %v1507 = vpow.pop %v1506
      %v1508 = vmul.f32 %v1406, 1.442695
      %v1509 = vpow.pop %v1508
      %v1510 = vmul.f32 %v1407, 1.442695
      %v1511 = vpow.pop %v1510
      %v1512 = vmul.f32 %v1408, 1.442695
      %v1513 = vpow.pop %v1512
      %v1514 = vmul.f32 %v1409, 1.442695
      %v1515 = vpow.pop %v1514
      %v1516 = vmul.f32 %v1410, 1.442695
      %v1517 = vpow.pop %v1516
      %v1518 = vmul.f32 %v1411, 1.442695
      %v1519 = vpow.pop %v1518
      %v1520 = vmul.f32 %v1250, %v1413
      %v1521 = vmul.f32 %v1251, %v1415
      %v1522 = vmul.f32 %v1252, %v1417
      %v1523 = vmul.f32 %v1253, %v1419
      %v1524 = vmul.f32 %v1254, %v1421
      %v1525 = vmul.f32 %v1255, %v1423
      %v1526 = vmul.f32 %v1256, %v1425
      %v1527 = vmul.f32 %v1257, %v1427
      %v1528 = vmul.f32 %v1258, %v1429
      %v1529 = vmul.f32 %v1259, %v1431
      %v1530 = vmul.f32 %v1260, %v1433
      %v1531 = vmul.f32 %v1261, %v1435
      %v1532 = vmul.f32 %v1262, %v1437
      %v1533 = vmul.f32 %v1263, %v1439
      %v1534 = vmul.f32 %v1264, %v1441
      %v1535 = vmul.f32 %v1265, %v1443
      %v1536 = vmul.f32 %v1266, %v1445
      %v1537 = vmul.f32 %v1267, %v1447
      %v1538 = vmul.f32 %v1268, %v1449
      %v1539 = vmul.f32 %v1269, %v1451
      %v1540 = vmul.f32 %v1270, %v1453
      %v1541 = vmul.f32 %v1271, %v1455
      %v1542 = vmul.f32 %v1272, %v1457
      %v1543 = vmul.f32 %v1273, %v1459
      %v1544 = vmul.f32 %v1274, %v1461
      %v1545 = vmul.f32 %v1275, %v1463
      %v1546 = vmul.f32 %v1276, %v1465
      %v1547 = vmul.f32 %v1277, %v1467
      %v1548 = vmul.f32 %v1278, %v1469
      %v1549 = vmul.f32 %v1279, %v1471
      %v1550 = vmul.f32 %v1280, %v1473
      %v1551 = vmul.f32 %v1281, %v1475
      %v1552 = vmul.f32 %v1282, %v1477
      %v1553 = vmul.f32 %v1283, %v1479
      %v1554 = vmul.f32 %v1284, %v1481
      %v1555 = vmul.f32 %v1285, %v1483
      %v1556 = vmul.f32 %v1286, %v1485
      %v1557 = vmul.f32 %v1287, %v1487
      %v1558 = vmul.f32 %v1288, %v1489
      %v1559 = vmul.f32 %v1289, %v1491
      %v1560 = vmul.f32 %v1290, %v1493
      %v1561 = vmul.f32 %v1291, %v1495
      %v1562 = vmul.f32 %v1292, %v1497
      %v1563 = vmul.f32 %v1293, %v1499
      %v1564 = vmul.f32 %v1294, %v1501
      %v1565 = vmul.f32 %v1295, %v1503
      %v1566 = vmul.f32 %v1296, %v1505
      %v1567 = vmul.f32 %v1297, %v1507
      %v1568 = vmul.f32 %v1298, %v1509
      %v1569 = vmul.f32 %v1299, %v1511
      %v1570 = vmul.f32 %v1300, %v1513
      %v1571 = vmul.f32 %v1301, %v1515
      %v1572 = vmul.f32 %v1302, %v1517
      %v1573 = vmul.f32 %v1303, %v1519
      %v1574 = vsub.f32 1.0, %v1520
      %v1575 = vsub.f32 1.0, %v1521
      %v1576 = vsub.f32 1.0, %v1522
      %v1577 = vsub.f32 1.0, %v1523
      %v1578 = vsub.f32 1.0, %v1524
      %v1579 = vsub.f32 1.0, %v1525
      %v1580 = vsub.f32 1.0, %v1526
      %v1581 = vsub.f32 1.0, %v1527
      %v1582 = vsub.f32 1.0, %v1528
      %v1583 = vsub.f32 1.0, %v1529
      %v1584 = vsub.f32 1.0, %v1530
      %v1585 = vsub.f32 1.0, %v1531
      %v1586 = vsub.f32 1.0, %v1532
      %v1587 = vsub.f32 1.0, %v1533
      %v1588 = vsub.f32 1.0, %v1534
      %v1589 = vsub.f32 1.0, %v1535
      %v1590 = vsub.f32 1.0, %v1536
      %v1591 = vsub.f32 1.0, %v1537
      %v1592 = vsub.f32 1.0, %v1538
      %v1593 = vsub.f32 1.0, %v1539
      %v1594 = vsub.f32 1.0, %v1540
      %v1595 = vsub.f32 1.0, %v1541
      %v1596 = vsub.f32 1.0, %v1542
      %v1597 = vsub.f32 1.0, %v1543
      %v1598 = vsub.f32 1.0, %v1544
      %v1599 = vsub.f32 1.0, %v1545
      %v1600 = vsub.f32 1.0, %v1546
      %v1601 = vsub.f32 1.0, %v1547
      %v1602 = vsub.f32 1.0, %v1548
      %v1603 = vsub.f32 1.0, %v1549
      %v1604 = vsub.f32 1.0, %v1550
      %v1605 = vsub.f32 1.0, %v1551
      %v1606 = vsub.f32 1.0, %v1552
      %v1607 = vsub.f32 1.0, %v1553
      %v1608 = vsub.f32 1.0, %v1554
      %v1609 = vsub.f32 1.0, %v1555
      %v1610 = vsub.f32 1.0, %v1556
      %v1611 = vsub.f32 1.0, %v1557
      %v1612 = vsub.f32 1.0, %v1558
      %v1613 = vsub.f32 1.0, %v1559
      %v1614 = vsub.f32 1.0, %v1560
      %v1615 = vsub.f32 1.0, %v1561
      %v1616 = vsub.f32 1.0, %v1562
      %v1617 = vsub.f32 1.0, %v1563
      %v1618 = vsub.f32 1.0, %v1564
      %v1619 = vsub.f32 1.0, %v1565
      %v1620 = vsub.f32 1.0, %v1566
      %v1621 = vsub.f32 1.0, %v1567
      %v1622 = vsub.f32 1.0, %v1568
      %v1623 = vsub.f32 1.0, %v1569
      %v1624 = vsub.f32 1.0, %v1570
      %v1625 = vsub.f32 1.0, %v1571
      %v1626 = vsub.f32 1.0, %v1572
      %v1627 = vsub.f32 1.0, %v1573
      %vm1628 = vcmp.ge.f32.partialorder %v494, 0.0
      %vm1629 = vcmp.ge.f32.partialorder %v495, 0.0
      %vm1630 = vcmp.ge.f32.partialorder %v496, 0.0
      %vm1631 = vcmp.ge.f32.partialorder %v497, 0.0
      %vm1632 = vcmp.ge.f32.partialorder %v498, 0.0
      %vm1633 = vcmp.ge.f32.partialorder %v499, 0.0
      %vm1634 = vcmp.ge.f32.partialorder %v500, 0.0
      %vm1635 = vcmp.ge.f32.partialorder %v501, 0.0
      %vm1636 = vcmp.ge.f32.partialorder %v502, 0.0
      %vm1637 = vcmp.ge.f32.partialorder %v503, 0.0
      %vm1638 = vcmp.ge.f32.partialorder %v504, 0.0
      %vm1639 = vcmp.ge.f32.partialorder %v505, 0.0
      %vm1640 = vcmp.ge.f32.partialorder %v506, 0.0
      %vm1641 = vcmp.ge.f32.partialorder %v507, 0.0
      %vm1642 = vcmp.ge.f32.partialorder %v508, 0.0
      %vm1643 = vcmp.ge.f32.partialorder %v509, 0.0
      %vm1644 = vcmp.ge.f32.partialorder %v510, 0.0
      %vm1645 = vcmp.ge.f32.partialorder %v511, 0.0
      %vm1646 = vcmp.ge.f32.partialorder %v512, 0.0
      %vm1647 = vcmp.ge.f32.partialorder %v513, 0.0
      %vm1648 = vcmp.ge.f32.partialorder %v514, 0.0
      %vm1649 = vcmp.ge.f32.partialorder %v515, 0.0
      %vm1650 = vcmp.ge.f32.partialorder %v516, 0.0
      %vm1651 = vcmp.ge.f32.partialorder %v517, 0.0
      %vm1652 = vcmp.ge.f32.partialorder %v518, 0.0
      %vm1653 = vcmp.ge.f32.partialorder %v519, 0.0
      %vm1654 = vcmp.ge.f32.partialorder %v520, 0.0
      %vm1655 = vcmp.ge.f32.partialorder %v521, 0.0
      %vm1656 = vcmp.ge.f32.partialorder %v522, 0.0
      %vm1657 = vcmp.ge.f32.partialorder %v523, 0.0
      %vm1658 = vcmp.ge.f32.partialorder %v524, 0.0
      %vm1659 = vcmp.ge.f32.partialorder %v525, 0.0
      %vm1660 = vcmp.ge.f32.partialorder %v526, 0.0
      %vm1661 = vcmp.ge.f32.partialorder %v527, 0.0
      %vm1662 = vcmp.ge.f32.partialorder %v528, 0.0
      %vm1663 = vcmp.ge.f32.partialorder %v529, 0.0
      %vm1664 = vcmp.ge.f32.partialorder %v530, 0.0
      %vm1665 = vcmp.ge.f32.partialorder %v531, 0.0
      %vm1666 = vcmp.ge.f32.partialorder %v532, 0.0
      %vm1667 = vcmp.ge.f32.partialorder %v533, 0.0
      %vm1668 = vcmp.ge.f32.partialorder %v534, 0.0
      %vm1669 = vcmp.ge.f32.partialorder %v535, 0.0
      %vm1670 = vcmp.ge.f32.partialorder %v536, 0.0
      %vm1671 = vcmp.ge.f32.partialorder %v537, 0.0
      %vm1672 = vcmp.ge.f32.partialorder %v538, 0.0
      %vm1673 = vcmp.ge.f32.partialorder %v539, 0.0
      %vm1674 = vcmp.ge.f32.partialorder %v540, 0.0
      %vm1675 = vcmp.ge.f32.partialorder %v541, 0.0
      %vm1676 = vcmp.ge.f32.partialorder %v542, 0.0
      %vm1677 = vcmp.ge.f32.partialorder %v543, 0.0
      %vm1678 = vcmp.ge.f32.partialorder %v544, 0.0
      %vm1679 = vcmp.ge.f32.partialorder %v545, 0.0
      %vm1680 = vcmp.ge.f32.partialorder %v546, 0.0
      %vm1681 = vcmp.ge.f32.partialorder %v547, 0.0
      %v1682 = vsub.f32 0.0, %v1574
      %v1683 = vsub.f32 0.0, %v1575
      %v1684 = vsub.f32 0.0, %v1576
      %v1685 = vsub.f32 0.0, %v1577
      %v1686 = vsub.f32 0.0, %v1578
      %v1687 = vsub.f32 0.0, %v1579
      %v1688 = vsub.f32 0.0, %v1580
      %v1689 = vsub.f32 0.0, %v1581
      %v1690 = vsub.f32 0.0, %v1582
      %v1691 = vsub.f32 0.0, %v1583
      %v1692 = vsub.f32 0.0, %v1584
      %v1693 = vsub.f32 0.0, %v1585
      %v1694 = vsub.f32 0.0, %v1586
      %v1695 = vsub.f32 0.0, %v1587
      %v1696 = vsub.f32 0.0, %v1588
      %v1697 = vsub.f32 0.0, %v1589
      %v1698 = vsub.f32 0.0, %v1590
      %v1699 = vsub.f32 0.0, %v1591
      %v1700 = vsub.f32 0.0, %v1592
      %v1701 = vsub.f32 0.0, %v1593
      %v1702 = vsub.f32 0.0, %v1594
      %v1703 = vsub.f32 0.0, %v1595
      %v1704 = vsub.f32 0.0, %v1596
      %v1705 = vsub.f32 0.0, %v1597
      %v1706 = vsub.f32 0.0, %v1598
      %v1707 = vsub.f32 0.0, %v1599
      %v1708 = vsub.f32 0.0, %v1600
      %v1709 = vsub.f32 0.0, %v1601
      %v1710 = vsub.f32 0.0, %v1602
      %v1711 = vsub.f32 0.0, %v1603
      %v1712 = vsub.f32 0.0, %v1604
      %v1713 = vsub.f32 0.0, %v1605
      %v1714 = vsub.f32 0.0, %v1606
      %v1715 = vsub.f32 0.0, %v1607
      %v1716 = vsub.f32 0.0, %v1608
      %v1717 = vsub.f32 0.0, %v1609
      %v1718 = vsub.f32 0.0, %v1610
      %v1719 = vsub.f32 0.0, %v1611
      %v1720 = vsub.f32 0.0, %v1612
      %v1721 = vsub.f32 0.0, %v1613
      %v1722 = vsub.f32 0.0, %v1614
      %v1723 = vsub.f32 0.0, %v1615
      %v1724 = vsub.f32 0.0, %v1616
      %v1725 = vsub.f32 0.0, %v1617
      %v1726 = vsub.f32 0.0, %v1618
      %v1727 = vsub.f32 0.0, %v1619
      %v1728 = vsub.f32 0.0, %v1620
      %v1729 = vsub.f32 0.0, %v1621
      %v1730 = vsub.f32 0.0, %v1622
      %v1731 = vsub.f32 0.0, %v1623
      %v1732 = vsub.f32 0.0, %v1624
      %v1733 = vsub.f32 0.0, %v1625
      %v1734 = vsub.f32 0.0, %v1626
      %v1735 = vsub.f32 0.0, %v1627
      %v1736 = vsel %vm1628, %v1574, %v1682
      %v1737 = vsel %vm1629, %v1575, %v1683
      %v1738 = vsel %vm1630, %v1576, %v1684
      %v1739 = vsel %vm1631, %v1577, %v1685
      %v1740 = vsel %vm1632, %v1578, %v1686
      %v1741 = vsel %vm1633, %v1579, %v1687
      %v1742 = vsel %vm1634, %v1580, %v1688
      %v1743 = vsel %vm1635, %v1581, %v1689
      %v1744 = vsel %vm1636, %v1582, %v1690
      %v1745 = vsel %vm1637, %v1583, %v1691
      %v1746 = vsel %vm1638, %v1584, %v1692
      %v1747 = vsel %vm1639, %v1585, %v1693
      %v1748 = vsel %vm1640, %v1586, %v1694
      %v1749 = vsel %vm1641, %v1587, %v1695
      %v1750 = vsel %vm1642, %v1588, %v1696
      %v1751 = vsel %vm1643, %v1589, %v1697
      %v1752 = vsel %vm1644, %v1590, %v1698
      %v1753 = vsel %vm1645, %v1591, %v1699
      %v1754 = vsel %vm1646, %v1592, %v1700
      %v1755 = vsel %vm1647, %v1593, %v1701
      %v1756 = vsel %vm1648, %v1594, %v1702
      %v1757 = vsel %vm1649, %v1595, %v1703
      %v1758 = vsel %vm1650, %v1596, %v1704
      %v1759 = vsel %vm1651, %v1597, %v1705
      %v1760 = vsel %vm1652, %v1598, %v1706
      %v1761 = vsel %vm1653, %v1599, %v1707
      %v1762 = vsel %vm1654, %v1600, %v1708
      %v1763 = vsel %vm1655, %v1601, %v1709
      %v1764 = vsel %vm1656, %v1602, %v1710
      %v1765 = vsel %vm1657, %v1603, %v1711
      %v1766 = vsel %vm1658, %v1604, %v1712
      %v1767 = vsel %vm1659, %v1605, %v1713
      %v1768 = vsel %vm1660, %v1606, %v1714
      %v1769 = vsel %vm1661, %v1607, %v1715
      %v1770 = vsel %vm1662, %v1608, %v1716
      %v1771 = vsel %vm1663, %v1609, %v1717
      %v1772 = vsel %vm1664, %v1610, %v1718
      %v1773 = vsel %vm1665, %v1611, %v1719
      %v1774 = vsel %vm1666, %v1612, %v1720
      %v1775 = vsel %vm1667, %v1613, %v1721
      %v1776 = vsel %vm1668, %v1614, %v1722
      %v1777 = vsel %vm1669, %v1615, %v1723
      %v1778 = vsel %vm1670, %v1616, %v1724
      %v1779 = vsel %vm1671, %v1617, %v1725
      %v1780 = vsel %vm1672, %v1618, %v1726
      %v1781 = vsel %vm1673, %v1619, %v1727
      %v1782 = vsel %vm1674, %v1620, %v1728
      %v1783 = vsel %vm1675, %v1621, %v1729
      %v1784 = vsel %vm1676, %v1622, %v1730
      %v1785 = vsel %vm1677, %v1623, %v1731
      %v1786 = vsel %vm1678, %v1624, %v1732
      %v1787 = vsel %vm1679, %v1625, %v1733
      %v1788 = vsel %vm1680, %v1626, %v1734
      %v1789 = vsel %vm1681, %v1627, %v1735
      %v1790 = vmul.f32 %v440, 0.5
      %v1791 = vmul.f32 %v441, 0.5
      %v1792 = vmul.f32 %v442, 0.5
      %v1793 = vmul.f32 %v443, 0.5
      %v1794 = vmul.f32 %v444, 0.5
      %v1795 = vmul.f32 %v445, 0.5
      %v1796 = vmul.f32 %v446, 0.5
      %v1797 = vmul.f32 %v447, 0.5
      %v1798 = vmul.f32 %v448, 0.5
      %v1799 = vmul.f32 %v449, 0.5
      %v1800 = vmul.f32 %v450, 0.5
      %v1801 = vmul.f32 %v451, 0.5
      %v1802 = vmul.f32 %v452, 0.5
      %v1803 = vmul.f32 %v453, 0.5
      %v1804 = vmul.f32 %v454, 0.5
      %v1805 = vmul.f32 %v455, 0.5
      %v1806 = vmul.f32 %v456, 0.5
      %v1807 = vmul.f32 %v457, 0.5
      %v1808 = vmul.f32 %v458, 0.5
      %v1809 = vmul.f32 %v459, 0.5
      %v1810 = vmul.f32 %v460, 0.5
      %v1811 = vmul.f32 %v461, 0.5
      %v1812 = vmul.f32 %v462, 0.5
      %v1813 = vmul.f32 %v463, 0.5
      %v1814 = vmul.f32 %v464, 0.5
      %v1815 = vmul.f32 %v465, 0.5
      %v1816 = vmul.f32 %v466, 0.5
      %v1817 = vmul.f32 %v467, 0.5
      %v1818 = vmul.f32 %v468, 0.5
      %v1819 = vmul.f32 %v469, 0.5
      %v1820 = vmul.f32 %v470, 0.5
      %v1821 = vmul.f32 %v471, 0.5
      %v1822 = vmul.f32 %v472, 0.5
      %v1823 = vmul.f32 %v473, 0.5
      %v1824 = vmul.f32 %v474, 0.5
      %v1825 = vmul.f32 %v475, 0.5
      %v1826 = vmul.f32 %v476, 0.5
      %v1827 = vmul.f32 %v477, 0.5
      %v1828 = vmul.f32 %v478, 0.5
      %v1829 = vmul.f32 %v479, 0.5
      %v1830 = vmul.f32 %v480, 0.5
      %v1831 = vmul.f32 %v481, 0.5
      %v1832 = vmul.f32 %v482, 0.5
      %v1833 = vmul.f32 %v483, 0.5
      %v1834 = vmul.f32 %v484, 0.5
      %v1835 = vmul.f32 %v485, 0.5
      %v1836 = vmul.f32 %v486, 0.5
      %v1837 = vmul.f32 %v487, 0.5
      %v1838 = vmul.f32 %v488, 0.5
      %v1839 = vmul.f32 %v489, 0.5
      %v1840 = vmul.f32 %v490, 0.5
      %v1841 = vmul.f32 %v491, 0.5
      %v1842 = vmul.f32 %v492, 0.5
      %v1843 = vmul.f32 %v493, 0.5
      %v1844 = vadd.f32 %v1736, 1.0
      %v1845 = vadd.f32 %v1737, 1.0
      %v1846 = vadd.f32 %v1738, 1.0
      %v1847 = vadd.f32 %v1739, 1.0
      %v1848 = vadd.f32 %v1740, 1.0
      %v1849 = vadd.f32 %v1741, 1.0
      %v1850 = vadd.f32 %v1742, 1.0
      %v1851 = vadd.f32 %v1743, 1.0
      %v1852 = vadd.f32 %v1744, 1.0
      %v1853 = vadd.f32 %v1745, 1.0
      %v1854 = vadd.f32 %v1746, 1.0
      %v1855 = vadd.f32 %v1747, 1.0
      %v1856 = vadd.f32 %v1748, 1.0
      %v1857 = vadd.f32 %v1749, 1.0
      %v1858 = vadd.f32 %v1750, 1.0
      %v1859 = vadd.f32 %v1751, 1.0
      %v1860 = vadd.f32 %v1752, 1.0
      %v1861 = vadd.f32 %v1753, 1.0
      %v1862 = vadd.f32 %v1754, 1.0
      %v1863 = vadd.f32 %v1755, 1.0
      %v1864 = vadd.f32 %v1756, 1.0
      %v1865 = vadd.f32 %v1757, 1.0
      %v1866 = vadd.f32 %v1758, 1.0
      %v1867 = vadd.f32 %v1759, 1.0
      %v1868 = vadd.f32 %v1760, 1.0
      %v1869 = vadd.f32 %v1761, 1.0
      %v1870 = vadd.f32 %v1762, 1.0
      %v1871 = vadd.f32 %v1763, 1.0
      %v1872 = vadd.f32 %v1764, 1.0
      %v1873 = vadd.f32 %v1765, 1.0
      %v1874 = vadd.f32 %v1766, 1.0
      %v1875 = vadd.f32 %v1767, 1.0
      %v1876 = vadd.f32 %v1768, 1.0
      %v1877 = vadd.f32 %v1769, 1.0
      %v1878 = vadd.f32 %v1770, 1.0
      %v1879 = vadd.f32 %v1771, 1.0
      %v1880 = vadd.f32 %v1772, 1.0
      %v1881 = vadd.f32 %v1773, 1.0
      %v1882 = vadd.f32 %v1774, 1.0
      %v1883 = vadd.f32 %v1775, 1.0
      %v1884 = vadd.f32 %v1776, 1.0
      %v1885 = vadd.f32 %v1777, 1.0
      %v1886 = vadd.f32 %v1778, 1.0
      %v1887 = vadd.f32 %v1779, 1.0
      %v1888 = vadd.f32 %v1780, 1.0
      %v1889 = vadd.f32 %v1781, 1.0
      %v1890 = vadd.f32 %v1782, 1.0
      %v1891 = vadd.f32 %v1783, 1.0
      %v1892 = vadd.f32 %v1784, 1.0
      %v1893 = vadd.f32 %v1785, 1.0
      %v1894 = vadd.f32 %v1786, 1.0
      %v1895 = vadd.f32 %v1787, 1.0
      %v1896 = vadd.f32 %v1788, 1.0
      %v1897 = vadd.f32 %v1789, 1.0
      %v1898 = vmul.f32 %v1790, %v1844
      %v1899 = vmul.f32 %v1791, %v1845
      %v1900 = vmul.f32 %v1792, %v1846
      %v1901 = vmul.f32 %v1793, %v1847
      %v1902 = vmul.f32 %v1794, %v1848
      %v1903 = vmul.f32 %v1795, %v1849
      %v1904 = vmul.f32 %v1796, %v1850
      %v1905 = vmul.f32 %v1797, %v1851
      %v1906 = vmul.f32 %v1798, %v1852
      %v1907 = vmul.f32 %v1799, %v1853
      %v1908 = vmul.f32 %v1800, %v1854
      %v1909 = vmul.f32 %v1801, %v1855
      %v1910 = vmul.f32 %v1802, %v1856
      %v1911 = vmul.f32 %v1803, %v1857
      %v1912 = vmul.f32 %v1804, %v1858
      %v1913 = vmul.f32 %v1805, %v1859
      %v1914 = vmul.f32 %v1806, %v1860
      %v1915 = vmul.f32 %v1807, %v1861
      %v1916 = vmul.f32 %v1808, %v1862
      %v1917 = vmul.f32 %v1809, %v1863
      %v1918 = vmul.f32 %v1810, %v1864
      %v1919 = vmul.f32 %v1811, %v1865
      %v1920 = vmul.f32 %v1812, %v1866
      %v1921 = vmul.f32 %v1813, %v1867
      %v1922 = vmul.f32 %v1814, %v1868
      %v1923 = vmul.f32 %v1815, %v1869
      %v1924 = vmul.f32 %v1816, %v1870
      %v1925 = vmul.f32 %v1817, %v1871
      %v1926 = vmul.f32 %v1818, %v1872
      %v1927 = vmul.f32 %v1819, %v1873
      %v1928 = vmul.f32 %v1820, %v1874
      %v1929 = vmul.f32 %v1821, %v1875
      %v1930 = vmul.f32 %v1822, %v1876
      %v1931 = vmul.f32 %v1823, %v1877
      %v1932 = vmul.f32 %v1824, %v1878
      %v1933 = vmul.f32 %v1825, %v1879
      %v1934 = vmul.f32 %v1826, %v1880
      %v1935 = vmul.f32 %v1827, %v1881
      %v1936 = vmul.f32 %v1828, %v1882
      %v1937 = vmul.f32 %v1829, %v1883
      %v1938 = vmul.f32 %v1830, %v1884
      %v1939 = vmul.f32 %v1831, %v1885
      %v1940 = vmul.f32 %v1832, %v1886
      %v1941 = vmul.f32 %v1833, %v1887
      %v1942 = vmul.f32 %v1834, %v1888
      %v1943 = vmul.f32 %v1835, %v1889
      %v1944 = vmul.f32 %v1836, %v1890
      %v1945 = vmul.f32 %v1837, %v1891
      %v1946 = vmul.f32 %v1838, %v1892
      %v1947 = vmul.f32 %v1839, %v1893
      %v1948 = vmul.f32 %v1840, %v1894
      %v1949 = vmul.f32 %v1841, %v1895
      %v1950 = vmul.f32 %v1842, %v1896
      %v1951 = vmul.f32 %v1843, %v1897
      %v1952 = vsel 0, %v1898, 0.0
      %v1953 = vsel 0, %v1899, 0.0
      %v1954 = vsel 0, %v1900, 0.0
      %v1955 = vsel 1, %v1901, 0.0
      %v1956 = vsel 1, %v1902, 0.0
      %v1957 = vsel 1, %v1903, 0.0
      %v1958 = vsel 1, %v1904, 0.0
      %v1959 = vsel 1, %v1905, 0.0
      %v1960 = vsel 1, %v1906, 0.0
      %v1961 = vsel 1, %v1907, 0.0
      %v1962 = vsel 1, %v1908, 0.0
      %v1963 = vsel 1, %v1909, 0.0
      %v1964 = vsel 1, %v1910, 0.0
      %v1965 = vsel 1, %v1911, 0.0
      %v1966 = vsel 1, %v1912, 0.0
      %v1967 = vsel 1, %v1913, 0.0
      %v1968 = vsel 1, %v1914, 0.0
      %v1969 = vsel 1, %v1915, 0.0
      %v1970 = vsel 1, %v1916, 0.0
      %v1971 = vsel 1, %v1917, 0.0
      %v1972 = vsel 1, %v1918, 0.0
      %v1973 = vsel 1, %v1919, 0.0
      %v1974 = vsel 1, %v1920, 0.0
      %v1975 = vsel 1, %v1921, 0.0
      %v1976 = vsel 1, %v1922, 0.0
      %v1977 = vsel 1, %v1923, 0.0
      %v1978 = vsel 1, %v1924, 0.0
      %v1979 = vsel 1, %v1925, 0.0
      %v1980 = vsel 1, %v1926, 0.0
      %v1981 = vsel 1, %v1927, 0.0
      %v1982 = vsel 1, %v1928, 0.0
      %v1983 = vsel 1, %v1929, 0.0
      %v1984 = vsel 1, %v1930, 0.0
      %v1985 = vsel 1, %v1931, 0.0
      %v1986 = vsel 1, %v1932, 0.0
      %v1987 = vsel 1, %v1933, 0.0
      %v1988 = vsel 1, %v1934, 0.0
      %v1989 = vsel 1, %v1935, 0.0
      %v1990 = vsel 1, %v1936, 0.0
      %v1991 = vsel 1, %v1937, 0.0
      %v1992 = vsel 1, %v1938, 0.0
      %v1993 = vsel 1, %v1939, 0.0
      %v1994 = vsel 1, %v1940, 0.0
      %v1995 = vsel 1, %v1941, 0.0
      %v1996 = vsel 1, %v1942, 0.0
      %v1997 = vsel 1, %v1943, 0.0
      %v1998 = vsel 1, %v1944, 0.0
      %v1999 = vsel 1, %v1945, 0.0
      %v2000 = vsel 1, %v1946, 0.0
      %v2001 = vsel 1, %v1947, 0.0
      %v2002 = vsel 1, %v1948, 0.0
      %v2003 = vsel 0, %v1949, 0.0
      %v2004 = vsel 0, %v1950, 0.0
      %v2005 = vsel 0, %v1951, 0.0
      %v2006 = vpack.c.bf16 %v1953, %v1952
      %v2007 = vpack.c.bf16 %v1954, %v1954
      %v2008 = vpack.c.bf16 %v1956, %v1955
      %v2009 = vpack.c.bf16 %v1957, %v1957
      %v2010 = vpack.c.bf16 %v1959, %v1958
      %v2011 = vpack.c.bf16 %v1960, %v1960
      %v2012 = vpack.c.bf16 %v1962, %v1961
      %v2013 = vpack.c.bf16 %v1963, %v1963
      %v2014 = vpack.c.bf16 %v1965, %v1964
      %v2015 = vpack.c.bf16 %v1966, %v1966
      %v2016 = vpack.c.bf16 %v1968, %v1967
      %v2017 = vpack.c.bf16 %v1969, %v1969
      %v2018 = vpack.c.bf16 %v1971, %v1970
      %v2019 = vpack.c.bf16 %v1972, %v1972
      %v2020 = vpack.c.bf16 %v1974, %v1973
      %v2021 = vpack.c.bf16 %v1975, %v1975
      %v2022 = vpack.c.bf16 %v1977, %v1976
      %v2023 = vpack.c.bf16 %v1978, %v1978
      %v2024 = vpack.c.bf16 %v1980, %v1979
      %v2025 = vpack.c.bf16 %v1981, %v1981
      %v2026 = vpack.c.bf16 %v1983, %v1982
      %v2027 = vpack.c.bf16 %v1984, %v1984
      %v2028 = vpack.c.bf16 %v1986, %v1985
      %v2029 = vpack.c.bf16 %v1987, %v1987
      %v2030 = vpack.c.bf16 %v1989, %v1988
      %v2031 = vpack.c.bf16 %v1990, %v1990
      %v2032 = vpack.c.bf16 %v1992, %v1991
      %v2033 = vpack.c.bf16 %v1993, %v1993
      %v2034 = vpack.c.bf16 %v1995, %v1994
      %v2035 = vpack.c.bf16 %v1996, %v1996
      %v2036 = vpack.c.bf16 %v1998, %v1997
      %v2037 = vpack.c.bf16 %v1999, %v1999
      %v2038 = vpack.c.bf16 %v2001, %v2000
      %v2039 = vpack.c.bf16 %v2002, %v2002
      %v2040 = vpack.c.bf16 %v2004, %v2003
      %v2041 = vpack.c.bf16 %v2005, %v2005
      %v2042 = vld [vmem:[%s1] sm:$0xf]
      %v2043 = vld [vmem:[%s1 + $0x4] sm:$0xf]
      %vm2044 = vsmask.f32 7424
      %v2046 = vshrl.u32 %v2006, 16
      %v2048 = vshll.u32 %v2006, 16
      %v2050 = vrot.slane %v2048, 1
      %v2051 = vor.u32 %v2046, %v2050
      %v2053 = vshll.u32 %v2007, 16
      %v2055 = vrot.slane %v2053, 1
      %v2056 = vsel %vm2044, %v2051, %v2055
      %v2058 = vshrl.u32 %v2008, 16
      %v2060 = vshll.u32 %v2008, 16
      %v2062 = vrot.slane %v2060, 1
      %v2063 = vor.u32 %v2058, %v2062
      %v2065 = vshll.u32 %v2009, 16
      %v2067 = vrot.slane %v2065, 1
      %v2068 = vsel %vm2044, %v2063, %v2067
      %v2070 = vshrl.u32 %v2010, 16
      %v2072 = vshll.u32 %v2010, 16
      %v2074 = vrot.slane %v2072, 1
      %v2075 = vor.u32 %v2070, %v2074
      %v2077 = vshll.u32 %v2011, 16
      %v2079 = vrot.slane %v2077, 1
      %v2080 = vsel %vm2044, %v2075, %v2079
      %v2082 = vshrl.u32 %v2012, 16
      %v2084 = vshll.u32 %v2012, 16
      %v2086 = vrot.slane %v2084, 1
      %v2087 = vor.u32 %v2082, %v2086
      %v2089 = vshll.u32 %v2013, 16
      %v2091 = vrot.slane %v2089, 1
      %v2092 = vsel %vm2044, %v2087, %v2091
      %v2094 = vshrl.u32 %v2014, 16
      %v2096 = vshll.u32 %v2014, 16
      %v2098 = vrot.slane %v2096, 1
      %v2099 = vor.u32 %v2094, %v2098
      %v2101 = vshll.u32 %v2015, 16
      %v2103 = vrot.slane %v2101, 1
      %v2104 = vsel %vm2044, %v2099, %v2103
      %v2106 = vshrl.u32 %v2016, 16
      %v2108 = vshll.u32 %v2016, 16
      %v2110 = vrot.slane %v2108, 1
      %v2111 = vor.u32 %v2106, %v2110
      %v2113 = vshll.u32 %v2017, 16
      %v2115 = vrot.slane %v2113, 1
      %v2116 = vsel %vm2044, %v2111, %v2115
      %v2118 = vshrl.u32 %v2018, 16
      %v2120 = vshll.u32 %v2018, 16
      %v2122 = vrot.slane %v2120, 1
      %v2123 = vor.u32 %v2118, %v2122
      %v2125 = vshll.u32 %v2019, 16
      %v2127 = vrot.slane %v2125, 1
      %v2128 = vsel %vm2044, %v2123, %v2127
      %v2130 = vshrl.u32 %v2020, 16
      %v2132 = vshll.u32 %v2020, 16
      %v2134 = vrot.slane %v2132, 1
      %v2135 = vor.u32 %v2130, %v2134
      %v2137 = vshll.u32 %v2021, 16
      %v2139 = vrot.slane %v2137, 1
      %v2140 = vsel %vm2044, %v2135, %v2139
      %v2142 = vshrl.u32 %v2022, 16
      %v2144 = vshll.u32 %v2022, 16
      %v2146 = vrot.slane %v2144, 1
      %v2147 = vor.u32 %v2142, %v2146
      %v2149 = vshll.u32 %v2023, 16
      %v2151 = vrot.slane %v2149, 1
      %v2152 = vsel %vm2044, %v2147, %v2151
      %v2154 = vshrl.u32 %v2024, 16
      %v2156 = vshll.u32 %v2024, 16
      %v2158 = vrot.slane %v2156, 1
      %v2159 = vor.u32 %v2154, %v2158
      %v2161 = vshll.u32 %v2025, 16
      %v2163 = vrot.slane %v2161, 1
      %v2164 = vsel %vm2044, %v2159, %v2163
      %v2166 = vshrl.u32 %v2026, 16
      %v2168 = vshll.u32 %v2026, 16
      %v2170 = vrot.slane %v2168, 1
      %v2171 = vor.u32 %v2166, %v2170
      %v2173 = vshll.u32 %v2027, 16
      %v2175 = vrot.slane %v2173, 1
      %v2176 = vsel %vm2044, %v2171, %v2175
      %v2178 = vshrl.u32 %v2028, 16
      %v2180 = vshll.u32 %v2028, 16
      %v2182 = vrot.slane %v2180, 1
      %v2183 = vor.u32 %v2178, %v2182
      %v2185 = vshll.u32 %v2029, 16
      %v2187 = vrot.slane %v2185, 1
      %v2188 = vsel %vm2044, %v2183, %v2187
      %v2190 = vshrl.u32 %v2030, 16
      %v2192 = vshll.u32 %v2030, 16
      %v2194 = vrot.slane %v2192, 1
      %v2195 = vor.u32 %v2190, %v2194
      %v2197 = vshll.u32 %v2031, 16
      %v2199 = vrot.slane %v2197, 1
      %v2200 = vsel %vm2044, %v2195, %v2199
      %v2202 = vshrl.u32 %v2032, 16
      %v2204 = vshll.u32 %v2032, 16
      %v2206 = vrot.slane %v2204, 1
      %v2207 = vor.u32 %v2202, %v2206
      %v2209 = vshll.u32 %v2033, 16
      %v2211 = vrot.slane %v2209, 1
      %v2212 = vsel %vm2044, %v2207, %v2211
      %v2214 = vshrl.u32 %v2034, 16
      %v2216 = vshll.u32 %v2034, 16
      %v2218 = vrot.slane %v2216, 1
      %v2219 = vor.u32 %v2214, %v2218
      %v2221 = vshll.u32 %v2035, 16
      %v2223 = vrot.slane %v2221, 1
      %v2224 = vsel %vm2044, %v2219, %v2223
      %v2226 = vshrl.u32 %v2036, 16
      %v2228 = vshll.u32 %v2036, 16
      %v2230 = vrot.slane %v2228, 1
      %v2231 = vor.u32 %v2226, %v2230
      %v2233 = vshll.u32 %v2037, 16
      %v2235 = vrot.slane %v2233, 1
      %v2236 = vsel %vm2044, %v2231, %v2235
      %s2237 = scalar_lea.vmem %s1, 8
      %v2238 = vld [vmem:[%s2237] sm:$0xf]
      %v2239 = vld [vmem:[%s2237 + $0x4] sm:$0xf]
      %v2242 = vunpack.c.l.b16 %v2238
      %v2243 = vunpack.c.l.b16 %v2239
      %v2244 = vpack.c.b16 %v2243, %v2242
      %vm2246 = vcmask 130048
      %v2248 = vsel %vm2246, %v2056, 0
      %v2251 = vsel %vm2246, %v2068, 0
      %v2254 = vsel %vm2246, %v2080, 0
      %v2257 = vsel %vm2246, %v2092, 0
      %v2260 = vsel %vm2246, %v2104, 0
      %v2263 = vsel %vm2246, %v2116, 0
      %v2266 = vsel %vm2246, %v2128, 0
      %v2269 = vsel %vm2246, %v2140, 0
      %v2272 = vsel %vm2246, %v2152, 0
      %v2275 = vsel %vm2246, %v2164, 0
      %v2278 = vsel %vm2246, %v2176, 0
      %v2281 = vsel %vm2246, %v2188, 0
      %v2284 = vsel %vm2246, %v2200, 0
      %v2287 = vsel %vm2246, %v2212, 0
      %v2290 = vsel %vm2246, %v2224, 0
      %v2293 = vsel %vm2246, %v2236, 0
      %2295 = vmatprep.subr.bf16.mxu0 0
      %2296 = vmatpush1.bf16.msra.mxu0 0
      %2297 = vmatprep.subr.bf16.mxu0 0
      %2298 = vmatpush1.bf16.msra.mxu0 0
      %2299 = vmatprep.subr.bf16.mxu0 0
      %2300 = vmatpush1.bf16.msra.mxu0 0
      %2301 = vmatprep.subr.bf16.mxu0 0
      %2302 = vmatpush1.bf16.msra.mxu0 0
      %2303 = vmatprep.subr.bf16.mxu0 0
      %2304 = vmatpush1.bf16.msra.mxu0 0
      %2305 = vmatprep.subr.bf16.mxu0 0
      %2306 = vmatpush1.bf16.msra.mxu0 0
      %2307 = vmatprep.subr.bf16.mxu0 0
      %2308 = vmatpush1.bf16.msra.mxu0 0
      %2309 = vmatprep.subr.bf16.mxu0 0
      %2310 = vmatpush1.bf16.msra.mxu0 %v2244
      %2311 = vmatprep.subr.bf16.mxu0 0
      %2312 = vmatpush2.bf16.msra.mxu0 0
      %2313 = vmatprep.subr.bf16.mxu0 0
      %2314 = vmatpush2.bf16.msra.mxu0 0
      %2315 = vmatprep.subr.bf16.mxu0 0
      %2316 = vmatpush2.bf16.msra.mxu0 0
      %2317 = vmatprep.subr.bf16.mxu0 0
      %2318 = vmatpush2.bf16.msra.mxu0 0
      %2319 = vmatprep.subr.bf16.mxu0 0
      %2320 = vmatpush2.bf16.msra.mxu0 0
      %2321 = vmatprep.subr.bf16.mxu0 0
      %2322 = vmatpush2.bf16.msra.mxu0 0
      %2323 = vmatprep.subr.bf16.mxu0 0
      %2324 = vmatpush2.bf16.msra.mxu0 0
      %2325 = vmatprep.subr.bf16.mxu0 0
      %2326 = vmatpush2.bf16.msra.mxu0 0
      %2327 = vmatprep.mubr.bf16.mxu0 0
      %2328 = vmatmul.mubr.bf16.gmra.mxu0 %v2248
      %v2329 = vpop.f32.mrf.mxu0
      %v2330 = vadd.f32 0.0, %v2329
      %v2331 = vpop.f32.mrf.mxu0
      %v2332 = vpop.f32.mrf.mxu0
      %v2333 = vadd.f32 0.0, %v2332
      %v2334 = vpop.f32.mrf.mxu0
      %2335 = vmatprep.mubr.bf16.mxu0 0
      %2336 = vmatmul.mubr.bf16.gmra.mxu0 %v2251
      %v2337 = vpop.f32.mrf.mxu0
      %v2338 = vadd.f32 0.0, %v2337
      %v2339 = vpop.f32.mrf.mxu0
      %v2340 = vpop.f32.mrf.mxu0
      %v2341 = vadd.f32 0.0, %v2340
      %v2342 = vpop.f32.mrf.mxu0
      %2343 = vmatprep.mubr.bf16.mxu0 0
      %2344 = vmatmul.mubr.bf16.gmra.mxu0 %v2254
      %v2345 = vpop.f32.mrf.mxu0
      %v2346 = vadd.f32 0.0, %v2345
      %v2347 = vpop.f32.mrf.mxu0
      %v2348 = vpop.f32.mrf.mxu0
      %v2349 = vadd.f32 0.0, %v2348
      %v2350 = vpop.f32.mrf.mxu0
      %2351 = vmatprep.mubr.bf16.mxu0 0
      %2352 = vmatmul.mubr.bf16.gmra.mxu0 %v2257
      %v2353 = vpop.f32.mrf.mxu0
      %v2354 = vadd.f32 0.0, %v2353
      %v2355 = vpop.f32.mrf.mxu0
      %v2356 = vpop.f32.mrf.mxu0
      %v2357 = vadd.f32 0.0, %v2356
      %v2358 = vpop.f32.mrf.mxu0
      %2359 = vmatprep.mubr.bf16.mxu0 0
      %2360 = vmatmul.mubr.bf16.gmra.mxu0 %v2260
      %v2361 = vpop.f32.mrf.mxu0
      %v2362 = vadd.f32 0.0, %v2361
      %v2363 = vpop.f32.mrf.mxu0
      %v2364 = vpop.f32.mrf.mxu0
      %v2365 = vadd.f32 0.0, %v2364
      %v2366 = vpop.f32.mrf.mxu0
      %2367 = vmatprep.mubr.bf16.mxu0 0
      %2368 = vmatmul.mubr.bf16.gmra.mxu0 %v2263
      %v2369 = vpop.f32.mrf.mxu0
      %v2370 = vadd.f32 0.0, %v2369
      %v2371 = vpop.f32.mrf.mxu0
      %v2372 = vpop.f32.mrf.mxu0
      %v2373 = vadd.f32 0.0, %v2372
      %v2374 = vpop.f32.mrf.mxu0
      %2375 = vmatprep.mubr.bf16.mxu0 0
      %2376 = vmatmul.mubr.bf16.gmra.mxu0 %v2266
      %v2377 = vpop.f32.mrf.mxu0
      %v2378 = vadd.f32 0.0, %v2377
      %v2379 = vpop.f32.mrf.mxu0
      %v2380 = vpop.f32.mrf.mxu0
      %v2381 = vadd.f32 0.0, %v2380
      %v2382 = vpop.f32.mrf.mxu0
      %2383 = vmatprep.mubr.bf16.mxu0 0
      %2384 = vmatmul.mubr.bf16.gmra.mxu0 %v2269
      %v2385 = vpop.f32.mrf.mxu0
      %v2386 = vadd.f32 0.0, %v2385
      %v2387 = vpop.f32.mrf.mxu0
      %v2388 = vpop.f32.mrf.mxu0
      %v2389 = vadd.f32 0.0, %v2388
      %v2390 = vpop.f32.mrf.mxu0
      %2391 = vmatprep.mubr.bf16.mxu0 0
      %2392 = vmatmul.mubr.bf16.gmra.mxu0 %v2272
      %v2393 = vpop.f32.mrf.mxu0
      %v2394 = vadd.f32 0.0, %v2393
      %v2395 = vpop.f32.mrf.mxu0
      %v2396 = vpop.f32.mrf.mxu0
      %v2397 = vadd.f32 0.0, %v2396
      %v2398 = vpop.f32.mrf.mxu0
      %2399 = vmatprep.mubr.bf16.mxu0 0
      %2400 = vmatmul.mubr.bf16.gmra.mxu0 %v2275
      %v2401 = vpop.f32.mrf.mxu0
      %v2402 = vadd.f32 0.0, %v2401
      %v2403 = vpop.f32.mrf.mxu0
      %v2404 = vpop.f32.mrf.mxu0
      %v2405 = vadd.f32 0.0, %v2404
      %v2406 = vpop.f32.mrf.mxu0
      %2407 = vmatprep.mubr.bf16.mxu0 0
      %2408 = vmatmul.mubr.bf16.gmra.mxu0 %v2278
      %v2409 = vpop.f32.mrf.mxu0
      %v2410 = vadd.f32 0.0, %v2409
      %v2411 = vpop.f32.mrf.mxu0
      %v2412 = vpop.f32.mrf.mxu0
      %v2413 = vadd.f32 0.0, %v2412
      %v2414 = vpop.f32.mrf.mxu0
      %2415 = vmatprep.mubr.bf16.mxu0 0
      %2416 = vmatmul.mubr.bf16.gmra.mxu0 %v2281
      %v2417 = vpop.f32.mrf.mxu0
      %v2418 = vadd.f32 0.0, %v2417
      %v2419 = vpop.f32.mrf.mxu0
      %v2420 = vpop.f32.mrf.mxu0
      %v2421 = vadd.f32 0.0, %v2420
      %v2422 = vpop.f32.mrf.mxu0
      %2423 = vmatprep.mubr.bf16.mxu0 0
      %2424 = vmatmul.mubr.bf16.gmra.mxu0 %v2284
      %v2425 = vpop.f32.mrf.mxu0
      %v2426 = vadd.f32 0.0, %v2425
      %v2427 = vpop.f32.mrf.mxu0
      %v2428 = vpop.f32.mrf.mxu0
      %v2429 = vadd.f32 0.0, %v2428
      %v2430 = vpop.f32.mrf.mxu0
      %2431 = vmatprep.mubr.bf16.mxu0 0
      %2432 = vmatmul.mubr.bf16.gmra.mxu0 %v2287
      %v2433 = vpop.f32.mrf.mxu0
      %v2434 = vadd.f32 0.0, %v2433
      %v2435 = vpop.f32.mrf.mxu0
      %v2436 = vpop.f32.mrf.mxu0
      %v2437 = vadd.f32 0.0, %v2436
      %v2438 = vpop.f32.mrf.mxu0
      %2439 = vmatprep.mubr.bf16.mxu0 0
      %2440 = vmatmul.mubr.bf16.gmra.mxu0 %v2290
      %v2441 = vpop.f32.mrf.mxu0
      %v2442 = vadd.f32 0.0, %v2441
      %v2443 = vpop.f32.mrf.mxu0
      %v2444 = vpop.f32.mrf.mxu0
      %v2445 = vadd.f32 0.0, %v2444
      %v2446 = vpop.f32.mrf.mxu0
      %2447 = vmatprep.mubr.bf16.mxu0 0
      %2448 = vmatmul.mubr.bf16.gmra.mxu0 %v2293
      %v2449 = vpop.f32.mrf.mxu0
      %v2450 = vadd.f32 0.0, %v2449
      %v2451 = vpop.f32.mrf.mxu0
      %v2452 = vpop.f32.mrf.mxu0
      %v2453 = vadd.f32 0.0, %v2452
      %v2454 = vpop.f32.mrf.mxu0
      %2455 = vdwg.mxu0
      %v2458 = vunpack.c.l.b16 %v2042
      %v2459 = vunpack.c.l.b16 %v2043
      %v2460 = vpack.c.b16 %v2459, %v2458
      %v2462 = vsel %vm2246, %v2006, 0
      %v2464 = vsel %vm2246, %v2008, 0
      %v2466 = vsel %vm2246, %v2010, 0
      %v2468 = vsel %vm2246, %v2012, 0
      %v2470 = vsel %vm2246, %v2014, 0
      %v2472 = vsel %vm2246, %v2016, 0
      %v2474 = vsel %vm2246, %v2018, 0
      %v2476 = vsel %vm2246, %v2020, 0
      %v2478 = vsel %vm2246, %v2022, 0
      %v2480 = vsel %vm2246, %v2024, 0
      %v2482 = vsel %vm2246, %v2026, 0
      %v2484 = vsel %vm2246, %v2028, 0
      %v2486 = vsel %vm2246, %v2030, 0
      %v2488 = vsel %vm2246, %v2032, 0
      %v2490 = vsel %vm2246, %v2034, 0
      %v2492 = vsel %vm2246, %v2036, 0
      %2494 = vmatprep.subr.bf16.mxu0 0
      %2495 = vmatpush1.bf16.msra.mxu0 0
      %2496 = vmatprep.subr.bf16.mxu0 0
      %2497 = vmatpush1.bf16.msra.mxu0 0
      %2498 = vmatprep.subr.bf16.mxu0 0
      %2499 = vmatpush1.bf16.msra.mxu0 0
      %2500 = vmatprep.subr.bf16.mxu0 0
      %2501 = vmatpush1.bf16.msra.mxu0 0
      %2502 = vmatprep.subr.bf16.mxu0 0
      %2503 = vmatpush1.bf16.msra.mxu0 0
      %2504 = vmatprep.subr.bf16.mxu0 0
      %2505 = vmatpush1.bf16.msra.mxu0 0
      %2506 = vmatprep.subr.bf16.mxu0 0
      %2507 = vmatpush1.bf16.msra.mxu0 0
      %2508 = vmatprep.subr.bf16.mxu0 0
      %2509 = vmatpush1.bf16.msra.mxu0 %v2460
      %2510 = vmatprep.subr.bf16.mxu0 0
      %2511 = vmatpush2.bf16.msra.mxu0 0
      %2512 = vmatprep.subr.bf16.mxu0 0
      %2513 = vmatpush2.bf16.msra.mxu0 0
      %2514 = vmatprep.subr.bf16.mxu0 0
      %2515 = vmatpush2.bf16.msra.mxu0 0
      %2516 = vmatprep.subr.bf16.mxu0 0
      %2517 = vmatpush2.bf16.msra.mxu0 0
      %2518 = vmatprep.subr.bf16.mxu0 0
      %2519 = vmatpush2.bf16.msra.mxu0 0
      %2520 = vmatprep.subr.bf16.mxu0 0
      %2521 = vmatpush2.bf16.msra.mxu0 0
      %2522 = vmatprep.subr.bf16.mxu0 0
      %2523 = vmatpush2.bf16.msra.mxu0 0
      %2524 = vmatprep.subr.bf16.mxu0 0
      %2525 = vmatpush2.bf16.msra.mxu0 0
      %2526 = vmatprep.mubr.bf16.mxu0 0
      %2527 = vmatmul.mubr.bf16.gmra.mxu0 %v2462
      %v2528 = vpop.f32.mrf.mxu0
      %v2529 = vadd.f32 %v2330, %v2528
      %v2530 = vpop.f32.mrf.mxu0
      %v2531 = vpop.f32.mrf.mxu0
      %v2532 = vadd.f32 %v2333, %v2531
      %v2533 = vpop.f32.mrf.mxu0
      %2534 = vmatprep.mubr.bf16.mxu0 0
      %2535 = vmatmul.mubr.bf16.gmra.mxu0 %v2464
      %v2536 = vpop.f32.mrf.mxu0
      %v2537 = vadd.f32 %v2338, %v2536
      %v2538 = vpop.f32.mrf.mxu0
      %v2539 = vpop.f32.mrf.mxu0
      %v2540 = vadd.f32 %v2341, %v2539
      %v2541 = vpop.f32.mrf.mxu0
      %2542 = vmatprep.mubr.bf16.mxu0 0
      %2543 = vmatmul.mubr.bf16.gmra.mxu0 %v2466
      %v2544 = vpop.f32.mrf.mxu0
      %v2545 = vadd.f32 %v2346, %v2544
      %v2546 = vpop.f32.mrf.mxu0
      %v2547 = vpop.f32.mrf.mxu0
      %v2548 = vadd.f32 %v2349, %v2547
      %v2549 = vpop.f32.mrf.mxu0
      %2550 = vmatprep.mubr.bf16.mxu0 0
      %2551 = vmatmul.mubr.bf16.gmra.mxu0 %v2468
      %v2552 = vpop.f32.mrf.mxu0
      %v2553 = vadd.f32 %v2354, %v2552
      %v2554 = vpop.f32.mrf.mxu0
      %v2555 = vpop.f32.mrf.mxu0
      %v2556 = vadd.f32 %v2357, %v2555
      %v2557 = vpop.f32.mrf.mxu0
      %2558 = vmatprep.mubr.bf16.mxu0 0
      %2559 = vmatmul.mubr.bf16.gmra.mxu0 %v2470
      %v2560 = vpop.f32.mrf.mxu0
      %v2561 = vadd.f32 %v2362, %v2560
      %v2562 = vpop.f32.mrf.mxu0
      %v2563 = vpop.f32.mrf.mxu0
      %v2564 = vadd.f32 %v2365, %v2563
      %v2565 = vpop.f32.mrf.mxu0
      %2566 = vmatprep.mubr.bf16.mxu0 0
      %2567 = vmatmul.mubr.bf16.gmra.mxu0 %v2472
      %v2568 = vpop.f32.mrf.mxu0
      %v2569 = vadd.f32 %v2370, %v2568
      %v2570 = vpop.f32.mrf.mxu0
      %v2571 = vpop.f32.mrf.mxu0
      %v2572 = vadd.f32 %v2373, %v2571
      %v2573 = vpop.f32.mrf.mxu0
      %2574 = vmatprep.mubr.bf16.mxu0 0
      %2575 = vmatmul.mubr.bf16.gmra.mxu0 %v2474
      %v2576 = vpop.f32.mrf.mxu0
      %v2577 = vadd.f32 %v2378, %v2576
      %v2578 = vpop.f32.mrf.mxu0
      %v2579 = vpop.f32.mrf.mxu0
      %v2580 = vadd.f32 %v2381, %v2579
      %v2581 = vpop.f32.mrf.mxu0
      %2582 = vmatprep.mubr.bf16.mxu0 0
      %2583 = vmatmul.mubr.bf16.gmra.mxu0 %v2476
      %v2584 = vpop.f32.mrf.mxu0
      %v2585 = vadd.f32 %v2386, %v2584
      %v2586 = vpop.f32.mrf.mxu0
      %v2587 = vpop.f32.mrf.mxu0
      %v2588 = vadd.f32 %v2389, %v2587
      %v2589 = vpop.f32.mrf.mxu0
      %2590 = vmatprep.mubr.bf16.mxu0 0
      %2591 = vmatmul.mubr.bf16.gmra.mxu0 %v2478
      %v2592 = vpop.f32.mrf.mxu0
      %v2593 = vadd.f32 %v2394, %v2592
      %v2594 = vpop.f32.mrf.mxu0
      %v2595 = vpop.f32.mrf.mxu0
      %v2596 = vadd.f32 %v2397, %v2595
      %v2597 = vpop.f32.mrf.mxu0
      %2598 = vmatprep.mubr.bf16.mxu0 0
      %2599 = vmatmul.mubr.bf16.gmra.mxu0 %v2480
      %v2600 = vpop.f32.mrf.mxu0
      %v2601 = vadd.f32 %v2402, %v2600
      %v2602 = vpop.f32.mrf.mxu0
      %v2603 = vpop.f32.mrf.mxu0
      %v2604 = vadd.f32 %v2405, %v2603
      %v2605 = vpop.f32.mrf.mxu0
      %2606 = vmatprep.mubr.bf16.mxu0 0
      %2607 = vmatmul.mubr.bf16.gmra.mxu0 %v2482
      %v2608 = vpop.f32.mrf.mxu0
      %v2609 = vadd.f32 %v2410, %v2608
      %v2610 = vpop.f32.mrf.mxu0
      %v2611 = vpop.f32.mrf.mxu0
      %v2612 = vadd.f32 %v2413, %v2611
      %v2613 = vpop.f32.mrf.mxu0
      %2614 = vmatprep.mubr.bf16.mxu0 0
      %2615 = vmatmul.mubr.bf16.gmra.mxu0 %v2484
      %v2616 = vpop.f32.mrf.mxu0
      %v2617 = vadd.f32 %v2418, %v2616
      %v2618 = vpop.f32.mrf.mxu0
      %v2619 = vpop.f32.mrf.mxu0
      %v2620 = vadd.f32 %v2421, %v2619
      %v2621 = vpop.f32.mrf.mxu0
      %2622 = vmatprep.mubr.bf16.mxu0 0
      %2623 = vmatmul.mubr.bf16.gmra.mxu0 %v2486
      %v2624 = vpop.f32.mrf.mxu0
      %v2625 = vadd.f32 %v2426, %v2624
      %v2626 = vpop.f32.mrf.mxu0
      %v2627 = vpop.f32.mrf.mxu0
      %v2628 = vadd.f32 %v2429, %v2627
      %v2629 = vpop.f32.mrf.mxu0
      %2630 = vmatprep.mubr.bf16.mxu0 0
      %2631 = vmatmul.mubr.bf16.gmra.mxu0 %v2488
      %v2632 = vpop.f32.mrf.mxu0
      %v2633 = vadd.f32 %v2434, %v2632
      %v2634 = vpop.f32.mrf.mxu0
      %v2635 = vpop.f32.mrf.mxu0
      %v2636 = vadd.f32 %v2437, %v2635
      %v2637 = vpop.f32.mrf.mxu0
      %2638 = vmatprep.mubr.bf16.mxu0 0
      %2639 = vmatmul.mubr.bf16.gmra.mxu0 %v2490
      %v2640 = vpop.f32.mrf.mxu0
      %v2641 = vadd.f32 %v2442, %v2640
      %v2642 = vpop.f32.mrf.mxu0
      %v2643 = vpop.f32.mrf.mxu0
      %v2644 = vadd.f32 %v2445, %v2643
      %v2645 = vpop.f32.mrf.mxu0
      %2646 = vmatprep.mubr.bf16.mxu0 0
      %2647 = vmatmul.mubr.bf16.gmra.mxu0 %v2492
      %v2648 = vpop.f32.mrf.mxu0
      %v2649 = vadd.f32 %v2450, %v2648
      %v2650 = vpop.f32.mrf.mxu0
      %v2651 = vpop.f32.mrf.mxu0
      %v2652 = vadd.f32 %v2453, %v2651
      %v2653 = vpop.f32.mrf.mxu0
      %2654 = vdwg.mxu0
      %vm2687 = vcmask 1046528
      %v2688 = vrot.slane %v2006, 1
      %v2689 = vrot.slane %v2007, 1
      %v2690 = vsel %vm2687, %v2688, %v2689
      %v2691 = vrot.slane %v2008, 1
      %v2692 = vrot.slane %v2009, 1
      %v2693 = vsel %vm2687, %v2691, %v2692
      %v2694 = vrot.slane %v2010, 1
      %v2695 = vrot.slane %v2011, 1
      %v2696 = vsel %vm2687, %v2694, %v2695
      %v2697 = vrot.slane %v2012, 1
      %v2698 = vrot.slane %v2013, 1
      %v2699 = vsel %vm2687, %v2697, %v2698
      %v2700 = vrot.slane %v2014, 1
      %v2701 = vrot.slane %v2015, 1
      %v2702 = vsel %vm2687, %v2700, %v2701
      %v2703 = vrot.slane %v2016, 1
      %v2704 = vrot.slane %v2017, 1
      %v2705 = vsel %vm2687, %v2703, %v2704
      %v2706 = vrot.slane %v2018, 1
      %v2707 = vrot.slane %v2019, 1
      %v2708 = vsel %vm2687, %v2706, %v2707
      %v2709 = vrot.slane %v2020, 1
      %v2710 = vrot.slane %v2021, 1
      %v2711 = vsel %vm2687, %v2709, %v2710
      %v2712 = vrot.slane %v2022, 1
      %v2713 = vrot.slane %v2023, 1
      %v2714 = vsel %vm2687, %v2712, %v2713
      %v2715 = vrot.slane %v2024, 1
      %v2716 = vrot.slane %v2025, 1
      %v2717 = vsel %vm2687, %v2715, %v2716
      %v2718 = vrot.slane %v2026, 1
      %v2719 = vrot.slane %v2027, 1
      %v2720 = vsel %vm2687, %v2718, %v2719
      %v2721 = vrot.slane %v2028, 1
      %v2722 = vrot.slane %v2029, 1
      %v2723 = vsel %vm2687, %v2721, %v2722
      %v2724 = vrot.slane %v2030, 1
      %v2725 = vrot.slane %v2031, 1
      %v2726 = vsel %vm2687, %v2724, %v2725
      %v2727 = vrot.slane %v2032, 1
      %v2728 = vrot.slane %v2033, 1
      %v2729 = vsel %vm2687, %v2727, %v2728
      %v2730 = vrot.slane %v2034, 1
      %v2731 = vrot.slane %v2035, 1
      %v2732 = vsel %vm2687, %v2730, %v2731
      %v2733 = vrot.slane %v2036, 1
      %v2734 = vrot.slane %v2037, 1
      %v2735 = vsel %vm2687, %v2733, %v2734
      %s2736 = scalar_lea.vmem %s1, 16
      %v2737 = vld [vmem:[%s2736] sm:$0xf]
      %v2738 = vld [vmem:[%s2736 + $0x4] sm:$0xf]
      %v2741 = vunpack.c.l.b16 %v2737
      %v2742 = vunpack.c.l.b16 %v2738
      %v2743 = vpack.c.b16 %v2742, %v2741
      %v2746 = vsel %vm2246, %v2690, 0
      %v2749 = vsel %vm2246, %v2693, 0
      %v2752 = vsel %vm2246, %v2696, 0
      %v2755 = vsel %vm2246, %v2699, 0
      %v2758 = vsel %vm2246, %v2702, 0
      %v2761 = vsel %vm2246, %v2705, 0
      %v2764 = vsel %vm2246, %v2708, 0
      %v2767 = vsel %vm2246, %v2711, 0
      %v2770 = vsel %vm2246, %v2714, 0
      %v2773 = vsel %vm2246, %v2717, 0
      %v2776 = vsel %vm2246, %v2720, 0
      %v2779 = vsel %vm2246, %v2723, 0
      %v2782 = vsel %vm2246, %v2726, 0
      %v2785 = vsel %vm2246, %v2729, 0
      %v2788 = vsel %vm2246, %v2732, 0
      %v2791 = vsel %vm2246, %v2735, 0
      %2793 = vmatprep.subr.bf16.mxu0 0
      %2794 = vmatpush1.bf16.msra.mxu0 0
      %2795 = vmatprep.subr.bf16.mxu0 0
      %2796 = vmatpush1.bf16.msra.mxu0 0
      %2797 = vmatprep.subr.bf16.mxu0 0
      %2798 = vmatpush1.bf16.msra.mxu0 0
      %2799 = vmatprep.subr.bf16.mxu0 0
      %2800 = vmatpush1.bf16.msra.mxu0 0
      %2801 = vmatprep.subr.bf16.mxu0 0
      %2802 = vmatpush1.bf16.msra.mxu0 0
      %2803 = vmatprep.subr.bf16.mxu0 0
      %2804 = vmatpush1.bf16.msra.mxu0 0
      %2805 = vmatprep.subr.bf16.mxu0 0
      %2806 = vmatpush1.bf16.msra.mxu0 0
      %2807 = vmatprep.subr.bf16.mxu0 0
      %2808 = vmatpush1.bf16.msra.mxu0 %v2743
      %2809 = vmatprep.subr.bf16.mxu0 0
      %2810 = vmatpush2.bf16.msra.mxu0 0
      %2811 = vmatprep.subr.bf16.mxu0 0
      %2812 = vmatpush2.bf16.msra.mxu0 0
      %2813 = vmatprep.subr.bf16.mxu0 0
      %2814 = vmatpush2.bf16.msra.mxu0 0
      %2815 = vmatprep.subr.bf16.mxu0 0
      %2816 = vmatpush2.bf16.msra.mxu0 0
      %2817 = vmatprep.subr.bf16.mxu0 0
      %2818 = vmatpush2.bf16.msra.mxu0 0
      %2819 = vmatprep.subr.bf16.mxu0 0
      %2820 = vmatpush2.bf16.msra.mxu0 0
      %2821 = vmatprep.subr.bf16.mxu0 0
      %2822 = vmatpush2.bf16.msra.mxu0 0
      %2823 = vmatprep.subr.bf16.mxu0 0
      %2824 = vmatpush2.bf16.msra.mxu0 0
      %2825 = vmatprep.mubr.bf16.mxu0 0
      %2826 = vmatmul.mubr.bf16.gmra.mxu0 %v2746
      %v2827 = vpop.f32.mrf.mxu0
      %v2828 = vadd.f32 0.0, %v2827
      %v2829 = vpop.f32.mrf.mxu0
      %v2830 = vpop.f32.mrf.mxu0
      %v2831 = vadd.f32 0.0, %v2830
      %v2832 = vpop.f32.mrf.mxu0
      %2833 = vmatprep.mubr.bf16.mxu0 0
      %2834 = vmatmul.mubr.bf16.gmra.mxu0 %v2749
      %v2835 = vpop.f32.mrf.mxu0
      %v2836 = vadd.f32 0.0, %v2835
      %v2837 = vpop.f32.mrf.mxu0
      %v2838 = vpop.f32.mrf.mxu0
      %v2839 = vadd.f32 0.0, %v2838
      %v2840 = vpop.f32.mrf.mxu0
      %2841 = vmatprep.mubr.bf16.mxu0 0
      %2842 = vmatmul.mubr.bf16.gmra.mxu0 %v2752
      %v2843 = vpop.f32.mrf.mxu0
      %v2844 = vadd.f32 0.0, %v2843
      %v2845 = vpop.f32.mrf.mxu0
      %v2846 = vpop.f32.mrf.mxu0
      %v2847 = vadd.f32 0.0, %v2846
      %v2848 = vpop.f32.mrf.mxu0
      %2849 = vmatprep.mubr.bf16.mxu0 0
      %2850 = vmatmul.mubr.bf16.gmra.mxu0 %v2755
      %v2851 = vpop.f32.mrf.mxu0
      %v2852 = vadd.f32 0.0, %v2851
      %v2853 = vpop.f32.mrf.mxu0
      %v2854 = vpop.f32.mrf.mxu0
      %v2855 = vadd.f32 0.0, %v2854
      %v2856 = vpop.f32.mrf.mxu0
      %2857 = vmatprep.mubr.bf16.mxu0 0
      %2858 = vmatmul.mubr.bf16.gmra.mxu0 %v2758
      %v2859 = vpop.f32.mrf.mxu0
      %v2860 = vadd.f32 0.0, %v2859
      %v2861 = vpop.f32.mrf.mxu0
      %v2862 = vpop.f32.mrf.mxu0
      %v2863 = vadd.f32 0.0, %v2862
      %v2864 = vpop.f32.mrf.mxu0
      %2865 = vmatprep.mubr.bf16.mxu0 0
      %2866 = vmatmul.mubr.bf16.gmra.mxu0 %v2761
      %v2867 = vpop.f32.mrf.mxu0
      %v2868 = vadd.f32 0.0, %v2867
      %v2869 = vpop.f32.mrf.mxu0
      %v2870 = vpop.f32.mrf.mxu0
      %v2871 = vadd.f32 0.0, %v2870
      %v2872 = vpop.f32.mrf.mxu0
      %2873 = vmatprep.mubr.bf16.mxu0 0
      %2874 = vmatmul.mubr.bf16.gmra.mxu0 %v2764
      %v2875 = vpop.f32.mrf.mxu0
      %v2876 = vadd.f32 0.0, %v2875
      %v2877 = vpop.f32.mrf.mxu0
      %v2878 = vpop.f32.mrf.mxu0
      %v2879 = vadd.f32 0.0, %v2878
      %v2880 = vpop.f32.mrf.mxu0
      %2881 = vmatprep.mubr.bf16.mxu0 0
      %2882 = vmatmul.mubr.bf16.gmra.mxu0 %v2767
      %v2883 = vpop.f32.mrf.mxu0
      %v2884 = vadd.f32 0.0, %v2883
      %v2885 = vpop.f32.mrf.mxu0
      %v2886 = vpop.f32.mrf.mxu0
      %v2887 = vadd.f32 0.0, %v2886
      %v2888 = vpop.f32.mrf.mxu0
      %2889 = vmatprep.mubr.bf16.mxu0 0
      %2890 = vmatmul.mubr.bf16.gmra.mxu0 %v2770
      %v2891 = vpop.f32.mrf.mxu0
      %v2892 = vadd.f32 0.0, %v2891
      %v2893 = vpop.f32.mrf.mxu0
      %v2894 = vpop.f32.mrf.mxu0
      %v2895 = vadd.f32 0.0, %v2894
      %v2896 = vpop.f32.mrf.mxu0
      %2897 = vmatprep.mubr.bf16.mxu0 0
      %2898 = vmatmul.mubr.bf16.gmra.mxu0 %v2773
      %v2899 = vpop.f32.mrf.mxu0
      %v2900 = vadd.f32 0.0, %v2899
      %v2901 = vpop.f32.mrf.mxu0
      %v2902 = vpop.f32.mrf.mxu0
      %v2903 = vadd.f32 0.0, %v2902
      %v2904 = vpop.f32.mrf.mxu0
      %2905 = vmatprep.mubr.bf16.mxu0 0
      %2906 = vmatmul.mubr.bf16.gmra.mxu0 %v2776
      %v2907 = vpop.f32.mrf.mxu0
      %v2908 = vadd.f32 0.0, %v2907
      %v2909 = vpop.f32.mrf.mxu0
      %v2910 = vpop.f32.mrf.mxu0
      %v2911 = vadd.f32 0.0, %v2910
      %v2912 = vpop.f32.mrf.mxu0
      %2913 = vmatprep.mubr.bf16.mxu0 0
      %2914 = vmatmul.mubr.bf16.gmra.mxu0 %v2779
      %v2915 = vpop.f32.mrf.mxu0
      %v2916 = vadd.f32 0.0, %v2915
      %v2917 = vpop.f32.mrf.mxu0
      %v2918 = vpop.f32.mrf.mxu0
      %v2919 = vadd.f32 0.0, %v2918
      %v2920 = vpop.f32.mrf.mxu0
      %2921 = vmatprep.mubr.bf16.mxu0 0
      %2922 = vmatmul.mubr.bf16.gmra.mxu0 %v2782
      %v2923 = vpop.f32.mrf.mxu0
      %v2924 = vadd.f32 0.0, %v2923
      %v2925 = vpop.f32.mrf.mxu0
      %v2926 = vpop.f32.mrf.mxu0
      %v2927 = vadd.f32 0.0, %v2926
      %v2928 = vpop.f32.mrf.mxu0
      %2929 = vmatprep.mubr.bf16.mxu0 0
      %2930 = vmatmul.mubr.bf16.gmra.mxu0 %v2785
      %v2931 = vpop.f32.mrf.mxu0
      %v2932 = vadd.f32 0.0, %v2931
      %v2933 = vpop.f32.mrf.mxu0
      %v2934 = vpop.f32.mrf.mxu0
      %v2935 = vadd.f32 0.0, %v2934
      %v2936 = vpop.f32.mrf.mxu0
      %2937 = vmatprep.mubr.bf16.mxu0 0
      %2938 = vmatmul.mubr.bf16.gmra.mxu0 %v2788
      %v2939 = vpop.f32.mrf.mxu0
      %v2940 = vadd.f32 0.0, %v2939
      %v2941 = vpop.f32.mrf.mxu0
      %v2942 = vpop.f32.mrf.mxu0
      %v2943 = vadd.f32 0.0, %v2942
      %v2944 = vpop.f32.mrf.mxu0
      %2945 = vmatprep.mubr.bf16.mxu0 0
      %2946 = vmatmul.mubr.bf16.gmra.mxu0 %v2791
      %v2947 = vpop.f32.mrf.mxu0
      %v2948 = vadd.f32 0.0, %v2947
      %v2949 = vpop.f32.mrf.mxu0
      %v2950 = vpop.f32.mrf.mxu0
      %v2951 = vadd.f32 0.0, %v2950
      %v2952 = vpop.f32.mrf.mxu0
      %2953 = vdwg.mxu0
      %v2954 = vadd.f32 %v2529, %v2828
      %v2955 = vadd.f32 %v2532, %v2831
      %v2956 = vadd.f32 %v2537, %v2836
      %v2957 = vadd.f32 %v2540, %v2839
      %v2958 = vadd.f32 %v2545, %v2844
      %v2959 = vadd.f32 %v2548, %v2847
      %v2960 = vadd.f32 %v2553, %v2852
      %v2961 = vadd.f32 %v2556, %v2855
      %v2962 = vadd.f32 %v2561, %v2860
      %v2963 = vadd.f32 %v2564, %v2863
      %v2964 = vadd.f32 %v2569, %v2868
      %v2965 = vadd.f32 %v2572, %v2871
      %v2966 = vadd.f32 %v2577, %v2876
      %v2967 = vadd.f32 %v2580, %v2879
      %v2968 = vadd.f32 %v2585, %v2884
      %v2969 = vadd.f32 %v2588, %v2887
      %v2970 = vadd.f32 %v2593, %v2892
      %v2971 = vadd.f32 %v2596, %v2895
      %v2972 = vadd.f32 %v2601, %v2900
      %v2973 = vadd.f32 %v2604, %v2903
      %v2974 = vadd.f32 %v2609, %v2908
      %v2975 = vadd.f32 %v2612, %v2911
      %v2976 = vadd.f32 %v2617, %v2916
      %v2977 = vadd.f32 %v2620, %v2919
      %v2978 = vadd.f32 %v2625, %v2924
      %v2979 = vadd.f32 %v2628, %v2927
      %v2980 = vadd.f32 %v2633, %v2932
      %v2981 = vadd.f32 %v2636, %v2935
      %v2982 = vadd.f32 %v2641, %v2940
      %v2983 = vadd.f32 %v2644, %v2943
      %v2984 = vadd.f32 %v2649, %v2948
      %v2985 = vadd.f32 %v2652, %v2951
      %s2986 = scalar_lea.vmem %s1, 24
      %v2987 = vld [vmem:[%s2986] sm:$0xf]
      %v2988 = vld [vmem:[%s2986 + $0x4] sm:$0xf]
      %v2991 = vunpack.c.l.b16 %v2987
      %v2992 = vunpack.c.l.b16 %v2988
      %v2993 = vpack.c.b16 %v2992, %v2991
      %v2996 = vsel %vm2246, %v2038, 0
      %2998 = vmatprep.subr.bf16.mxu0 0
      %2999 = vmatpush1.bf16.msra.mxu0 0
      %3000 = vmatprep.subr.bf16.mxu0 0
      %3001 = vmatpush1.bf16.msra.mxu0 0
      %3002 = vmatprep.subr.bf16.mxu0 0
      %3003 = vmatpush1.bf16.msra.mxu0 0
      %3004 = vmatprep.subr.bf16.mxu0 0
      %3005 = vmatpush1.bf16.msra.mxu0 0
      %3006 = vmatprep.subr.bf16.mxu0 0
      %3007 = vmatpush1.bf16.msra.mxu0 0
      %3008 = vmatprep.subr.bf16.mxu0 0
      %3009 = vmatpush1.bf16.msra.mxu0 0
      %3010 = vmatprep.subr.bf16.mxu0 0
      %3011 = vmatpush1.bf16.msra.mxu0 0
      %3012 = vmatprep.subr.bf16.mxu0 0
      %3013 = vmatpush1.bf16.msra.mxu0 %v2993
      %3014 = vmatprep.subr.bf16.mxu0 0
      %3015 = vmatpush2.bf16.msra.mxu0 0
      %3016 = vmatprep.subr.bf16.mxu0 0
      %3017 = vmatpush2.bf16.msra.mxu0 0
      %3018 = vmatprep.subr.bf16.mxu0 0
      %3019 = vmatpush2.bf16.msra.mxu0 0
      %3020 = vmatprep.subr.bf16.mxu0 0
      %3021 = vmatpush2.bf16.msra.mxu0 0
      %3022 = vmatprep.subr.bf16.mxu0 0
      %3023 = vmatpush2.bf16.msra.mxu0 0
      %3024 = vmatprep.subr.bf16.mxu0 0
      %3025 = vmatpush2.bf16.msra.mxu0 0
      %3026 = vmatprep.subr.bf16.mxu0 0
      %3027 = vmatpush2.bf16.msra.mxu0 0
      %3028 = vmatprep.subr.bf16.mxu0 0
      %3029 = vmatpush2.bf16.msra.mxu0 0
      %3030 = vmatprep.mubr.bf16.mxu0 0
      %3031 = vmatmul.mubr.bf16.gmra.mxu0 %v2464
      %v3032 = vpop.f32.mrf.mxu0
      %v3033 = vadd.f32 0.0, %v3032
      %v3034 = vpop.f32.mrf.mxu0
      %v3035 = vpop.f32.mrf.mxu0
      %v3036 = vadd.f32 0.0, %v3035
      %v3037 = vpop.f32.mrf.mxu0
      %3038 = vmatprep.mubr.bf16.mxu0 0
      %3039 = vmatmul.mubr.bf16.gmra.mxu0 %v2466
      %v3040 = vpop.f32.mrf.mxu0
      %v3041 = vadd.f32 0.0, %v3040
      %v3042 = vpop.f32.mrf.mxu0
      %v3043 = vpop.f32.mrf.mxu0
      %v3044 = vadd.f32 0.0, %v3043
      %v3045 = vpop.f32.mrf.mxu0
      %3046 = vmatprep.mubr.bf16.mxu0 0
      %3047 = vmatmul.mubr.bf16.gmra.mxu0 %v2468
      %v3048 = vpop.f32.mrf.mxu0
      %v3049 = vadd.f32 0.0, %v3048
      %v3050 = vpop.f32.mrf.mxu0
      %v3051 = vpop.f32.mrf.mxu0
      %v3052 = vadd.f32 0.0, %v3051
      %v3053 = vpop.f32.mrf.mxu0
      %3054 = vmatprep.mubr.bf16.mxu0 0
      %3055 = vmatmul.mubr.bf16.gmra.mxu0 %v2470
      %v3056 = vpop.f32.mrf.mxu0
      %v3057 = vadd.f32 0.0, %v3056
      %v3058 = vpop.f32.mrf.mxu0
      %v3059 = vpop.f32.mrf.mxu0
      %v3060 = vadd.f32 0.0, %v3059
      %v3061 = vpop.f32.mrf.mxu0
      %3062 = vmatprep.mubr.bf16.mxu0 0
      %3063 = vmatmul.mubr.bf16.gmra.mxu0 %v2472
      %v3064 = vpop.f32.mrf.mxu0
      %v3065 = vadd.f32 0.0, %v3064
      %v3066 = vpop.f32.mrf.mxu0
      %v3067 = vpop.f32.mrf.mxu0
      %v3068 = vadd.f32 0.0, %v3067
      %v3069 = vpop.f32.mrf.mxu0
      %3070 = vmatprep.mubr.bf16.mxu0 0
      %3071 = vmatmul.mubr.bf16.gmra.mxu0 %v2474
      %v3072 = vpop.f32.mrf.mxu0
      %v3073 = vadd.f32 0.0, %v3072
      %v3074 = vpop.f32.mrf.mxu0
      %v3075 = vpop.f32.mrf.mxu0
      %v3076 = vadd.f32 0.0, %v3075
      %v3077 = vpop.f32.mrf.mxu0
      %3078 = vmatprep.mubr.bf16.mxu0 0
      %3079 = vmatmul.mubr.bf16.gmra.mxu0 %v2476
      %v3080 = vpop.f32.mrf.mxu0
      %v3081 = vadd.f32 0.0, %v3080
      %v3082 = vpop.f32.mrf.mxu0
      %v3083 = vpop.f32.mrf.mxu0
      %v3084 = vadd.f32 0.0, %v3083
      %v3085 = vpop.f32.mrf.mxu0
      %3086 = vmatprep.mubr.bf16.mxu0 0
      %3087 = vmatmul.mubr.bf16.gmra.mxu0 %v2478
      %v3088 = vpop.f32.mrf.mxu0
      %v3089 = vadd.f32 0.0, %v3088
      %v3090 = vpop.f32.mrf.mxu0
      %v3091 = vpop.f32.mrf.mxu0
      %v3092 = vadd.f32 0.0, %v3091
      %v3093 = vpop.f32.mrf.mxu0
      %3094 = vmatprep.mubr.bf16.mxu0 0
      %3095 = vmatmul.mubr.bf16.gmra.mxu0 %v2480
      %v3096 = vpop.f32.mrf.mxu0
      %v3097 = vadd.f32 0.0, %v3096
      %v3098 = vpop.f32.mrf.mxu0
      %v3099 = vpop.f32.mrf.mxu0
      %v3100 = vadd.f32 0.0, %v3099
      %v3101 = vpop.f32.mrf.mxu0
      %3102 = vmatprep.mubr.bf16.mxu0 0
      %3103 = vmatmul.mubr.bf16.gmra.mxu0 %v2482
      %v3104 = vpop.f32.mrf.mxu0
      %v3105 = vadd.f32 0.0, %v3104
      %v3106 = vpop.f32.mrf.mxu0
      %v3107 = vpop.f32.mrf.mxu0
      %v3108 = vadd.f32 0.0, %v3107
      %v3109 = vpop.f32.mrf.mxu0
      %3110 = vmatprep.mubr.bf16.mxu0 0
      %3111 = vmatmul.mubr.bf16.gmra.mxu0 %v2484
      %v3112 = vpop.f32.mrf.mxu0
      %v3113 = vadd.f32 0.0, %v3112
      %v3114 = vpop.f32.mrf.mxu0
      %v3115 = vpop.f32.mrf.mxu0
      %v3116 = vadd.f32 0.0, %v3115
      %v3117 = vpop.f32.mrf.mxu0
      %3118 = vmatprep.mubr.bf16.mxu0 0
      %3119 = vmatmul.mubr.bf16.gmra.mxu0 %v2486
      %v3120 = vpop.f32.mrf.mxu0
      %v3121 = vadd.f32 0.0, %v3120
      %v3122 = vpop.f32.mrf.mxu0
      %v3123 = vpop.f32.mrf.mxu0
      %v3124 = vadd.f32 0.0, %v3123
      %v3125 = vpop.f32.mrf.mxu0
      %3126 = vmatprep.mubr.bf16.mxu0 0
      %3127 = vmatmul.mubr.bf16.gmra.mxu0 %v2488
      %v3128 = vpop.f32.mrf.mxu0
      %v3129 = vadd.f32 0.0, %v3128
      %v3130 = vpop.f32.mrf.mxu0
      %v3131 = vpop.f32.mrf.mxu0
      %v3132 = vadd.f32 0.0, %v3131
      %v3133 = vpop.f32.mrf.mxu0
      %3134 = vmatprep.mubr.bf16.mxu0 0
      %3135 = vmatmul.mubr.bf16.gmra.mxu0 %v2490
      %v3136 = vpop.f32.mrf.mxu0
      %v3137 = vadd.f32 0.0, %v3136
      %v3138 = vpop.f32.mrf.mxu0
      %v3139 = vpop.f32.mrf.mxu0
      %v3140 = vadd.f32 0.0, %v3139
      %v3141 = vpop.f32.mrf.mxu0
      %3142 = vmatprep.mubr.bf16.mxu0 0
      %3143 = vmatmul.mubr.bf16.gmra.mxu0 %v2492
      %v3144 = vpop.f32.mrf.mxu0
      %v3145 = vadd.f32 0.0, %v3144
      %v3146 = vpop.f32.mrf.mxu0
      %v3147 = vpop.f32.mrf.mxu0
      %v3148 = vadd.f32 0.0, %v3147
      %v3149 = vpop.f32.mrf.mxu0
      %3150 = vmatprep.mubr.bf16.mxu0 0
      %3151 = vmatmul.mubr.bf16.gmra.mxu0 %v2996
      %v3152 = vpop.f32.mrf.mxu0
      %v3153 = vadd.f32 0.0, %v3152
      %v3154 = vpop.f32.mrf.mxu0
      %v3155 = vpop.f32.mrf.mxu0
      %v3156 = vadd.f32 0.0, %v3155
      %v3157 = vpop.f32.mrf.mxu0
      %3158 = vdwg.mxu0
      %v3159 = vadd.f32 %v2954, %v3033
      %v3160 = vadd.f32 %v2955, %v3036
      %v3161 = vadd.f32 %v2956, %v3041
      %v3162 = vadd.f32 %v2957, %v3044
      %v3163 = vadd.f32 %v2958, %v3049
      %v3164 = vadd.f32 %v2959, %v3052
      %v3165 = vadd.f32 %v2960, %v3057
      %v3166 = vadd.f32 %v2961, %v3060
      %v3167 = vadd.f32 %v2962, %v3065
      %v3168 = vadd.f32 %v2963, %v3068
      %v3169 = vadd.f32 %v2964, %v3073
      %v3170 = vadd.f32 %v2965, %v3076
      %v3171 = vadd.f32 %v2966, %v3081
      %v3172 = vadd.f32 %v2967, %v3084
      %v3173 = vadd.f32 %v2968, %v3089
      %v3174 = vadd.f32 %v2969, %v3092
      %v3175 = vadd.f32 %v2970, %v3097
      %v3176 = vadd.f32 %v2971, %v3100
      %v3177 = vadd.f32 %v2972, %v3105
      %v3178 = vadd.f32 %v2973, %v3108
      %v3179 = vadd.f32 %v2974, %v3113
      %v3180 = vadd.f32 %v2975, %v3116
      %v3181 = vadd.f32 %v2976, %v3121
      %v3182 = vadd.f32 %v2977, %v3124
      %v3183 = vadd.f32 %v2978, %v3129
      %v3184 = vadd.f32 %v2979, %v3132
      %v3185 = vadd.f32 %v2980, %v3137
      %v3186 = vadd.f32 %v2981, %v3140
      %v3187 = vadd.f32 %v2982, %v3145
      %v3188 = vadd.f32 %v2983, %v3148
      %v3189 = vadd.f32 %v2984, %v3153
      %v3190 = vadd.f32 %v2985, %v3156
      %v3191 = vshrl.u32 %v2038, 16
      %v3193 = vshll.u32 %v2038, 16
      %v3195 = vrot.slane %v3193, 1
      %v3196 = vor.u32 %v3191, %v3195
      %v3198 = vshll.u32 %v2039, 16
      %v3200 = vrot.slane %v3198, 1
      %v3201 = vsel %vm2044, %v3196, %v3200
      %s3202 = scalar_lea.vmem %s1, 32
      %v3203 = vld [vmem:[%s3202] sm:$0xf]
      %v3204 = vld [vmem:[%s3202 + $0x4] sm:$0xf]
      %v3207 = vunpack.c.l.b16 %v3203
      %v3208 = vunpack.c.l.b16 %v3204
      %v3209 = vpack.c.b16 %v3208, %v3207
      %v3212 = vsel %vm2246, %v3201, 0
      %3214 = vmatprep.subr.bf16.mxu0 0
      %3215 = vmatpush1.bf16.msra.mxu0 0
      %3216 = vmatprep.subr.bf16.mxu0 0
      %3217 = vmatpush1.bf16.msra.mxu0 0
      %3218 = vmatprep.subr.bf16.mxu0 0
      %3219 = vmatpush1.bf16.msra.mxu0 0
      %3220 = vmatprep.subr.bf16.mxu0 0
      %3221 = vmatpush1.bf16.msra.mxu0 0
      %3222 = vmatprep.subr.bf16.mxu0 0
      %3223 = vmatpush1.bf16.msra.mxu0 0
      %3224 = vmatprep.subr.bf16.mxu0 0
      %3225 = vmatpush1.bf16.msra.mxu0 0
      %3226 = vmatprep.subr.bf16.mxu0 0
      %3227 = vmatpush1.bf16.msra.mxu0 0
      %3228 = vmatprep.subr.bf16.mxu0 0
      %3229 = vmatpush1.bf16.msra.mxu0 %v3209
      %3230 = vmatprep.subr.bf16.mxu0 0
      %3231 = vmatpush2.bf16.msra.mxu0 0
      %3232 = vmatprep.subr.bf16.mxu0 0
      %3233 = vmatpush2.bf16.msra.mxu0 0
      %3234 = vmatprep.subr.bf16.mxu0 0
      %3235 = vmatpush2.bf16.msra.mxu0 0
      %3236 = vmatprep.subr.bf16.mxu0 0
      %3237 = vmatpush2.bf16.msra.mxu0 0
      %3238 = vmatprep.subr.bf16.mxu0 0
      %3239 = vmatpush2.bf16.msra.mxu0 0
      %3240 = vmatprep.subr.bf16.mxu0 0
      %3241 = vmatpush2.bf16.msra.mxu0 0
      %3242 = vmatprep.subr.bf16.mxu0 0
      %3243 = vmatpush2.bf16.msra.mxu0 0
      %3244 = vmatprep.subr.bf16.mxu0 0
      %3245 = vmatpush2.bf16.msra.mxu0 0
      %3246 = vmatprep.mubr.bf16.mxu0 0
      %3247 = vmatmul.mubr.bf16.gmra.mxu0 %v2251
      %v3248 = vpop.f32.mrf.mxu0
      %v3249 = vadd.f32 0.0, %v3248
      %v3250 = vpop.f32.mrf.mxu0
      %v3251 = vpop.f32.mrf.mxu0
      %v3252 = vadd.f32 0.0, %v3251
      %v3253 = vpop.f32.mrf.mxu0
      %3254 = vmatprep.mubr.bf16.mxu0 0
      %3255 = vmatmul.mubr.bf16.gmra.mxu0 %v2254
      %v3256 = vpop.f32.mrf.mxu0
      %v3257 = vadd.f32 0.0, %v3256
      %v3258 = vpop.f32.mrf.mxu0
      %v3259 = vpop.f32.mrf.mxu0
      %v3260 = vadd.f32 0.0, %v3259
      %v3261 = vpop.f32.mrf.mxu0
      %3262 = vmatprep.mubr.bf16.mxu0 0
      %3263 = vmatmul.mubr.bf16.gmra.mxu0 %v2257
      %v3264 = vpop.f32.mrf.mxu0
      %v3265 = vadd.f32 0.0, %v3264
      %v3266 = vpop.f32.mrf.mxu0
      %v3267 = vpop.f32.mrf.mxu0
      %v3268 = vadd.f32 0.0, %v3267
      %v3269 = vpop.f32.mrf.mxu0
      %3270 = vmatprep.mubr.bf16.mxu0 0
      %3271 = vmatmul.mubr.bf16.gmra.mxu0 %v2260
      %v3272 = vpop.f32.mrf.mxu0
      %v3273 = vadd.f32 0.0, %v3272
      %v3274 = vpop.f32.mrf.mxu0
      %v3275 = vpop.f32.mrf.mxu0
      %v3276 = vadd.f32 0.0, %v3275
      %v3277 = vpop.f32.mrf.mxu0
      %3278 = vmatprep.mubr.bf16.mxu0 0
      %3279 = vmatmul.mubr.bf16.gmra.mxu0 %v2263
      %v3280 = vpop.f32.mrf.mxu0
      %v3281 = vadd.f32 0.0, %v3280
      %v3282 = vpop.f32.mrf.mxu0
      %v3283 = vpop.f32.mrf.mxu0
      %v3284 = vadd.f32 0.0, %v3283
      %v3285 = vpop.f32.mrf.mxu0
      %3286 = vmatprep.mubr.bf16.mxu0 0
      %3287 = vmatmul.mubr.bf16.gmra.mxu0 %v2266
      %v3288 = vpop.f32.mrf.mxu0
      %v3289 = vadd.f32 0.0, %v3288
      %v3290 = vpop.f32.mrf.mxu0
      %v3291 = vpop.f32.mrf.mxu0
      %v3292 = vadd.f32 0.0, %v3291
      %v3293 = vpop.f32.mrf.mxu0
      %3294 = vmatprep.mubr.bf16.mxu0 0
      %3295 = vmatmul.mubr.bf16.gmra.mxu0 %v2269
      %v3296 = vpop.f32.mrf.mxu0
      %v3297 = vadd.f32 0.0, %v3296
      %v3298 = vpop.f32.mrf.mxu0
      %v3299 = vpop.f32.mrf.mxu0
      %v3300 = vadd.f32 0.0, %v3299
      %v3301 = vpop.f32.mrf.mxu0
      %3302 = vmatprep.mubr.bf16.mxu0 0
      %3303 = vmatmul.mubr.bf16.gmra.mxu0 %v2272
      %v3304 = vpop.f32.mrf.mxu0
      %v3305 = vadd.f32 0.0, %v3304
      %v3306 = vpop.f32.mrf.mxu0
      %v3307 = vpop.f32.mrf.mxu0
      %v3308 = vadd.f32 0.0, %v3307
      %v3309 = vpop.f32.mrf.mxu0
      %3310 = vmatprep.mubr.bf16.mxu0 0
      %3311 = vmatmul.mubr.bf16.gmra.mxu0 %v2275
      %v3312 = vpop.f32.mrf.mxu0
      %v3313 = vadd.f32 0.0, %v3312
      %v3314 = vpop.f32.mrf.mxu0
      %v3315 = vpop.f32.mrf.mxu0
      %v3316 = vadd.f32 0.0, %v3315
      %v3317 = vpop.f32.mrf.mxu0
      %3318 = vmatprep.mubr.bf16.mxu0 0
      %3319 = vmatmul.mubr.bf16.gmra.mxu0 %v2278
      %v3320 = vpop.f32.mrf.mxu0
      %v3321 = vadd.f32 0.0, %v3320
      %v3322 = vpop.f32.mrf.mxu0
      %v3323 = vpop.f32.mrf.mxu0
      %v3324 = vadd.f32 0.0, %v3323
      %v3325 = vpop.f32.mrf.mxu0
      %3326 = vmatprep.mubr.bf16.mxu0 0
      %3327 = vmatmul.mubr.bf16.gmra.mxu0 %v2281
      %v3328 = vpop.f32.mrf.mxu0
      %v3329 = vadd.f32 0.0, %v3328
      %v3330 = vpop.f32.mrf.mxu0
      %v3331 = vpop.f32.mrf.mxu0
      %v3332 = vadd.f32 0.0, %v3331
      %v3333 = vpop.f32.mrf.mxu0
      %3334 = vmatprep.mubr.bf16.mxu0 0
      %3335 = vmatmul.mubr.bf16.gmra.mxu0 %v2284
      %v3336 = vpop.f32.mrf.mxu0
      %v3337 = vadd.f32 0.0, %v3336
      %v3338 = vpop.f32.mrf.mxu0
      %v3339 = vpop.f32.mrf.mxu0
      %v3340 = vadd.f32 0.0, %v3339
      %v3341 = vpop.f32.mrf.mxu0
      %3342 = vmatprep.mubr.bf16.mxu0 0
      %3343 = vmatmul.mubr.bf16.gmra.mxu0 %v2287
      %v3344 = vpop.f32.mrf.mxu0
      %v3345 = vadd.f32 0.0, %v3344
      %v3346 = vpop.f32.mrf.mxu0
      %v3347 = vpop.f32.mrf.mxu0
      %v3348 = vadd.f32 0.0, %v3347
      %v3349 = vpop.f32.mrf.mxu0
      %3350 = vmatprep.mubr.bf16.mxu0 0
      %3351 = vmatmul.mubr.bf16.gmra.mxu0 %v2290
      %v3352 = vpop.f32.mrf.mxu0
      %v3353 = vadd.f32 0.0, %v3352
      %v3354 = vpop.f32.mrf.mxu0
      %v3355 = vpop.f32.mrf.mxu0
      %v3356 = vadd.f32 0.0, %v3355
      %v3357 = vpop.f32.mrf.mxu0
      %3358 = vmatprep.mubr.bf16.mxu0 0
      %3359 = vmatmul.mubr.bf16.gmra.mxu0 %v2293
      %v3360 = vpop.f32.mrf.mxu0
      %v3361 = vadd.f32 0.0, %v3360
      %v3362 = vpop.f32.mrf.mxu0
      %v3363 = vpop.f32.mrf.mxu0
      %v3364 = vadd.f32 0.0, %v3363
      %v3365 = vpop.f32.mrf.mxu0
      %3366 = vmatprep.mubr.bf16.mxu0 0
      %3367 = vmatmul.mubr.bf16.gmra.mxu0 %v3212
      %v3368 = vpop.f32.mrf.mxu0
      %v3369 = vadd.f32 0.0, %v3368
      %v3370 = vpop.f32.mrf.mxu0
      %v3371 = vpop.f32.mrf.mxu0
      %v3372 = vadd.f32 0.0, %v3371
      %v3373 = vpop.f32.mrf.mxu0
      %3374 = vdwg.mxu0
      %v3375 = vadd.f32 %v3159, %v3249
      %v3376 = vadd.f32 %v3160, %v3252
      %v3377 = vadd.f32 %v3161, %v3257
      %v3378 = vadd.f32 %v3162, %v3260
      %v3379 = vadd.f32 %v3163, %v3265
      %v3380 = vadd.f32 %v3164, %v3268
      %v3381 = vadd.f32 %v3165, %v3273
      %v3382 = vadd.f32 %v3166, %v3276
      %v3383 = vadd.f32 %v3167, %v3281
      %v3384 = vadd.f32 %v3168, %v3284
      %v3385 = vadd.f32 %v3169, %v3289
      %v3386 = vadd.f32 %v3170, %v3292
      %v3387 = vadd.f32 %v3171, %v3297
      %v3388 = vadd.f32 %v3172, %v3300
      %v3389 = vadd.f32 %v3173, %v3305
      %v3390 = vadd.f32 %v3174, %v3308
      %v3391 = vadd.f32 %v3175, %v3313
      %v3392 = vadd.f32 %v3176, %v3316
      %v3393 = vadd.f32 %v3177, %v3321
      %v3394 = vadd.f32 %v3178, %v3324
      %v3395 = vadd.f32 %v3179, %v3329
      %v3396 = vadd.f32 %v3180, %v3332
      %v3397 = vadd.f32 %v3181, %v3337
      %v3398 = vadd.f32 %v3182, %v3340
      %v3399 = vadd.f32 %v3183, %v3345
      %v3400 = vadd.f32 %v3184, %v3348
      %v3401 = vadd.f32 %v3185, %v3353
      %v3402 = vadd.f32 %v3186, %v3356
      %v3403 = vadd.f32 %v3187, %v3361
      %v3404 = vadd.f32 %v3188, %v3364
      %v3405 = vadd.f32 %v3189, %v3369
      %v3406 = vadd.f32 %v3190, %v3372
      %v3409 = vrot.slane %v2038, 1
      %v3410 = vrot.slane %v2039, 1
      %v3411 = vsel %vm2687, %v3409, %v3410
      %s3412 = scalar_lea.vmem %s1, 40
      %v3413 = vld [vmem:[%s3412] sm:$0xf]
      %v3414 = vld [vmem:[%s3412 + $0x4] sm:$0xf]
      %v3417 = vunpack.c.l.b16 %v3413
      %v3418 = vunpack.c.l.b16 %v3414
      %v3419 = vpack.c.b16 %v3418, %v3417
      %v3422 = vsel %vm2246, %v3411, 0
      %3424 = vmatprep.subr.bf16.mxu0 0
      %3425 = vmatpush1.bf16.msra.mxu0 0
      %3426 = vmatprep.subr.bf16.mxu0 0
      %3427 = vmatpush1.bf16.msra.mxu0 0
      %3428 = vmatprep.subr.bf16.mxu0 0
      %3429 = vmatpush1.bf16.msra.mxu0 0
      %3430 = vmatprep.subr.bf16.mxu0 0
      %3431 = vmatpush1.bf16.msra.mxu0 0
      %3432 = vmatprep.subr.bf16.mxu0 0
      %3433 = vmatpush1.bf16.msra.mxu0 0
      %3434 = vmatprep.subr.bf16.mxu0 0
      %3435 = vmatpush1.bf16.msra.mxu0 0
      %3436 = vmatprep.subr.bf16.mxu0 0
      %3437 = vmatpush1.bf16.msra.mxu0 0
      %3438 = vmatprep.subr.bf16.mxu0 0
      %3439 = vmatpush1.bf16.msra.mxu0 %v3419
      %3440 = vmatprep.subr.bf16.mxu0 0
      %3441 = vmatpush2.bf16.msra.mxu0 0
      %3442 = vmatprep.subr.bf16.mxu0 0
      %3443 = vmatpush2.bf16.msra.mxu0 0
      %3444 = vmatprep.subr.bf16.mxu0 0
      %3445 = vmatpush2.bf16.msra.mxu0 0
      %3446 = vmatprep.subr.bf16.mxu0 0
      %3447 = vmatpush2.bf16.msra.mxu0 0
      %3448 = vmatprep.subr.bf16.mxu0 0
      %3449 = vmatpush2.bf16.msra.mxu0 0
      %3450 = vmatprep.subr.bf16.mxu0 0
      %3451 = vmatpush2.bf16.msra.mxu0 0
      %3452 = vmatprep.subr.bf16.mxu0 0
      %3453 = vmatpush2.bf16.msra.mxu0 0
      %3454 = vmatprep.subr.bf16.mxu0 0
      %3455 = vmatpush2.bf16.msra.mxu0 0
      %3456 = vmatprep.mubr.bf16.mxu0 0
      %3457 = vmatmul.mubr.bf16.gmra.mxu0 %v2749
      %v3458 = vpop.f32.mrf.mxu0
      %v3459 = vadd.f32 0.0, %v3458
      %v3460 = vpop.f32.mrf.mxu0
      %v3461 = vpop.f32.mrf.mxu0
      %v3462 = vadd.f32 0.0, %v3461
      %v3463 = vpop.f32.mrf.mxu0
      %3464 = vmatprep.mubr.bf16.mxu0 0
      %3465 = vmatmul.mubr.bf16.gmra.mxu0 %v2752
      %v3466 = vpop.f32.mrf.mxu0
      %v3467 = vadd.f32 0.0, %v3466
      %v3468 = vpop.f32.mrf.mxu0
      %v3469 = vpop.f32.mrf.mxu0
      %v3470 = vadd.f32 0.0, %v3469
      %v3471 = vpop.f32.mrf.mxu0
      %3472 = vmatprep.mubr.bf16.mxu0 0
      %3473 = vmatmul.mubr.bf16.gmra.mxu0 %v2755
      %v3474 = vpop.f32.mrf.mxu0
      %v3475 = vadd.f32 0.0, %v3474
      %v3476 = vpop.f32.mrf.mxu0
      %v3477 = vpop.f32.mrf.mxu0
      %v3478 = vadd.f32 0.0, %v3477
      %v3479 = vpop.f32.mrf.mxu0
      %3480 = vmatprep.mubr.bf16.mxu0 0
      %3481 = vmatmul.mubr.bf16.gmra.mxu0 %v2758
      %v3482 = vpop.f32.mrf.mxu0
      %v3483 = vadd.f32 0.0, %v3482
      %v3484 = vpop.f32.mrf.mxu0
      %v3485 = vpop.f32.mrf.mxu0
      %v3486 = vadd.f32 0.0, %v3485
      %v3487 = vpop.f32.mrf.mxu0
      %3488 = vmatprep.mubr.bf16.mxu0 0
      %3489 = vmatmul.mubr.bf16.gmra.mxu0 %v2761
      %v3490 = vpop.f32.mrf.mxu0
      %v3491 = vadd.f32 0.0, %v3490
      %v3492 = vpop.f32.mrf.mxu0
      %v3493 = vpop.f32.mrf.mxu0
      %v3494 = vadd.f32 0.0, %v3493
      %v3495 = vpop.f32.mrf.mxu0
      %3496 = vmatprep.mubr.bf16.mxu0 0
      %3497 = vmatmul.mubr.bf16.gmra.mxu0 %v2764
      %v3498 = vpop.f32.mrf.mxu0
      %v3499 = vadd.f32 0.0, %v3498
      %v3500 = vpop.f32.mrf.mxu0
      %v3501 = vpop.f32.mrf.mxu0
      %v3502 = vadd.f32 0.0, %v3501
      %v3503 = vpop.f32.mrf.mxu0
      %3504 = vmatprep.mubr.bf16.mxu0 0
      %3505 = vmatmul.mubr.bf16.gmra.mxu0 %v2767
      %v3506 = vpop.f32.mrf.mxu0
      %v3507 = vadd.f32 0.0, %v3506
      %v3508 = vpop.f32.mrf.mxu0
      %v3509 = vpop.f32.mrf.mxu0
      %v3510 = vadd.f32 0.0, %v3509
      %v3511 = vpop.f32.mrf.mxu0
      %3512 = vmatprep.mubr.bf16.mxu0 0
      %3513 = vmatmul.mubr.bf16.gmra.mxu0 %v2770
      %v3514 = vpop.f32.mrf.mxu0
      %v3515 = vadd.f32 0.0, %v3514
      %v3516 = vpop.f32.mrf.mxu0
      %v3517 = vpop.f32.mrf.mxu0
      %v3518 = vadd.f32 0.0, %v3517
      %v3519 = vpop.f32.mrf.mxu0
      %3520 = vmatprep.mubr.bf16.mxu0 0
      %3521 = vmatmul.mubr.bf16.gmra.mxu0 %v2773
      %v3522 = vpop.f32.mrf.mxu0
      %v3523 = vadd.f32 0.0, %v3522
      %v3524 = vpop.f32.mrf.mxu0
      %v3525 = vpop.f32.mrf.mxu0
      %v3526 = vadd.f32 0.0, %v3525
      %v3527 = vpop.f32.mrf.mxu0
      %3528 = vmatprep.mubr.bf16.mxu0 0
      %3529 = vmatmul.mubr.bf16.gmra.mxu0 %v2776
      %v3530 = vpop.f32.mrf.mxu0
      %v3531 = vadd.f32 0.0, %v3530
      %v3532 = vpop.f32.mrf.mxu0
      %v3533 = vpop.f32.mrf.mxu0
      %v3534 = vadd.f32 0.0, %v3533
      %v3535 = vpop.f32.mrf.mxu0
      %3536 = vmatprep.mubr.bf16.mxu0 0
      %3537 = vmatmul.mubr.bf16.gmra.mxu0 %v2779
      %v3538 = vpop.f32.mrf.mxu0
      %v3539 = vadd.f32 0.0, %v3538
      %v3540 = vpop.f32.mrf.mxu0
      %v3541 = vpop.f32.mrf.mxu0
      %v3542 = vadd.f32 0.0, %v3541
      %v3543 = vpop.f32.mrf.mxu0
      %3544 = vmatprep.mubr.bf16.mxu0 0
      %3545 = vmatmul.mubr.bf16.gmra.mxu0 %v2782
      %v3546 = vpop.f32.mrf.mxu0
      %v3547 = vadd.f32 0.0, %v3546
      %v3548 = vpop.f32.mrf.mxu0
      %v3549 = vpop.f32.mrf.mxu0
      %v3550 = vadd.f32 0.0, %v3549
      %v3551 = vpop.f32.mrf.mxu0
      %3552 = vmatprep.mubr.bf16.mxu0 0
      %3553 = vmatmul.mubr.bf16.gmra.mxu0 %v2785
      %v3554 = vpop.f32.mrf.mxu0
      %v3555 = vadd.f32 0.0, %v3554
      %v3556 = vpop.f32.mrf.mxu0
      %v3557 = vpop.f32.mrf.mxu0
      %v3558 = vadd.f32 0.0, %v3557
      %v3559 = vpop.f32.mrf.mxu0
      %3560 = vmatprep.mubr.bf16.mxu0 0
      %3561 = vmatmul.mubr.bf16.gmra.mxu0 %v2788
      %v3562 = vpop.f32.mrf.mxu0
      %v3563 = vadd.f32 0.0, %v3562
      %v3564 = vpop.f32.mrf.mxu0
      %v3565 = vpop.f32.mrf.mxu0
      %v3566 = vadd.f32 0.0, %v3565
      %v3567 = vpop.f32.mrf.mxu0
      %3568 = vmatprep.mubr.bf16.mxu0 0
      %3569 = vmatmul.mubr.bf16.gmra.mxu0 %v2791
      %v3570 = vpop.f32.mrf.mxu0
      %v3571 = vadd.f32 0.0, %v3570
      %v3572 = vpop.f32.mrf.mxu0
      %v3573 = vpop.f32.mrf.mxu0
      %v3574 = vadd.f32 0.0, %v3573
      %v3575 = vpop.f32.mrf.mxu0
      %3576 = vmatprep.mubr.bf16.mxu0 0
      %3577 = vmatmul.mubr.bf16.gmra.mxu0 %v3422
      %v3578 = vpop.f32.mrf.mxu0
      %v3579 = vadd.f32 0.0, %v3578
      %v3580 = vpop.f32.mrf.mxu0
      %v3581 = vpop.f32.mrf.mxu0
      %v3582 = vadd.f32 0.0, %v3581
      %v3583 = vpop.f32.mrf.mxu0
      %3584 = vdwg.mxu0
      %v3585 = vadd.f32 %v3375, %v3459
      %v3586 = vadd.f32 %v3376, %v3462
      %v3587 = vadd.f32 %v3377, %v3467
      %v3588 = vadd.f32 %v3378, %v3470
      %v3589 = vadd.f32 %v3379, %v3475
      %v3590 = vadd.f32 %v3380, %v3478
      %v3591 = vadd.f32 %v3381, %v3483
      %v3592 = vadd.f32 %v3382, %v3486
      %v3593 = vadd.f32 %v3383, %v3491
      %v3594 = vadd.f32 %v3384, %v3494
      %v3595 = vadd.f32 %v3385, %v3499
      %v3596 = vadd.f32 %v3386, %v3502
      %v3597 = vadd.f32 %v3387, %v3507
      %v3598 = vadd.f32 %v3388, %v3510
      %v3599 = vadd.f32 %v3389, %v3515
      %v3600 = vadd.f32 %v3390, %v3518
      %v3601 = vadd.f32 %v3391, %v3523
      %v3602 = vadd.f32 %v3392, %v3526
      %v3603 = vadd.f32 %v3393, %v3531
      %v3604 = vadd.f32 %v3394, %v3534
      %v3605 = vadd.f32 %v3395, %v3539
      %v3606 = vadd.f32 %v3396, %v3542
      %v3607 = vadd.f32 %v3397, %v3547
      %v3608 = vadd.f32 %v3398, %v3550
      %v3609 = vadd.f32 %v3399, %v3555
      %v3610 = vadd.f32 %v3400, %v3558
      %v3611 = vadd.f32 %v3401, %v3563
      %v3612 = vadd.f32 %v3402, %v3566
      %v3613 = vadd.f32 %v3403, %v3571
      %v3614 = vadd.f32 %v3404, %v3574
      %v3615 = vadd.f32 %v3405, %v3579
      %v3616 = vadd.f32 %v3406, %v3582
      %s3617 = scalar_lea.vmem %s1, 48
      %v3618 = vld [vmem:[%s3617] sm:$0xf]
      %v3619 = vld [vmem:[%s3617 + $0x4] sm:$0xf]
      %v3622 = vunpack.c.l.b16 %v3618
      %v3623 = vunpack.c.l.b16 %v3619
      %v3624 = vpack.c.b16 %v3623, %v3622
      %v3627 = vsel %vm2246, %v2040, 0
      %3629 = vmatprep.subr.bf16.mxu0 0
      %3630 = vmatpush1.bf16.msra.mxu0 0
      %3631 = vmatprep.subr.bf16.mxu0 0
      %3632 = vmatpush1.bf16.msra.mxu0 0
      %3633 = vmatprep.subr.bf16.mxu0 0
      %3634 = vmatpush1.bf16.msra.mxu0 0
      %3635 = vmatprep.subr.bf16.mxu0 0
      %3636 = vmatpush1.bf16.msra.mxu0 0
      %3637 = vmatprep.subr.bf16.mxu0 0
      %3638 = vmatpush1.bf16.msra.mxu0 0
      %3639 = vmatprep.subr.bf16.mxu0 0
      %3640 = vmatpush1.bf16.msra.mxu0 0
      %3641 = vmatprep.subr.bf16.mxu0 0
      %3642 = vmatpush1.bf16.msra.mxu0 0
      %3643 = vmatprep.subr.bf16.mxu0 0
      %3644 = vmatpush1.bf16.msra.mxu0 %v3624
      %3645 = vmatprep.subr.bf16.mxu0 0
      %3646 = vmatpush2.bf16.msra.mxu0 0
      %3647 = vmatprep.subr.bf16.mxu0 0
      %3648 = vmatpush2.bf16.msra.mxu0 0
      %3649 = vmatprep.subr.bf16.mxu0 0
      %3650 = vmatpush2.bf16.msra.mxu0 0
      %3651 = vmatprep.subr.bf16.mxu0 0
      %3652 = vmatpush2.bf16.msra.mxu0 0
      %3653 = vmatprep.subr.bf16.mxu0 0
      %3654 = vmatpush2.bf16.msra.mxu0 0
      %3655 = vmatprep.subr.bf16.mxu0 0
      %3656 = vmatpush2.bf16.msra.mxu0 0
      %3657 = vmatprep.subr.bf16.mxu0 0
      %3658 = vmatpush2.bf16.msra.mxu0 0
      %3659 = vmatprep.subr.bf16.mxu0 0
      %3660 = vmatpush2.bf16.msra.mxu0 0
      %3661 = vmatprep.mubr.bf16.mxu0 0
      %3662 = vmatmul.mubr.bf16.gmra.mxu0 %v2466
      %v3663 = vpop.f32.mrf.mxu0
      %v3664 = vadd.f32 0.0, %v3663
      %v3665 = vpop.f32.mrf.mxu0
      %v3666 = vpop.f32.mrf.mxu0
      %v3667 = vadd.f32 0.0, %v3666
      %v3668 = vpop.f32.mrf.mxu0
      %3669 = vmatprep.mubr.bf16.mxu0 0
      %3670 = vmatmul.mubr.bf16.gmra.mxu0 %v2468
      %v3671 = vpop.f32.mrf.mxu0
      %v3672 = vadd.f32 0.0, %v3671
      %v3673 = vpop.f32.mrf.mxu0
      %v3674 = vpop.f32.mrf.mxu0
      %v3675 = vadd.f32 0.0, %v3674
      %v3676 = vpop.f32.mrf.mxu0
      %3677 = vmatprep.mubr.bf16.mxu0 0
      %3678 = vmatmul.mubr.bf16.gmra.mxu0 %v2470
      %v3679 = vpop.f32.mrf.mxu0
      %v3680 = vadd.f32 0.0, %v3679
      %v3681 = vpop.f32.mrf.mxu0
      %v3682 = vpop.f32.mrf.mxu0
      %v3683 = vadd.f32 0.0, %v3682
      %v3684 = vpop.f32.mrf.mxu0
      %3685 = vmatprep.mubr.bf16.mxu0 0
      %3686 = vmatmul.mubr.bf16.gmra.mxu0 %v2472
      %v3687 = vpop.f32.mrf.mxu0
      %v3688 = vadd.f32 0.0, %v3687
      %v3689 = vpop.f32.mrf.mxu0
      %v3690 = vpop.f32.mrf.mxu0
      %v3691 = vadd.f32 0.0, %v3690
      %v3692 = vpop.f32.mrf.mxu0
      %3693 = vmatprep.mubr.bf16.mxu0 0
      %3694 = vmatmul.mubr.bf16.gmra.mxu0 %v2474
      %v3695 = vpop.f32.mrf.mxu0
      %v3696 = vadd.f32 0.0, %v3695
      %v3697 = vpop.f32.mrf.mxu0
      %v3698 = vpop.f32.mrf.mxu0
      %v3699 = vadd.f32 0.0, %v3698
      %v3700 = vpop.f32.mrf.mxu0
      %3701 = vmatprep.mubr.bf16.mxu0 0
      %3702 = vmatmul.mubr.bf16.gmra.mxu0 %v2476
      %v3703 = vpop.f32.mrf.mxu0
      %v3704 = vadd.f32 0.0, %v3703
      %v3705 = vpop.f32.mrf.mxu0
      %v3706 = vpop.f32.mrf.mxu0
      %v3707 = vadd.f32 0.0, %v3706
      %v3708 = vpop.f32.mrf.mxu0
      %3709 = vmatprep.mubr.bf16.mxu0 0
      %3710 = vmatmul.mubr.bf16.gmra.mxu0 %v2478
      %v3711 = vpop.f32.mrf.mxu0
      %v3712 = vadd.f32 0.0, %v3711
      %v3713 = vpop.f32.mrf.mxu0
      %v3714 = vpop.f32.mrf.mxu0
      %v3715 = vadd.f32 0.0, %v3714
      %v3716 = vpop.f32.mrf.mxu0
      %3717 = vmatprep.mubr.bf16.mxu0 0
      %3718 = vmatmul.mubr.bf16.gmra.mxu0 %v2480
      %v3719 = vpop.f32.mrf.mxu0
      %v3720 = vadd.f32 0.0, %v3719
      %v3721 = vpop.f32.mrf.mxu0
      %v3722 = vpop.f32.mrf.mxu0
      %v3723 = vadd.f32 0.0, %v3722
      %v3724 = vpop.f32.mrf.mxu0
      %3725 = vmatprep.mubr.bf16.mxu0 0
      %3726 = vmatmul.mubr.bf16.gmra.mxu0 %v2482
      %v3727 = vpop.f32.mrf.mxu0
      %v3728 = vadd.f32 0.0, %v3727
      %v3729 = vpop.f32.mrf.mxu0
      %v3730 = vpop.f32.mrf.mxu0
      %v3731 = vadd.f32 0.0, %v3730
      %v3732 = vpop.f32.mrf.mxu0
      %3733 = vmatprep.mubr.bf16.mxu0 0
      %3734 = vmatmul.mubr.bf16.gmra.mxu0 %v2484
      %v3735 = vpop.f32.mrf.mxu0
      %v3736 = vadd.f32 0.0, %v3735
      %v3737 = vpop.f32.mrf.mxu0
      %v3738 = vpop.f32.mrf.mxu0
      %v3739 = vadd.f32 0.0, %v3738
      %v3740 = vpop.f32.mrf.mxu0
      %3741 = vmatprep.mubr.bf16.mxu0 0
      %3742 = vmatmul.mubr.bf16.gmra.mxu0 %v2486
      %v3743 = vpop.f32.mrf.mxu0
      %v3744 = vadd.f32 0.0, %v3743
      %v3745 = vpop.f32.mrf.mxu0
      %v3746 = vpop.f32.mrf.mxu0
      %v3747 = vadd.f32 0.0, %v3746
      %v3748 = vpop.f32.mrf.mxu0
      %3749 = vmatprep.mubr.bf16.mxu0 0
      %3750 = vmatmul.mubr.bf16.gmra.mxu0 %v2488
      %v3751 = vpop.f32.mrf.mxu0
      %v3752 = vadd.f32 0.0, %v3751
      %v3753 = vpop.f32.mrf.mxu0
      %v3754 = vpop.f32.mrf.mxu0
      %v3755 = vadd.f32 0.0, %v3754
      %v3756 = vpop.f32.mrf.mxu0
      %3757 = vmatprep.mubr.bf16.mxu0 0
      %3758 = vmatmul.mubr.bf16.gmra.mxu0 %v2490
      %v3759 = vpop.f32.mrf.mxu0
      %v3760 = vadd.f32 0.0, %v3759
      %v3761 = vpop.f32.mrf.mxu0
      %v3762 = vpop.f32.mrf.mxu0
      %v3763 = vadd.f32 0.0, %v3762
      %v3764 = vpop.f32.mrf.mxu0
      %3765 = vmatprep.mubr.bf16.mxu0 0
      %3766 = vmatmul.mubr.bf16.gmra.mxu0 %v2492
      %v3767 = vpop.f32.mrf.mxu0
      %v3768 = vadd.f32 0.0, %v3767
      %v3769 = vpop.f32.mrf.mxu0
      %v3770 = vpop.f32.mrf.mxu0
      %v3771 = vadd.f32 0.0, %v3770
      %v3772 = vpop.f32.mrf.mxu0
      %3773 = vmatprep.mubr.bf16.mxu0 0
      %3774 = vmatmul.mubr.bf16.gmra.mxu0 %v2996
      %v3775 = vpop.f32.mrf.mxu0
      %v3776 = vadd.f32 0.0, %v3775
      %v3777 = vpop.f32.mrf.mxu0
      %v3778 = vpop.f32.mrf.mxu0
      %v3779 = vadd.f32 0.0, %v3778
      %v3780 = vpop.f32.mrf.mxu0
      %3781 = vmatprep.mubr.bf16.mxu0 0
      %3782 = vmatmul.mubr.bf16.gmra.mxu0 %v3627
      %v3783 = vpop.f32.mrf.mxu0
      %v3784 = vadd.f32 0.0, %v3783
      %v3785 = vpop.f32.mrf.mxu0
      %v3786 = vpop.f32.mrf.mxu0
      %v3787 = vadd.f32 0.0, %v3786
      %v3788 = vpop.f32.mrf.mxu0
      %3789 = vdwg.mxu0
      %v3790 = vadd.f32 %v3585, %v3664
      %v3791 = vadd.f32 %v3586, %v3667
      %v3792 = vadd.f32 %v3587, %v3672
      %v3793 = vadd.f32 %v3588, %v3675
      %v3794 = vadd.f32 %v3589, %v3680
      %v3795 = vadd.f32 %v3590, %v3683
      %v3796 = vadd.f32 %v3591, %v3688
      %v3797 = vadd.f32 %v3592, %v3691
      %v3798 = vadd.f32 %v3593, %v3696
      %v3799 = vadd.f32 %v3594, %v3699
      %v3800 = vadd.f32 %v3595, %v3704
      %v3801 = vadd.f32 %v3596, %v3707
      %v3802 = vadd.f32 %v3597, %v3712
      %v3803 = vadd.f32 %v3598, %v3715
      %v3804 = vadd.f32 %v3599, %v3720
      %v3805 = vadd.f32 %v3600, %v3723
      %v3806 = vadd.f32 %v3601, %v3728
      %v3807 = vadd.f32 %v3602, %v3731
      %v3808 = vadd.f32 %v3603, %v3736
      %v3809 = vadd.f32 %v3604, %v3739
      %v3810 = vadd.f32 %v3605, %v3744
      %v3811 = vadd.f32 %v3606, %v3747
      %v3812 = vadd.f32 %v3607, %v3752
      %v3813 = vadd.f32 %v3608, %v3755
      %v3814 = vadd.f32 %v3609, %v3760
      %v3815 = vadd.f32 %v3610, %v3763
      %v3816 = vadd.f32 %v3611, %v3768
      %v3817 = vadd.f32 %v3612, %v3771
      %v3818 = vadd.f32 %v3613, %v3776
      %v3819 = vadd.f32 %v3614, %v3779
      %v3820 = vadd.f32 %v3615, %v3784
      %v3821 = vadd.f32 %v3616, %v3787
      %v3822 = vshrl.u32 %v2040, 16
      %v3824 = vshll.u32 %v2040, 16
      %v3826 = vrot.slane %v3824, 1
      %v3827 = vor.u32 %v3822, %v3826
      %v3829 = vshll.u32 %v2041, 16
      %v3831 = vrot.slane %v3829, 1
      %v3832 = vsel %vm2044, %v3827, %v3831
      %s3833 = scalar_lea.vmem %s1, 56
      %v3834 = vld [vmem:[%s3833] sm:$0xf]
      %v3835 = vld [vmem:[%s3833 + $0x4] sm:$0xf]
      %v3838 = vunpack.c.l.b16 %v3834
      %v3839 = vunpack.c.l.b16 %v3835
      %v3840 = vpack.c.b16 %v3839, %v3838
      %v3843 = vsel %vm2246, %v3832, 0
      %3845 = vmatprep.subr.bf16.mxu0 0
      %3846 = vmatpush1.bf16.msra.mxu0 0
      %3847 = vmatprep.subr.bf16.mxu0 0
      %3848 = vmatpush1.bf16.msra.mxu0 0
      %3849 = vmatprep.subr.bf16.mxu0 0
      %3850 = vmatpush1.bf16.msra.mxu0 0
      %3851 = vmatprep.subr.bf16.mxu0 0
      %3852 = vmatpush1.bf16.msra.mxu0 0
      %3853 = vmatprep.subr.bf16.mxu0 0
      %3854 = vmatpush1.bf16.msra.mxu0 0
      %3855 = vmatprep.subr.bf16.mxu0 0
      %3856 = vmatpush1.bf16.msra.mxu0 0
      %3857 = vmatprep.subr.bf16.mxu0 0
      %3858 = vmatpush1.bf16.msra.mxu0 0
      %3859 = vmatprep.subr.bf16.mxu0 0
      %3860 = vmatpush1.bf16.msra.mxu0 %v3840
      %3861 = vmatprep.subr.bf16.mxu0 0
      %3862 = vmatpush2.bf16.msra.mxu0 0
      %3863 = vmatprep.subr.bf16.mxu0 0
      %3864 = vmatpush2.bf16.msra.mxu0 0
      %3865 = vmatprep.subr.bf16.mxu0 0
      %3866 = vmatpush2.bf16.msra.mxu0 0
      %3867 = vmatprep.subr.bf16.mxu0 0
      %3868 = vmatpush2.bf16.msra.mxu0 0
      %3869 = vmatprep.subr.bf16.mxu0 0
      %3870 = vmatpush2.bf16.msra.mxu0 0
      %3871 = vmatprep.subr.bf16.mxu0 0
      %3872 = vmatpush2.bf16.msra.mxu0 0
      %3873 = vmatprep.subr.bf16.mxu0 0
      %3874 = vmatpush2.bf16.msra.mxu0 0
      %3875 = vmatprep.subr.bf16.mxu0 0
      %3876 = vmatpush2.bf16.msra.mxu0 0
      %3877 = vmatprep.mubr.bf16.mxu0 0
      %3878 = vmatmul.mubr.bf16.gmra.mxu0 %v2254
      %v3879 = vpop.f32.mrf.mxu0
      %v3880 = vadd.f32 0.0, %v3879
      %v3881 = vpop.f32.mrf.mxu0
      %v3882 = vpop.f32.mrf.mxu0
      %v3883 = vadd.f32 0.0, %v3882
      %v3884 = vpop.f32.mrf.mxu0
      %3885 = vmatprep.mubr.bf16.mxu0 0
      %3886 = vmatmul.mubr.bf16.gmra.mxu0 %v2257
      %v3887 = vpop.f32.mrf.mxu0
      %v3888 = vadd.f32 0.0, %v3887
      %v3889 = vpop.f32.mrf.mxu0
      %v3890 = vpop.f32.mrf.mxu0
      %v3891 = vadd.f32 0.0, %v3890
      %v3892 = vpop.f32.mrf.mxu0
      %3893 = vmatprep.mubr.bf16.mxu0 0
      %3894 = vmatmul.mubr.bf16.gmra.mxu0 %v2260
      %v3895 = vpop.f32.mrf.mxu0
      %v3896 = vadd.f32 0.0, %v3895
      %v3897 = vpop.f32.mrf.mxu0
      %v3898 = vpop.f32.mrf.mxu0
      %v3899 = vadd.f32 0.0, %v3898
      %v3900 = vpop.f32.mrf.mxu0
      %3901 = vmatprep.mubr.bf16.mxu0 0
      %3902 = vmatmul.mubr.bf16.gmra.mxu0 %v2263
      %v3903 = vpop.f32.mrf.mxu0
      %v3904 = vadd.f32 0.0, %v3903
      %v3905 = vpop.f32.mrf.mxu0
      %v3906 = vpop.f32.mrf.mxu0
      %v3907 = vadd.f32 0.0, %v3906
      %v3908 = vpop.f32.mrf.mxu0
      %3909 = vmatprep.mubr.bf16.mxu0 0
      %3910 = vmatmul.mubr.bf16.gmra.mxu0 %v2266
      %v3911 = vpop.f32.mrf.mxu0
      %v3912 = vadd.f32 0.0, %v3911
      %v3913 = vpop.f32.mrf.mxu0
      %v3914 = vpop.f32.mrf.mxu0
      %v3915 = vadd.f32 0.0, %v3914
      %v3916 = vpop.f32.mrf.mxu0
      %3917 = vmatprep.mubr.bf16.mxu0 0
      %3918 = vmatmul.mubr.bf16.gmra.mxu0 %v2269
      %v3919 = vpop.f32.mrf.mxu0
      %v3920 = vadd.f32 0.0, %v3919
      %v3921 = vpop.f32.mrf.mxu0
      %v3922 = vpop.f32.mrf.mxu0
      %v3923 = vadd.f32 0.0, %v3922
      %v3924 = vpop.f32.mrf.mxu0
      %3925 = vmatprep.mubr.bf16.mxu0 0
      %3926 = vmatmul.mubr.bf16.gmra.mxu0 %v2272
      %v3927 = vpop.f32.mrf.mxu0
      %v3928 = vadd.f32 0.0, %v3927
      %v3929 = vpop.f32.mrf.mxu0
      %v3930 = vpop.f32.mrf.mxu0
      %v3931 = vadd.f32 0.0, %v3930
      %v3932 = vpop.f32.mrf.mxu0
      %3933 = vmatprep.mubr.bf16.mxu0 0
      %3934 = vmatmul.mubr.bf16.gmra.mxu0 %v2275
      %v3935 = vpop.f32.mrf.mxu0
      %v3936 = vadd.f32 0.0, %v3935
      %v3937 = vpop.f32.mrf.mxu0
      %v3938 = vpop.f32.mrf.mxu0
      %v3939 = vadd.f32 0.0, %v3938
      %v3940 = vpop.f32.mrf.mxu0
      %3941 = vmatprep.mubr.bf16.mxu0 0
      %3942 = vmatmul.mubr.bf16.gmra.mxu0 %v2278
      %v3943 = vpop.f32.mrf.mxu0
      %v3944 = vadd.f32 0.0, %v3943
      %v3945 = vpop.f32.mrf.mxu0
      %v3946 = vpop.f32.mrf.mxu0
      %v3947 = vadd.f32 0.0, %v3946
      %v3948 = vpop.f32.mrf.mxu0
      %3949 = vmatprep.mubr.bf16.mxu0 0
      %3950 = vmatmul.mubr.bf16.gmra.mxu0 %v2281
      %v3951 = vpop.f32.mrf.mxu0
      %v3952 = vadd.f32 0.0, %v3951
      %v3953 = vpop.f32.mrf.mxu0
      %v3954 = vpop.f32.mrf.mxu0
      %v3955 = vadd.f32 0.0, %v3954
      %v3956 = vpop.f32.mrf.mxu0
      %3957 = vmatprep.mubr.bf16.mxu0 0
      %3958 = vmatmul.mubr.bf16.gmra.mxu0 %v2284
      %v3959 = vpop.f32.mrf.mxu0
      %v3960 = vadd.f32 0.0, %v3959
      %v3961 = vpop.f32.mrf.mxu0
      %v3962 = vpop.f32.mrf.mxu0
      %v3963 = vadd.f32 0.0, %v3962
      %v3964 = vpop.f32.mrf.mxu0
      %3965 = vmatprep.mubr.bf16.mxu0 0
      %3966 = vmatmul.mubr.bf16.gmra.mxu0 %v2287
      %v3967 = vpop.f32.mrf.mxu0
      %v3968 = vadd.f32 0.0, %v3967
      %v3969 = vpop.f32.mrf.mxu0
      %v3970 = vpop.f32.mrf.mxu0
      %v3971 = vadd.f32 0.0, %v3970
      %v3972 = vpop.f32.mrf.mxu0
      %3973 = vmatprep.mubr.bf16.mxu0 0
      %3974 = vmatmul.mubr.bf16.gmra.mxu0 %v2290
      %v3975 = vpop.f32.mrf.mxu0
      %v3976 = vadd.f32 0.0, %v3975
      %v3977 = vpop.f32.mrf.mxu0
      %v3978 = vpop.f32.mrf.mxu0
      %v3979 = vadd.f32 0.0, %v3978
      %v3980 = vpop.f32.mrf.mxu0
      %3981 = vmatprep.mubr.bf16.mxu0 0
      %3982 = vmatmul.mubr.bf16.gmra.mxu0 %v2293
      %v3983 = vpop.f32.mrf.mxu0
      %v3984 = vadd.f32 0.0, %v3983
      %v3985 = vpop.f32.mrf.mxu0
      %v3986 = vpop.f32.mrf.mxu0
      %v3987 = vadd.f32 0.0, %v3986
      %v3988 = vpop.f32.mrf.mxu0
      %3989 = vmatprep.mubr.bf16.mxu0 0
      %3990 = vmatmul.mubr.bf16.gmra.mxu0 %v3212
      %v3991 = vpop.f32.mrf.mxu0
      %v3992 = vadd.f32 0.0, %v3991
      %v3993 = vpop.f32.mrf.mxu0
      %v3994 = vpop.f32.mrf.mxu0
      %v3995 = vadd.f32 0.0, %v3994
      %v3996 = vpop.f32.mrf.mxu0
      %3997 = vmatprep.mubr.bf16.mxu0 0
      %3998 = vmatmul.mubr.bf16.gmra.mxu0 %v3843
      %v3999 = vpop.f32.mrf.mxu0
      %v4000 = vadd.f32 0.0, %v3999
      %v4001 = vpop.f32.mrf.mxu0
      %v4002 = vpop.f32.mrf.mxu0
      %v4003 = vadd.f32 0.0, %v4002
      %v4004 = vpop.f32.mrf.mxu0
      %4005 = vdwg.mxu0
      %v4006 = vadd.f32 %v3790, %v3880
      %v4007 = vadd.f32 %v3791, %v3883
      %v4008 = vadd.f32 %v3792, %v3888
      %v4009 = vadd.f32 %v3793, %v3891
      %v4010 = vadd.f32 %v3794, %v3896
      %v4011 = vadd.f32 %v3795, %v3899
      %v4012 = vadd.f32 %v3796, %v3904
      %v4013 = vadd.f32 %v3797, %v3907
      %v4014 = vadd.f32 %v3798, %v3912
      %v4015 = vadd.f32 %v3799, %v3915
      %v4016 = vadd.f32 %v3800, %v3920
      %v4017 = vadd.f32 %v3801, %v3923
      %v4018 = vadd.f32 %v3802, %v3928
      %v4019 = vadd.f32 %v3803, %v3931
      %v4020 = vadd.f32 %v3804, %v3936
      %v4021 = vadd.f32 %v3805, %v3939
      %v4022 = vadd.f32 %v3806, %v3944
      %v4023 = vadd.f32 %v3807, %v3947
      %v4024 = vadd.f32 %v3808, %v3952
      %v4025 = vadd.f32 %v3809, %v3955
      %v4026 = vadd.f32 %v3810, %v3960
      %v4027 = vadd.f32 %v3811, %v3963
      %v4028 = vadd.f32 %v3812, %v3968
      %v4029 = vadd.f32 %v3813, %v3971
      %v4030 = vadd.f32 %v3814, %v3976
      %v4031 = vadd.f32 %v3815, %v3979
      %v4032 = vadd.f32 %v3816, %v3984
      %v4033 = vadd.f32 %v3817, %v3987
      %v4034 = vadd.f32 %v3818, %v3992
      %v4035 = vadd.f32 %v3819, %v3995
      %v4036 = vadd.f32 %v3820, %v4000
      %v4037 = vadd.f32 %v3821, %v4003
      %v4040 = vrot.slane %v2040, 1
      %v4041 = vrot.slane %v2041, 1
      %v4042 = vsel %vm2687, %v4040, %v4041
      %s4043 = scalar_lea.vmem %s1, 64
      %v4044 = vld [vmem:[%s4043] sm:$0xf]
      %v4045 = vld [vmem:[%s4043 + $0x4] sm:$0xf]
      %v4048 = vunpack.c.l.b16 %v4044
      %v4049 = vunpack.c.l.b16 %v4045
      %v4050 = vpack.c.b16 %v4049, %v4048
      %v4053 = vsel %vm2246, %v4042, 0
      %4055 = vmatprep.subr.bf16.mxu0 0
      %4056 = vmatpush1.bf16.msra.mxu0 0
      %4057 = vmatprep.subr.bf16.mxu0 0
      %4058 = vmatpush1.bf16.msra.mxu0 0
      %4059 = vmatprep.subr.bf16.mxu0 0
      %4060 = vmatpush1.bf16.msra.mxu0 0
      %4061 = vmatprep.subr.bf16.mxu0 0
      %4062 = vmatpush1.bf16.msra.mxu0 0
      %4063 = vmatprep.subr.bf16.mxu0 0
      %4064 = vmatpush1.bf16.msra.mxu0 0
      %4065 = vmatprep.subr.bf16.mxu0 0
      %4066 = vmatpush1.bf16.msra.mxu0 0
      %4067 = vmatprep.subr.bf16.mxu0 0
      %4068 = vmatpush1.bf16.msra.mxu0 0
      %4069 = vmatprep.subr.bf16.mxu0 0
      %4070 = vmatpush1.bf16.msra.mxu0 %v4050
      %4071 = vmatprep.subr.bf16.mxu0 0
      %4072 = vmatpush2.bf16.msra.mxu0 0
      %4073 = vmatprep.subr.bf16.mxu0 0
      %4074 = vmatpush2.bf16.msra.mxu0 0
      %4075 = vmatprep.subr.bf16.mxu0 0
      %4076 = vmatpush2.bf16.msra.mxu0 0
      %4077 = vmatprep.subr.bf16.mxu0 0
      %4078 = vmatpush2.bf16.msra.mxu0 0
      %4079 = vmatprep.subr.bf16.mxu0 0
      %4080 = vmatpush2.bf16.msra.mxu0 0
      %4081 = vmatprep.subr.bf16.mxu0 0
      %4082 = vmatpush2.bf16.msra.mxu0 0
      %4083 = vmatprep.subr.bf16.mxu0 0
      %4084 = vmatpush2.bf16.msra.mxu0 0
      %4085 = vmatprep.subr.bf16.mxu0 0
      %4086 = vmatpush2.bf16.msra.mxu0 0
      %4087 = vmatprep.mubr.bf16.mxu0 0
      %4088 = vmatmul.mubr.bf16.gmra.mxu0 %v2752
      %v4089 = vpop.f32.mrf.mxu0
      %v4090 = vadd.f32 0.0, %v4089
      %v4091 = vpop.f32.mrf.mxu0
      %v4092 = vpop.f32.mrf.mxu0
      %v4093 = vadd.f32 0.0, %v4092
      %v4094 = vpop.f32.mrf.mxu0
      %4095 = vmatprep.mubr.bf16.mxu0 0
      %4096 = vmatmul.mubr.bf16.gmra.mxu0 %v2755
      %v4097 = vpop.f32.mrf.mxu0
      %v4098 = vadd.f32 0.0, %v4097
      %v4099 = vpop.f32.mrf.mxu0
      %v4100 = vpop.f32.mrf.mxu0
      %v4101 = vadd.f32 0.0, %v4100
      %v4102 = vpop.f32.mrf.mxu0
      %4103 = vmatprep.mubr.bf16.mxu0 0
      %4104 = vmatmul.mubr.bf16.gmra.mxu0 %v2758
      %v4105 = vpop.f32.mrf.mxu0
      %v4106 = vadd.f32 0.0, %v4105
      %v4107 = vpop.f32.mrf.mxu0
      %v4108 = vpop.f32.mrf.mxu0
      %v4109 = vadd.f32 0.0, %v4108
      %v4110 = vpop.f32.mrf.mxu0
      %4111 = vmatprep.mubr.bf16.mxu0 0
      %4112 = vmatmul.mubr.bf16.gmra.mxu0 %v2761
      %v4113 = vpop.f32.mrf.mxu0
      %v4114 = vadd.f32 0.0, %v4113
      %v4115 = vpop.f32.mrf.mxu0
      %v4116 = vpop.f32.mrf.mxu0
      %v4117 = vadd.f32 0.0, %v4116
      %v4118 = vpop.f32.mrf.mxu0
      %4119 = vmatprep.mubr.bf16.mxu0 0
      %4120 = vmatmul.mubr.bf16.gmra.mxu0 %v2764
      %v4121 = vpop.f32.mrf.mxu0
      %v4122 = vadd.f32 0.0, %v4121
      %v4123 = vpop.f32.mrf.mxu0
      %v4124 = vpop.f32.mrf.mxu0
      %v4125 = vadd.f32 0.0, %v4124
      %v4126 = vpop.f32.mrf.mxu0
      %4127 = vmatprep.mubr.bf16.mxu0 0
      %4128 = vmatmul.mubr.bf16.gmra.mxu0 %v2767
      %v4129 = vpop.f32.mrf.mxu0
      %v4130 = vadd.f32 0.0, %v4129
      %v4131 = vpop.f32.mrf.mxu0
      %v4132 = vpop.f32.mrf.mxu0
      %v4133 = vadd.f32 0.0, %v4132
      %v4134 = vpop.f32.mrf.mxu0
      %4135 = vmatprep.mubr.bf16.mxu0 0
      %4136 = vmatmul.mubr.bf16.gmra.mxu0 %v2770
      %v4137 = vpop.f32.mrf.mxu0
      %v4138 = vadd.f32 0.0, %v4137
      %v4139 = vpop.f32.mrf.mxu0
      %v4140 = vpop.f32.mrf.mxu0
      %v4141 = vadd.f32 0.0, %v4140
      %v4142 = vpop.f32.mrf.mxu0
      %4143 = vmatprep.mubr.bf16.mxu0 0
      %4144 = vmatmul.mubr.bf16.gmra.mxu0 %v2773
      %v4145 = vpop.f32.mrf.mxu0
      %v4146 = vadd.f32 0.0, %v4145
      %v4147 = vpop.f32.mrf.mxu0
      %v4148 = vpop.f32.mrf.mxu0
      %v4149 = vadd.f32 0.0, %v4148
      %v4150 = vpop.f32.mrf.mxu0
      %4151 = vmatprep.mubr.bf16.mxu0 0
      %4152 = vmatmul.mubr.bf16.gmra.mxu0 %v2776
      %v4153 = vpop.f32.mrf.mxu0
      %v4154 = vadd.f32 0.0, %v4153
      %v4155 = vpop.f32.mrf.mxu0
      %v4156 = vpop.f32.mrf.mxu0
      %v4157 = vadd.f32 0.0, %v4156
      %v4158 = vpop.f32.mrf.mxu0
      %4159 = vmatprep.mubr.bf16.mxu0 0
      %4160 = vmatmul.mubr.bf16.gmra.mxu0 %v2779
      %v4161 = vpop.f32.mrf.mxu0
      %v4162 = vadd.f32 0.0, %v4161
      %v4163 = vpop.f32.mrf.mxu0
      %v4164 = vpop.f32.mrf.mxu0
      %v4165 = vadd.f32 0.0, %v4164
      %v4166 = vpop.f32.mrf.mxu0
      %4167 = vmatprep.mubr.bf16.mxu0 0
      %4168 = vmatmul.mubr.bf16.gmra.mxu0 %v2782
      %v4169 = vpop.f32.mrf.mxu0
      %v4170 = vadd.f32 0.0, %v4169
      %v4171 = vpop.f32.mrf.mxu0
      %v4172 = vpop.f32.mrf.mxu0
      %v4173 = vadd.f32 0.0, %v4172
      %v4174 = vpop.f32.mrf.mxu0
      %4175 = vmatprep.mubr.bf16.mxu0 0
      %4176 = vmatmul.mubr.bf16.gmra.mxu0 %v2785
      %v4177 = vpop.f32.mrf.mxu0
      %v4178 = vadd.f32 0.0, %v4177
      %v4179 = vpop.f32.mrf.mxu0
      %v4180 = vpop.f32.mrf.mxu0
      %v4181 = vadd.f32 0.0, %v4180
      %v4182 = vpop.f32.mrf.mxu0
      %4183 = vmatprep.mubr.bf16.mxu0 0
      %4184 = vmatmul.mubr.bf16.gmra.mxu0 %v2788
      %v4185 = vpop.f32.mrf.mxu0
      %v4186 = vadd.f32 0.0, %v4185
      %v4187 = vpop.f32.mrf.mxu0
      %v4188 = vpop.f32.mrf.mxu0
      %v4189 = vadd.f32 0.0, %v4188
      %v4190 = vpop.f32.mrf.mxu0
      %4191 = vmatprep.mubr.bf16.mxu0 0
      %4192 = vmatmul.mubr.bf16.gmra.mxu0 %v2791
      %v4193 = vpop.f32.mrf.mxu0
      %v4194 = vadd.f32 0.0, %v4193
      %v4195 = vpop.f32.mrf.mxu0
      %v4196 = vpop.f32.mrf.mxu0
      %v4197 = vadd.f32 0.0, %v4196
      %v4198 = vpop.f32.mrf.mxu0
      %4199 = vmatprep.mubr.bf16.mxu0 0
      %4200 = vmatmul.mubr.bf16.gmra.mxu0 %v3422
      %v4201 = vpop.f32.mrf.mxu0
      %v4202 = vadd.f32 0.0, %v4201
      %v4203 = vpop.f32.mrf.mxu0
      %v4204 = vpop.f32.mrf.mxu0
      %v4205 = vadd.f32 0.0, %v4204
      %v4206 = vpop.f32.mrf.mxu0
      %4207 = vmatprep.mubr.bf16.mxu0 0
      %4208 = vmatmul.mubr.bf16.gmra.mxu0 %v4053
      %v4209 = vpop.f32.mrf.mxu0
      %v4210 = vadd.f32 0.0, %v4209
      %v4211 = vpop.f32.mrf.mxu0
      %v4212 = vpop.f32.mrf.mxu0
      %v4213 = vadd.f32 0.0, %v4212
      %v4214 = vpop.f32.mrf.mxu0
      %4215 = vdwg.mxu0
      %v4216 = vadd.f32 %v4006, %v4090
      %v4217 = vadd.f32 %v4007, %v4093
      %v4218 = vadd.f32 %v4008, %v4098
      %v4219 = vadd.f32 %v4009, %v4101
      %v4220 = vadd.f32 %v4010, %v4106
      %v4221 = vadd.f32 %v4011, %v4109
      %v4222 = vadd.f32 %v4012, %v4114
      %v4223 = vadd.f32 %v4013, %v4117
      %v4224 = vadd.f32 %v4014, %v4122
      %v4225 = vadd.f32 %v4015, %v4125
      %v4226 = vadd.f32 %v4016, %v4130
      %v4227 = vadd.f32 %v4017, %v4133
      %v4228 = vadd.f32 %v4018, %v4138
      %v4229 = vadd.f32 %v4019, %v4141
      %v4230 = vadd.f32 %v4020, %v4146
      %v4231 = vadd.f32 %v4021, %v4149
      %v4232 = vadd.f32 %v4022, %v4154
      %v4233 = vadd.f32 %v4023, %v4157
      %v4234 = vadd.f32 %v4024, %v4162
      %v4235 = vadd.f32 %v4025, %v4165
      %v4236 = vadd.f32 %v4026, %v4170
      %v4237 = vadd.f32 %v4027, %v4173
      %v4238 = vadd.f32 %v4028, %v4178
      %v4239 = vadd.f32 %v4029, %v4181
      %v4240 = vadd.f32 %v4030, %v4186
      %v4241 = vadd.f32 %v4031, %v4189
      %v4242 = vadd.f32 %v4032, %v4194
      %v4243 = vadd.f32 %v4033, %v4197
      %v4244 = vadd.f32 %v4034, %v4202
      %v4245 = vadd.f32 %v4035, %v4205
      %v4246 = vadd.f32 %v4036, %v4210
      %v4247 = vadd.f32 %v4037, %v4213
      %v4248 = vld [vmem:[%s2] sm:$0x1]
      %v4250 = vlaneseq
      %v4251 = vshrl.u32 %v4250, 7
      %v4252 = vsub.s32 0, %v4251
      %v4253 = vrot.slane %v4248, %v4252
      %v4255 = vadd.f32 %v4216, %v4253
      %v4256 = vadd.f32 %v4217, %v4253
      %v4257 = vadd.f32 %v4218, %v4253
      %v4258 = vadd.f32 %v4219, %v4253
      %v4259 = vadd.f32 %v4220, %v4253
      %v4260 = vadd.f32 %v4221, %v4253
      %v4261 = vadd.f32 %v4222, %v4253
      %v4262 = vadd.f32 %v4223, %v4253
      %v4263 = vadd.f32 %v4224, %v4253
      %v4264 = vadd.f32 %v4225, %v4253
      %v4265 = vadd.f32 %v4226, %v4253
      %v4266 = vadd.f32 %v4227, %v4253
      %v4267 = vadd.f32 %v4228, %v4253
      %v4268 = vadd.f32 %v4229, %v4253
      %v4269 = vadd.f32 %v4230, %v4253
      %v4270 = vadd.f32 %v4231, %v4253
      %v4271 = vadd.f32 %v4232, %v4253
      %v4272 = vadd.f32 %v4233, %v4253
      %v4273 = vadd.f32 %v4234, %v4253
      %v4274 = vadd.f32 %v4235, %v4253
      %v4275 = vadd.f32 %v4236, %v4253
      %v4276 = vadd.f32 %v4237, %v4253
      %v4277 = vadd.f32 %v4238, %v4253
      %v4278 = vadd.f32 %v4239, %v4253
      %v4279 = vadd.f32 %v4240, %v4253
      %v4280 = vadd.f32 %v4241, %v4253
      %v4281 = vadd.f32 %v4242, %v4253
      %v4282 = vadd.f32 %v4243, %v4253
      %v4283 = vadd.f32 %v4244, %v4253
      %v4284 = vadd.f32 %v4245, %v4253
      %v4285 = vadd.f32 %v4246, %v4253
      %v4286 = vadd.f32 %v4247, %v4253
      %v4287 = vsel %vm2246, %v4255, 0.0
      %v4288 = vsel %vm2246, %v4256, 0.0
      %v4289 = vadd.f32 %v4287, %v4288
      %v4290 = vsel %vm2246, %v4257, 0.0
      %v4291 = vadd.f32 %v4289, %v4290
      %v4292 = vsel %vm2246, %v4258, 0.0
      %v4293 = vadd.f32 %v4291, %v4292
      %v4294 = vsel %vm2246, %v4259, 0.0
      %v4295 = vadd.f32 %v4293, %v4294
      %v4296 = vsel %vm2246, %v4260, 0.0
      %v4297 = vadd.f32 %v4295, %v4296
      %v4298 = vsel %vm2246, %v4261, 0.0
      %v4299 = vadd.f32 %v4297, %v4298
      %v4300 = vsel %vm2246, %v4262, 0.0
      %v4301 = vadd.f32 %v4299, %v4300
      %v4302 = vsel %vm2246, %v4263, 0.0
      %v4303 = vadd.f32 %v4301, %v4302
      %v4304 = vsel %vm2246, %v4264, 0.0
      %v4305 = vadd.f32 %v4303, %v4304
      %v4306 = vsel %vm2246, %v4265, 0.0
      %v4307 = vadd.f32 %v4305, %v4306
      %v4308 = vsel %vm2246, %v4266, 0.0
      %v4309 = vadd.f32 %v4307, %v4308
      %v4310 = vsel %vm2246, %v4267, 0.0
      %v4311 = vadd.f32 %v4309, %v4310
      %v4312 = vsel %vm2246, %v4268, 0.0
      %v4313 = vadd.f32 %v4311, %v4312
      %v4314 = vsel %vm2246, %v4269, 0.0
      %v4315 = vadd.f32 %v4313, %v4314
      %v4316 = vsel %vm2246, %v4270, 0.0
      %v4317 = vadd.f32 %v4315, %v4316
      %v4318 = vsel %vm2246, %v4271, 0.0
      %v4319 = vadd.f32 %v4317, %v4318
      %v4320 = vsel %vm2246, %v4272, 0.0
      %v4321 = vadd.f32 %v4319, %v4320
      %v4322 = vsel %vm2246, %v4273, 0.0
      %v4323 = vadd.f32 %v4321, %v4322
      %v4324 = vsel %vm2246, %v4274, 0.0
      %v4325 = vadd.f32 %v4323, %v4324
      %v4326 = vsel %vm2246, %v4275, 0.0
      %v4327 = vadd.f32 %v4325, %v4326
      %v4328 = vsel %vm2246, %v4276, 0.0
      %v4329 = vadd.f32 %v4327, %v4328
      %v4330 = vsel %vm2246, %v4277, 0.0
      %v4331 = vadd.f32 %v4329, %v4330
      %v4332 = vsel %vm2246, %v4278, 0.0
      %v4333 = vadd.f32 %v4331, %v4332
      %v4334 = vsel %vm2246, %v4279, 0.0
      %v4335 = vadd.f32 %v4333, %v4334
      %v4336 = vsel %vm2246, %v4280, 0.0
      %v4337 = vadd.f32 %v4335, %v4336
      %v4338 = vsel %vm2246, %v4281, 0.0
      %v4339 = vadd.f32 %v4337, %v4338
      %v4340 = vsel %vm2246, %v4282, 0.0
      %v4341 = vadd.f32 %v4339, %v4340
      %v4342 = vsel %vm2246, %v4283, 0.0
      %v4343 = vadd.f32 %v4341, %v4342
      %v4344 = vsel %vm2246, %v4284, 0.0
      %v4345 = vadd.f32 %v4343, %v4344
      %v4346 = vsel %vm2246, %v4285, 0.0
      %v4347 = vadd.f32 %v4345, %v4346
      %v4348 = vsel %vm2246, %v4286, 0.0
      %v4349 = vadd.f32 %v4347, %v4348
      %v4350 = vrot.slane %v4349, 4
      %v4351 = vadd.f32 %v4349, %v4350
      %v4352 = vrot.slane %v4351, 2
      %v4353 = vadd.f32 %v4351, %v4352
      %v4354 = vrot.slane %v4353, 1
      %v4355 = vadd.f32 %v4353, %v4354
      %vm4356 = vcmask 122880
      %4357 = vst.msk [vmem:[%s262] sm:$0x1] %vm4356, %v4355
      %v4358 = vmul.f32 %v4255, %v4255
      %v4359 = vmul.f32 %v4256, %v4256
      %v4360 = vmul.f32 %v4257, %v4257
      %v4361 = vmul.f32 %v4258, %v4258
      %v4362 = vmul.f32 %v4259, %v4259
      %v4363 = vmul.f32 %v4260, %v4260
      %v4364 = vmul.f32 %v4261, %v4261
      %v4365 = vmul.f32 %v4262, %v4262
      %v4366 = vmul.f32 %v4263, %v4263
      %v4367 = vmul.f32 %v4264, %v4264
      %v4368 = vmul.f32 %v4265, %v4265
      %v4369 = vmul.f32 %v4266, %v4266
      %v4370 = vmul.f32 %v4267, %v4267
      %v4371 = vmul.f32 %v4268, %v4268
      %v4372 = vmul.f32 %v4269, %v4269
      %v4373 = vmul.f32 %v4270, %v4270
      %v4374 = vmul.f32 %v4271, %v4271
      %v4375 = vmul.f32 %v4272, %v4272
      %v4376 = vmul.f32 %v4273, %v4273
      %v4377 = vmul.f32 %v4274, %v4274
      %v4378 = vmul.f32 %v4275, %v4275
      %v4379 = vmul.f32 %v4276, %v4276
      %v4380 = vmul.f32 %v4277, %v4277
      %v4381 = vmul.f32 %v4278, %v4278
      %v4382 = vmul.f32 %v4279, %v4279
      %v4383 = vmul.f32 %v4280, %v4280
      %v4384 = vmul.f32 %v4281, %v4281
      %v4385 = vmul.f32 %v4282, %v4282
      %v4386 = vmul.f32 %v4283, %v4283
      %v4387 = vmul.f32 %v4284, %v4284
      %v4388 = vmul.f32 %v4285, %v4285
      %v4389 = vmul.f32 %v4286, %v4286
      %v4390 = vsel %vm2246, %v4358, 0.0
      %v4391 = vsel %vm2246, %v4359, 0.0
      %v4392 = vadd.f32 %v4390, %v4391
      %v4393 = vsel %vm2246, %v4360, 0.0
      %v4394 = vadd.f32 %v4392, %v4393
      %v4395 = vsel %vm2246, %v4361, 0.0
      %v4396 = vadd.f32 %v4394, %v4395
      %v4397 = vsel %vm2246, %v4362, 0.0
      %v4398 = vadd.f32 %v4396, %v4397
      %v4399 = vsel %vm2246, %v4363, 0.0
      %v4400 = vadd.f32 %v4398, %v4399
      %v4401 = vsel %vm2246, %v4364, 0.0
      %v4402 = vadd.f32 %v4400, %v4401
      %v4403 = vsel %vm2246, %v4365, 0.0
      %v4404 = vadd.f32 %v4402, %v4403
      %v4405 = vsel %vm2246, %v4366, 0.0
      %v4406 = vadd.f32 %v4404, %v4405
      %v4407 = vsel %vm2246, %v4367, 0.0
      %v4408 = vadd.f32 %v4406, %v4407
      %v4409 = vsel %vm2246, %v4368, 0.0
      %v4410 = vadd.f32 %v4408, %v4409
      %v4411 = vsel %vm2246, %v4369, 0.0
      %v4412 = vadd.f32 %v4410, %v4411
      %v4413 = vsel %vm2246, %v4370, 0.0
      %v4414 = vadd.f32 %v4412, %v4413
      %v4415 = vsel %vm2246, %v4371, 0.0
      %v4416 = vadd.f32 %v4414, %v4415
      %v4417 = vsel %vm2246, %v4372, 0.0
      %v4418 = vadd.f32 %v4416, %v4417
      %v4419 = vsel %vm2246, %v4373, 0.0
      %v4420 = vadd.f32 %v4418, %v4419
      %v4421 = vsel %vm2246, %v4374, 0.0
      %v4422 = vadd.f32 %v4420, %v4421
      %v4423 = vsel %vm2246, %v4375, 0.0
      %v4424 = vadd.f32 %v4422, %v4423
      %v4425 = vsel %vm2246, %v4376, 0.0
      %v4426 = vadd.f32 %v4424, %v4425
      %v4427 = vsel %vm2246, %v4377, 0.0
      %v4428 = vadd.f32 %v4426, %v4427
      %v4429 = vsel %vm2246, %v4378, 0.0
      %v4430 = vadd.f32 %v4428, %v4429
      %v4431 = vsel %vm2246, %v4379, 0.0
      %v4432 = vadd.f32 %v4430, %v4431
      %v4433 = vsel %vm2246, %v4380, 0.0
      %v4434 = vadd.f32 %v4432, %v4433
      %v4435 = vsel %vm2246, %v4381, 0.0
      %v4436 = vadd.f32 %v4434, %v4435
      %v4437 = vsel %vm2246, %v4382, 0.0
      %v4438 = vadd.f32 %v4436, %v4437
      %v4439 = vsel %vm2246, %v4383, 0.0
      %v4440 = vadd.f32 %v4438, %v4439
      %v4441 = vsel %vm2246, %v4384, 0.0
      %v4442 = vadd.f32 %v4440, %v4441
      %v4443 = vsel %vm2246, %v4385, 0.0
      %v4444 = vadd.f32 %v4442, %v4443
      %v4445 = vsel %vm2246, %v4386, 0.0
      %v4446 = vadd.f32 %v4444, %v4445
      %v4447 = vsel %vm2246, %v4387, 0.0
      %v4448 = vadd.f32 %v4446, %v4447
      %v4449 = vsel %vm2246, %v4388, 0.0
      %v4450 = vadd.f32 %v4448, %v4449
      %v4451 = vsel %vm2246, %v4389, 0.0
      %v4452 = vadd.f32 %v4450, %v4451
      %v4453 = vrot.slane %v4452, 4
      %v4454 = vadd.f32 %v4452, %v4453
      %v4455 = vrot.slane %v4454, 2
      %v4456 = vadd.f32 %v4454, %v4455
      %v4457 = vrot.slane %v4456, 1
      %v4458 = vadd.f32 %v4456, %v4457
      %4459 = vst.msk [vmem:[%s262 + $0x1] sm:$0x1] %vm4356, %v4458
      %v4460 = vpack.c.bf16 %v4256, %v4255
      %v4461 = vpack.c.bf16 %v4258, %v4257
      %v4462 = vpack.c.bf16 %v4260, %v4259
      %v4463 = vpack.c.bf16 %v4262, %v4261
      %v4464 = vpack.c.bf16 %v4264, %v4263
      %v4465 = vpack.c.bf16 %v4266, %v4265
      %v4466 = vpack.c.bf16 %v4268, %v4267
      %v4467 = vpack.c.bf16 %v4270, %v4269
      %v4468 = vpack.c.bf16 %v4272, %v4271
      %v4469 = vpack.c.bf16 %v4274, %v4273
      %v4470 = vpack.c.bf16 %v4276, %v4275
      %v4471 = vpack.c.bf16 %v4278, %v4277
      %v4472 = vpack.c.bf16 %v4280, %v4279
      %v4473 = vpack.c.bf16 %v4282, %v4281
      %v4474 = vpack.c.bf16 %v4284, %v4283
      %v4475 = vpack.c.bf16 %v4286, %v4285
      %v4492 = vunpack.c.l.b16 %v4460
      %v4493 = vunpack.c.h.b16 %v4460
      %v4494 = vunpack.c.l.b16 %v4461
      %v4495 = vunpack.c.h.b16 %v4461
      %v4496 = vunpack.c.l.b16 %v4462
      %v4497 = vunpack.c.h.b16 %v4462
      %v4498 = vunpack.c.l.b16 %v4463
      %v4499 = vunpack.c.h.b16 %v4463
      %v4500 = vunpack.c.l.b16 %v4464
      %v4501 = vunpack.c.h.b16 %v4464
      %v4502 = vunpack.c.l.b16 %v4465
      %v4503 = vunpack.c.h.b16 %v4465
      %v4504 = vunpack.c.l.b16 %v4466
      %v4505 = vunpack.c.h.b16 %v4466
      %v4506 = vunpack.c.l.b16 %v4467
      %v4507 = vunpack.c.h.b16 %v4467
      %v4508 = vunpack.c.l.b16 %v4468
      %v4509 = vunpack.c.h.b16 %v4468
      %v4510 = vunpack.c.l.b16 %v4469
      %v4511 = vunpack.c.h.b16 %v4469
      %v4512 = vunpack.c.l.b16 %v4470
      %v4513 = vunpack.c.h.b16 %v4470
      %v4514 = vunpack.c.l.b16 %v4471
      %v4515 = vunpack.c.h.b16 %v4471
      %v4516 = vunpack.c.l.b16 %v4472
      %v4517 = vunpack.c.h.b16 %v4472
      %v4518 = vunpack.c.l.b16 %v4473
      %v4519 = vunpack.c.h.b16 %v4473
      %v4520 = vunpack.c.l.b16 %v4474
      %v4521 = vunpack.c.h.b16 %v4474
      %v4522 = vunpack.c.l.b16 %v4475
      %v4523 = vunpack.c.h.b16 %v4475
      %v4524 = vpack.c.b16 %v4492, %v4492
      %v4525 = vpack.c.b16 %v4493, %v4493
      %v4526 = vpack.c.b16 %v4494, %v4494
      %v4527 = vpack.c.b16 %v4495, %v4495
      %v4528 = vpack.c.b16 %v4496, %v4496
      %v4529 = vpack.c.b16 %v4497, %v4497
      %v4530 = vpack.c.b16 %v4498, %v4498
      %v4531 = vpack.c.b16 %v4499, %v4499
      %v4532 = vpack.c.b16 %v4500, %v4500
      %v4533 = vpack.c.b16 %v4501, %v4501
      %v4534 = vpack.c.b16 %v4502, %v4502
      %v4535 = vpack.c.b16 %v4503, %v4503
      %v4536 = vpack.c.b16 %v4504, %v4504
      %v4537 = vpack.c.b16 %v4505, %v4505
      %v4538 = vpack.c.b16 %v4506, %v4506
      %v4539 = vpack.c.b16 %v4507, %v4507
      %v4540 = vpack.c.b16 %v4508, %v4508
      %v4541 = vpack.c.b16 %v4509, %v4509
      %v4542 = vpack.c.b16 %v4510, %v4510
      %v4543 = vpack.c.b16 %v4511, %v4511
      %v4544 = vpack.c.b16 %v4512, %v4512
      %v4545 = vpack.c.b16 %v4513, %v4513
      %v4546 = vpack.c.b16 %v4514, %v4514
      %v4547 = vpack.c.b16 %v4515, %v4515
      %v4548 = vpack.c.b16 %v4516, %v4516
      %v4549 = vpack.c.b16 %v4517, %v4517
      %v4550 = vpack.c.b16 %v4518, %v4518
      %v4551 = vpack.c.b16 %v4519, %v4519
      %v4552 = vpack.c.b16 %v4520, %v4520
      %v4553 = vpack.c.b16 %v4521, %v4521
      %v4554 = vpack.c.b16 %v4522, %v4522
      %v4555 = vpack.c.b16 %v4523, %v4523
      %vm4588 = vcmask 125952
      %4589 = vst.msk [vmem:[%s258] sm:$0xf] %vm4588, %v4524
      %4590 = vst.msk [vmem:[%s258 + $0x4] sm:$0xf] %vm4588, %v4525
      %4591 = vst.msk [vmem:[%s258 + $0x8] sm:$0xf] %vm4588, %v4526
      %4592 = vst.msk [vmem:[%s258 + $0xc] sm:$0xf] %vm4588, %v4527
      %4593 = vst.msk [vmem:[%s258 + $0x10] sm:$0xf] %vm4588, %v4528
      %4594 = vst.msk [vmem:[%s258 + $0x14] sm:$0xf] %vm4588, %v4529
      %4595 = vst.msk [vmem:[%s258 + $0x18] sm:$0xf] %vm4588, %v4530
      %4596 = vst.msk [vmem:[%s258 + $0x1c] sm:$0xf] %vm4588, %v4531
      %4597 = vst.msk [vmem:[%s258 + $0x20] sm:$0xf] %vm4588, %v4532
      %4598 = vst.msk [vmem:[%s258 + $0x24] sm:$0xf] %vm4588, %v4533
      %4599 = vst.msk [vmem:[%s258 + $0x28] sm:$0xf] %vm4588, %v4534
      %4600 = vst.msk [vmem:[%s258 + $0x2c] sm:$0xf] %vm4588, %v4535
      %4601 = vst.msk [vmem:[%s258 + $0x30] sm:$0xf] %vm4588, %v4536
      %4602 = vst.msk [vmem:[%s258 + $0x34] sm:$0xf] %vm4588, %v4537
      %4603 = vst.msk [vmem:[%s258 + $0x38] sm:$0xf] %vm4588, %v4538
      %4604 = vst.msk [vmem:[%s258 + $0x3c] sm:$0xf] %vm4588, %v4539
      %4605 = vst.msk [vmem:[%s258 + $0x40] sm:$0xf] %vm4588, %v4540
      %4606 = vst.msk [vmem:[%s258 + $0x44] sm:$0xf] %vm4588, %v4541
      %4607 = vst.msk [vmem:[%s258 + $0x48] sm:$0xf] %vm4588, %v4542
      %4608 = vst.msk [vmem:[%s258 + $0x4c] sm:$0xf] %vm4588, %v4543
      %4609 = vst.msk [vmem:[%s258 + $0x50] sm:$0xf] %vm4588, %v4544
      %4610 = vst.msk [vmem:[%s258 + $0x54] sm:$0xf] %vm4588, %v4545
      %4611 = vst.msk [vmem:[%s258 + $0x58] sm:$0xf] %vm4588, %v4546
      %4612 = vst.msk [vmem:[%s258 + $0x5c] sm:$0xf] %vm4588, %v4547
      %4613 = vst.msk [vmem:[%s258 + $0x60] sm:$0xf] %vm4588, %v4548
      %4614 = vst.msk [vmem:[%s258 + $0x64] sm:$0xf] %vm4588, %v4549
      %4615 = vst.msk [vmem:[%s258 + $0x68] sm:$0xf] %vm4588, %v4550
      %4616 = vst.msk [vmem:[%s258 + $0x6c] sm:$0xf] %vm4588, %v4551
      %4617 = vst.msk [vmem:[%s258 + $0x70] sm:$0xf] %vm4588, %v4552
      %4618 = vst.msk [vmem:[%s258 + $0x74] sm:$0xf] %vm4588, %v4553
      %4619 = vst.msk [vmem:[%s258 + $0x78] sm:$0xf] %vm4588, %v4554
      %4620 = vst.msk [vmem:[%s258 + $0x7c] sm:$0xf] %vm4588, %v4555
      %p4621 = scmp.lt.s32.totalorder %s18, 1
      %s4622 = scalar_select %p4621, %s18, 1
      %s4623 = smul.addr %s4622, 32
      %s4624 = smul.addr %s4623, 4
      %s4625 = scalar_lea.vmem %s5, %s4624
      %p4626 = scmp.lt.s32.totalorder %s18, 1
      %s4627 = scalar_select %p4626, %s18, 1
      %s4628 = smul.addr %s4627, 2
      %s4629 = scalar_lea.vmem %s6, %s4628
      // Predicated region
      $region41: #{up_forward.6} parent=39 // pred_check
        %p4630 = pneg %p146
      $region42: #{up_forward.6} parent=39 // pred_check_branch
        %4632 = sbr.rel (%p4630) target = $region44
      $region43: #{up_forward.6} parent=39 // pred_region
        _
      $region44: #{up_forward.6} parent=39 // pred_fallthru
        _
      // Predicated region
      $region45: #{up_forward.6} parent=39 // pred_check
        %p4633 = pneg %p172
      $region46: #{up_forward.6} parent=39 // pred_check_branch
        %4635 = sbr.rel (%p4633) target = $region48
      $region47: #{up_forward.6} parent=39 // pred_region
        _
      $region48: #{up_forward.6} parent=39 // pred_fallthru
        _
    $region40: #{up_forward.6} parent=5 // pred_fallthru
      _
    %p4636 = scmp.le.s32.totalorder 2, %s13
    // Predicated region
    $region49: #{up_forward.6} parent=5 // pred_check
      %p4637 = pneg %p4636
    $region50: #{up_forward.6} parent=5 // pred_check_branch
      %4639 = sbr.rel (%p4637) target = $region52
    $region51: #{up_forward.6} parent=5 // pred_region
      %s4640 = ssub.s32 %s13, 2
      // Predicated region
      $region53: #{up_forward.6} parent=51 // pred_check
        %p4641 = pneg %p152
      $region54: #{up_forward.6} parent=51 // pred_check_branch
        %4643 = sbr.rel (%p4641) target = $region56
      $region55: #{up_forward.6} parent=51 // pred_region
        %p4644 = scmp.lt.s32.totalorder %s19, 1
        %s4645 = scalar_select %p4644, %s19, 1
        %s4646 = smul.addr %s4645, 32
        %s4647 = smul.addr %s4646, 4
        %s4648 = scalar_lea.vmem %s5, %s4647
      $region56: #{up_forward.6} parent=51 // pred_fallthru
        _
      // Predicated region
      $region57: #{up_forward.6} parent=51 // pred_check
        %p4649 = pneg %p178
      $region58: #{up_forward.6} parent=51 // pred_check_branch
        %4651 = sbr.rel (%p4649) target = $region60
      $region59: #{up_forward.6} parent=51 // pred_region
        %p4652 = scmp.lt.s32.totalorder %s19, 1
        %s4653 = scalar_select %p4652, %s19, 1
        %s4654 = smul.addr %s4653, 2
        %s4655 = scalar_lea.vmem %s6, %s4654
      $region60: #{up_forward.6} parent=51 // pred_fallthru
        _
    $region52: #{up_forward.6} parent=5 // pred_fallthru
      _
  $region6: #{up_forward.6} parent=0 // loop_footer
    %s17 = sadd.s32 1, %s13
  $region7: #{up_forward.6} parent=0 // loop_footer_branch
    %12 = sbr.rel target = $region3
  $region8: #{up_forward.6} parent=0 // loop_exit
    _

</llo_original>
